<compile_context>
chip_gen: v7x
topology: tpu7x:2x2x1
jax: 0.10.0
libtpu: 0.0.40
codegen_flags: <defaults>
</compile_context>

<pallas_src>
import numpy as np
import jax
import jax.numpy as jnp
from jax import lax
from jax.experimental import pallas as pl
from jax.experimental.pallas import tpu as pltpu

# ----------------------------- hyper-parameters (from gtnet.__init__) --------
NUM_NODES   = 8
SEQ_IN_LEN  = 15
LAYERS      = 3
KERNEL_SIZE = 6
CONV_CH     = 16       # conv_channels
RES_CH      = 16       # residual_channels
SKIP_CH     = 32       # skip_channels
END_CH      = 64       # end_channels
KERNEL_SET  = [2, 3, 4, 6]
RECEPTIVE_FIELD = LAYERS * (KERNEL_SIZE - 1) + 1            # 16
T0 = max(SEQ_IN_LEN, RECEPTIVE_FIELD)                       # padded input length = 16
N  = NUM_NODES
T_IN  = [T0 - l * (KERNEL_SIZE - 1) for l in range(LAYERS)]       # [16, 11, 6]
T_OUT = [t - (KERNEL_SIZE - 1) for t in T_IN]                     # [11, 6, 1]
EPS = 1e-5

BT       = 16                           # batch elements folded per grid step
ROWS     = BT * N                       # 128 rows (sublane dim) per step
LANE_IN  = T0 * RES_CH                  # 256 lanes of the layer-0 activation
LANE_MAX = T_OUT[0] * CONV_CH           # 176 lanes (widest layer output)
GATE_OFF = 256                          # gate columns start at a 128-multiple
FG_COLS  = GATE_OFF + LANE_MAX          # 432 (filter block || pad || gate block)


# ----------------------------------- kernel ----------------------------------
def gtnet_kernel(inp_ref,
                 sconv_w_ref, sconv_b_ref,
                 skip0_w_ref, skip0_b_ref,
                 fg_w_ref, fg_b_ref,
                 skip_w_ref, skip_b_ref,
                 mix_ref,
                 gcn_w_ref, gcn_b_ref,
                 norm_w_ref, norm_b_ref,
                 skipE_w_ref, skipE_b_ref,
                 end1_w_ref, end1_b_ref,
                 end2_w_ref, end2_b_ref,
                 out_ref):
    f32 = jnp.float32
    inp = inp_ref[...]                                           # (ROWS, T0)

    # start_conv (1x1, 1 -> RES_CH): expansion matmul straight into nt layout
    x = (jnp.dot(inp, sconv_w_ref[...], preferred_element_type=f32)
         + sconv_b_ref[...])                                     # (ROWS, 256)

    # skip0: conv spanning the whole (padded) time axis, 1 -> SKIP_CH
    skip = (jnp.dot(inp, skip0_w_ref[...], preferred_element_type=f32)
            + skip0_b_ref[...])                                  # (ROWS, 32)

    abd = mix_ref[0]        # kron(I_BT, Ahat)        (ROWS, ROWS) node mixing
    bsum = mix_ref[1]       # kron(I_BT, ones(N, N))  (ROWS, ROWS) per-sample row sum

    t_cur = T0
    for l in range(LAYERS):
        t_out = t_cur - (KERNEL_SIZE - 1)
        lin, lout = t_cur * RES_CH, t_out * CONV_CH
        residual = x                                             # (ROWS, lin)

        # fused dilated-inception filter || gate : ONE banded matmul per layer
        fg = (jnp.dot(x, fg_w_ref[l, :lin, :], preferred_element_type=f32)
              + fg_b_ref[l])                                     # (ROWS, 432)
        filt = jnp.tanh(fg[:, :lout])
        gate = jax.nn.sigmoid(fg[:, GATE_OFF:GATE_OFF + lout])
        x = filt * gate                                          # (ROWS, lout)

        # skip conv (kernel spans the remaining time axis): one contraction
        skip = (skip + jnp.dot(x, skip_w_ref[l, :lout, :], preferred_element_type=f32)
                + skip_b_ref[l])                                 # (ROWS, 32)

        # GCN: node mixing (block-diag Ahat over the batch fold) + channel linear
        xg = jnp.dot(abd, x, preferred_element_type=f32)         # (ROWS, lout)
        x = (jnp.dot(xg, gcn_w_ref[l, :lout, :lout], preferred_element_type=f32)
             + gcn_b_ref[l, :, :lout])

        # residual connection on the last t_out timesteps
        x = x + residual[:, (t_cur - t_out) * RES_CH:]

        # LayerNorm over (C, N, T) per batch element (pure 2-D): both statistics
        # gathered with a single block-sum matmul against a 2-column RHS.
        inv_cnt = 1.0 / float(N * lout)
        stats = jnp.concatenate(
            [jnp.sum(x, axis=1, keepdims=True),
             jnp.sum(x * x, axis=1, keepdims=True)], axis=1)     # (ROWS, 2)
        g = jnp.dot(bsum, stats, preferred_element_type=f32) * inv_cnt
        mu = g[:, 0:1]
        var = jnp.maximum(g[:, 1:2] - mu * mu, 0.0)
        x = (x - mu) * lax.rsqrt(var + EPS)
        x = x * norm_w_ref[l, :, :lout] + norm_b_ref[l, :, :lout]

        t_cur = t_out

    # skipE (1x1 conv, T == 1 here) + output head
    skip = (skip + jnp.dot(x, skipE_w_ref[...], preferred_element_type=f32)
            + skipE_b_ref[...])                                  # (ROWS, 32)
    h = jnp.maximum(skip, 0.0)
    h = jnp.maximum(jnp.dot(h, end1_w_ref[...], preferred_element_type=f32)
                    + end1_b_ref[...], 0.0)                      # (ROWS, 64)
    y = jnp.dot(h, end2_w_ref[...], preferred_element_type=f32) + end2_b_ref[...]
    out_ref[...] = y                                             # (ROWS, 1)


# ----------------------------------- wrapper ---------------------------------
def gtnet_forward(inp_nchw, params):
    B = inp_nchw.shape[0]
    assert inp_nchw.shape == (B, 1, NUM_NODES, SEQ_IN_LEN), \
        "input sequence length not equal to preset sequence length"
    pad_t = RECEPTIVE_FIELD - SEQ_IN_LEN
    xpad = jnp.pad(inp_nchw, ((0, 0), (0, 0), (0, 0), (pad_t, 0)))   # left-pad time
    b_pad = ((B + BT - 1) // BT) * BT
    if b_pad != B:
        xpad = jnp.pad(xpad, ((0, b_pad - B), (0, 0), (0, 0), (0, 0)))
    inp2d = xpad[:, 0].reshape(b_pad * N, T0)                    # row = b*N + n, lane = t

    param_list = list(params)
    assert param_list[8].shape == (2, ROWS, ROWS)                # mixing matrices match BT

    def const_spec(arr):
        nd = arr.ndim
        return pl.BlockSpec(arr.shape, lambda b, _n=nd: (0,) * _n)

    in_specs = ([pl.BlockSpec((ROWS, T0), lambda b: (b, 0))]
                + [const_spec(p) for p in param_list])

    out = pl.pallas_call(
        gtnet_kernel,
        out_shape=jax.ShapeDtypeStruct((b_pad * N, 1), jnp.float32),
        grid_spec=pltpu.PrefetchScalarGridSpec(
            num_scalar_prefetch=0,
            grid=(b_pad // BT,),
            in_specs=in_specs,
            out_specs=pl.BlockSpec((ROWS, 1), lambda b: (b, 0)),
        ),
        compiler_params=pltpu.CompilerParams(
            dimension_semantics=("parallel",)),   # batch steps shard across v7x's 2 TCs
    )(inp2d, *param_list)

    out = out.reshape(b_pad, N)[:B]
    return out[:, None, :, None]                                 # torch NCHW: (B, 1, N, 1)


# --------------------------- deterministic parameters ------------------------
def init_params(key):
    ks = list(jax.random.split(key, 32))

    def rnd(shape, scale=0.2):
        return np.asarray(scale * jax.random.normal(ks.pop(), shape, jnp.float32))

    # ---- base (torch-like) parameters ---------------------------------------
    start_w = rnd((RES_CH,))
    start_b = rnd((RES_CH,))
    skip0_w = rnd((T0, SKIP_CH))
    skip0_b = rnd((1, SKIP_CH))

    # dilated_inception tap mask: branch j (kernel k) uses taps [6-k, 6)
    branch = CONV_CH // len(KERNEL_SET)
    mask = np.zeros((1, KERNEL_SIZE, RES_CH, CONV_CH), np.float32)
    for j, kk in enumerate(KERNEL_SET):
        mask[0, KERNEL_SIZE - kk:, :, j * branch:(j + 1) * branch] = 1.0

    filt_w = rnd((LAYERS, KERNEL_SIZE, RES_CH, CONV_CH)) * mask
    filt_b = rnd((LAYERS, CONV_CH))
    gate_w = rnd((LAYERS, KERNEL_SIZE, RES_CH, CONV_CH)) * mask
    gate_b = rnd((LAYERS, CONV_CH))

    gcn_w = rnd((LAYERS, CONV_CH, RES_CH))
    gcn_b = rnd((LAYERS, RES_CH))

    skip_tap_w = rnd((LAYERS, T_OUT[0], CONV_CH, SKIP_CH))
    skip_b = rnd((LAYERS, 1, SKIP_CH))

    skipE_w = rnd((RES_CH, SKIP_CH))
    skipE_b = rnd((1, SKIP_CH))
    end1_w = rnd((SKIP_CH, END_CH))
    end1_b = rnd((1, END_CH))
    end2_w = rnd((END_CH, 1))
    end2_b = rnd((1, 1))

    # graph: bidirectional ring with deterministic weights -> normalized adjacency
    src = np.arange(N)
    dst = (src + 1) % N
    edge_index = np.stack([np.concatenate([src, dst]), np.concatenate([dst, src])])
    edge_weight = np.asarray(
        jax.random.uniform(ks.pop(), (edge_index.shape[1],), jnp.float32, 0.5, 1.5))
    A = np.zeros((N, N), np.float64)
    A[edge_index[1], edge_index[0]] = edge_weight                # A[dst, src]
    A_t = A + np.eye(N)                                          # self loops
    dinv = 1.0 / np.sqrt(A_t.sum(axis=1))
    Ahat = ((dinv[:, None] * A_t) * dinv[None, :]).astype(np.float32)

    # ---- pack into nt-layout (row = bt*N + n, lane = t*C + c) slabs ----------
    # start_conv expansion: S[t, t*C + c] = start_w[c]
    sconv_w = np.zeros((T0, LANE_IN), np.float32)
    for t in range(T0):
        sconv_w[t, t * RES_CH:(t + 1) * RES_CH] = start_w
    sconv_b = np.tile(start_b, T0)[None, :]                      # (1, 256)

    # fused inception (filter || gate), banded over time
    fg_w = np.zeros((LAYERS, LANE_IN, FG_COLS), np.float32)
    fg_b = np.zeros((LAYERS, 1, FG_COLS), np.float32)
    for l in range(LAYERS):
        t_out = T_OUT[l]
        for t in range(t_out):
            for d in range(KERNEL_SIZE):
                s = t + d
                fg_w[l, s * RES_CH:(s + 1) * RES_CH,
                     t * CONV_CH:(t + 1) * CONV_CH] = filt_w[l, d]
                fg_w[l, s * RES_CH:(s + 1) * RES_CH,
                     GATE_OFF + t * CONV_CH:GATE_OFF + (t + 1) * CONV_CH] = gate_w[l, d]
            fg_b[l, 0, t * CONV_CH:(t + 1) * CONV_CH] = filt_b[l]
            fg_b[l, 0, GATE_OFF + t * CONV_CH:GATE_OFF + (t + 1) * CONV_CH] = gate_b[l]

    # skip conv as a single contraction over (time, channel)
    skp_w = np.zeros((LAYERS, LANE_MAX, SKIP_CH), np.float32)
    for l in range(LAYERS):
        for t in range(T_OUT[l]):
            skp_w[l, t * CONV_CH:(t + 1) * CONV_CH, :] = skip_tap_w[l, t]

    # GCN: channel linear as kron(I_t, W); node mix / layernorm-sum as ROWSxROWS mixers
    gcnk_w = np.zeros((LAYERS, LANE_MAX, LANE_MAX), np.float32)
    gcnk_b = np.zeros((LAYERS, 1, LANE_MAX), np.float32)
    for l in range(LAYERS):
        lo = T_OUT[l] * RES_CH
        gcnk_w[l, :lo, :lo] = np.kron(np.eye(T_OUT[l], dtype=np.float32), gcn_w[l])
        gcnk_b[l, 0, :lo] = np.tile(gcn_b[l], T_OUT[l])
    abd = np.kron(np.eye(BT), Ahat).astype(np.float32)           # (ROWS, ROWS)
    bsum = np.kron(np.eye(BT), np.ones((N, N))).astype(np.float32)
    mixR = np.stack([abd, bsum]).astype(np.float32)              # (2, ROWS, ROWS)

    # LayerNorm affine: torch (C, N, T) -> nt layout (N, T*C), tiled over the batch fold
    norm_w = np.zeros((LAYERS, ROWS, LANE_MAX), np.float32)
    norm_b = np.zeros((LAYERS, ROWS, LANE_MAX), np.float32)
    for l in range(LAYERS):
        to = T_OUT[l]
        w = 1.0 + rnd((RES_CH, N, to), 0.05)
        b = rnd((RES_CH, N, to), 0.05)
        w_nt = np.transpose(w, (1, 2, 0)).reshape(N, to * RES_CH)
        b_nt = np.transpose(b, (1, 2, 0)).reshape(N, to * RES_CH)
        norm_w[l, :, :to * RES_CH] = np.tile(w_nt, (BT, 1))
        norm_b[l, :, :to * RES_CH] = np.tile(b_nt, (BT, 1))

    packed = (sconv_w, sconv_b, skip0_w, skip0_b,
              fg_w, fg_b, skp_w, skip_b,
              mixR, gcnk_w, gcnk_b, norm_w, norm_b,
              skipE_w, skipE_b, end1_w, end1_b, end2_w, end2_b)
    return tuple(jnp.asarray(p) for p in packed)


# ------------------------------------ main ------------------------------------
if __name__ == "__main__":
    key = jax.random.PRNGKey(0)
    kx, kp = jax.random.split(key)
    B = 32
    x = jax.random.normal(kx, (B, 1, NUM_NODES, SEQ_IN_LEN), jnp.float32)
    params = init_params(kp)
    out = gtnet_forward(x, params)
    out = jax.block_until_ready(out)
    assert out.shape == (B, 1, NUM_NODES, 1)
    assert bool(jnp.all(jnp.isfinite(out)))
    print("KERNEL_OK")
</pallas_src>

<mosaic_0001>
module attributes {stable_mosaic.version = 11 : i64} {
  func.func @gtnet_kernel(%arg0: i32, %arg1: memref<128x16xf32, #tpu.memory_space<vmem>>, %arg2: memref<16x256xf32, #tpu.memory_space<vmem>>, %arg3: memref<1x256xf32, #tpu.memory_space<vmem>>, %arg4: memref<16x32xf32, #tpu.memory_space<vmem>>, %arg5: memref<1x32xf32, #tpu.memory_space<vmem>>, %arg6: memref<3x256x432xf32, #tpu.memory_space<vmem>>, %arg7: memref<3x1x432xf32, #tpu.memory_space<vmem>>, %arg8: memref<3x176x32xf32, #tpu.memory_space<vmem>>, %arg9: memref<3x1x32xf32, #tpu.memory_space<vmem>>, %arg10: memref<2x128x128xf32, #tpu.memory_space<vmem>>, %arg11: memref<3x176x176xf32, #tpu.memory_space<vmem>>, %arg12: memref<3x1x176xf32, #tpu.memory_space<vmem>>, %arg13: memref<3x128x176xf32, #tpu.memory_space<vmem>>, %arg14: memref<3x128x176xf32, #tpu.memory_space<vmem>>, %arg15: memref<16x32xf32, #tpu.memory_space<vmem>>, %arg16: memref<1x32xf32, #tpu.memory_space<vmem>>, %arg17: memref<32x64xf32, #tpu.memory_space<vmem>>, %arg18: memref<1x64xf32, #tpu.memory_space<vmem>>, %arg19: memref<64x1xf32, #tpu.memory_space<vmem>>, %arg20: memref<1x1xf32, #tpu.memory_space<vmem>>, %arg21: memref<128x1xf32, #tpu.memory_space<vmem>>) attributes {dimension_semantics = [#tpu.dimension_semantics<parallel>], iteration_bounds = array<i64: 2>, scalar_prefetch = 0 : i64, scratch_operands = 0 : i64, tpu.core_type = #tpu.core_type<tc>, window_params = [{transform_indices = @transform_0, window_bounds = array<i64: 128, 16>}, {pipeline_mode = #tpu.pipeline_mode<synchronous>, transform_indices = @transform_1, window_bounds = array<i64: 16, 256>}, {pipeline_mode = #tpu.pipeline_mode<synchronous>, transform_indices = @transform_2, window_bounds = array<i64: 1, 256>}, {pipeline_mode = #tpu.pipeline_mode<synchronous>, transform_indices = @transform_3, window_bounds = array<i64: 16, 32>}, {pipeline_mode = #tpu.pipeline_mode<synchronous>, transform_indices = @transform_4, window_bounds = array<i64: 1, 32>}, {pipeline_mode = #tpu.pipeline_mode<synchronous>, transform_indices = @transform_5, window_bounds = array<i64: 3, 256, 432>}, {pipeline_mode = #tpu.pipeline_mode<synchronous>, transform_indices = @transform_6, window_bounds = array<i64: 3, 1, 432>}, {pipeline_mode = #tpu.pipeline_mode<synchronous>, transform_indices = @transform_7, window_bounds = array<i64: 3, 176, 32>}, {pipeline_mode = #tpu.pipeline_mode<synchronous>, transform_indices = @transform_8, window_bounds = array<i64: 3, 1, 32>}, {pipeline_mode = #tpu.pipeline_mode<synchronous>, transform_indices = @transform_9, window_bounds = array<i64: 2, 128, 128>}, {pipeline_mode = #tpu.pipeline_mode<synchronous>, transform_indices = @transform_10, window_bounds = array<i64: 3, 176, 176>}, {pipeline_mode = #tpu.pipeline_mode<synchronous>, transform_indices = @transform_11, window_bounds = array<i64: 3, 1, 176>}, {pipeline_mode = #tpu.pipeline_mode<synchronous>, transform_indices = @transform_12, window_bounds = array<i64: 3, 128, 176>}, {pipeline_mode = #tpu.pipeline_mode<synchronous>, transform_indices = @transform_13, window_bounds = array<i64: 3, 128, 176>}, {pipeline_mode = #tpu.pipeline_mode<synchronous>, transform_indices = @transform_14, window_bounds = array<i64: 16, 32>}, {pipeline_mode = #tpu.pipeline_mode<synchronous>, transform_indices = @transform_15, window_bounds = array<i64: 1, 32>}, {pipeline_mode = #tpu.pipeline_mode<synchronous>, transform_indices = @transform_16, window_bounds = array<i64: 32, 64>}, {pipeline_mode = #tpu.pipeline_mode<synchronous>, transform_indices = @transform_17, window_bounds = array<i64: 1, 64>}, {pipeline_mode = #tpu.pipeline_mode<synchronous>, transform_indices = @transform_18, window_bounds = array<i64: 64, 1>}, {pipeline_mode = #tpu.pipeline_mode<synchronous>, transform_indices = @transform_19, window_bounds = array<i64: 1, 1>}, {transform_indices = @transform_20, window_bounds = array<i64: 128, 1>}]} {
    %c0 = arith.constant 0 : index
    %c0_0 = arith.constant 0 : index
    %0 = vector.load %arg1[%c0, %c0_0] : memref<128x16xf32, #tpu.memory_space<vmem>>, vector<128x16xf32>
    %c0_1 = arith.constant 0 : index
    %c0_2 = arith.constant 0 : index
    %1 = vector.load %arg2[%c0_1, %c0_2] : memref<16x256xf32, #tpu.memory_space<vmem>>, vector<16x256xf32>
    %cst = arith.constant dense<0.000000e+00> : vector<128x256xf32>
    %2 = tpu.matmul %0, %1, %cst {dimension_numbers = #tpu.dot_dimension_numbers<[1], [0], [0], [1], [0, 0, 1, 1], [], []>} : vector<128x16xf32>, vector<16x256xf32>, vector<128x256xf32> -> vector<128x256xf32>
    %c0_3 = arith.constant 0 : index
    %c0_4 = arith.constant 0 : index
    %3 = vector.load %arg3[%c0_3, %c0_4] : memref<1x256xf32, #tpu.memory_space<vmem>>, vector<1x256xf32>
    %4 = vector.broadcast %3 : vector<1x256xf32> to vector<128x256xf32>
    %5 = arith.addf %2, %4 : vector<128x256xf32>
    %c0_5 = arith.constant 0 : index
    %c0_6 = arith.constant 0 : index
    %6 = vector.load %arg4[%c0_5, %c0_6] : memref<16x32xf32, #tpu.memory_space<vmem>>, vector<16x32xf32>
    %cst_7 = arith.constant dense<0.000000e+00> : vector<128x32xf32>
    %7 = tpu.matmul %0, %6, %cst_7 {dimension_numbers = #tpu.dot_dimension_numbers<[1], [0], [0], [1], [0, 0, 1, 1], [], []>} : vector<128x16xf32>, vector<16x32xf32>, vector<128x32xf32> -> vector<128x32xf32>
    %c0_8 = arith.constant 0 : index
    %c0_9 = arith.constant 0 : index
    %8 = vector.load %arg5[%c0_8, %c0_9] : memref<1x32xf32, #tpu.memory_space<vmem>>, vector<1x32xf32>
    %9 = vector.broadcast %8 : vector<1x32xf32> to vector<128x32xf32>
    %10 = arith.addf %7, %9 : vector<128x32xf32>
    %c0_10 = arith.constant 0 : index
    %c0_11 = arith.constant 0 : index
    %c0_12 = arith.constant 0 : index
    %11 = vector.load %arg10[%c0_10, %c0_11, %c0_12] : memref<2x128x128xf32, #tpu.memory_space<vmem>>, vector<1x128x128xf32>
    %12 = vector.shape_cast %11 : vector<1x128x128xf32> to vector<128x128xf32>
    %c1 = arith.constant 1 : index
    %c0_13 = arith.constant 0 : index
    %c0_14 = arith.constant 0 : index
    %13 = vector.load %arg10[%c1, %c0_13, %c0_14] : memref<2x128x128xf32, #tpu.memory_space<vmem>>, vector<1x128x128xf32>
    %14 = vector.shape_cast %13 : vector<1x128x128xf32> to vector<128x128xf32>
    %c0_15 = arith.constant 0 : index
    %c0_16 = arith.constant 0 : index
    %c0_17 = arith.constant 0 : index
    %15 = vector.load %arg6[%c0_15, %c0_16, %c0_17] : memref<3x256x432xf32, #tpu.memory_space<vmem>>, vector<1x256x432xf32>
    %16 = vector.shape_cast %15 : vector<1x256x432xf32> to vector<256x432xf32>
    %cst_18 = arith.constant dense<0.000000e+00> : vector<128x432xf32>
    %17 = tpu.matmul %5, %16, %cst_18 {dimension_numbers = #tpu.dot_dimension_numbers<[1], [0], [0], [1], [0, 0, 1, 1], [], []>} : vector<128x256xf32>, vector<256x432xf32>, vector<128x432xf32> -> vector<128x432xf32>
    %c0_19 = arith.constant 0 : index
    %c0_20 = arith.constant 0 : index
    %c0_21 = arith.constant 0 : index
    %18 = vector.load %arg7[%c0_19, %c0_20, %c0_21] : memref<3x1x432xf32, #tpu.memory_space<vmem>>, vector<1x1x432xf32>
    %19 = vector.shape_cast %18 : vector<1x1x432xf32> to vector<1x432xf32>
    %20 = vector.broadcast %19 : vector<1x432xf32> to vector<128x432xf32>
    %21 = arith.addf %17, %20 : vector<128x432xf32>
    %22 = vector.extract_strided_slice %21 {offsets = [0, 0], sizes = [128, 176], strides = [1, 1]} : vector<128x432xf32> to vector<128x176xf32>
    %23 = math.tanh %22 : vector<128x176xf32>
    %24 = vector.extract_strided_slice %21 {offsets = [0, 256], sizes = [128, 176], strides = [1, 1]} : vector<128x432xf32> to vector<128x176xf32>
    %25 = arith.negf %24 : vector<128x176xf32>
    %26 = math.exp %25 : vector<128x176xf32>
    %cst_22 = arith.constant 1.000000e+00 : f32
    %27 = vector.broadcast %cst_22 : f32 to vector<128x176xf32>
    %28 = arith.addf %27, %26 : vector<128x176xf32>
    %29 = arith.divf %27, %28 : vector<128x176xf32>
    %30 = arith.mulf %23, %29 : vector<128x176xf32>
    %c0_23 = arith.constant 0 : index
    %c0_24 = arith.constant 0 : index
    %c0_25 = arith.constant 0 : index
    %31 = vector.load %arg8[%c0_23, %c0_24, %c0_25] : memref<3x176x32xf32, #tpu.memory_space<vmem>>, vector<1x176x32xf32>
    %32 = vector.shape_cast %31 : vector<1x176x32xf32> to vector<176x32xf32>
    %cst_26 = arith.constant dense<0.000000e+00> : vector<128x32xf32>
    %33 = tpu.matmul %30, %32, %cst_26 {dimension_numbers = #tpu.dot_dimension_numbers<[1], [0], [0], [1], [0, 0, 1, 1], [], []>} : vector<128x176xf32>, vector<176x32xf32>, vector<128x32xf32> -> vector<128x32xf32>
    %34 = arith.addf %10, %33 : vector<128x32xf32>
    %c0_27 = arith.constant 0 : index
    %c0_28 = arith.constant 0 : index
    %c0_29 = arith.constant 0 : index
    %35 = vector.load %arg9[%c0_27, %c0_28, %c0_29] : memref<3x1x32xf32, #tpu.memory_space<vmem>>, vector<1x1x32xf32>
    %36 = vector.shape_cast %35 : vector<1x1x32xf32> to vector<1x32xf32>
    %37 = vector.broadcast %36 : vector<1x32xf32> to vector<128x32xf32>
    %38 = arith.addf %34, %37 : vector<128x32xf32>
    %cst_30 = arith.constant dense<0.000000e+00> : vector<128x176xf32>
    %39 = tpu.matmul %12, %30, %cst_30 {dimension_numbers = #tpu.dot_dimension_numbers<[1], [0], [0], [1], [0, 0, 1, 1], [], []>} : vector<128x128xf32>, vector<128x176xf32>, vector<128x176xf32> -> vector<128x176xf32>
    %c0_31 = arith.constant 0 : index
    %c0_32 = arith.constant 0 : index
    %c0_33 = arith.constant 0 : index
    %40 = vector.load %arg11[%c0_31, %c0_32, %c0_33] : memref<3x176x176xf32, #tpu.memory_space<vmem>>, vector<1x176x176xf32>
    %41 = vector.shape_cast %40 : vector<1x176x176xf32> to vector<176x176xf32>
    %cst_34 = arith.constant dense<0.000000e+00> : vector<128x176xf32>
    %42 = tpu.matmul %39, %41, %cst_34 {dimension_numbers = #tpu.dot_dimension_numbers<[1], [0], [0], [1], [0, 0, 1, 1], [], []>} : vector<128x176xf32>, vector<176x176xf32>, vector<128x176xf32> -> vector<128x176xf32>
    %c0_35 = arith.constant 0 : index
    %c0_36 = arith.constant 0 : index
    %c0_37 = arith.constant 0 : index
    %43 = vector.load %arg12[%c0_35, %c0_36, %c0_37] : memref<3x1x176xf32, #tpu.memory_space<vmem>>, vector<1x1x176xf32>
    %44 = vector.shape_cast %43 : vector<1x1x176xf32> to vector<1x176xf32>
    %45 = vector.broadcast %44 : vector<1x176xf32> to vector<128x176xf32>
    %46 = arith.addf %42, %45 : vector<128x176xf32>
    %47 = vector.extract_strided_slice %5 {offsets = [0, 80], sizes = [128, 176], strides = [1, 1]} : vector<128x256xf32> to vector<128x176xf32>
    %48 = arith.addf %46, %47 : vector<128x176xf32>
    %cst_38 = arith.constant dense<0.000000e+00> : vector<128xf32>
    %49 = vector.multi_reduction <add>, %48, %cst_38 [1] : vector<128x176xf32> to vector<128xf32>
    %50 = vector.shape_cast %49 : vector<128xf32> to vector<128x1xf32>
    %51 = arith.mulf %48, %48 : vector<128x176xf32>
    %cst_39 = arith.constant dense<0.000000e+00> : vector<128xf32>
    %52 = vector.multi_reduction <add>, %51, %cst_39 [1] : vector<128x176xf32> to vector<128xf32>
    %53 = vector.shape_cast %52 : vector<128xf32> to vector<128x1xf32>
    %54 = tpu.concatenate %50, %53 in 1 : vector<128x1xf32>, vector<128x1xf32> -> vector<128x2xf32>
    %cst_40 = arith.constant dense<0.000000e+00> : vector<128x2xf32>
    %55 = tpu.matmul %14, %54, %cst_40 {dimension_numbers = #tpu.dot_dimension_numbers<[1], [0], [0], [1], [0, 0, 1, 1], [], []>} : vector<128x128xf32>, vector<128x2xf32>, vector<128x2xf32> -> vector<128x2xf32>
    %cst_41 = arith.constant 7.10227294E-4 : f32
    %56 = vector.broadcast %cst_41 : f32 to vector<128x2xf32>
    %57 = arith.mulf %55, %56 : vector<128x2xf32>
    %58 = vector.extract_strided_slice %57 {offsets = [0, 0], sizes = [128, 1], strides = [1, 1]} : vector<128x2xf32> to vector<128x1xf32>
    %59 = vector.extract_strided_slice %57 {offsets = [0, 1], sizes = [128, 1], strides = [1, 1]} : vector<128x2xf32> to vector<128x1xf32>
    %60 = arith.mulf %58, %58 : vector<128x1xf32>
    %61 = arith.subf %59, %60 : vector<128x1xf32>
    %cst_42 = arith.constant 0.000000e+00 : f32
    %62 = vector.broadcast %cst_42 : f32 to vector<128x1xf32>
    %63 = arith.maximumf %61, %62 : vector<128x1xf32>
    %64 = vector.broadcast %58 : vector<128x1xf32> to vector<128x176xf32>
    %65 = arith.subf %48, %64 : vector<128x176xf32>
    %cst_43 = arith.constant 9.99999974E-6 : f32
    %66 = vector.broadcast %cst_43 : f32 to vector<128x1xf32>
    %67 = arith.addf %63, %66 : vector<128x1xf32>
    %68 = math.rsqrt %67 : vector<128x1xf32>
    %69 = vector.broadcast %68 : vector<128x1xf32> to vector<128x176xf32>
    %70 = arith.mulf %65, %69 : vector<128x176xf32>
    %c0_44 = arith.constant 0 : index
    %c0_45 = arith.constant 0 : index
    %c0_46 = arith.constant 0 : index
    %71 = vector.load %arg13[%c0_44, %c0_45, %c0_46] : memref<3x128x176xf32, #tpu.memory_space<vmem>>, vector<1x128x176xf32>
    %72 = vector.shape_cast %71 : vector<1x128x176xf32> to vector<128x176xf32>
    %73 = arith.mulf %70, %72 : vector<128x176xf32>
    %c0_47 = arith.constant 0 : index
    %c0_48 = arith.constant 0 : index
    %c0_49 = arith.constant 0 : index
    %74 = vector.load %arg14[%c0_47, %c0_48, %c0_49] : memref<3x128x176xf32, #tpu.memory_space<vmem>>, vector<1x128x176xf32>
    %75 = vector.shape_cast %74 : vector<1x128x176xf32> to vector<128x176xf32>
    %76 = arith.addf %73, %75 : vector<128x176xf32>
    %c1_50 = arith.constant 1 : index
    %c0_51 = arith.constant 0 : index
    %c0_52 = arith.constant 0 : index
    %77 = vector.load %arg6[%c1_50, %c0_51, %c0_52] : memref<3x256x432xf32, #tpu.memory_space<vmem>>, vector<1x176x432xf32>
    %78 = vector.shape_cast %77 : vector<1x176x432xf32> to vector<176x432xf32>
    %cst_53 = arith.constant dense<0.000000e+00> : vector<128x432xf32>
    %79 = tpu.matmul %76, %78, %cst_53 {dimension_numbers = #tpu.dot_dimension_numbers<[1], [0], [0], [1], [0, 0, 1, 1], [], []>} : vector<128x176xf32>, vector<176x432xf32>, vector<128x432xf32> -> vector<128x432xf32>
    %c1_54 = arith.constant 1 : index
    %c0_55 = arith.constant 0 : index
    %c0_56 = arith.constant 0 : index
    %80 = vector.load %arg7[%c1_54, %c0_55, %c0_56] : memref<3x1x432xf32, #tpu.memory_space<vmem>>, vector<1x1x432xf32>
    %81 = vector.shape_cast %80 : vector<1x1x432xf32> to vector<1x432xf32>
    %82 = vector.broadcast %81 : vector<1x432xf32> to vector<128x432xf32>
    %83 = arith.addf %79, %82 : vector<128x432xf32>
    %84 = vector.extract_strided_slice %83 {offsets = [0, 0], sizes = [128, 96], strides = [1, 1]} : vector<128x432xf32> to vector<128x96xf32>
    %85 = math.tanh %84 : vector<128x96xf32>
    %86 = vector.extract_strided_slice %83 {offsets = [0, 256], sizes = [128, 96], strides = [1, 1]} : vector<128x432xf32> to vector<128x96xf32>
    %87 = arith.negf %86 : vector<128x96xf32>
    %88 = math.exp %87 : vector<128x96xf32>
    %cst_57 = arith.constant 1.000000e+00 : f32
    %89 = vector.broadcast %cst_57 : f32 to vector<128x96xf32>
    %90 = arith.addf %89, %88 : vector<128x96xf32>
    %91 = arith.divf %89, %90 : vector<128x96xf32>
    %92 = arith.mulf %85, %91 : vector<128x96xf32>
    %c1_58 = arith.constant 1 : index
    %c0_59 = arith.constant 0 : index
    %c0_60 = arith.constant 0 : index
    %93 = vector.load %arg8[%c1_58, %c0_59, %c0_60] : memref<3x176x32xf32, #tpu.memory_space<vmem>>, vector<1x96x32xf32>
    %94 = vector.shape_cast %93 : vector<1x96x32xf32> to vector<96x32xf32>
    %cst_61 = arith.constant dense<0.000000e+00> : vector<128x32xf32>
    %95 = tpu.matmul %92, %94, %cst_61 {dimension_numbers = #tpu.dot_dimension_numbers<[1], [0], [0], [1], [0, 0, 1, 1], [], []>} : vector<128x96xf32>, vector<96x32xf32>, vector<128x32xf32> -> vector<128x32xf32>
    %96 = arith.addf %38, %95 : vector<128x32xf32>
    %c1_62 = arith.constant 1 : index
    %c0_63 = arith.constant 0 : index
    %c0_64 = arith.constant 0 : index
    %97 = vector.load %arg9[%c1_62, %c0_63, %c0_64] : memref<3x1x32xf32, #tpu.memory_space<vmem>>, vector<1x1x32xf32>
    %98 = vector.shape_cast %97 : vector<1x1x32xf32> to vector<1x32xf32>
    %99 = vector.broadcast %98 : vector<1x32xf32> to vector<128x32xf32>
    %100 = arith.addf %96, %99 : vector<128x32xf32>
    %cst_65 = arith.constant dense<0.000000e+00> : vector<128x96xf32>
    %101 = tpu.matmul %12, %92, %cst_65 {dimension_numbers = #tpu.dot_dimension_numbers<[1], [0], [0], [1], [0, 0, 1, 1], [], []>} : vector<128x128xf32>, vector<128x96xf32>, vector<128x96xf32> -> vector<128x96xf32>
    %c1_66 = arith.constant 1 : index
    %c0_67 = arith.constant 0 : index
    %c0_68 = arith.constant 0 : index
    %102 = vector.load %arg11[%c1_66, %c0_67, %c0_68] : memref<3x176x176xf32, #tpu.memory_space<vmem>>, vector<1x96x96xf32>
    %103 = vector.shape_cast %102 : vector<1x96x96xf32> to vector<96x96xf32>
    %cst_69 = arith.constant dense<0.000000e+00> : vector<128x96xf32>
    %104 = tpu.matmul %101, %103, %cst_69 {dimension_numbers = #tpu.dot_dimension_numbers<[1], [0], [0], [1], [0, 0, 1, 1], [], []>} : vector<128x96xf32>, vector<96x96xf32>, vector<128x96xf32> -> vector<128x96xf32>
    %c1_70 = arith.constant 1 : index
    %c0_71 = arith.constant 0 : index
    %c0_72 = arith.constant 0 : index
    %105 = vector.load %arg12[%c1_70, %c0_71, %c0_72] : memref<3x1x176xf32, #tpu.memory_space<vmem>>, vector<1x1x96xf32>
    %106 = vector.shape_cast %105 : vector<1x1x96xf32> to vector<1x96xf32>
    %107 = vector.broadcast %106 : vector<1x96xf32> to vector<128x96xf32>
    %108 = arith.addf %104, %107 : vector<128x96xf32>
    %109 = vector.extract_strided_slice %76 {offsets = [0, 80], sizes = [128, 96], strides = [1, 1]} : vector<128x176xf32> to vector<128x96xf32>
    %110 = arith.addf %108, %109 : vector<128x96xf32>
    %cst_73 = arith.constant dense<0.000000e+00> : vector<128xf32>
    %111 = vector.multi_reduction <add>, %110, %cst_73 [1] : vector<128x96xf32> to vector<128xf32>
    %112 = vector.shape_cast %111 : vector<128xf32> to vector<128x1xf32>
    %113 = arith.mulf %110, %110 : vector<128x96xf32>
    %cst_74 = arith.constant dense<0.000000e+00> : vector<128xf32>
    %114 = vector.multi_reduction <add>, %113, %cst_74 [1] : vector<128x96xf32> to vector<128xf32>
    %115 = vector.shape_cast %114 : vector<128xf32> to vector<128x1xf32>
    %116 = tpu.concatenate %112, %115 in 1 : vector<128x1xf32>, vector<128x1xf32> -> vector<128x2xf32>
    %cst_75 = arith.constant dense<0.000000e+00> : vector<128x2xf32>
    %117 = tpu.matmul %14, %116, %cst_75 {dimension_numbers = #tpu.dot_dimension_numbers<[1], [0], [0], [1], [0, 0, 1, 1], [], []>} : vector<128x128xf32>, vector<128x2xf32>, vector<128x2xf32> -> vector<128x2xf32>
    %cst_76 = arith.constant 0.00130208337 : f32
    %118 = vector.broadcast %cst_76 : f32 to vector<128x2xf32>
    %119 = arith.mulf %117, %118 : vector<128x2xf32>
    %120 = vector.extract_strided_slice %119 {offsets = [0, 0], sizes = [128, 1], strides = [1, 1]} : vector<128x2xf32> to vector<128x1xf32>
    %121 = vector.extract_strided_slice %119 {offsets = [0, 1], sizes = [128, 1], strides = [1, 1]} : vector<128x2xf32> to vector<128x1xf32>
    %122 = arith.mulf %120, %120 : vector<128x1xf32>
    %123 = arith.subf %121, %122 : vector<128x1xf32>
    %cst_77 = arith.constant 0.000000e+00 : f32
    %124 = vector.broadcast %cst_77 : f32 to vector<128x1xf32>
    %125 = arith.maximumf %123, %124 : vector<128x1xf32>
    %126 = vector.broadcast %120 : vector<128x1xf32> to vector<128x96xf32>
    %127 = arith.subf %110, %126 : vector<128x96xf32>
    %cst_78 = arith.constant 9.99999974E-6 : f32
    %128 = vector.broadcast %cst_78 : f32 to vector<128x1xf32>
    %129 = arith.addf %125, %128 : vector<128x1xf32>
    %130 = math.rsqrt %129 : vector<128x1xf32>
    %131 = vector.broadcast %130 : vector<128x1xf32> to vector<128x96xf32>
    %132 = arith.mulf %127, %131 : vector<128x96xf32>
    %c1_79 = arith.constant 1 : index
    %c0_80 = arith.constant 0 : index
    %c0_81 = arith.constant 0 : index
    %133 = vector.load %arg13[%c1_79, %c0_80, %c0_81] : memref<3x128x176xf32, #tpu.memory_space<vmem>>, vector<1x128x96xf32>
    %134 = vector.shape_cast %133 : vector<1x128x96xf32> to vector<128x96xf32>
    %135 = arith.mulf %132, %134 : vector<128x96xf32>
    %c1_82 = arith.constant 1 : index
    %c0_83 = arith.constant 0 : index
    %c0_84 = arith.constant 0 : index
    %136 = vector.load %arg14[%c1_82, %c0_83, %c0_84] : memref<3x128x176xf32, #tpu.memory_space<vmem>>, vector<1x128x96xf32>
    %137 = vector.shape_cast %136 : vector<1x128x96xf32> to vector<128x96xf32>
    %138 = arith.addf %135, %137 : vector<128x96xf32>
    %c2 = arith.constant 2 : index
    %c0_85 = arith.constant 0 : index
    %c0_86 = arith.constant 0 : index
    %139 = vector.load %arg6[%c2, %c0_85, %c0_86] : memref<3x256x432xf32, #tpu.memory_space<vmem>>, vector<1x96x432xf32>
    %140 = vector.shape_cast %139 : vector<1x96x432xf32> to vector<96x432xf32>
    %cst_87 = arith.constant dense<0.000000e+00> : vector<128x432xf32>
    %141 = tpu.matmul %138, %140, %cst_87 {dimension_numbers = #tpu.dot_dimension_numbers<[1], [0], [0], [1], [0, 0, 1, 1], [], []>} : vector<128x96xf32>, vector<96x432xf32>, vector<128x432xf32> -> vector<128x432xf32>
    %c2_88 = arith.constant 2 : index
    %c0_89 = arith.constant 0 : index
    %c0_90 = arith.constant 0 : index
    %142 = vector.load %arg7[%c2_88, %c0_89, %c0_90] : memref<3x1x432xf32, #tpu.memory_space<vmem>>, vector<1x1x432xf32>
    %143 = vector.shape_cast %142 : vector<1x1x432xf32> to vector<1x432xf32>
    %144 = vector.broadcast %143 : vector<1x432xf32> to vector<128x432xf32>
    %145 = arith.addf %141, %144 : vector<128x432xf32>
    %146 = vector.extract_strided_slice %145 {offsets = [0, 0], sizes = [128, 16], strides = [1, 1]} : vector<128x432xf32> to vector<128x16xf32>
    %147 = math.tanh %146 : vector<128x16xf32>
    %148 = vector.extract_strided_slice %145 {offsets = [0, 256], sizes = [128, 16], strides = [1, 1]} : vector<128x432xf32> to vector<128x16xf32>
    %149 = arith.negf %148 : vector<128x16xf32>
    %150 = math.exp %149 : vector<128x16xf32>
    %cst_91 = arith.constant 1.000000e+00 : f32
    %151 = vector.broadcast %cst_91 : f32 to vector<128x16xf32>
    %152 = arith.addf %151, %150 : vector<128x16xf32>
    %153 = arith.divf %151, %152 : vector<128x16xf32>
    %154 = arith.mulf %147, %153 : vector<128x16xf32>
    %c2_92 = arith.constant 2 : index
    %c0_93 = arith.constant 0 : index
    %c0_94 = arith.constant 0 : index
    %155 = vector.load %arg8[%c2_92, %c0_93, %c0_94] : memref<3x176x32xf32, #tpu.memory_space<vmem>>, vector<1x16x32xf32>
    %156 = vector.shape_cast %155 : vector<1x16x32xf32> to vector<16x32xf32>
    %cst_95 = arith.constant dense<0.000000e+00> : vector<128x32xf32>
    %157 = tpu.matmul %154, %156, %cst_95 {dimension_numbers = #tpu.dot_dimension_numbers<[1], [0], [0], [1], [0, 0, 1, 1], [], []>} : vector<128x16xf32>, vector<16x32xf32>, vector<128x32xf32> -> vector<128x32xf32>
    %158 = arith.addf %100, %157 : vector<128x32xf32>
    %c2_96 = arith.constant 2 : index
    %c0_97 = arith.constant 0 : index
    %c0_98 = arith.constant 0 : index
    %159 = vector.load %arg9[%c2_96, %c0_97, %c0_98] : memref<3x1x32xf32, #tpu.memory_space<vmem>>, vector<1x1x32xf32>
    %160 = vector.shape_cast %159 : vector<1x1x32xf32> to vector<1x32xf32>
    %161 = vector.broadcast %160 : vector<1x32xf32> to vector<128x32xf32>
    %162 = arith.addf %158, %161 : vector<128x32xf32>
    %cst_99 = arith.constant dense<0.000000e+00> : vector<128x16xf32>
    %163 = tpu.matmul %12, %154, %cst_99 {dimension_numbers = #tpu.dot_dimension_numbers<[1], [0], [0], [1], [0, 0, 1, 1], [], []>} : vector<128x128xf32>, vector<128x16xf32>, vector<128x16xf32> -> vector<128x16xf32>
    %c2_100 = arith.constant 2 : index
    %c0_101 = arith.constant 0 : index
    %c0_102 = arith.constant 0 : index
    %164 = vector.load %arg11[%c2_100, %c0_101, %c0_102] : memref<3x176x176xf32, #tpu.memory_space<vmem>>, vector<1x16x16xf32>
    %165 = vector.shape_cast %164 : vector<1x16x16xf32> to vector<16x16xf32>
    %cst_103 = arith.constant dense<0.000000e+00> : vector<128x16xf32>
    %166 = tpu.matmul %163, %165, %cst_103 {dimension_numbers = #tpu.dot_dimension_numbers<[1], [0], [0], [1], [0, 0, 1, 1], [], []>} : vector<128x16xf32>, vector<16x16xf32>, vector<128x16xf32> -> vector<128x16xf32>
    %c2_104 = arith.constant 2 : index
    %c0_105 = arith.constant 0 : index
    %c0_106 = arith.constant 0 : index
    %167 = vector.load %arg12[%c2_104, %c0_105, %c0_106] : memref<3x1x176xf32, #tpu.memory_space<vmem>>, vector<1x1x16xf32>
    %168 = vector.shape_cast %167 : vector<1x1x16xf32> to vector<1x16xf32>
    %169 = vector.broadcast %168 : vector<1x16xf32> to vector<128x16xf32>
    %170 = arith.addf %166, %169 : vector<128x16xf32>
    %171 = vector.extract_strided_slice %138 {offsets = [0, 80], sizes = [128, 16], strides = [1, 1]} : vector<128x96xf32> to vector<128x16xf32>
    %172 = arith.addf %170, %171 : vector<128x16xf32>
    %cst_107 = arith.constant dense<0.000000e+00> : vector<128xf32>
    %173 = vector.multi_reduction <add>, %172, %cst_107 [1] : vector<128x16xf32> to vector<128xf32>
    %174 = vector.shape_cast %173 : vector<128xf32> to vector<128x1xf32>
    %175 = arith.mulf %172, %172 : vector<128x16xf32>
    %cst_108 = arith.constant dense<0.000000e+00> : vector<128xf32>
    %176 = vector.multi_reduction <add>, %175, %cst_108 [1] : vector<128x16xf32> to vector<128xf32>
    %177 = vector.shape_cast %176 : vector<128xf32> to vector<128x1xf32>
    %178 = tpu.concatenate %174, %177 in 1 : vector<128x1xf32>, vector<128x1xf32> -> vector<128x2xf32>
    %cst_109 = arith.constant dense<0.000000e+00> : vector<128x2xf32>
    %179 = tpu.matmul %14, %178, %cst_109 {dimension_numbers = #tpu.dot_dimension_numbers<[1], [0], [0], [1], [0, 0, 1, 1], [], []>} : vector<128x128xf32>, vector<128x2xf32>, vector<128x2xf32> -> vector<128x2xf32>
    %cst_110 = arith.constant 7.812500e-03 : f32
    %180 = vector.broadcast %cst_110 : f32 to vector<128x2xf32>
    %181 = arith.mulf %179, %180 : vector<128x2xf32>
    %182 = vector.extract_strided_slice %181 {offsets = [0, 0], sizes = [128, 1], strides = [1, 1]} : vector<128x2xf32> to vector<128x1xf32>
    %183 = vector.extract_strided_slice %181 {offsets = [0, 1], sizes = [128, 1], strides = [1, 1]} : vector<128x2xf32> to vector<128x1xf32>
    %184 = arith.mulf %182, %182 : vector<128x1xf32>
    %185 = arith.subf %183, %184 : vector<128x1xf32>
    %cst_111 = arith.constant 0.000000e+00 : f32
    %186 = vector.broadcast %cst_111 : f32 to vector<128x1xf32>
    %187 = arith.maximumf %185, %186 : vector<128x1xf32>
    %188 = vector.broadcast %182 : vector<128x1xf32> to vector<128x16xf32>
    %189 = arith.subf %172, %188 : vector<128x16xf32>
    %cst_112 = arith.constant 9.99999974E-6 : f32
    %190 = vector.broadcast %cst_112 : f32 to vector<128x1xf32>
    %191 = arith.addf %187, %190 : vector<128x1xf32>
    %192 = math.rsqrt %191 : vector<128x1xf32>
    %193 = vector.broadcast %192 : vector<128x1xf32> to vector<128x16xf32>
    %194 = arith.mulf %189, %193 : vector<128x16xf32>
    %c2_113 = arith.constant 2 : index
    %c0_114 = arith.constant 0 : index
    %c0_115 = arith.constant 0 : index
    %195 = vector.load %arg13[%c2_113, %c0_114, %c0_115] : memref<3x128x176xf32, #tpu.memory_space<vmem>>, vector<1x128x16xf32>
    %196 = vector.shape_cast %195 : vector<1x128x16xf32> to vector<128x16xf32>
    %197 = arith.mulf %194, %196 : vector<128x16xf32>
    %c2_116 = arith.constant 2 : index
    %c0_117 = arith.constant 0 : index
    %c0_118 = arith.constant 0 : index
    %198 = vector.load %arg14[%c2_116, %c0_117, %c0_118] : memref<3x128x176xf32, #tpu.memory_space<vmem>>, vector<1x128x16xf32>
    %199 = vector.shape_cast %198 : vector<1x128x16xf32> to vector<128x16xf32>
    %200 = arith.addf %197, %199 : vector<128x16xf32>
    %c0_119 = arith.constant 0 : index
    %c0_120 = arith.constant 0 : index
    %201 = vector.load %arg15[%c0_119, %c0_120] : memref<16x32xf32, #tpu.memory_space<vmem>>, vector<16x32xf32>
    %cst_121 = arith.constant dense<0.000000e+00> : vector<128x32xf32>
    %202 = tpu.matmul %200, %201, %cst_121 {dimension_numbers = #tpu.dot_dimension_numbers<[1], [0], [0], [1], [0, 0, 1, 1], [], []>} : vector<128x16xf32>, vector<16x32xf32>, vector<128x32xf32> -> vector<128x32xf32>
    %203 = arith.addf %162, %202 : vector<128x32xf32>
    %c0_122 = arith.constant 0 : index
    %c0_123 = arith.constant 0 : index
    %204 = vector.load %arg16[%c0_122, %c0_123] : memref<1x32xf32, #tpu.memory_space<vmem>>, vector<1x32xf32>
    %205 = vector.broadcast %204 : vector<1x32xf32> to vector<128x32xf32>
    %206 = arith.addf %203, %205 : vector<128x32xf32>
    %cst_124 = arith.constant 0.000000e+00 : f32
    %207 = vector.broadcast %cst_124 : f32 to vector<128x32xf32>
    %208 = arith.maximumf %206, %207 : vector<128x32xf32>
    %c0_125 = arith.constant 0 : index
    %c0_126 = arith.constant 0 : index
    %209 = vector.load %arg17[%c0_125, %c0_126] : memref<32x64xf32, #tpu.memory_space<vmem>>, vector<32x64xf32>
    %cst_127 = arith.constant dense<0.000000e+00> : vector<128x64xf32>
    %210 = tpu.matmul %208, %209, %cst_127 {dimension_numbers = #tpu.dot_dimension_numbers<[1], [0], [0], [1], [0, 0, 1, 1], [], []>} : vector<128x32xf32>, vector<32x64xf32>, vector<128x64xf32> -> vector<128x64xf32>
    %c0_128 = arith.constant 0 : index
    %c0_129 = arith.constant 0 : index
    %211 = vector.load %arg18[%c0_128, %c0_129] : memref<1x64xf32, #tpu.memory_space<vmem>>, vector<1x64xf32>
    %212 = vector.broadcast %211 : vector<1x64xf32> to vector<128x64xf32>
    %213 = arith.addf %210, %212 : vector<128x64xf32>
    %cst_130 = arith.constant 0.000000e+00 : f32
    %214 = vector.broadcast %cst_130 : f32 to vector<128x64xf32>
    %215 = arith.maximumf %213, %214 : vector<128x64xf32>
    %c0_131 = arith.constant 0 : index
    %c0_132 = arith.constant 0 : index
    %216 = vector.load %arg19[%c0_131, %c0_132] : memref<64x1xf32, #tpu.memory_space<vmem>>, vector<64x1xf32>
    %cst_133 = arith.constant dense<0.000000e+00> : vector<128x1xf32>
    %217 = tpu.matmul %215, %216, %cst_133 {dimension_numbers = #tpu.dot_dimension_numbers<[1], [0], [0], [1], [0, 0, 1, 1], [], []>} : vector<128x64xf32>, vector<64x1xf32>, vector<128x1xf32> -> vector<128x1xf32>
    %c0_134 = arith.constant 0 : index
    %c0_135 = arith.constant 0 : index
    %218 = vector.load %arg20[%c0_134, %c0_135] : memref<1x1xf32, #tpu.memory_space<vmem>>, vector<1x1xf32>
    %219 = vector.broadcast %218 : vector<1x1xf32> to vector<128x1xf32>
    %220 = arith.addf %217, %219 : vector<128x1xf32>
    %c0_136 = arith.constant 0 : index
    %c0_137 = arith.constant 0 : index
    %221 = vector.load %arg21[%c0_136, %c0_137] : memref<128x1xf32, #tpu.memory_space<vmem>>, vector<128x1xf32>
    tpu.vector_store %arg21[%c0_136, %c0_137], %220 {strides = array<i32>} : memref<128x1xf32, #tpu.memory_space<vmem>>, vector<128x1xf32>,
    return
  }
  func.func @transform_0(%arg0: i32) -> (i32, i32) {
    %c0_i32 = arith.constant 0 : i32
    %c0_i32_0 = arith.constant 0 : i32
    return %arg0, %c0_i32 : i32, i32
  }
  func.func @transform_1(%arg0: i32) -> (i32, i32) {
    %c0_i32 = arith.constant 0 : i32
    %c0_i32_0 = arith.constant 0 : i32
    %c0_i32_1 = arith.constant 0 : i32
    return %c0_i32, %c0_i32_0 : i32, i32
  }
  func.func @transform_2(%arg0: i32) -> (i32, i32) {
    %c0_i32 = arith.constant 0 : i32
    %c0_i32_0 = arith.constant 0 : i32
    %c0_i32_1 = arith.constant 0 : i32
    return %c0_i32, %c0_i32_0 : i32, i32
  }
  func.func @transform_3(%arg0: i32) -> (i32, i32) {
    %c0_i32 = arith.constant 0 : i32
    %c0_i32_0 = arith.constant 0 : i32
    %c0_i32_1 = arith.constant 0 : i32
    return %c0_i32, %c0_i32_0 : i32, i32
  }
  func.func @transform_4(%arg0: i32) -> (i32, i32) {
    %c0_i32 = arith.constant 0 : i32
    %c0_i32_0 = arith.constant 0 : i32
    %c0_i32_1 = arith.constant 0 : i32
    return %c0_i32, %c0_i32_0 : i32, i32
  }
  func.func @transform_5(%arg0: i32) -> (i32, i32, i32) {
    %c0_i32 = arith.constant 0 : i32
    %c0_i32_0 = arith.constant 0 : i32
    %c0_i32_1 = arith.constant 0 : i32
    %c0_i32_2 = arith.constant 0 : i32
    return %c0_i32, %c0_i32_0, %c0_i32_1 : i32, i32, i32
  }
  func.func @transform_6(%arg0: i32) -> (i32, i32, i32) {
    %c0_i32 = arith.constant 0 : i32
    %c0_i32_0 = arith.constant 0 : i32
    %c0_i32_1 = arith.constant 0 : i32
    %c0_i32_2 = arith.constant 0 : i32
    return %c0_i32, %c0_i32_0, %c0_i32_1 : i32, i32, i32
  }
  func.func @transform_7(%arg0: i32) -> (i32, i32, i32) {
    %c0_i32 = arith.constant 0 : i32
    %c0_i32_0 = arith.constant 0 : i32
    %c0_i32_1 = arith.constant 0 : i32
    %c0_i32_2 = arith.constant 0 : i32
    return %c0_i32, %c0_i32_0, %c0_i32_1 : i32, i32, i32
  }
  func.func @transform_8(%arg0: i32) -> (i32, i32, i32) {
    %c0_i32 = arith.constant 0 : i32
    %c0_i32_0 = arith.constant 0 : i32
    %c0_i32_1 = arith.constant 0 : i32
    %c0_i32_2 = arith.constant 0 : i32
    return %c0_i32, %c0_i32_0, %c0_i32_1 : i32, i32, i32
  }
  func.func @transform_9(%arg0: i32) -> (i32, i32, i32) {
    %c0_i32 = arith.constant 0 : i32
    %c0_i32_0 = arith.constant 0 : i32
    %c0_i32_1 = arith.constant 0 : i32
    %c0_i32_2 = arith.constant 0 : i32
    return %c0_i32, %c0_i32_0, %c0_i32_1 : i32, i32, i32
  }
  func.func @transform_10(%arg0: i32) -> (i32, i32, i32) {
    %c0_i32 = arith.constant 0 : i32
    %c0_i32_0 = arith.constant 0 : i32
    %c0_i32_1 = arith.constant 0 : i32
    %c0_i32_2 = arith.constant 0 : i32
    return %c0_i32, %c0_i32_0, %c0_i32_1 : i32, i32, i32
  }
  func.func @transform_11(%arg0: i32) -> (i32, i32, i32) {
    %c0_i32 = arith.constant 0 : i32
    %c0_i32_0 = arith.constant 0 : i32
    %c0_i32_1 = arith.constant 0 : i32
    %c0_i32_2 = arith.constant 0 : i32
    return %c0_i32, %c0_i32_0, %c0_i32_1 : i32, i32, i32
  }
  func.func @transform_12(%arg0: i32) -> (i32, i32, i32) {
    %c0_i32 = arith.constant 0 : i32
    %c0_i32_0 = arith.constant 0 : i32
    %c0_i32_1 = arith.constant 0 : i32
    %c0_i32_2 = arith.constant 0 : i32
    return %c0_i32, %c0_i32_0, %c0_i32_1 : i32, i32, i32
  }
  func.func @transform_13(%arg0: i32) -> (i32, i32, i32) {
    %c0_i32 = arith.constant 0 : i32
    %c0_i32_0 = arith.constant 0 : i32
    %c0_i32_1 = arith.constant 0 : i32
    %c0_i32_2 = arith.constant 0 : i32
    return %c0_i32, %c0_i32_0, %c0_i32_1 : i32, i32, i32
  }
  func.func @transform_14(%arg0: i32) -> (i32, i32) {
    %c0_i32 = arith.constant 0 : i32
    %c0_i32_0 = arith.constant 0 : i32
    %c0_i32_1 = arith.constant 0 : i32
    return %c0_i32, %c0_i32_0 : i32, i32
  }
  func.func @transform_15(%arg0: i32) -> (i32, i32) {
    %c0_i32 = arith.constant 0 : i32
    %c0_i32_0 = arith.constant 0 : i32
    %c0_i32_1 = arith.constant 0 : i32
    return %c0_i32, %c0_i32_0 : i32, i32
  }
  func.func @transform_16(%arg0: i32) -> (i32, i32) {
    %c0_i32 = arith.constant 0 : i32
    %c0_i32_0 = arith.constant 0 : i32
    %c0_i32_1 = arith.constant 0 : i32
    return %c0_i32, %c0_i32_0 : i32, i32
  }
  func.func @transform_17(%arg0: i32) -> (i32, i32) {
    %c0_i32 = arith.constant 0 : i32
    %c0_i32_0 = arith.constant 0 : i32
    %c0_i32_1 = arith.constant 0 : i32
    return %c0_i32, %c0_i32_0 : i32, i32
  }
  func.func @transform_18(%arg0: i32) -> (i32, i32) {
    %c0_i32 = arith.constant 0 : i32
    %c0_i32_0 = arith.constant 0 : i32
    %c0_i32_1 = arith.constant 0 : i32
    return %c0_i32, %c0_i32_0 : i32, i32
  }
  func.func @transform_19(%arg0: i32) -> (i32, i32) {
    %c0_i32 = arith.constant 0 : i32
    %c0_i32_0 = arith.constant 0 : i32
    %c0_i32_1 = arith.constant 0 : i32
    return %c0_i32, %c0_i32_0 : i32, i32
  }
  func.func @transform_20(%arg0: i32) -> (i32, i32) {
    %c0_i32 = arith.constant 0 : i32
    %c0_i32_0 = arith.constant 0 : i32
    return %arg0, %c0_i32 : i32, i32
  }
}

</mosaic_0001>

<llo_original>
// kernel: tpu_custom_call.1
$region0: #{tpu_custom_call.1}
  #allocation0 [shape = 'u32[]', space=smem, size = 0x4, offset = 0x4, fixed_abs, tag = 'smem constant byte address 0x4 - core index']
  #allocation1 [shape = 'u32[144,128]{1,0:T(1,128)}', space=vmem, size = 0x12000, scoped, tag = 'internal scratch']
  #allocation2 [shape = 'f32[1,1]{1,0:T(1,128)S(1)}', space=vmem, size = 0x200, scoped, tag = 'scoped memory for tpu_custom_call.1']
  %s0 = inlined_call_operand.vmem [shape: f32[256,16], index: 0, kind: input, shape index: {}]
  %s1 = inlined_call_operand.vmem [shape: f32[16,256], index: 1, kind: input, shape index: {}]
  %s2 = inlined_call_operand.vmem [shape: f32[1,256], index: 2, kind: input, shape index: {}]
  %s3 = inlined_call_operand.vmem [shape: f32[16,32], index: 3, kind: input, shape index: {}]
  %s4 = inlined_call_operand.vmem [shape: f32[1,32], index: 4, kind: input, shape index: {}]
  %s5 = inlined_call_operand.vmem [shape: f32[3,256,432], index: 5, kind: input, shape index: {}]
  %s6 = inlined_call_operand.vmem [shape: f32[3,1,432], index: 6, kind: input, shape index: {}]
  %s7 = inlined_call_operand.vmem [shape: f32[3,176,32], index: 7, kind: input, shape index: {}]
  %s8 = inlined_call_operand.vmem [shape: f32[3,1,32], index: 8, kind: input, shape index: {}]
  %s9 = inlined_call_operand.vmem [shape: f32[2,128,128], index: 9, kind: input, shape index: {}]
  %s10 = inlined_call_operand.vmem [shape: f32[3,176,176], index: 10, kind: input, shape index: {}]
  %s11 = inlined_call_operand.vmem [shape: f32[3,1,176], index: 11, kind: input, shape index: {}]
  %s12 = inlined_call_operand.vmem [shape: f32[3,128,176], index: 12, kind: input, shape index: {}]
  %s13 = inlined_call_operand.vmem [shape: f32[3,128,176], index: 13, kind: input, shape index: {}]
  %s14 = inlined_call_operand.vmem [shape: f32[16,32], index: 14, kind: input, shape index: {}]
  %s15 = inlined_call_operand.vmem [shape: f32[1,32], index: 15, kind: input, shape index: {}]
  %s16 = inlined_call_operand.vmem [shape: f32[32,64], index: 16, kind: input, shape index: {}]
  %s17 = inlined_call_operand.vmem [shape: f32[1,64], index: 17, kind: input, shape index: {}]
  %s18 = inlined_call_operand.vmem [shape: f32[64,1], index: 18, kind: input, shape index: {}]
  %s19 = inlined_call_operand.<no memory space> [shape: f32[1,1], index: 19, kind: input, shape index: {}]
  %s20 = inlined_call_operand.vmem [shape: f32[256,1], index: 20, kind: output, shape index: {}]
  %s21 = sld [smem:[#allocation0]]
  $region113: #{tpu_custom_call.1} parent=0
    _
  %s23 = ssub.s32 1, %s21
  %s24 = scalar_select 0, %s23, %s21
  %v25 = vstv %s19
  %26 = vst [vmem:[#allocation2] sm:$0x1] %v25
  loop: start=0, step=1, limit=4
  $region2: #{tpu_custom_call.1} parent=0 // loop_pre_header
    _
  $region3: #{tpu_custom_call.1} parent=0 // loop_header
    %s28 = sphi 0, %s32
    %p29 = scmp.ge.s32.totalorder %s28, 4
    %s38 = sphi 0, %s40
    %s41 = sphi 0, %s38
    %s42 = sphi 0, %s41
    %s58 = sphi 0, %s42
    %s62 = sphi 0, %s62
    %s64 = sphi 0, %s62
    %s65 = sphi 0, %s64
    %s79 = sphi 0, %s65
    %s83 = sphi 0, %s83
    %s85 = sphi 0, %s83
    %s86 = sphi 0, %s85
    %s100 = sphi 0, %s86
    %s104 = sphi 0, %s104
    %s106 = sphi 0, %s104
    %s107 = sphi 0, %s106
    %s121 = sphi 0, %s107
    %s125 = sphi 0, %s125
    %s127 = sphi 0, %s125
    %s128 = sphi 0, %s127
    %s142 = sphi 0, %s128
    %s146 = sphi 0, %s146
    %s148 = sphi 0, %s146
    %s149 = sphi 0, %s148
    %s163 = sphi 0, %s149
    %s167 = sphi 0, %s167
    %s169 = sphi 0, %s167
    %s170 = sphi 0, %s169
    %s184 = sphi 0, %s170
    %s188 = sphi 0, %s188
    %s190 = sphi 0, %s188
    %s191 = sphi 0, %s190
    %s205 = sphi 0, %s191
    %s209 = sphi 0, %s209
    %s211 = sphi 0, %s209
    %s212 = sphi 0, %s211
    %s226 = sphi 0, %s212
    %s230 = sphi 0, %s230
    %s232 = sphi 0, %s230
    %s233 = sphi 0, %s232
    %s247 = sphi 0, %s233
    %s251 = sphi 0, %s251
    %s253 = sphi 0, %s251
    %s254 = sphi 0, %s253
    %s268 = sphi 0, %s254
    %s272 = sphi 0, %s272
    %s274 = sphi 0, %s272
    %s275 = sphi 0, %s274
    %s289 = sphi 0, %s275
    %s293 = sphi 0, %s293
    %s295 = sphi 0, %s293
    %s296 = sphi 0, %s295
    %s310 = sphi 0, %s296
    %s314 = sphi 0, %s314
    %s316 = sphi 0, %s314
    %s317 = sphi 0, %s316
    %s331 = sphi 0, %s317
    %s335 = sphi 0, %s335
    %s337 = sphi 0, %s335
    %s338 = sphi 0, %s337
    %s352 = sphi 0, %s338
    %s356 = sphi 0, %s356
    %s358 = sphi 0, %s356
    %s359 = sphi 0, %s358
    %s373 = sphi 0, %s359
    %s377 = sphi 0, %s377
    %s379 = sphi 0, %s377
    %s380 = sphi 0, %s379
    %s394 = sphi 0, %s380
    %s398 = sphi 0, %s398
    %s400 = sphi 0, %s398
    %s401 = sphi 0, %s400
    %s415 = sphi 0, %s401
    %s419 = sphi 0, %s419
    %s421 = sphi 0, %s419
    %s422 = sphi 0, %s421
    %s436 = sphi 0, %s422
    %s440 = sphi 0, %s440
    %s442 = sphi 0, %s440
    %s443 = sphi 0, %s442
    %s457 = sphi 0, %s443
    %s463 = sphi 0, %s465
    %s466 = sphi 0, %s463
    %s467 = sphi 0, %s466
    %s483 = sphi 0, %s467
  $region4: #{tpu_custom_call.1} parent=0 // loop_header_branch
    %31 = sbr.rel (%p29) target = $region8
  $region5: #{tpu_custom_call.1} parent=0 // loop_body
    %s33 = ssub.s32 %s28, 1
    %s34 = ssub.s32 %s28, 2
    %s35 = sadd.s32 %s28, 1
    %s36 = ssub.s32 %s28, %s35
    %p37 = scmp.eq.s32.totalorder %s36, 0
    %s39 = sadd.s32 %s38, 1
    %s40 = scalar_select %p37, %s38, %s39
    %p43 = pneg %p37
    %p44 = scmp.eq.s32.totalorder %s28, 1
    %p45 = por %p43, %p44
    %p46 = scmp.ne.s32.totalorder %s38, %s41
    %p47 = scmp.eq.s32.totalorder %s28, 0
    %p48 = por %p46, %p47
    %p49 = scmp.ne.s32.totalorder %s38, %s41
    %p50 = scmp.eq.s32.totalorder %s33, 1
    %p51 = por %p49, %p50
    %p52 = scmp.ne.s32.totalorder %s41, %s42
    %p53 = scmp.eq.s32.totalorder %s33, 0
    %p54 = por %p52, %p53
    %p55 = scmp.ne.s32.totalorder %s41, %s42
    %p56 = scmp.eq.s32.totalorder %s34, 1
    %p57 = por %p55, %p56
    %p59 = scmp.ne.s32.totalorder %s42, %s58
    %p60 = scmp.eq.s32.totalorder %s34, 0
    %p61 = por %p59, %p60
    %s63 = sadd.s32 %s62, 1
    %p66 = scmp.eq.s32.totalorder %s28, 1
    %p67 = scmp.ne.s32.totalorder %s62, %s64
    %p68 = scmp.eq.s32.totalorder %s28, 0
    %p69 = por %p67, %p68
    %p70 = scmp.ne.s32.totalorder %s62, %s64
    %p71 = scmp.eq.s32.totalorder %s33, 1
    %p72 = por %p70, %p71
    %p73 = scmp.ne.s32.totalorder %s64, %s65
    %p74 = scmp.eq.s32.totalorder %s33, 0
    %p75 = por %p73, %p74
    %p76 = scmp.ne.s32.totalorder %s64, %s65
    %p77 = scmp.eq.s32.totalorder %s34, 1
    %p78 = por %p76, %p77
    %p80 = scmp.ne.s32.totalorder %s65, %s79
    %p81 = scmp.eq.s32.totalorder %s34, 0
    %p82 = por %p80, %p81
    %s84 = sadd.s32 %s83, 1
    %p87 = scmp.eq.s32.totalorder %s28, 1
    %p88 = scmp.ne.s32.totalorder %s83, %s85
    %p89 = scmp.eq.s32.totalorder %s28, 0
    %p90 = por %p88, %p89
    %p91 = scmp.ne.s32.totalorder %s83, %s85
    %p92 = scmp.eq.s32.totalorder %s33, 1
    %p93 = por %p91, %p92
    %p94 = scmp.ne.s32.totalorder %s85, %s86
    %p95 = scmp.eq.s32.totalorder %s33, 0
    %p96 = por %p94, %p95
    %p97 = scmp.ne.s32.totalorder %s85, %s86
    %p98 = scmp.eq.s32.totalorder %s34, 1
    %p99 = por %p97, %p98
    %p101 = scmp.ne.s32.totalorder %s86, %s100
    %p102 = scmp.eq.s32.totalorder %s34, 0
    %p103 = por %p101, %p102
    %s105 = sadd.s32 %s104, 1
    %p108 = scmp.eq.s32.totalorder %s28, 1
    %p109 = scmp.ne.s32.totalorder %s104, %s106
    %p110 = scmp.eq.s32.totalorder %s28, 0
    %p111 = por %p109, %p110
    %p112 = scmp.ne.s32.totalorder %s104, %s106
    %p113 = scmp.eq.s32.totalorder %s33, 1
    %p114 = por %p112, %p113
    %p115 = scmp.ne.s32.totalorder %s106, %s107
    %p116 = scmp.eq.s32.totalorder %s33, 0
    %p117 = por %p115, %p116
    %p118 = scmp.ne.s32.totalorder %s106, %s107
    %p119 = scmp.eq.s32.totalorder %s34, 1
    %p120 = por %p118, %p119
    %p122 = scmp.ne.s32.totalorder %s107, %s121
    %p123 = scmp.eq.s32.totalorder %s34, 0
    %p124 = por %p122, %p123
    %s126 = sadd.s32 %s125, 1
    %p129 = scmp.eq.s32.totalorder %s28, 1
    %p130 = scmp.ne.s32.totalorder %s125, %s127
    %p131 = scmp.eq.s32.totalorder %s28, 0
    %p132 = por %p130, %p131
    %p133 = scmp.ne.s32.totalorder %s125, %s127
    %p134 = scmp.eq.s32.totalorder %s33, 1
    %p135 = por %p133, %p134
    %p136 = scmp.ne.s32.totalorder %s127, %s128
    %p137 = scmp.eq.s32.totalorder %s33, 0
    %p138 = por %p136, %p137
    %p139 = scmp.ne.s32.totalorder %s127, %s128
    %p140 = scmp.eq.s32.totalorder %s34, 1
    %p141 = por %p139, %p140
    %p143 = scmp.ne.s32.totalorder %s128, %s142
    %p144 = scmp.eq.s32.totalorder %s34, 0
    %p145 = por %p143, %p144
    %s147 = sadd.s32 %s146, 1
    %p150 = scmp.eq.s32.totalorder %s28, 1
    %p151 = scmp.ne.s32.totalorder %s146, %s148
    %p152 = scmp.eq.s32.totalorder %s28, 0
    %p153 = por %p151, %p152
    %p154 = scmp.ne.s32.totalorder %s146, %s148
    %p155 = scmp.eq.s32.totalorder %s33, 1
    %p156 = por %p154, %p155
    %p157 = scmp.ne.s32.totalorder %s148, %s149
    %p158 = scmp.eq.s32.totalorder %s33, 0
    %p159 = por %p157, %p158
    %p160 = scmp.ne.s32.totalorder %s148, %s149
    %p161 = scmp.eq.s32.totalorder %s34, 1
    %p162 = por %p160, %p161
    %p164 = scmp.ne.s32.totalorder %s149, %s163
    %p165 = scmp.eq.s32.totalorder %s34, 0
    %p166 = por %p164, %p165
    %s168 = sadd.s32 %s167, 1
    %p171 = scmp.eq.s32.totalorder %s28, 1
    %p172 = scmp.ne.s32.totalorder %s167, %s169
    %p173 = scmp.eq.s32.totalorder %s28, 0
    %p174 = por %p172, %p173
    %p175 = scmp.ne.s32.totalorder %s167, %s169
    %p176 = scmp.eq.s32.totalorder %s33, 1
    %p177 = por %p175, %p176
    %p178 = scmp.ne.s32.totalorder %s169, %s170
    %p179 = scmp.eq.s32.totalorder %s33, 0
    %p180 = por %p178, %p179
    %p181 = scmp.ne.s32.totalorder %s169, %s170
    %p182 = scmp.eq.s32.totalorder %s34, 1
    %p183 = por %p181, %p182
    %p185 = scmp.ne.s32.totalorder %s170, %s184
    %p186 = scmp.eq.s32.totalorder %s34, 0
    %p187 = por %p185, %p186
    %s189 = sadd.s32 %s188, 1
    %p192 = scmp.eq.s32.totalorder %s28, 1
    %p193 = scmp.ne.s32.totalorder %s188, %s190
    %p194 = scmp.eq.s32.totalorder %s28, 0
    %p195 = por %p193, %p194
    %p196 = scmp.ne.s32.totalorder %s188, %s190
    %p197 = scmp.eq.s32.totalorder %s33, 1
    %p198 = por %p196, %p197
    %p199 = scmp.ne.s32.totalorder %s190, %s191
    %p200 = scmp.eq.s32.totalorder %s33, 0
    %p201 = por %p199, %p200
    %p202 = scmp.ne.s32.totalorder %s190, %s191
    %p203 = scmp.eq.s32.totalorder %s34, 1
    %p204 = por %p202, %p203
    %p206 = scmp.ne.s32.totalorder %s191, %s205
    %p207 = scmp.eq.s32.totalorder %s34, 0
    %p208 = por %p206, %p207
    %s210 = sadd.s32 %s209, 1
    %p213 = scmp.eq.s32.totalorder %s28, 1
    %p214 = scmp.ne.s32.totalorder %s209, %s211
    %p215 = scmp.eq.s32.totalorder %s28, 0
    %p216 = por %p214, %p215
    %p217 = scmp.ne.s32.totalorder %s209, %s211
    %p218 = scmp.eq.s32.totalorder %s33, 1
    %p219 = por %p217, %p218
    %p220 = scmp.ne.s32.totalorder %s211, %s212
    %p221 = scmp.eq.s32.totalorder %s33, 0
    %p222 = por %p220, %p221
    %p223 = scmp.ne.s32.totalorder %s211, %s212
    %p224 = scmp.eq.s32.totalorder %s34, 1
    %p225 = por %p223, %p224
    %p227 = scmp.ne.s32.totalorder %s212, %s226
    %p228 = scmp.eq.s32.totalorder %s34, 0
    %p229 = por %p227, %p228
    %s231 = sadd.s32 %s230, 1
    %p234 = scmp.eq.s32.totalorder %s28, 1
    %p235 = scmp.ne.s32.totalorder %s230, %s232
    %p236 = scmp.eq.s32.totalorder %s28, 0
    %p237 = por %p235, %p236
    %p238 = scmp.ne.s32.totalorder %s230, %s232
    %p239 = scmp.eq.s32.totalorder %s33, 1
    %p240 = por %p238, %p239
    %p241 = scmp.ne.s32.totalorder %s232, %s233
    %p242 = scmp.eq.s32.totalorder %s33, 0
    %p243 = por %p241, %p242
    %p244 = scmp.ne.s32.totalorder %s232, %s233
    %p245 = scmp.eq.s32.totalorder %s34, 1
    %p246 = por %p244, %p245
    %p248 = scmp.ne.s32.totalorder %s233, %s247
    %p249 = scmp.eq.s32.totalorder %s34, 0
    %p250 = por %p248, %p249
    %s252 = sadd.s32 %s251, 1
    %p255 = scmp.eq.s32.totalorder %s28, 1
    %p256 = scmp.ne.s32.totalorder %s251, %s253
    %p257 = scmp.eq.s32.totalorder %s28, 0
    %p258 = por %p256, %p257
    %p259 = scmp.ne.s32.totalorder %s251, %s253
    %p260 = scmp.eq.s32.totalorder %s33, 1
    %p261 = por %p259, %p260
    %p262 = scmp.ne.s32.totalorder %s253, %s254
    %p263 = scmp.eq.s32.totalorder %s33, 0
    %p264 = por %p262, %p263
    %p265 = scmp.ne.s32.totalorder %s253, %s254
    %p266 = scmp.eq.s32.totalorder %s34, 1
    %p267 = por %p265, %p266
    %p269 = scmp.ne.s32.totalorder %s254, %s268
    %p270 = scmp.eq.s32.totalorder %s34, 0
    %p271 = por %p269, %p270
    %s273 = sadd.s32 %s272, 1
    %p276 = scmp.eq.s32.totalorder %s28, 1
    %p277 = scmp.ne.s32.totalorder %s272, %s274
    %p278 = scmp.eq.s32.totalorder %s28, 0
    %p279 = por %p277, %p278
    %p280 = scmp.ne.s32.totalorder %s272, %s274
    %p281 = scmp.eq.s32.totalorder %s33, 1
    %p282 = por %p280, %p281
    %p283 = scmp.ne.s32.totalorder %s274, %s275
    %p284 = scmp.eq.s32.totalorder %s33, 0
    %p285 = por %p283, %p284
    %p286 = scmp.ne.s32.totalorder %s274, %s275
    %p287 = scmp.eq.s32.totalorder %s34, 1
    %p288 = por %p286, %p287
    %p290 = scmp.ne.s32.totalorder %s275, %s289
    %p291 = scmp.eq.s32.totalorder %s34, 0
    %p292 = por %p290, %p291
    %s294 = sadd.s32 %s293, 1
    %p297 = scmp.eq.s32.totalorder %s28, 1
    %p298 = scmp.ne.s32.totalorder %s293, %s295
    %p299 = scmp.eq.s32.totalorder %s28, 0
    %p300 = por %p298, %p299
    %p301 = scmp.ne.s32.totalorder %s293, %s295
    %p302 = scmp.eq.s32.totalorder %s33, 1
    %p303 = por %p301, %p302
    %p304 = scmp.ne.s32.totalorder %s295, %s296
    %p305 = scmp.eq.s32.totalorder %s33, 0
    %p306 = por %p304, %p305
    %p307 = scmp.ne.s32.totalorder %s295, %s296
    %p308 = scmp.eq.s32.totalorder %s34, 1
    %p309 = por %p307, %p308
    %p311 = scmp.ne.s32.totalorder %s296, %s310
    %p312 = scmp.eq.s32.totalorder %s34, 0
    %p313 = por %p311, %p312
    %s315 = sadd.s32 %s314, 1
    %p318 = scmp.eq.s32.totalorder %s28, 1
    %p319 = scmp.ne.s32.totalorder %s314, %s316
    %p320 = scmp.eq.s32.totalorder %s28, 0
    %p321 = por %p319, %p320
    %p322 = scmp.ne.s32.totalorder %s314, %s316
    %p323 = scmp.eq.s32.totalorder %s33, 1
    %p324 = por %p322, %p323
    %p325 = scmp.ne.s32.totalorder %s316, %s317
    %p326 = scmp.eq.s32.totalorder %s33, 0
    %p327 = por %p325, %p326
    %p328 = scmp.ne.s32.totalorder %s316, %s317
    %p329 = scmp.eq.s32.totalorder %s34, 1
    %p330 = por %p328, %p329
    %p332 = scmp.ne.s32.totalorder %s317, %s331
    %p333 = scmp.eq.s32.totalorder %s34, 0
    %p334 = por %p332, %p333
    %s336 = sadd.s32 %s335, 1
    %p339 = scmp.eq.s32.totalorder %s28, 1
    %p340 = scmp.ne.s32.totalorder %s335, %s337
    %p341 = scmp.eq.s32.totalorder %s28, 0
    %p342 = por %p340, %p341
    %p343 = scmp.ne.s32.totalorder %s335, %s337
    %p344 = scmp.eq.s32.totalorder %s33, 1
    %p345 = por %p343, %p344
    %p346 = scmp.ne.s32.totalorder %s337, %s338
    %p347 = scmp.eq.s32.totalorder %s33, 0
    %p348 = por %p346, %p347
    %p349 = scmp.ne.s32.totalorder %s337, %s338
    %p350 = scmp.eq.s32.totalorder %s34, 1
    %p351 = por %p349, %p350
    %p353 = scmp.ne.s32.totalorder %s338, %s352
    %p354 = scmp.eq.s32.totalorder %s34, 0
    %p355 = por %p353, %p354
    %s357 = sadd.s32 %s356, 1
    %p360 = scmp.eq.s32.totalorder %s28, 1
    %p361 = scmp.ne.s32.totalorder %s356, %s358
    %p362 = scmp.eq.s32.totalorder %s28, 0
    %p363 = por %p361, %p362
    %p364 = scmp.ne.s32.totalorder %s356, %s358
    %p365 = scmp.eq.s32.totalorder %s33, 1
    %p366 = por %p364, %p365
    %p367 = scmp.ne.s32.totalorder %s358, %s359
    %p368 = scmp.eq.s32.totalorder %s33, 0
    %p369 = por %p367, %p368
    %p370 = scmp.ne.s32.totalorder %s358, %s359
    %p371 = scmp.eq.s32.totalorder %s34, 1
    %p372 = por %p370, %p371
    %p374 = scmp.ne.s32.totalorder %s359, %s373
    %p375 = scmp.eq.s32.totalorder %s34, 0
    %p376 = por %p374, %p375
    %s378 = sadd.s32 %s377, 1
    %p381 = scmp.eq.s32.totalorder %s28, 1
    %p382 = scmp.ne.s32.totalorder %s377, %s379
    %p383 = scmp.eq.s32.totalorder %s28, 0
    %p384 = por %p382, %p383
    %p385 = scmp.ne.s32.totalorder %s377, %s379
    %p386 = scmp.eq.s32.totalorder %s33, 1
    %p387 = por %p385, %p386
    %p388 = scmp.ne.s32.totalorder %s379, %s380
    %p389 = scmp.eq.s32.totalorder %s33, 0
    %p390 = por %p388, %p389
    %p391 = scmp.ne.s32.totalorder %s379, %s380
    %p392 = scmp.eq.s32.totalorder %s34, 1
    %p393 = por %p391, %p392
    %p395 = scmp.ne.s32.totalorder %s380, %s394
    %p396 = scmp.eq.s32.totalorder %s34, 0
    %p397 = por %p395, %p396
    %s399 = sadd.s32 %s398, 1
    %p402 = scmp.eq.s32.totalorder %s28, 1
    %p403 = scmp.ne.s32.totalorder %s398, %s400
    %p404 = scmp.eq.s32.totalorder %s28, 0
    %p405 = por %p403, %p404
    %p406 = scmp.ne.s32.totalorder %s398, %s400
    %p407 = scmp.eq.s32.totalorder %s33, 1
    %p408 = por %p406, %p407
    %p409 = scmp.ne.s32.totalorder %s400, %s401
    %p410 = scmp.eq.s32.totalorder %s33, 0
    %p411 = por %p409, %p410
    %p412 = scmp.ne.s32.totalorder %s400, %s401
    %p413 = scmp.eq.s32.totalorder %s34, 1
    %p414 = por %p412, %p413
    %p416 = scmp.ne.s32.totalorder %s401, %s415
    %p417 = scmp.eq.s32.totalorder %s34, 0
    %p418 = por %p416, %p417
    %s420 = sadd.s32 %s419, 1
    %p423 = scmp.eq.s32.totalorder %s28, 1
    %p424 = scmp.ne.s32.totalorder %s419, %s421
    %p425 = scmp.eq.s32.totalorder %s28, 0
    %p426 = por %p424, %p425
    %p427 = scmp.ne.s32.totalorder %s419, %s421
    %p428 = scmp.eq.s32.totalorder %s33, 1
    %p429 = por %p427, %p428
    %p430 = scmp.ne.s32.totalorder %s421, %s422
    %p431 = scmp.eq.s32.totalorder %s33, 0
    %p432 = por %p430, %p431
    %p433 = scmp.ne.s32.totalorder %s421, %s422
    %p434 = scmp.eq.s32.totalorder %s34, 1
    %p435 = por %p433, %p434
    %p437 = scmp.ne.s32.totalorder %s422, %s436
    %p438 = scmp.eq.s32.totalorder %s34, 0
    %p439 = por %p437, %p438
    %s441 = sadd.s32 %s440, 1
    %p444 = scmp.eq.s32.totalorder %s28, 1
    %p445 = scmp.ne.s32.totalorder %s440, %s442
    %p446 = scmp.eq.s32.totalorder %s28, 0
    %p447 = por %p445, %p446
    %p448 = scmp.ne.s32.totalorder %s440, %s442
    %p449 = scmp.eq.s32.totalorder %s33, 1
    %p450 = por %p448, %p449
    %p451 = scmp.ne.s32.totalorder %s442, %s443
    %p452 = scmp.eq.s32.totalorder %s33, 0
    %p453 = por %p451, %p452
    %p454 = scmp.ne.s32.totalorder %s442, %s443
    %p455 = scmp.eq.s32.totalorder %s34, 1
    %p456 = por %p454, %p455
    %p458 = scmp.ne.s32.totalorder %s443, %s457
    %p459 = scmp.eq.s32.totalorder %s34, 0
    %p460 = por %p458, %p459
    %s461 = ssub.s32 %s28, %s35
    %p462 = scmp.eq.s32.totalorder %s461, 0
    %s464 = sadd.s32 %s463, 1
    %s465 = scalar_select %p462, %s463, %s464
    %p468 = pneg %p462
    %p469 = scmp.eq.s32.totalorder %s28, 1
    %p470 = por %p468, %p469
    %p471 = scmp.ne.s32.totalorder %s463, %s466
    %p472 = scmp.eq.s32.totalorder %s28, 0
    %p473 = por %p471, %p472
    %p474 = scmp.ne.s32.totalorder %s463, %s466
    %p475 = scmp.eq.s32.totalorder %s33, 1
    %p476 = por %p474, %p475
    %p477 = scmp.ne.s32.totalorder %s466, %s467
    %p478 = scmp.eq.s32.totalorder %s33, 0
    %p479 = por %p477, %p478
    %p480 = scmp.ne.s32.totalorder %s466, %s467
    %p481 = scmp.eq.s32.totalorder %s34, 1
    %p482 = por %p480, %p481
    %p484 = scmp.ne.s32.totalorder %s467, %s483
    %p485 = scmp.eq.s32.totalorder %s34, 0
    %p486 = por %p484, %p485
    %p487 = scmp.le.s32.totalorder 1, %s28
    %p488 = scmp.lt.s32.totalorder %s28, 3
    %p489 = pnand %p487, %p488
    %p490 = pneg %p489
    // Predicated region
    $region9: #{tpu_custom_call.1} parent=5 // pred_check
      _
    $region10: #{tpu_custom_call.1} parent=5 // pred_check_branch
      %492 = sbr.rel (%p489) target = $region12
    $region11: #{tpu_custom_call.1} parent=5 // pred_region
      %s493 = ssub.s32 %s28, 1
      // Predicated region
      $region13: #{tpu_custom_call.1} parent=11 // pred_check
        %p494 = pneg %p75
      $region14: #{tpu_custom_call.1} parent=11 // pred_check_branch
        %496 = sbr.rel (%p494) target = $region16
      $region15: #{tpu_custom_call.1} parent=11 // pred_region
        _
      $region16: #{tpu_custom_call.1} parent=11 // pred_fallthru
        _
      // Predicated region
      $region17: #{tpu_custom_call.1} parent=11 // pred_check
        %p497 = pneg %p96
      $region18: #{tpu_custom_call.1} parent=11 // pred_check_branch
        %499 = sbr.rel (%p497) target = $region20
      $region19: #{tpu_custom_call.1} parent=11 // pred_region
        _
      $region20: #{tpu_custom_call.1} parent=11 // pred_fallthru
        _
      // Predicated region
      $region21: #{tpu_custom_call.1} parent=11 // pred_check
        %p500 = pneg %p117
      $region22: #{tpu_custom_call.1} parent=11 // pred_check_branch
        %502 = sbr.rel (%p500) target = $region24
      $region23: #{tpu_custom_call.1} parent=11 // pred_region
        _
      $region24: #{tpu_custom_call.1} parent=11 // pred_fallthru
        _
      // Predicated region
      $region25: #{tpu_custom_call.1} parent=11 // pred_check
        %p503 = pneg %p138
      $region26: #{tpu_custom_call.1} parent=11 // pred_check_branch
        %505 = sbr.rel (%p503) target = $region28
      $region27: #{tpu_custom_call.1} parent=11 // pred_region
        _
      $region28: #{tpu_custom_call.1} parent=11 // pred_fallthru
        _
      // Predicated region
      $region29: #{tpu_custom_call.1} parent=11 // pred_check
        %p506 = pneg %p159
      $region30: #{tpu_custom_call.1} parent=11 // pred_check_branch
        %508 = sbr.rel (%p506) target = $region32
      $region31: #{tpu_custom_call.1} parent=11 // pred_region
        _
      $region32: #{tpu_custom_call.1} parent=11 // pred_fallthru
        _
      // Predicated region
      $region33: #{tpu_custom_call.1} parent=11 // pred_check
        %p509 = pneg %p180
      $region34: #{tpu_custom_call.1} parent=11 // pred_check_branch
        %511 = sbr.rel (%p509) target = $region36
      $region35: #{tpu_custom_call.1} parent=11 // pred_region
        _
      $region36: #{tpu_custom_call.1} parent=11 // pred_fallthru
        _
      // Predicated region
      $region37: #{tpu_custom_call.1} parent=11 // pred_check
        %p512 = pneg %p201
      $region38: #{tpu_custom_call.1} parent=11 // pred_check_branch
        %514 = sbr.rel (%p512) target = $region40
      $region39: #{tpu_custom_call.1} parent=11 // pred_region
        _
      $region40: #{tpu_custom_call.1} parent=11 // pred_fallthru
        _
      // Predicated region
      $region41: #{tpu_custom_call.1} parent=11 // pred_check
        %p515 = pneg %p222
      $region42: #{tpu_custom_call.1} parent=11 // pred_check_branch
        %517 = sbr.rel (%p515) target = $region44
      $region43: #{tpu_custom_call.1} parent=11 // pred_region
        _
      $region44: #{tpu_custom_call.1} parent=11 // pred_fallthru
        _
      // Predicated region
      $region45: #{tpu_custom_call.1} parent=11 // pred_check
        %p518 = pneg %p243
      $region46: #{tpu_custom_call.1} parent=11 // pred_check_branch
        %520 = sbr.rel (%p518) target = $region48
      $region47: #{tpu_custom_call.1} parent=11 // pred_region
        _
      $region48: #{tpu_custom_call.1} parent=11 // pred_fallthru
        _
      // Predicated region
      $region49: #{tpu_custom_call.1} parent=11 // pred_check
        %p521 = pneg %p264
      $region50: #{tpu_custom_call.1} parent=11 // pred_check_branch
        %523 = sbr.rel (%p521) target = $region52
      $region51: #{tpu_custom_call.1} parent=11 // pred_region
        _
      $region52: #{tpu_custom_call.1} parent=11 // pred_fallthru
        _
      // Predicated region
      $region53: #{tpu_custom_call.1} parent=11 // pred_check
        %p524 = pneg %p285
      $region54: #{tpu_custom_call.1} parent=11 // pred_check_branch
        %526 = sbr.rel (%p524) target = $region56
      $region55: #{tpu_custom_call.1} parent=11 // pred_region
        _
      $region56: #{tpu_custom_call.1} parent=11 // pred_fallthru
        _
      // Predicated region
      $region57: #{tpu_custom_call.1} parent=11 // pred_check
        %p527 = pneg %p306
      $region58: #{tpu_custom_call.1} parent=11 // pred_check_branch
        %529 = sbr.rel (%p527) target = $region60
      $region59: #{tpu_custom_call.1} parent=11 // pred_region
        _
      $region60: #{tpu_custom_call.1} parent=11 // pred_fallthru
        _
      // Predicated region
      $region61: #{tpu_custom_call.1} parent=11 // pred_check
        %p530 = pneg %p327
      $region62: #{tpu_custom_call.1} parent=11 // pred_check_branch
        %532 = sbr.rel (%p530) target = $region64
      $region63: #{tpu_custom_call.1} parent=11 // pred_region
        _
      $region64: #{tpu_custom_call.1} parent=11 // pred_fallthru
        _
      // Predicated region
      $region65: #{tpu_custom_call.1} parent=11 // pred_check
        %p533 = pneg %p348
      $region66: #{tpu_custom_call.1} parent=11 // pred_check_branch
        %535 = sbr.rel (%p533) target = $region68
      $region67: #{tpu_custom_call.1} parent=11 // pred_region
        _
      $region68: #{tpu_custom_call.1} parent=11 // pred_fallthru
        _
      // Predicated region
      $region69: #{tpu_custom_call.1} parent=11 // pred_check
        %p536 = pneg %p369
      $region70: #{tpu_custom_call.1} parent=11 // pred_check_branch
        %538 = sbr.rel (%p536) target = $region72
      $region71: #{tpu_custom_call.1} parent=11 // pred_region
        _
      $region72: #{tpu_custom_call.1} parent=11 // pred_fallthru
        _
      // Predicated region
      $region73: #{tpu_custom_call.1} parent=11 // pred_check
        %p539 = pneg %p390
      $region74: #{tpu_custom_call.1} parent=11 // pred_check_branch
        %541 = sbr.rel (%p539) target = $region76
      $region75: #{tpu_custom_call.1} parent=11 // pred_region
        _
      $region76: #{tpu_custom_call.1} parent=11 // pred_fallthru
        _
      // Predicated region
      $region77: #{tpu_custom_call.1} parent=11 // pred_check
        %p542 = pneg %p411
      $region78: #{tpu_custom_call.1} parent=11 // pred_check_branch
        %544 = sbr.rel (%p542) target = $region80
      $region79: #{tpu_custom_call.1} parent=11 // pred_region
        _
      $region80: #{tpu_custom_call.1} parent=11 // pred_fallthru
        _
      // Predicated region
      $region81: #{tpu_custom_call.1} parent=11 // pred_check
        %p545 = pneg %p432
      $region82: #{tpu_custom_call.1} parent=11 // pred_check_branch
        %547 = sbr.rel (%p545) target = $region84
      $region83: #{tpu_custom_call.1} parent=11 // pred_region
        _
      $region84: #{tpu_custom_call.1} parent=11 // pred_fallthru
        _
      // Predicated region
      $region85: #{tpu_custom_call.1} parent=11 // pred_check
        %p548 = pneg %p453
      $region86: #{tpu_custom_call.1} parent=11 // pred_check_branch
        %550 = sbr.rel (%p548) target = $region88
      $region87: #{tpu_custom_call.1} parent=11 // pred_region
        _
      $region88: #{tpu_custom_call.1} parent=11 // pred_fallthru
        _
    $region12: #{tpu_custom_call.1} parent=5 // pred_fallthru
      _
    %p551 = scmp.lt.s32.totalorder %s28, 2
    // Predicated region
    $region89: #{tpu_custom_call.1} parent=5 // pred_check
      %p552 = pneg %p551
    $region90: #{tpu_custom_call.1} parent=5 // pred_check_branch
      %554 = sbr.rel (%p552) target = $region92
    $region91: #{tpu_custom_call.1} parent=5 // pred_region
      // Predicated region
      $region93: #{tpu_custom_call.1} parent=91 // pred_check
        %p555 = pneg %p48
      $region94: #{tpu_custom_call.1} parent=91 // pred_check_branch
        %557 = sbr.rel (%p555) target = $region96
      $region95: #{tpu_custom_call.1} parent=91 // pred_region
        %s558 = smul.u32 16, %s28
        %p559 = scmp.lt.s32.totalorder %s558, 31
        %s560 = scalar_select %p559, %s558, 31
        %s561 = smul.addr %s560, 8
        %s562 = scalar_lea.vmem %s0, %s561
        %s563 = smul.u32 16, %s28
      $region96: #{tpu_custom_call.1} parent=91 // pred_fallthru
        _
    $region92: #{tpu_custom_call.1} parent=5 // pred_fallthru
      _
    %p564 = scmp.le.s32.totalorder 1, %s28
    %p565 = scmp.lt.s32.totalorder %s28, 3
    %p566 = pnand %p564, %p565
    %p567 = pneg %p566
    // Predicated region
    $region97: #{tpu_custom_call.1} parent=5 // pred_check
      _
    $region98: #{tpu_custom_call.1} parent=5 // pred_check_branch
      %569 = sbr.rel (%p566) target = $region100
    $region99: #{tpu_custom_call.1} parent=5 // pred_region
      %s570 = ssub.s32 %s28, 1
      %s571 = smul.u32 16, %s33
      %p572 = scmp.lt.s32.totalorder %s571, 31
      %s573 = scalar_select %p572, %s571, 31
      %s574 = smul.addr %s573, 8
      %s575 = scalar_lea.vmem %s0, %s574
      %p576 = pneg %p54
      %p577 = pneg %p51
      %p578 = pneg %p75
      %p579 = pneg %p72
      %p580 = pneg %p96
      %p581 = pneg %p93
      %p582 = pneg %p117
      %p583 = pneg %p114
      %p584 = pneg %p138
      %p585 = pneg %p135
      %p586 = pneg %p159
      %p587 = pneg %p156
      %p588 = pneg %p180
      %p589 = pneg %p177
      %p590 = pneg %p201
      %p591 = pneg %p198
      %p592 = pneg %p222
      %p593 = pneg %p219
      %p594 = pneg %p243
      %p595 = pneg %p240
      %p596 = pneg %p264
      %p597 = pneg %p261
      %p598 = pneg %p285
      %p599 = pneg %p282
      %p600 = pneg %p306
      %p601 = pneg %p303
      %p602 = pneg %p327
      %p603 = pneg %p324
      %p604 = pneg %p348
      %p605 = pneg %p345
      %p606 = pneg %p369
      %p607 = pneg %p366
      %p608 = pneg %p390
      %p609 = pneg %p387
      %p610 = pneg %p411
      %p611 = pneg %p408
      %p612 = pneg %p432
      %p613 = pneg %p429
      %p614 = pneg %p453
      %p615 = pneg %p450
      %p616 = pneg %p479
      %p617 = pneg %p476
      %s618 = smul.u32 16, %s33
      %p619 = scmp.lt.s32.totalorder %s618, 31
      %s620 = scalar_select %p619, %s618, 31
      %s621 = smul.addr %s620, 8
      %s622 = scalar_lea.vmem %s20, %s621
      %s623 = smul.u32 16, %s33
      %p624 = scmp.lt.s32.totalorder %s623, 31
      %s625 = scalar_select %p624, %s623, 31
      %s626 = smul.addr %s625, 8
      %s627 = scalar_lea.vmem %s0, %s626
      %s628 = smul.u32 16, %s33
      %s629 = smul.u32 16, %s33
      %p630 = scmp.lt.s32.totalorder %s629, 31
      %s631 = scalar_select %p630, %s629, 31
      %s632 = smul.addr %s631, 8
      %s633 = scalar_lea.vmem %s20, %s632
      %s634 = smul.u32 16, %s33
      %v635 = vld [vmem:[%s627] sm:$0xff]
      %v636 = vld [vmem:[%s627 + $0x8] sm:$0xff]
      %v637 = vld [vmem:[%s627 + $0x10] sm:$0xff]
      %v638 = vld [vmem:[%s627 + $0x18] sm:$0xff]
      %v639 = vld [vmem:[%s627 + $0x20] sm:$0xff]
      %v640 = vld [vmem:[%s627 + $0x28] sm:$0xff]
      %v641 = vld [vmem:[%s627 + $0x30] sm:$0xff]
      %v642 = vld [vmem:[%s627 + $0x38] sm:$0xff]
      %v643 = vld [vmem:[%s627 + $0x40] sm:$0xff]
      %v644 = vld [vmem:[%s627 + $0x48] sm:$0xff]
      %v645 = vld [vmem:[%s627 + $0x50] sm:$0xff]
      %v646 = vld [vmem:[%s627 + $0x58] sm:$0xff]
      %v647 = vld [vmem:[%s627 + $0x60] sm:$0xff]
      %v648 = vld [vmem:[%s627 + $0x68] sm:$0xff]
      %v649 = vld [vmem:[%s627 + $0x70] sm:$0xff]
      %v650 = vld [vmem:[%s627 + $0x78] sm:$0xff]
      %v651 = vld [vmem:[%s1] sm:$0xff]
      %v652 = vld [vmem:[%s1 + $0x8] sm:$0xff]
      %v653 = vld [vmem:[%s1 + $0x10] sm:$0xff]
      %v654 = vld [vmem:[%s1 + $0x18] sm:$0xff]
      %v655 = vld [vmem:[%s2] sm:$0x3]
      %v657 = vlaneseq
      %v658 = vshrl.u32 %v657, 7
      %v659 = vsub.s32 0, %v658
      %v660 = vrot.slane %v655, %v659
      %v661 = vlaneseq
      %v662 = vshrl.u32 %v661, 7
      %v663 = vsub.s32 1, %v662
      %v664 = vrot.slane %v655, %v663
      %vm667 = vcmask 130048
      %v669 = vsel %vm667, %v635, 0
      %v672 = vsel %vm667, %v636, 0
      %v675 = vsel %vm667, %v637, 0
      %v678 = vsel %vm667, %v638, 0
      %v681 = vsel %vm667, %v639, 0
      %v684 = vsel %vm667, %v640, 0
      %v687 = vsel %vm667, %v641, 0
      %v690 = vsel %vm667, %v642, 0
      %v693 = vsel %vm667, %v643, 0
      %v696 = vsel %vm667, %v644, 0
      %v699 = vsel %vm667, %v645, 0
      %v702 = vsel %vm667, %v646, 0
      %v705 = vsel %vm667, %v647, 0
      %v708 = vsel %vm667, %v648, 0
      %v711 = vsel %vm667, %v649, 0
      %v714 = vsel %vm667, %v650, 0
      %716 = vmatprep.subr.mxu0 %v652
      %717 = vmatpush1.msra.mxu0 %v651
      %718 = vmatprep.subr.mxu0 %v654
      %719 = vmatpush1.msra.mxu0 %v653
      %720 = vmatprep.subr.mxu0 0.0
      %721 = vmatpush1.msra.mxu0 0.0
      %722 = vmatprep.subr.mxu0 0.0
      %723 = vmatpush1.msra.mxu0 0.0
      %724 = vmatprep.subr.mxu0 0.0
      %725 = vmatpush1.msra.mxu0 0.0
      %726 = vmatprep.subr.mxu0 0.0
      %727 = vmatpush1.msra.mxu0 0.0
      %728 = vmatprep.subr.mxu0 0.0
      %729 = vmatpush1.msra.mxu0 0.0
      %730 = vmatprep.subr.mxu0 0.0
      %731 = vmatpush1.msra.mxu0 0.0
      %732 = vmatprep.subr.mxu0 0.0
      %733 = vmatpush1.msra.mxu0 0.0
      %734 = vmatprep.subr.mxu0 0.0
      %735 = vmatpush1.msra.mxu0 0.0
      %736 = vmatprep.subr.mxu0 0.0
      %737 = vmatpush1.msra.mxu0 0.0
      %738 = vmatprep.subr.mxu0 0.0
      %739 = vmatpush1.msra.mxu0 0.0
      %740 = vmatprep.subr.mxu0 0.0
      %741 = vmatpush1.msra.mxu0 0.0
      %742 = vmatprep.subr.mxu0 0.0
      %743 = vmatpush1.msra.mxu0 0.0
      %744 = vmatprep.subr.mxu0 0.0
      %745 = vmatpush1.msra.mxu0 0.0
      %746 = vmatprep.subr.mxu0 0.0
      %747 = vmatpush1.msra.mxu0 0.0
      %748 = vmatprep.subr.mxu0 0.0
      %749 = vmatpush1.msra.mxu0 0.0
      %750 = vmatprep.subr.mxu0 0.0
      %751 = vmatpush1.msra.mxu0 0.0
      %752 = vmatprep.subr.mxu0 0.0
      %753 = vmatpush1.msra.mxu0 0.0
      %754 = vmatprep.subr.mxu0 0.0
      %755 = vmatpush1.msra.mxu0 0.0
      %756 = vmatprep.subr.mxu0 0.0
      %757 = vmatpush1.msra.mxu0 0.0
      %758 = vmatprep.subr.mxu0 0.0
      %759 = vmatpush1.msra.mxu0 0.0
      %760 = vmatprep.subr.mxu0 0.0
      %761 = vmatpush1.msra.mxu0 0.0
      %762 = vmatprep.subr.mxu0 0.0
      %763 = vmatpush1.msra.mxu0 0.0
      %764 = vmatprep.subr.mxu0 0.0
      %765 = vmatpush1.msra.mxu0 0.0
      %766 = vmatprep.subr.mxu0 0.0
      %767 = vmatpush1.msra.mxu0 0.0
      %768 = vmatprep.subr.mxu0 0.0
      %769 = vmatpush1.msra.mxu0 0.0
      %770 = vmatprep.subr.mxu0 0.0
      %771 = vmatpush1.msra.mxu0 0.0
      %772 = vmatprep.subr.mxu0 0.0
      %773 = vmatpush1.msra.mxu0 0.0
      %774 = vmatprep.subr.mxu0 0.0
      %775 = vmatpush1.msra.mxu0 0.0
      %776 = vmatprep.subr.mxu0 0.0
      %777 = vmatpush1.msra.mxu0 0.0
      %778 = vmatprep.subr.mxu0 0.0
      %779 = vmatpush1.msra.mxu0 0.0
      %780 = vmatprep.mubr.f32.mxu0 0.0
      %781 = vmatmul.mubr.f32.gmra.mrb[0].mxu0 %v669
      %v782 = vpop.f32.mrb[0].mxu0
      %v783 = vadd.f32 %v660, %v782
      %v784 = vpop.f32.mrb[0].mxu0
      %v785 = vadd.f32 %v664, %v784
      %786 = vmatprep.mubr.f32.mxu0 0.0
      %787 = vmatmul.mubr.f32.gmra.mrb[0].mxu0 %v672
      %v788 = vpop.f32.mrb[0].mxu0
      %v789 = vadd.f32 %v660, %v788
      %v790 = vpop.f32.mrb[0].mxu0
      %v791 = vadd.f32 %v664, %v790
      %792 = vmatprep.mubr.f32.mxu0 0.0
      %793 = vmatmul.mubr.f32.gmra.mrb[0].mxu0 %v675
      %v794 = vpop.f32.mrb[0].mxu0
      %v795 = vadd.f32 %v660, %v794
      %v796 = vpop.f32.mrb[0].mxu0
      %v797 = vadd.f32 %v664, %v796
      %798 = vmatprep.mubr.f32.mxu0 0.0
      %799 = vmatmul.mubr.f32.gmra.mrb[0].mxu0 %v678
      %v800 = vpop.f32.mrb[0].mxu0
      %v801 = vadd.f32 %v660, %v800
      %v802 = vpop.f32.mrb[0].mxu0
      %v803 = vadd.f32 %v664, %v802
      %804 = vmatprep.mubr.f32.mxu0 0.0
      %805 = vmatmul.mubr.f32.gmra.mrb[0].mxu0 %v681
      %v806 = vpop.f32.mrb[0].mxu0
      %v807 = vadd.f32 %v660, %v806
      %v808 = vpop.f32.mrb[0].mxu0
      %v809 = vadd.f32 %v664, %v808
      %810 = vmatprep.mubr.f32.mxu0 0.0
      %811 = vmatmul.mubr.f32.gmra.mrb[0].mxu0 %v684
      %v812 = vpop.f32.mrb[0].mxu0
      %v813 = vadd.f32 %v660, %v812
      %v814 = vpop.f32.mrb[0].mxu0
      %v815 = vadd.f32 %v664, %v814
      %816 = vmatprep.mubr.f32.mxu0 0.0
      %817 = vmatmul.mubr.f32.gmra.mrb[0].mxu0 %v687
      %v818 = vpop.f32.mrb[0].mxu0
      %v819 = vadd.f32 %v660, %v818
      %v820 = vpop.f32.mrb[0].mxu0
      %v821 = vadd.f32 %v664, %v820
      %822 = vmatprep.mubr.f32.mxu0 0.0
      %823 = vmatmul.mubr.f32.gmra.mrb[0].mxu0 %v690
      %v824 = vpop.f32.mrb[0].mxu0
      %v825 = vadd.f32 %v660, %v824
      %v826 = vpop.f32.mrb[0].mxu0
      %v827 = vadd.f32 %v664, %v826
      %828 = vmatprep.mubr.f32.mxu0 0.0
      %829 = vmatmul.mubr.f32.gmra.mrb[0].mxu0 %v693
      %v830 = vpop.f32.mrb[0].mxu0
      %v831 = vadd.f32 %v660, %v830
      %v832 = vpop.f32.mrb[0].mxu0
      %v833 = vadd.f32 %v664, %v832
      %834 = vmatprep.mubr.f32.mxu0 0.0
      %835 = vmatmul.mubr.f32.gmra.mrb[0].mxu0 %v696
      %v836 = vpop.f32.mrb[0].mxu0
      %v837 = vadd.f32 %v660, %v836
      %v838 = vpop.f32.mrb[0].mxu0
      %v839 = vadd.f32 %v664, %v838
      %840 = vmatprep.mubr.f32.mxu0 0.0
      %841 = vmatmul.mubr.f32.gmra.mrb[0].mxu0 %v699
      %v842 = vpop.f32.mrb[0].mxu0
      %v843 = vadd.f32 %v660, %v842
      %v844 = vpop.f32.mrb[0].mxu0
      %v845 = vadd.f32 %v664, %v844
      %846 = vmatprep.mubr.f32.mxu0 0.0
      %847 = vmatmul.mubr.f32.gmra.mrb[0].mxu0 %v702
      %v848 = vpop.f32.mrb[0].mxu0
      %v849 = vadd.f32 %v660, %v848
      %v850 = vpop.f32.mrb[0].mxu0
      %v851 = vadd.f32 %v664, %v850
      %852 = vmatprep.mubr.f32.mxu0 0.0
      %853 = vmatmul.mubr.f32.gmra.mrb[0].mxu0 %v705
      %v854 = vpop.f32.mrb[0].mxu0
      %v855 = vadd.f32 %v660, %v854
      %v856 = vpop.f32.mrb[0].mxu0
      %v857 = vadd.f32 %v664, %v856
      %858 = vmatprep.mubr.f32.mxu0 0.0
      %859 = vmatmul.mubr.f32.gmra.mrb[0].mxu0 %v708
      %v860 = vpop.f32.mrb[0].mxu0
      %v861 = vadd.f32 %v660, %v860
      %v862 = vpop.f32.mrb[0].mxu0
      %v863 = vadd.f32 %v664, %v862
      %864 = vmatprep.mubr.f32.mxu0 0.0
      %865 = vmatmul.mubr.f32.gmra.mrb[0].mxu0 %v711
      %v866 = vpop.f32.mrb[0].mxu0
      %v867 = vadd.f32 %v660, %v866
      %v868 = vpop.f32.mrb[0].mxu0
      %v869 = vadd.f32 %v664, %v868
      %870 = vmatprep.mubr.f32.mxu0 0.0
      %871 = vmatmul.mubr.f32.gmra.mrb[0].mxu0 %v714
      %v872 = vpop.f32.mrb[0].mxu0
      %v873 = vadd.f32 %v660, %v872
      %v874 = vpop.f32.mrb[0].mxu0
      %v875 = vadd.f32 %v664, %v874
      %876 = vdwg.mxu0
      %v877 = vld [vmem:[%s3] sm:$0xff]
      %v878 = vld [vmem:[%s3 + $0x8] sm:$0xff]
      %v879 = vld [vmem:[%s4] sm:$0x1]
      %v881 = vlaneseq
      %v882 = vshrl.u32 %v881, 7
      %v883 = vsub.s32 0, %v882
      %v884 = vrot.slane %v879, %v883
      %886 = vmatprep.subr.mxu0 0.0
      %887 = vmatpush1.msra.mxu0 %v877
      %888 = vmatprep.subr.mxu0 0.0
      %889 = vmatpush1.msra.mxu0 %v878
      %890 = vmatprep.subr.mxu0 0.0
      %891 = vmatpush1.msra.mxu0 0.0
      %892 = vmatprep.subr.mxu0 0.0
      %893 = vmatpush1.msra.mxu0 0.0
      %894 = vmatprep.subr.mxu0 0.0
      %895 = vmatpush1.msra.mxu0 0.0
      %896 = vmatprep.subr.mxu0 0.0
      %897 = vmatpush1.msra.mxu0 0.0
      %898 = vmatprep.subr.mxu0 0.0
      %899 = vmatpush1.msra.mxu0 0.0
      %900 = vmatprep.subr.mxu0 0.0
      %901 = vmatpush1.msra.mxu0 0.0
      %902 = vmatprep.subr.mxu0 0.0
      %903 = vmatpush1.msra.mxu0 0.0
      %904 = vmatprep.subr.mxu0 0.0
      %905 = vmatpush1.msra.mxu0 0.0
      %906 = vmatprep.subr.mxu0 0.0
      %907 = vmatpush1.msra.mxu0 0.0
      %908 = vmatprep.subr.mxu0 0.0
      %909 = vmatpush1.msra.mxu0 0.0
      %910 = vmatprep.subr.mxu0 0.0
      %911 = vmatpush1.msra.mxu0 0.0
      %912 = vmatprep.subr.mxu0 0.0
      %913 = vmatpush1.msra.mxu0 0.0
      %914 = vmatprep.subr.mxu0 0.0
      %915 = vmatpush1.msra.mxu0 0.0
      %916 = vmatprep.subr.mxu0 0.0
      %917 = vmatpush1.msra.mxu0 0.0
      %918 = vmatprep.subr.mxu0 0.0
      %919 = vmatpush1.msra.mxu0 0.0
      %920 = vmatprep.subr.mxu0 0.0
      %921 = vmatpush1.msra.mxu0 0.0
      %922 = vmatprep.subr.mxu0 0.0
      %923 = vmatpush1.msra.mxu0 0.0
      %924 = vmatprep.subr.mxu0 0.0
      %925 = vmatpush1.msra.mxu0 0.0
      %926 = vmatprep.subr.mxu0 0.0
      %927 = vmatpush1.msra.mxu0 0.0
      %928 = vmatprep.subr.mxu0 0.0
      %929 = vmatpush1.msra.mxu0 0.0
      %930 = vmatprep.subr.mxu0 0.0
      %931 = vmatpush1.msra.mxu0 0.0
      %932 = vmatprep.subr.mxu0 0.0
      %933 = vmatpush1.msra.mxu0 0.0
      %934 = vmatprep.subr.mxu0 0.0
      %935 = vmatpush1.msra.mxu0 0.0
      %936 = vmatprep.subr.mxu0 0.0
      %937 = vmatpush1.msra.mxu0 0.0
      %938 = vmatprep.subr.mxu0 0.0
      %939 = vmatpush1.msra.mxu0 0.0
      %940 = vmatprep.subr.mxu0 0.0
      %941 = vmatpush1.msra.mxu0 0.0
      %942 = vmatprep.subr.mxu0 0.0
      %943 = vmatpush1.msra.mxu0 0.0
      %944 = vmatprep.subr.mxu0 0.0
      %945 = vmatpush1.msra.mxu0 0.0
      %946 = vmatprep.subr.mxu0 0.0
      %947 = vmatpush1.msra.mxu0 0.0
      %948 = vmatprep.subr.mxu0 0.0
      %949 = vmatpush1.msra.mxu0 0.0
      %950 = vmatprep.mubr.f32.mxu0 0.0
      %951 = vmatmul.mubr.f32.gmra.mrb[0].mxu0 %v669
      %v952 = vpop.f32.mrb[0].mxu0
      %v953 = vadd.f32 %v884, %v952
      %v954 = vpop.f32.mrb[0].mxu0
      %955 = vmatprep.mubr.f32.mxu0 0.0
      %956 = vmatmul.mubr.f32.gmra.mrb[0].mxu0 %v672
      %v957 = vpop.f32.mrb[0].mxu0
      %v958 = vadd.f32 %v884, %v957
      %v959 = vpop.f32.mrb[0].mxu0
      %960 = vmatprep.mubr.f32.mxu0 0.0
      %961 = vmatmul.mubr.f32.gmra.mrb[0].mxu0 %v675
      %v962 = vpop.f32.mrb[0].mxu0
      %v963 = vadd.f32 %v884, %v962
      %v964 = vpop.f32.mrb[0].mxu0
      %965 = vmatprep.mubr.f32.mxu0 0.0
      %966 = vmatmul.mubr.f32.gmra.mrb[0].mxu0 %v678
      %v967 = vpop.f32.mrb[0].mxu0
      %v968 = vadd.f32 %v884, %v967
      %v969 = vpop.f32.mrb[0].mxu0
      %970 = vmatprep.mubr.f32.mxu0 0.0
      %971 = vmatmul.mubr.f32.gmra.mrb[0].mxu0 %v681
      %v972 = vpop.f32.mrb[0].mxu0
      %v973 = vadd.f32 %v884, %v972
      %v974 = vpop.f32.mrb[0].mxu0
      %975 = vmatprep.mubr.f32.mxu0 0.0
      %976 = vmatmul.mubr.f32.gmra.mrb[0].mxu0 %v684
      %v977 = vpop.f32.mrb[0].mxu0
      %v978 = vadd.f32 %v884, %v977
      %v979 = vpop.f32.mrb[0].mxu0
      %980 = vmatprep.mubr.f32.mxu0 0.0
      %981 = vmatmul.mubr.f32.gmra.mrb[0].mxu0 %v687
      %v982 = vpop.f32.mrb[0].mxu0
      %v983 = vadd.f32 %v884, %v982
      %v984 = vpop.f32.mrb[0].mxu0
      %985 = vmatprep.mubr.f32.mxu0 0.0
      %986 = vmatmul.mubr.f32.gmra.mrb[0].mxu0 %v690
      %v987 = vpop.f32.mrb[0].mxu0
      %v988 = vadd.f32 %v884, %v987
      %v989 = vpop.f32.mrb[0].mxu0
      %990 = vmatprep.mubr.f32.mxu0 0.0
      %991 = vmatmul.mubr.f32.gmra.mrb[0].mxu0 %v693
      %v992 = vpop.f32.mrb[0].mxu0
      %v993 = vadd.f32 %v884, %v992
      %v994 = vpop.f32.mrb[0].mxu0
      %995 = vmatprep.mubr.f32.mxu0 0.0
      %996 = vmatmul.mubr.f32.gmra.mrb[0].mxu0 %v696
      %v997 = vpop.f32.mrb[0].mxu0
      %v998 = vadd.f32 %v884, %v997
      %v999 = vpop.f32.mrb[0].mxu0
      %1000 = vmatprep.mubr.f32.mxu0 0.0
      %1001 = vmatmul.mubr.f32.gmra.mrb[0].mxu0 %v699
      %v1002 = vpop.f32.mrb[0].mxu0
      %v1003 = vadd.f32 %v884, %v1002
      %v1004 = vpop.f32.mrb[0].mxu0
      %1005 = vmatprep.mubr.f32.mxu0 0.0
      %1006 = vmatmul.mubr.f32.gmra.mrb[0].mxu0 %v702
      %v1007 = vpop.f32.mrb[0].mxu0
      %v1008 = vadd.f32 %v884, %v1007
      %v1009 = vpop.f32.mrb[0].mxu0
      %1010 = vmatprep.mubr.f32.mxu0 0.0
      %1011 = vmatmul.mubr.f32.gmra.mrb[0].mxu0 %v705
      %v1012 = vpop.f32.mrb[0].mxu0
      %v1013 = vadd.f32 %v884, %v1012
      %v1014 = vpop.f32.mrb[0].mxu0
      %1015 = vmatprep.mubr.f32.mxu0 0.0
      %1016 = vmatmul.mubr.f32.gmra.mrb[0].mxu0 %v708
      %v1017 = vpop.f32.mrb[0].mxu0
      %v1018 = vadd.f32 %v884, %v1017
      %v1019 = vpop.f32.mrb[0].mxu0
      %1020 = vmatprep.mubr.f32.mxu0 0.0
      %1021 = vmatmul.mubr.f32.gmra.mrb[0].mxu0 %v711
      %v1022 = vpop.f32.mrb[0].mxu0
      %v1023 = vadd.f32 %v884, %v1022
      %v1024 = vpop.f32.mrb[0].mxu0
      %1025 = vmatprep.mubr.f32.mxu0 0.0
      %1026 = vmatmul.mubr.f32.gmra.mrb[0].mxu0 %v714
      %v1027 = vpop.f32.mrb[0].mxu0
      %v1028 = vadd.f32 %v884, %v1027
      %v1029 = vpop.f32.mrb[0].mxu0
      %1030 = vdwg.mxu0
      %v1031 = vld [vmem:[%s9] sm:$0xff]
      %v1032 = vld [vmem:[%s9 + $0x8] sm:$0xff]
      %v1033 = vld [vmem:[%s9 + $0x10] sm:$0xff]
      %v1034 = vld [vmem:[%s9 + $0x18] sm:$0xff]
      %v1035 = vld [vmem:[%s9 + $0x20] sm:$0xff]
      %v1036 = vld [vmem:[%s9 + $0x28] sm:$0xff]
      %v1037 = vld [vmem:[%s9 + $0x30] sm:$0xff]
      %v1038 = vld [vmem:[%s9 + $0x38] sm:$0xff]
      %v1039 = vld [vmem:[%s9 + $0x40] sm:$0xff]
      %v1040 = vld [vmem:[%s9 + $0x48] sm:$0xff]
      %v1041 = vld [vmem:[%s9 + $0x50] sm:$0xff]
      %v1042 = vld [vmem:[%s9 + $0x58] sm:$0xff]
      %v1043 = vld [vmem:[%s9 + $0x60] sm:$0xff]
      %v1044 = vld [vmem:[%s9 + $0x68] sm:$0xff]
      %v1045 = vld [vmem:[%s9 + $0x70] sm:$0xff]
      %v1046 = vld [vmem:[%s9 + $0x78] sm:$0xff]
      %s1047 = scalar_lea.vmem %s9, 128
      %v1048 = vld [vmem:[%s1047] sm:$0xff]
      %v1049 = vld [vmem:[%s1047 + $0x8] sm:$0xff]
      %v1050 = vld [vmem:[%s1047 + $0x10] sm:$0xff]
      %v1051 = vld [vmem:[%s1047 + $0x18] sm:$0xff]
      %v1052 = vld [vmem:[%s1047 + $0x20] sm:$0xff]
      %v1053 = vld [vmem:[%s1047 + $0x28] sm:$0xff]
      %v1054 = vld [vmem:[%s1047 + $0x30] sm:$0xff]
      %v1055 = vld [vmem:[%s1047 + $0x38] sm:$0xff]
      %v1056 = vld [vmem:[%s1047 + $0x40] sm:$0xff]
      %v1057 = vld [vmem:[%s1047 + $0x48] sm:$0xff]
      %v1058 = vld [vmem:[%s1047 + $0x50] sm:$0xff]
      %v1059 = vld [vmem:[%s1047 + $0x58] sm:$0xff]
      %v1060 = vld [vmem:[%s1047 + $0x60] sm:$0xff]
      %v1061 = vld [vmem:[%s1047 + $0x68] sm:$0xff]
      %v1062 = vld [vmem:[%s1047 + $0x70] sm:$0xff]
      %v1063 = vld [vmem:[%s1047 + $0x78] sm:$0xff]
      %v1064 = vld [vmem:[%s5] sm:$0xff]
      %v1065 = vld [vmem:[%s5 + $0x8] sm:$0xff]
      %v1066 = vld [vmem:[%s5 + $0x10] sm:$0xff]
      %v1067 = vld [vmem:[%s5 + $0x18] sm:$0xff]
      %v1068 = vld [vmem:[%s5 + $0x20] sm:$0xff]
      %v1069 = vld [vmem:[%s5 + $0x28] sm:$0xff]
      %v1070 = vld [vmem:[%s5 + $0x30] sm:$0xff]
      %v1071 = vld [vmem:[%s5 + $0x38] sm:$0xff]
      %v1072 = vld [vmem:[%s5 + $0x40] sm:$0xff]
      %v1073 = vld [vmem:[%s5 + $0x48] sm:$0xff]
      %v1074 = vld [vmem:[%s5 + $0x50] sm:$0xff]
      %v1075 = vld [vmem:[%s5 + $0x58] sm:$0xff]
      %v1076 = vld [vmem:[%s5 + $0x60] sm:$0xff]
      %v1077 = vld [vmem:[%s5 + $0x68] sm:$0xff]
      %v1078 = vld [vmem:[%s5 + $0x70] sm:$0xff]
      %v1079 = vld [vmem:[%s5 + $0x78] sm:$0xff]
      %v1080 = vld [vmem:[%s5 + $0x80] sm:$0xff]
      %v1081 = vld [vmem:[%s5 + $0x88] sm:$0xff]
      %v1082 = vld [vmem:[%s5 + $0x90] sm:$0xff]
      %v1083 = vld [vmem:[%s5 + $0x98] sm:$0xff]
      %v1084 = vld [vmem:[%s5 + $0xa0] sm:$0xff]
      %v1085 = vld [vmem:[%s5 + $0xa8] sm:$0xff]
      %v1086 = vld [vmem:[%s5 + $0xb0] sm:$0xff]
      %v1087 = vld [vmem:[%s5 + $0xb8] sm:$0xff]
      %v1088 = vld [vmem:[%s5 + $0xc0] sm:$0xff]
      %v1089 = vld [vmem:[%s5 + $0xc8] sm:$0xff]
      %v1090 = vld [vmem:[%s5 + $0xd0] sm:$0xff]
      %v1091 = vld [vmem:[%s5 + $0xd8] sm:$0xff]
      %v1092 = vld [vmem:[%s5 + $0xe0] sm:$0xff]
      %v1093 = vld [vmem:[%s5 + $0xe8] sm:$0xff]
      %v1094 = vld [vmem:[%s5 + $0xf0] sm:$0xff]
      %v1095 = vld [vmem:[%s5 + $0xf8] sm:$0xff]
      %v1096 = vld [vmem:[%s5 + $0x100] sm:$0xff]
      %v1097 = vld [vmem:[%s5 + $0x108] sm:$0xff]
      %v1098 = vld [vmem:[%s5 + $0x110] sm:$0xff]
      %v1099 = vld [vmem:[%s5 + $0x118] sm:$0xff]
      %v1100 = vld [vmem:[%s5 + $0x120] sm:$0xff]
      %v1101 = vld [vmem:[%s5 + $0x128] sm:$0xff]
      %v1102 = vld [vmem:[%s5 + $0x130] sm:$0xff]
      %v1103 = vld [vmem:[%s5 + $0x138] sm:$0xff]
      %v1104 = vld [vmem:[%s5 + $0x140] sm:$0xff]
      %v1105 = vld [vmem:[%s5 + $0x148] sm:$0xff]
      %v1106 = vld [vmem:[%s5 + $0x150] sm:$0xff]
      %v1107 = vld [vmem:[%s5 + $0x158] sm:$0xff]
      %v1108 = vld [vmem:[%s5 + $0x160] sm:$0xff]
      %v1109 = vld [vmem:[%s5 + $0x168] sm:$0xff]
      %v1110 = vld [vmem:[%s5 + $0x170] sm:$0xff]
      %v1111 = vld [vmem:[%s5 + $0x178] sm:$0xff]
      %v1112 = vld [vmem:[%s5 + $0x180] sm:$0xff]
      %v1113 = vld [vmem:[%s5 + $0x188] sm:$0xff]
      %v1114 = vld [vmem:[%s5 + $0x190] sm:$0xff]
      %v1115 = vld [vmem:[%s5 + $0x198] sm:$0xff]
      %v1116 = vld [vmem:[%s5 + $0x1a0] sm:$0xff]
      %v1117 = vld [vmem:[%s5 + $0x1a8] sm:$0xff]
      %v1118 = vld [vmem:[%s5 + $0x1b0] sm:$0xff]
      %v1119 = vld [vmem:[%s5 + $0x1b8] sm:$0xff]
      %v1120 = vld [vmem:[%s5 + $0x1c0] sm:$0xff]
      %v1121 = vld [vmem:[%s5 + $0x1c8] sm:$0xff]
      %v1122 = vld [vmem:[%s5 + $0x1d0] sm:$0xff]
      %v1123 = vld [vmem:[%s5 + $0x1d8] sm:$0xff]
      %v1124 = vld [vmem:[%s5 + $0x1e0] sm:$0xff]
      %v1125 = vld [vmem:[%s5 + $0x1e8] sm:$0xff]
      %v1126 = vld [vmem:[%s5 + $0x1f0] sm:$0xff]
      %v1127 = vld [vmem:[%s5 + $0x1f8] sm:$0xff]
      %v1128 = vld [vmem:[%s5 + $0x200] sm:$0xff]
      %v1129 = vld [vmem:[%s5 + $0x208] sm:$0xff]
      %v1130 = vld [vmem:[%s5 + $0x210] sm:$0xff]
      %v1131 = vld [vmem:[%s5 + $0x218] sm:$0xff]
      %v1132 = vld [vmem:[%s5 + $0x220] sm:$0xff]
      %v1133 = vld [vmem:[%s5 + $0x228] sm:$0xff]
      %v1134 = vld [vmem:[%s5 + $0x230] sm:$0xff]
      %v1135 = vld [vmem:[%s5 + $0x238] sm:$0xff]
      %v1136 = vld [vmem:[%s5 + $0x240] sm:$0xff]
      %v1137 = vld [vmem:[%s5 + $0x248] sm:$0xff]
      %v1138 = vld [vmem:[%s5 + $0x250] sm:$0xff]
      %v1139 = vld [vmem:[%s5 + $0x258] sm:$0xff]
      %v1140 = vld [vmem:[%s5 + $0x260] sm:$0xff]
      %v1141 = vld [vmem:[%s5 + $0x268] sm:$0xff]
      %v1142 = vld [vmem:[%s5 + $0x270] sm:$0xff]
      %v1143 = vld [vmem:[%s5 + $0x278] sm:$0xff]
      %v1144 = vld [vmem:[%s5 + $0x280] sm:$0xff]
      %v1145 = vld [vmem:[%s5 + $0x288] sm:$0xff]
      %v1146 = vld [vmem:[%s5 + $0x290] sm:$0xff]
      %v1147 = vld [vmem:[%s5 + $0x298] sm:$0xff]
      %v1148 = vld [vmem:[%s5 + $0x2a0] sm:$0xff]
      %v1149 = vld [vmem:[%s5 + $0x2a8] sm:$0xff]
      %v1150 = vld [vmem:[%s5 + $0x2b0] sm:$0xff]
      %v1151 = vld [vmem:[%s5 + $0x2b8] sm:$0xff]
      %v1152 = vld [vmem:[%s5 + $0x2c0] sm:$0xff]
      %v1153 = vld [vmem:[%s5 + $0x2c8] sm:$0xff]
      %v1154 = vld [vmem:[%s5 + $0x2d0] sm:$0xff]
      %v1155 = vld [vmem:[%s5 + $0x2d8] sm:$0xff]
      %v1156 = vld [vmem:[%s5 + $0x2e0] sm:$0xff]
      %v1157 = vld [vmem:[%s5 + $0x2e8] sm:$0xff]
      %v1158 = vld [vmem:[%s5 + $0x2f0] sm:$0xff]
      %v1159 = vld [vmem:[%s5 + $0x2f8] sm:$0xff]
      %v1160 = vld [vmem:[%s5 + $0x300] sm:$0xff]
      %v1161 = vld [vmem:[%s5 + $0x308] sm:$0xff]
      %v1162 = vld [vmem:[%s5 + $0x310] sm:$0xff]
      %v1163 = vld [vmem:[%s5 + $0x318] sm:$0xff]
      %v1164 = vld [vmem:[%s5 + $0x320] sm:$0xff]
      %v1165 = vld [vmem:[%s5 + $0x328] sm:$0xff]
      %v1166 = vld [vmem:[%s5 + $0x330] sm:$0xff]
      %v1167 = vld [vmem:[%s5 + $0x338] sm:$0xff]
      %v1168 = vld [vmem:[%s5 + $0x340] sm:$0xff]
      %v1169 = vld [vmem:[%s5 + $0x348] sm:$0xff]
      %v1170 = vld [vmem:[%s5 + $0x350] sm:$0xff]
      %v1171 = vld [vmem:[%s5 + $0x358] sm:$0xff]
      %v1172 = vld [vmem:[%s5 + $0x360] sm:$0xff]
      %v1173 = vld [vmem:[%s5 + $0x368] sm:$0xff]
      %v1174 = vld [vmem:[%s5 + $0x370] sm:$0xff]
      %v1175 = vld [vmem:[%s5 + $0x378] sm:$0xff]
      %v1176 = vld [vmem:[%s5 + $0x380] sm:$0xff]
      %v1177 = vld [vmem:[%s5 + $0x388] sm:$0xff]
      %v1178 = vld [vmem:[%s5 + $0x390] sm:$0xff]
      %v1179 = vld [vmem:[%s5 + $0x398] sm:$0xff]
      %v1180 = vld [vmem:[%s5 + $0x3a0] sm:$0xff]
      %v1181 = vld [vmem:[%s5 + $0x3a8] sm:$0xff]
      %v1182 = vld [vmem:[%s5 + $0x3b0] sm:$0xff]
      %v1183 = vld [vmem:[%s5 + $0x3b8] sm:$0xff]
      %v1184 = vld [vmem:[%s5 + $0x3c0] sm:$0xff]
      %v1185 = vld [vmem:[%s5 + $0x3c8] sm:$0xff]
      %v1186 = vld [vmem:[%s5 + $0x3d0] sm:$0xff]
      %v1187 = vld [vmem:[%s5 + $0x3d8] sm:$0xff]
      %v1188 = vld [vmem:[%s5 + $0x3e0] sm:$0xff]
      %v1189 = vld [vmem:[%s5 + $0x3e8] sm:$0xff]
      %v1190 = vld [vmem:[%s5 + $0x3f0] sm:$0xff]
      %v1191 = vld [vmem:[%s5 + $0x3f8] sm:$0xff]
      %v1192 = vld [vmem:[%s6] sm:$0xf]
      %v1194 = vlaneseq
      %v1195 = vshrl.u32 %v1194, 7
      %v1196 = vsub.s32 0, %v1195
      %v1197 = vrot.slane %v1192, %v1196
      %v1198 = vlaneseq
      %v1199 = vshrl.u32 %v1198, 7
      %v1200 = vsub.s32 1, %v1199
      %v1201 = vrot.slane %v1192, %v1200
      %v1202 = vlaneseq
      %v1203 = vshrl.u32 %v1202, 7
      %v1204 = vsub.s32 2, %v1203
      %v1205 = vrot.slane %v1192, %v1204
      %v1206 = vlaneseq
      %v1207 = vshrl.u32 %v1206, 7
      %v1208 = vsub.s32 3, %v1207
      %v1209 = vrot.slane %v1192, %v1208
      %1214 = vmatprep.subr.mxu0 %v1065
      %1215 = vmatpush1.msra.mxu0 %v1064
      %1216 = vmatprep.subr.mxu0 %v1069
      %1217 = vmatpush1.msra.mxu0 %v1068
      %1218 = vmatprep.subr.mxu0 %v1073
      %1219 = vmatpush1.msra.mxu0 %v1072
      %1220 = vmatprep.subr.mxu0 %v1077
      %1221 = vmatpush1.msra.mxu0 %v1076
      %1222 = vmatprep.subr.mxu0 %v1081
      %1223 = vmatpush1.msra.mxu0 %v1080
      %1224 = vmatprep.subr.mxu0 %v1085
      %1225 = vmatpush1.msra.mxu0 %v1084
      %1226 = vmatprep.subr.mxu0 %v1089
      %1227 = vmatpush1.msra.mxu0 %v1088
      %1228 = vmatprep.subr.mxu0 %v1093
      %1229 = vmatpush1.msra.mxu0 %v1092
      %1230 = vmatprep.subr.mxu0 %v1097
      %1231 = vmatpush1.msra.mxu0 %v1096
      %1232 = vmatprep.subr.mxu0 %v1101
      %1233 = vmatpush1.msra.mxu0 %v1100
      %1234 = vmatprep.subr.mxu0 %v1105
      %1235 = vmatpush1.msra.mxu0 %v1104
      %1236 = vmatprep.subr.mxu0 %v1109
      %1237 = vmatpush1.msra.mxu0 %v1108
      %1238 = vmatprep.subr.mxu0 %v1113
      %1239 = vmatpush1.msra.mxu0 %v1112
      %1240 = vmatprep.subr.mxu0 %v1117
      %1241 = vmatpush1.msra.mxu0 %v1116
      %1242 = vmatprep.subr.mxu0 %v1121
      %1243 = vmatpush1.msra.mxu0 %v1120
      %1244 = vmatprep.subr.mxu0 %v1125
      %1245 = vmatpush1.msra.mxu0 %v1124
      %1246 = vmatprep.subr.mxu0 %v1129
      %1247 = vmatpush1.msra.mxu0 %v1128
      %1248 = vmatprep.subr.mxu0 %v1133
      %1249 = vmatpush1.msra.mxu0 %v1132
      %1250 = vmatprep.subr.mxu0 %v1137
      %1251 = vmatpush1.msra.mxu0 %v1136
      %1252 = vmatprep.subr.mxu0 %v1141
      %1253 = vmatpush1.msra.mxu0 %v1140
      %1254 = vmatprep.subr.mxu0 %v1145
      %1255 = vmatpush1.msra.mxu0 %v1144
      %1256 = vmatprep.subr.mxu0 %v1149
      %1257 = vmatpush1.msra.mxu0 %v1148
      %1258 = vmatprep.subr.mxu0 %v1153
      %1259 = vmatpush1.msra.mxu0 %v1152
      %1260 = vmatprep.subr.mxu0 %v1157
      %1261 = vmatpush1.msra.mxu0 %v1156
      %1262 = vmatprep.subr.mxu0 %v1161
      %1263 = vmatpush1.msra.mxu0 %v1160
      %1264 = vmatprep.subr.mxu0 %v1165
      %1265 = vmatpush1.msra.mxu0 %v1164
      %1266 = vmatprep.subr.mxu0 %v1169
      %1267 = vmatpush1.msra.mxu0 %v1168
      %1268 = vmatprep.subr.mxu0 %v1173
      %1269 = vmatpush1.msra.mxu0 %v1172
      %1270 = vmatprep.subr.mxu0 %v1177
      %1271 = vmatpush1.msra.mxu0 %v1176
      %1272 = vmatprep.subr.mxu0 %v1181
      %1273 = vmatpush1.msra.mxu0 %v1180
      %1274 = vmatprep.subr.mxu0 %v1185
      %1275 = vmatpush1.msra.mxu0 %v1184
      %1276 = vmatprep.subr.mxu0 %v1189
      %1277 = vmatpush1.msra.mxu0 %v1188
      %1278 = vmatprep.mubr.f32.mxu0 %v785
      %1279 = vmatmul.mubr.f32.gmra.mrb[0].mxu0 %v783
      %v1280 = vpop.f32.mrb[0].mxu0
      %v1281 = vadd.f32 %v1197, %v1280
      %v1282 = vpop.f32.mrb[0].mxu0
      %v1283 = vadd.f32 %v1201, %v1282
      %1284 = vmatprep.mubr.f32.mxu0 %v791
      %1285 = vmatmul.mubr.f32.gmra.mrb[0].mxu0 %v789
      %v1286 = vpop.f32.mrb[0].mxu0
      %v1287 = vadd.f32 %v1197, %v1286
      %v1288 = vpop.f32.mrb[0].mxu0
      %v1289 = vadd.f32 %v1201, %v1288
      %1290 = vmatprep.mubr.f32.mxu0 %v797
      %1291 = vmatmul.mubr.f32.gmra.mrb[0].mxu0 %v795
      %v1292 = vpop.f32.mrb[0].mxu0
      %v1293 = vadd.f32 %v1197, %v1292
      %v1294 = vpop.f32.mrb[0].mxu0
      %v1295 = vadd.f32 %v1201, %v1294
      %1296 = vmatprep.mubr.f32.mxu0 %v803
      %1297 = vmatmul.mubr.f32.gmra.mrb[0].mxu0 %v801
      %v1298 = vpop.f32.mrb[0].mxu0
      %v1299 = vadd.f32 %v1197, %v1298
      %v1300 = vpop.f32.mrb[0].mxu0
      %v1301 = vadd.f32 %v1201, %v1300
      %1302 = vmatprep.mubr.f32.mxu0 %v809
      %1303 = vmatmul.mubr.f32.gmra.mrb[0].mxu0 %v807
      %v1304 = vpop.f32.mrb[0].mxu0
      %v1305 = vadd.f32 %v1197, %v1304
      %v1306 = vpop.f32.mrb[0].mxu0
      %v1307 = vadd.f32 %v1201, %v1306
      %1308 = vmatprep.mubr.f32.mxu0 %v815
      %1309 = vmatmul.mubr.f32.gmra.mrb[0].mxu0 %v813
      %v1310 = vpop.f32.mrb[0].mxu0
      %v1311 = vadd.f32 %v1197, %v1310
      %v1312 = vpop.f32.mrb[0].mxu0
      %v1313 = vadd.f32 %v1201, %v1312
      %1314 = vmatprep.mubr.f32.mxu0 %v821
      %1315 = vmatmul.mubr.f32.gmra.mrb[0].mxu0 %v819
      %v1316 = vpop.f32.mrb[0].mxu0
      %v1317 = vadd.f32 %v1197, %v1316
      %v1318 = vpop.f32.mrb[0].mxu0
      %v1319 = vadd.f32 %v1201, %v1318
      %1320 = vmatprep.mubr.f32.mxu0 %v827
      %1321 = vmatmul.mubr.f32.gmra.mrb[0].mxu0 %v825
      %v1322 = vpop.f32.mrb[0].mxu0
      %v1323 = vadd.f32 %v1197, %v1322
      %v1324 = vpop.f32.mrb[0].mxu0
      %v1325 = vadd.f32 %v1201, %v1324
      %1326 = vmatprep.mubr.f32.mxu0 %v833
      %1327 = vmatmul.mubr.f32.gmra.mrb[0].mxu0 %v831
      %v1328 = vpop.f32.mrb[0].mxu0
      %v1329 = vadd.f32 %v1197, %v1328
      %v1330 = vpop.f32.mrb[0].mxu0
      %v1331 = vadd.f32 %v1201, %v1330
      %1332 = vmatprep.mubr.f32.mxu0 %v839
      %1333 = vmatmul.mubr.f32.gmra.mrb[0].mxu0 %v837
      %v1334 = vpop.f32.mrb[0].mxu0
      %v1335 = vadd.f32 %v1197, %v1334
      %v1336 = vpop.f32.mrb[0].mxu0
      %v1337 = vadd.f32 %v1201, %v1336
      %1338 = vmatprep.mubr.f32.mxu0 %v845
      %1339 = vmatmul.mubr.f32.gmra.mrb[0].mxu0 %v843
      %v1340 = vpop.f32.mrb[0].mxu0
      %v1341 = vadd.f32 %v1197, %v1340
      %v1342 = vpop.f32.mrb[0].mxu0
      %v1343 = vadd.f32 %v1201, %v1342
      %1344 = vmatprep.mubr.f32.mxu0 %v851
      %1345 = vmatmul.mubr.f32.gmra.mrb[0].mxu0 %v849
      %v1346 = vpop.f32.mrb[0].mxu0
      %v1347 = vadd.f32 %v1197, %v1346
      %v1348 = vpop.f32.mrb[0].mxu0
      %v1349 = vadd.f32 %v1201, %v1348
      %1350 = vmatprep.mubr.f32.mxu0 %v857
      %1351 = vmatmul.mubr.f32.gmra.mrb[0].mxu0 %v855
      %v1352 = vpop.f32.mrb[0].mxu0
      %v1353 = vadd.f32 %v1197, %v1352
      %v1354 = vpop.f32.mrb[0].mxu0
      %v1355 = vadd.f32 %v1201, %v1354
      %1356 = vmatprep.mubr.f32.mxu0 %v863
      %1357 = vmatmul.mubr.f32.gmra.mrb[0].mxu0 %v861
      %v1358 = vpop.f32.mrb[0].mxu0
      %v1359 = vadd.f32 %v1197, %v1358
      %v1360 = vpop.f32.mrb[0].mxu0
      %v1361 = vadd.f32 %v1201, %v1360
      %1362 = vmatprep.mubr.f32.mxu0 %v869
      %1363 = vmatmul.mubr.f32.gmra.mrb[0].mxu0 %v867
      %v1364 = vpop.f32.mrb[0].mxu0
      %v1365 = vadd.f32 %v1197, %v1364
      %v1366 = vpop.f32.mrb[0].mxu0
      %v1367 = vadd.f32 %v1201, %v1366
      %1368 = vmatprep.mubr.f32.mxu0 %v875
      %1369 = vmatmul.mubr.f32.gmra.mrb[0].mxu0 %v873
      %v1370 = vpop.f32.mrb[0].mxu0
      %v1371 = vadd.f32 %v1197, %v1370
      %v1372 = vpop.f32.mrb[0].mxu0
      %v1373 = vadd.f32 %v1201, %v1372
      %1374 = vdwg.mxu0
      %1375 = vmatprep.subr.mxu0 %v1067
      %1376 = vmatpush1.msra.mxu0 %v1066
      %1377 = vmatprep.subr.mxu0 %v1071
      %1378 = vmatpush1.msra.mxu0 %v1070
      %1379 = vmatprep.subr.mxu0 %v1075
      %1380 = vmatpush1.msra.mxu0 %v1074
      %1381 = vmatprep.subr.mxu0 %v1079
      %1382 = vmatpush1.msra.mxu0 %v1078
      %1383 = vmatprep.subr.mxu0 %v1083
      %1384 = vmatpush1.msra.mxu0 %v1082
      %1385 = vmatprep.subr.mxu0 %v1087
      %1386 = vmatpush1.msra.mxu0 %v1086
      %1387 = vmatprep.subr.mxu0 %v1091
      %1388 = vmatpush1.msra.mxu0 %v1090
      %1389 = vmatprep.subr.mxu0 %v1095
      %1390 = vmatpush1.msra.mxu0 %v1094
      %1391 = vmatprep.subr.mxu0 %v1099
      %1392 = vmatpush1.msra.mxu0 %v1098
      %1393 = vmatprep.subr.mxu0 %v1103
      %1394 = vmatpush1.msra.mxu0 %v1102
      %1395 = vmatprep.subr.mxu0 %v1107
      %1396 = vmatpush1.msra.mxu0 %v1106
      %1397 = vmatprep.subr.mxu0 %v1111
      %1398 = vmatpush1.msra.mxu0 %v1110
      %1399 = vmatprep.subr.mxu0 %v1115
      %1400 = vmatpush1.msra.mxu0 %v1114
      %1401 = vmatprep.subr.mxu0 %v1119
      %1402 = vmatpush1.msra.mxu0 %v1118
      %1403 = vmatprep.subr.mxu0 %v1123
      %1404 = vmatpush1.msra.mxu0 %v1122
      %1405 = vmatprep.subr.mxu0 %v1127
      %1406 = vmatpush1.msra.mxu0 %v1126
      %1407 = vmatprep.subr.mxu0 %v1131
      %1408 = vmatpush1.msra.mxu0 %v1130
      %1409 = vmatprep.subr.mxu0 %v1135
      %1410 = vmatpush1.msra.mxu0 %v1134
      %1411 = vmatprep.subr.mxu0 %v1139
      %1412 = vmatpush1.msra.mxu0 %v1138
      %1413 = vmatprep.subr.mxu0 %v1143
      %1414 = vmatpush1.msra.mxu0 %v1142
      %1415 = vmatprep.subr.mxu0 %v1147
      %1416 = vmatpush1.msra.mxu0 %v1146
      %1417 = vmatprep.subr.mxu0 %v1151
      %1418 = vmatpush1.msra.mxu0 %v1150
      %1419 = vmatprep.subr.mxu0 %v1155
      %1420 = vmatpush1.msra.mxu0 %v1154
      %1421 = vmatprep.subr.mxu0 %v1159
      %1422 = vmatpush1.msra.mxu0 %v1158
      %1423 = vmatprep.subr.mxu0 %v1163
      %1424 = vmatpush1.msra.mxu0 %v1162
      %1425 = vmatprep.subr.mxu0 %v1167
      %1426 = vmatpush1.msra.mxu0 %v1166
      %1427 = vmatprep.subr.mxu0 %v1171
      %1428 = vmatpush1.msra.mxu0 %v1170
      %1429 = vmatprep.subr.mxu0 %v1175
      %1430 = vmatpush1.msra.mxu0 %v1174
      %1431 = vmatprep.subr.mxu0 %v1179
      %1432 = vmatpush1.msra.mxu0 %v1178
      %1433 = vmatprep.subr.mxu0 %v1183
      %1434 = vmatpush1.msra.mxu0 %v1182
      %1435 = vmatprep.subr.mxu0 %v1187
      %1436 = vmatpush1.msra.mxu0 %v1186
      %1437 = vmatprep.subr.mxu0 %v1191
      %1438 = vmatpush1.msra.mxu0 %v1190
      %1439 = vmatprep.mubr.f32.mxu0 %v785
      %1440 = vmatmul.mubr.f32.gmra.mrb[0].mxu0 %v783
      %v1441 = vpop.f32.mrb[0].mxu0
      %v1442 = vadd.f32 %v1205, %v1441
      %v1443 = vpop.f32.mrb[0].mxu0
      %v1444 = vadd.f32 %v1209, %v1443
      %1445 = vmatprep.mubr.f32.mxu0 %v791
      %1446 = vmatmul.mubr.f32.gmra.mrb[0].mxu0 %v789
      %v1447 = vpop.f32.mrb[0].mxu0
      %v1448 = vadd.f32 %v1205, %v1447
      %v1449 = vpop.f32.mrb[0].mxu0
      %v1450 = vadd.f32 %v1209, %v1449
      %1451 = vmatprep.mubr.f32.mxu0 %v797
      %1452 = vmatmul.mubr.f32.gmra.mrb[0].mxu0 %v795
      %v1453 = vpop.f32.mrb[0].mxu0
      %v1454 = vadd.f32 %v1205, %v1453
      %v1455 = vpop.f32.mrb[0].mxu0
      %v1456 = vadd.f32 %v1209, %v1455
      %1457 = vmatprep.mubr.f32.mxu0 %v803
      %1458 = vmatmul.mubr.f32.gmra.mrb[0].mxu0 %v801
      %v1459 = vpop.f32.mrb[0].mxu0
      %v1460 = vadd.f32 %v1205, %v1459
      %v1461 = vpop.f32.mrb[0].mxu0
      %v1462 = vadd.f32 %v1209, %v1461
      %1463 = vmatprep.mubr.f32.mxu0 %v809
      %1464 = vmatmul.mubr.f32.gmra.mrb[0].mxu0 %v807
      %v1465 = vpop.f32.mrb[0].mxu0
      %v1466 = vadd.f32 %v1205, %v1465
      %v1467 = vpop.f32.mrb[0].mxu0
      %v1468 = vadd.f32 %v1209, %v1467
      %1469 = vmatprep.mubr.f32.mxu0 %v815
      %1470 = vmatmul.mubr.f32.gmra.mrb[0].mxu0 %v813
      %v1471 = vpop.f32.mrb[0].mxu0
      %v1472 = vadd.f32 %v1205, %v1471
      %v1473 = vpop.f32.mrb[0].mxu0
      %v1474 = vadd.f32 %v1209, %v1473
      %1475 = vmatprep.mubr.f32.mxu0 %v821
      %1476 = vmatmul.mubr.f32.gmra.mrb[0].mxu0 %v819
      %v1477 = vpop.f32.mrb[0].mxu0
      %v1478 = vadd.f32 %v1205, %v1477
      %v1479 = vpop.f32.mrb[0].mxu0
      %v1480 = vadd.f32 %v1209, %v1479
      %1481 = vmatprep.mubr.f32.mxu0 %v827
      %1482 = vmatmul.mubr.f32.gmra.mrb[0].mxu0 %v825
      %v1483 = vpop.f32.mrb[0].mxu0
      %v1484 = vadd.f32 %v1205, %v1483
      %v1485 = vpop.f32.mrb[0].mxu0
      %v1486 = vadd.f32 %v1209, %v1485
      %1487 = vmatprep.mubr.f32.mxu0 %v833
      %1488 = vmatmul.mubr.f32.gmra.mrb[0].mxu0 %v831
      %v1489 = vpop.f32.mrb[0].mxu0
      %v1490 = vadd.f32 %v1205, %v1489
      %v1491 = vpop.f32.mrb[0].mxu0
      %v1492 = vadd.f32 %v1209, %v1491
      %1493 = vmatprep.mubr.f32.mxu0 %v839
      %1494 = vmatmul.mubr.f32.gmra.mrb[0].mxu0 %v837
      %v1495 = vpop.f32.mrb[0].mxu0
      %v1496 = vadd.f32 %v1205, %v1495
      %v1497 = vpop.f32.mrb[0].mxu0
      %v1498 = vadd.f32 %v1209, %v1497
      %1499 = vmatprep.mubr.f32.mxu0 %v845
      %1500 = vmatmul.mubr.f32.gmra.mrb[0].mxu0 %v843
      %v1501 = vpop.f32.mrb[0].mxu0
      %v1502 = vadd.f32 %v1205, %v1501
      %v1503 = vpop.f32.mrb[0].mxu0
      %v1504 = vadd.f32 %v1209, %v1503
      %1505 = vmatprep.mubr.f32.mxu0 %v851
      %1506 = vmatmul.mubr.f32.gmra.mrb[0].mxu0 %v849
      %v1507 = vpop.f32.mrb[0].mxu0
      %v1508 = vadd.f32 %v1205, %v1507
      %v1509 = vpop.f32.mrb[0].mxu0
      %v1510 = vadd.f32 %v1209, %v1509
      %1511 = vmatprep.mubr.f32.mxu0 %v857
      %1512 = vmatmul.mubr.f32.gmra.mrb[0].mxu0 %v855
      %v1513 = vpop.f32.mrb[0].mxu0
      %v1514 = vadd.f32 %v1205, %v1513
      %v1515 = vpop.f32.mrb[0].mxu0
      %v1516 = vadd.f32 %v1209, %v1515
      %1517 = vmatprep.mubr.f32.mxu0 %v863
      %1518 = vmatmul.mubr.f32.gmra.mrb[0].mxu0 %v861
      %v1519 = vpop.f32.mrb[0].mxu0
      %v1520 = vadd.f32 %v1205, %v1519
      %v1521 = vpop.f32.mrb[0].mxu0
      %v1522 = vadd.f32 %v1209, %v1521
      %1523 = vmatprep.mubr.f32.mxu0 %v869
      %1524 = vmatmul.mubr.f32.gmra.mrb[0].mxu0 %v867
      %v1525 = vpop.f32.mrb[0].mxu0
      %v1526 = vadd.f32 %v1205, %v1525
      %v1527 = vpop.f32.mrb[0].mxu0
      %v1528 = vadd.f32 %v1209, %v1527
      %1529 = vmatprep.mubr.f32.mxu0 %v875
      %1530 = vmatmul.mubr.f32.gmra.mrb[0].mxu0 %v873
      %v1531 = vpop.f32.mrb[0].mxu0
      %v1532 = vadd.f32 %v1205, %v1531
      %v1533 = vpop.f32.mrb[0].mxu0
      %v1534 = vadd.f32 %v1209, %v1533
      %1535 = vdwg.mxu0
      %v1536 = vtanh.pop %v1281
      %v1537 = vtanh.pop %v1283
      %v1538 = vtanh.pop %v1287
      %v1539 = vtanh.pop %v1289
      %v1540 = vtanh.pop %v1293
      %v1541 = vtanh.pop %v1295
      %v1542 = vtanh.pop %v1299
      %v1543 = vtanh.pop %v1301
      %v1544 = vtanh.pop %v1305
      %v1545 = vtanh.pop %v1307
      %v1546 = vtanh.pop %v1311
      %v1547 = vtanh.pop %v1313
      %v1548 = vtanh.pop %v1317
      %v1549 = vtanh.pop %v1319
      %v1550 = vtanh.pop %v1323
      %v1551 = vtanh.pop %v1325
      %v1552 = vtanh.pop %v1329
      %v1553 = vtanh.pop %v1331
      %v1554 = vtanh.pop %v1335
      %v1555 = vtanh.pop %v1337
      %v1556 = vtanh.pop %v1341
      %v1557 = vtanh.pop %v1343
      %v1558 = vtanh.pop %v1347
      %v1559 = vtanh.pop %v1349
      %v1560 = vtanh.pop %v1353
      %v1561 = vtanh.pop %v1355
      %v1562 = vtanh.pop %v1359
      %v1563 = vtanh.pop %v1361
      %v1564 = vtanh.pop %v1365
      %v1565 = vtanh.pop %v1367
      %v1566 = vtanh.pop %v1371
      %v1567 = vtanh.pop %v1373
      %v1568 = vxor.u32 %v1442, 2147483648
      %v1569 = vxor.u32 %v1444, 2147483648
      %v1570 = vxor.u32 %v1448, 2147483648
      %v1571 = vxor.u32 %v1450, 2147483648
      %v1572 = vxor.u32 %v1454, 2147483648
      %v1573 = vxor.u32 %v1456, 2147483648
      %v1574 = vxor.u32 %v1460, 2147483648
      %v1575 = vxor.u32 %v1462, 2147483648
      %v1576 = vxor.u32 %v1466, 2147483648
      %v1577 = vxor.u32 %v1468, 2147483648
      %v1578 = vxor.u32 %v1472, 2147483648
      %v1579 = vxor.u32 %v1474, 2147483648
      %v1580 = vxor.u32 %v1478, 2147483648
      %v1581 = vxor.u32 %v1480, 2147483648
      %v1582 = vxor.u32 %v1484, 2147483648
      %v1583 = vxor.u32 %v1486, 2147483648
      %v1584 = vxor.u32 %v1490, 2147483648
      %v1585 = vxor.u32 %v1492, 2147483648
      %v1586 = vxor.u32 %v1496, 2147483648
      %v1587 = vxor.u32 %v1498, 2147483648
      %v1588 = vxor.u32 %v1502, 2147483648
      %v1589 = vxor.u32 %v1504, 2147483648
      %v1590 = vxor.u32 %v1508, 2147483648
      %v1591 = vxor.u32 %v1510, 2147483648
      %v1592 = vxor.u32 %v1514, 2147483648
      %v1593 = vxor.u32 %v1516, 2147483648
      %v1594 = vxor.u32 %v1520, 2147483648
      %v1595 = vxor.u32 %v1522, 2147483648
      %v1596 = vxor.u32 %v1526, 2147483648
      %v1597 = vxor.u32 %v1528, 2147483648
      %v1598 = vxor.u32 %v1532, 2147483648
      %v1599 = vxor.u32 %v1534, 2147483648
      %v1600 = vmul.f32 %v1568, 1.442695
      %v1601 = vpow.pop %v1600
      %v1602 = vmul.f32 %v1569, 1.442695
      %v1603 = vpow.pop %v1602
      %v1604 = vmul.f32 %v1570, 1.442695
      %v1605 = vpow.pop %v1604
      %v1606 = vmul.f32 %v1571, 1.442695
      %v1607 = vpow.pop %v1606
      %v1608 = vmul.f32 %v1572, 1.442695
      %v1609 = vpow.pop %v1608
      %v1610 = vmul.f32 %v1573, 1.442695
      %v1611 = vpow.pop %v1610
      %v1612 = vmul.f32 %v1574, 1.442695
      %v1613 = vpow.pop %v1612
      %v1614 = vmul.f32 %v1575, 1.442695
      %v1615 = vpow.pop %v1614
      %v1616 = vmul.f32 %v1576, 1.442695
      %v1617 = vpow.pop %v1616
      %v1618 = vmul.f32 %v1577, 1.442695
      %v1619 = vpow.pop %v1618
      %v1620 = vmul.f32 %v1578, 1.442695
      %v1621 = vpow.pop %v1620
      %v1622 = vmul.f32 %v1579, 1.442695
      %v1623 = vpow.pop %v1622
      %v1624 = vmul.f32 %v1580, 1.442695
      %v1625 = vpow.pop %v1624
      %v1626 = vmul.f32 %v1581, 1.442695
      %v1627 = vpow.pop %v1626
      %v1628 = vmul.f32 %v1582, 1.442695
      %v1629 = vpow.pop %v1628
      %v1630 = vmul.f32 %v1583, 1.442695
      %v1631 = vpow.pop %v1630
      %v1632 = vmul.f32 %v1584, 1.442695
      %v1633 = vpow.pop %v1632
      %v1634 = vmul.f32 %v1585, 1.442695
      %v1635 = vpow.pop %v1634
      %v1636 = vmul.f32 %v1586, 1.442695
      %v1637 = vpow.pop %v1636
      %v1638 = vmul.f32 %v1587, 1.442695
      %v1639 = vpow.pop %v1638
      %v1640 = vmul.f32 %v1588, 1.442695
      %v1641 = vpow.pop %v1640
      %v1642 = vmul.f32 %v1589, 1.442695
      %v1643 = vpow.pop %v1642
      %v1644 = vmul.f32 %v1590, 1.442695
      %v1645 = vpow.pop %v1644
      %v1646 = vmul.f32 %v1591, 1.442695
      %v1647 = vpow.pop %v1646
      %v1648 = vmul.f32 %v1592, 1.442695
      %v1649 = vpow.pop %v1648
      %v1650 = vmul.f32 %v1593, 1.442695
      %v1651 = vpow.pop %v1650
      %v1652 = vmul.f32 %v1594, 1.442695
      %v1653 = vpow.pop %v1652
      %v1654 = vmul.f32 %v1595, 1.442695
      %v1655 = vpow.pop %v1654
      %v1656 = vmul.f32 %v1596, 1.442695
      %v1657 = vpow.pop %v1656
      %v1658 = vmul.f32 %v1597, 1.442695
      %v1659 = vpow.pop %v1658
      %v1660 = vmul.f32 %v1598, 1.442695
      %v1661 = vpow.pop %v1660
      %v1662 = vmul.f32 %v1599, 1.442695
      %v1663 = vpow.pop %v1662
      %v1664 = vadd.f32 %v1601, 1.0
      %v1665 = vadd.f32 %v1603, 1.0
      %v1666 = vadd.f32 %v1605, 1.0
      %v1667 = vadd.f32 %v1607, 1.0
      %v1668 = vadd.f32 %v1609, 1.0
      %v1669 = vadd.f32 %v1611, 1.0
      %v1670 = vadd.f32 %v1613, 1.0
      %v1671 = vadd.f32 %v1615, 1.0
      %v1672 = vadd.f32 %v1617, 1.0
      %v1673 = vadd.f32 %v1619, 1.0
      %v1674 = vadd.f32 %v1621, 1.0
      %v1675 = vadd.f32 %v1623, 1.0
      %v1676 = vadd.f32 %v1625, 1.0
      %v1677 = vadd.f32 %v1627, 1.0
      %v1678 = vadd.f32 %v1629, 1.0
      %v1679 = vadd.f32 %v1631, 1.0
      %v1680 = vadd.f32 %v1633, 1.0
      %v1681 = vadd.f32 %v1635, 1.0
      %v1682 = vadd.f32 %v1637, 1.0
      %v1683 = vadd.f32 %v1639, 1.0
      %v1684 = vadd.f32 %v1641, 1.0
      %v1685 = vadd.f32 %v1643, 1.0
      %v1686 = vadd.f32 %v1645, 1.0
      %v1687 = vadd.f32 %v1647, 1.0
      %v1688 = vadd.f32 %v1649, 1.0
      %v1689 = vadd.f32 %v1651, 1.0
      %v1690 = vadd.f32 %v1653, 1.0
      %v1691 = vadd.f32 %v1655, 1.0
      %v1692 = vadd.f32 %v1657, 1.0
      %v1693 = vadd.f32 %v1659, 1.0
      %v1694 = vadd.f32 %v1661, 1.0
      %v1695 = vadd.f32 %v1663, 1.0
      %v1696 = vrcp.pop %v1664
      %v1697 = vmul.f32 1.0, %v1696
      %v1698 = vrcp.pop %v1665
      %v1699 = vmul.f32 1.0, %v1698
      %v1700 = vrcp.pop %v1666
      %v1701 = vmul.f32 1.0, %v1700
      %v1702 = vrcp.pop %v1667
      %v1703 = vmul.f32 1.0, %v1702
      %v1704 = vrcp.pop %v1668
      %v1705 = vmul.f32 1.0, %v1704
      %v1706 = vrcp.pop %v1669
      %v1707 = vmul.f32 1.0, %v1706
      %v1708 = vrcp.pop %v1670
      %v1709 = vmul.f32 1.0, %v1708
      %v1710 = vrcp.pop %v1671
      %v1711 = vmul.f32 1.0, %v1710
      %v1712 = vrcp.pop %v1672
      %v1713 = vmul.f32 1.0, %v1712
      %v1714 = vrcp.pop %v1673
      %v1715 = vmul.f32 1.0, %v1714
      %v1716 = vrcp.pop %v1674
      %v1717 = vmul.f32 1.0, %v1716
      %v1718 = vrcp.pop %v1675
      %v1719 = vmul.f32 1.0, %v1718
      %v1720 = vrcp.pop %v1676
      %v1721 = vmul.f32 1.0, %v1720
      %v1722 = vrcp.pop %v1677
      %v1723 = vmul.f32 1.0, %v1722
      %v1724 = vrcp.pop %v1678
      %v1725 = vmul.f32 1.0, %v1724
      %v1726 = vrcp.pop %v1679
      %v1727 = vmul.f32 1.0, %v1726
      %v1728 = vrcp.pop %v1680
      %v1729 = vmul.f32 1.0, %v1728
      %v1730 = vrcp.pop %v1681
      %v1731 = vmul.f32 1.0, %v1730
      %v1732 = vrcp.pop %v1682
      %v1733 = vmul.f32 1.0, %v1732
      %v1734 = vrcp.pop %v1683
      %v1735 = vmul.f32 1.0, %v1734
      %v1736 = vrcp.pop %v1684
      %v1737 = vmul.f32 1.0, %v1736
      %v1738 = vrcp.pop %v1685
      %v1739 = vmul.f32 1.0, %v1738
      %v1740 = vrcp.pop %v1686
      %v1741 = vmul.f32 1.0, %v1740
      %v1742 = vrcp.pop %v1687
      %v1743 = vmul.f32 1.0, %v1742
      %v1744 = vrcp.pop %v1688
      %v1745 = vmul.f32 1.0, %v1744
      %v1746 = vrcp.pop %v1689
      %v1747 = vmul.f32 1.0, %v1746
      %v1748 = vrcp.pop %v1690
      %v1749 = vmul.f32 1.0, %v1748
      %v1750 = vrcp.pop %v1691
      %v1751 = vmul.f32 1.0, %v1750
      %v1752 = vrcp.pop %v1692
      %v1753 = vmul.f32 1.0, %v1752
      %v1754 = vrcp.pop %v1693
      %v1755 = vmul.f32 1.0, %v1754
      %v1756 = vrcp.pop %v1694
      %v1757 = vmul.f32 1.0, %v1756
      %v1758 = vrcp.pop %v1695
      %v1759 = vmul.f32 1.0, %v1758
      %v1760 = vmul.f32 %v1536, %v1697
      %v1761 = vmul.f32 %v1537, %v1699
      %v1762 = vmul.f32 %v1538, %v1701
      %v1763 = vmul.f32 %v1539, %v1703
      %v1764 = vmul.f32 %v1540, %v1705
      %v1765 = vmul.f32 %v1541, %v1707
      %v1766 = vmul.f32 %v1542, %v1709
      %v1767 = vmul.f32 %v1543, %v1711
      %v1768 = vmul.f32 %v1544, %v1713
      %v1769 = vmul.f32 %v1545, %v1715
      %v1770 = vmul.f32 %v1546, %v1717
      %v1771 = vmul.f32 %v1547, %v1719
      %v1772 = vmul.f32 %v1548, %v1721
      %v1773 = vmul.f32 %v1549, %v1723
      %v1774 = vmul.f32 %v1550, %v1725
      %v1775 = vmul.f32 %v1551, %v1727
      %v1776 = vmul.f32 %v1552, %v1729
      %v1777 = vmul.f32 %v1553, %v1731
      %v1778 = vmul.f32 %v1554, %v1733
      %v1779 = vmul.f32 %v1555, %v1735
      %v1780 = vmul.f32 %v1556, %v1737
      %v1781 = vmul.f32 %v1557, %v1739
      %v1782 = vmul.f32 %v1558, %v1741
      %v1783 = vmul.f32 %v1559, %v1743
      %v1784 = vmul.f32 %v1560, %v1745
      %v1785 = vmul.f32 %v1561, %v1747
      %v1786 = vmul.f32 %v1562, %v1749
      %v1787 = vmul.f32 %v1563, %v1751
      %v1788 = vmul.f32 %v1564, %v1753
      %v1789 = vmul.f32 %v1565, %v1755
      %v1790 = vmul.f32 %v1566, %v1757
      %v1791 = vmul.f32 %v1567, %v1759
      %v1792 = vld [vmem:[%s7] sm:$0xff]
      %v1793 = vld [vmem:[%s7 + $0x8] sm:$0xff]
      %v1794 = vld [vmem:[%s7 + $0x10] sm:$0xff]
      %v1795 = vld [vmem:[%s7 + $0x18] sm:$0xff]
      %v1796 = vld [vmem:[%s7 + $0x20] sm:$0xff]
      %v1797 = vld [vmem:[%s7 + $0x28] sm:$0xff]
      %v1798 = vld [vmem:[%s7 + $0x30] sm:$0xff]
      %v1799 = vld [vmem:[%s7 + $0x38] sm:$0xff]
      %v1800 = vld [vmem:[%s7 + $0x40] sm:$0xff]
      %v1801 = vld [vmem:[%s7 + $0x48] sm:$0xff]
      %v1802 = vld [vmem:[%s7 + $0x50] sm:$0xff]
      %v1803 = vld [vmem:[%s7 + $0x58] sm:$0xff]
      %v1804 = vld [vmem:[%s7 + $0x60] sm:$0xff]
      %v1805 = vld [vmem:[%s7 + $0x68] sm:$0xff]
      %v1806 = vld [vmem:[%s7 + $0x70] sm:$0xff]
      %v1807 = vld [vmem:[%s7 + $0x78] sm:$0xff]
      %v1808 = vld [vmem:[%s7 + $0x80] sm:$0xff]
      %v1809 = vld [vmem:[%s7 + $0x88] sm:$0xff]
      %v1810 = vld [vmem:[%s7 + $0x90] sm:$0xff]
      %v1811 = vld [vmem:[%s7 + $0x98] sm:$0xff]
      %v1812 = vld [vmem:[%s7 + $0xa0] sm:$0xff]
      %v1813 = vld [vmem:[%s7 + $0xa8] sm:$0xff]
      %vm1814 = vcmask 392192
      %v1816 = vsel %vm1814, %v1761, 0
      %v1819 = vsel %vm1814, %v1763, 0
      %v1822 = vsel %vm1814, %v1765, 0
      %v1825 = vsel %vm1814, %v1767, 0
      %v1828 = vsel %vm1814, %v1769, 0
      %v1831 = vsel %vm1814, %v1771, 0
      %v1834 = vsel %vm1814, %v1773, 0
      %v1837 = vsel %vm1814, %v1775, 0
      %v1840 = vsel %vm1814, %v1777, 0
      %v1843 = vsel %vm1814, %v1779, 0
      %v1846 = vsel %vm1814, %v1781, 0
      %v1849 = vsel %vm1814, %v1783, 0
      %v1852 = vsel %vm1814, %v1785, 0
      %v1855 = vsel %vm1814, %v1787, 0
      %v1858 = vsel %vm1814, %v1789, 0
      %v1861 = vsel %vm1814, %v1791, 0
      %1863 = vmatprep.subr.mxu0 0.0
      %1864 = vmatpush1.msra.mxu0 %v1792
      %1865 = vmatprep.subr.mxu0 0.0
      %1866 = vmatpush1.msra.mxu0 %v1793
      %1867 = vmatprep.subr.mxu0 0.0
      %1868 = vmatpush1.msra.mxu0 %v1794
      %1869 = vmatprep.subr.mxu0 0.0
      %1870 = vmatpush1.msra.mxu0 %v1795
      %1871 = vmatprep.subr.mxu0 0.0
      %1872 = vmatpush1.msra.mxu0 %v1796
      %1873 = vmatprep.subr.mxu0 0.0
      %1874 = vmatpush1.msra.mxu0 %v1797
      %1875 = vmatprep.subr.mxu0 0.0
      %1876 = vmatpush1.msra.mxu0 %v1798
      %1877 = vmatprep.subr.mxu0 0.0
      %1878 = vmatpush1.msra.mxu0 %v1799
      %1879 = vmatprep.subr.mxu0 0.0
      %1880 = vmatpush1.msra.mxu0 %v1800
      %1881 = vmatprep.subr.mxu0 0.0
      %1882 = vmatpush1.msra.mxu0 %v1801
      %1883 = vmatprep.subr.mxu0 0.0
      %1884 = vmatpush1.msra.mxu0 %v1802
      %1885 = vmatprep.subr.mxu0 0.0
      %1886 = vmatpush1.msra.mxu0 %v1803
      %1887 = vmatprep.subr.mxu0 0.0
      %1888 = vmatpush1.msra.mxu0 %v1804
      %1889 = vmatprep.subr.mxu0 0.0
      %1890 = vmatpush1.msra.mxu0 %v1805
      %1891 = vmatprep.subr.mxu0 0.0
      %1892 = vmatpush1.msra.mxu0 %v1806
      %1893 = vmatprep.subr.mxu0 0.0
      %1894 = vmatpush1.msra.mxu0 %v1807
      %1895 = vmatprep.subr.mxu0 0.0
      %1896 = vmatpush1.msra.mxu0 %v1808
      %1897 = vmatprep.subr.mxu0 0.0
      %1898 = vmatpush1.msra.mxu0 %v1809
      %1899 = vmatprep.subr.mxu0 0.0
      %1900 = vmatpush1.msra.mxu0 %v1810
      %1901 = vmatprep.subr.mxu0 0.0
      %1902 = vmatpush1.msra.mxu0 %v1811
      %1903 = vmatprep.subr.mxu0 0.0
      %1904 = vmatpush1.msra.mxu0 %v1812
      %1905 = vmatprep.subr.mxu0 0.0
      %1906 = vmatpush1.msra.mxu0 %v1813
      %1907 = vmatprep.subr.mxu0 0.0
      %1908 = vmatpush1.msra.mxu0 0.0
      %1909 = vmatprep.subr.mxu0 0.0
      %1910 = vmatpush1.msra.mxu0 0.0
      %1911 = vmatprep.subr.mxu0 0.0
      %1912 = vmatpush1.msra.mxu0 0.0
      %1913 = vmatprep.subr.mxu0 0.0
      %1914 = vmatpush1.msra.mxu0 0.0
      %1915 = vmatprep.subr.mxu0 0.0
      %1916 = vmatpush1.msra.mxu0 0.0
      %1917 = vmatprep.subr.mxu0 0.0
      %1918 = vmatpush1.msra.mxu0 0.0
      %1919 = vmatprep.subr.mxu0 0.0
      %1920 = vmatpush1.msra.mxu0 0.0
      %1921 = vmatprep.subr.mxu0 0.0
      %1922 = vmatpush1.msra.mxu0 0.0
      %1923 = vmatprep.subr.mxu0 0.0
      %1924 = vmatpush1.msra.mxu0 0.0
      %1925 = vmatprep.subr.mxu0 0.0
      %1926 = vmatpush1.msra.mxu0 0.0
      %1927 = vmatprep.mubr.f32.mxu0 %v1816
      %1928 = vmatmul.mubr.f32.gmra.mrb[0].mxu0 %v1760
      %v1929 = vpop.f32.mrb[0].mxu0
      %v1930 = vadd.f32 0.0, %v1929
      %v1931 = vpop.f32.mrb[0].mxu0
      %1932 = vmatprep.mubr.f32.mxu0 %v1819
      %1933 = vmatmul.mubr.f32.gmra.mrb[0].mxu0 %v1762
      %v1934 = vpop.f32.mrb[0].mxu0
      %v1935 = vadd.f32 0.0, %v1934
      %v1936 = vpop.f32.mrb[0].mxu0
      %1937 = vmatprep.mubr.f32.mxu0 %v1822
      %1938 = vmatmul.mubr.f32.gmra.mrb[0].mxu0 %v1764
      %v1939 = vpop.f32.mrb[0].mxu0
      %v1940 = vadd.f32 0.0, %v1939
      %v1941 = vpop.f32.mrb[0].mxu0
      %1942 = vmatprep.mubr.f32.mxu0 %v1825
      %1943 = vmatmul.mubr.f32.gmra.mrb[0].mxu0 %v1766
      %v1944 = vpop.f32.mrb[0].mxu0
      %v1945 = vadd.f32 0.0, %v1944
      %v1946 = vpop.f32.mrb[0].mxu0
      %1947 = vmatprep.mubr.f32.mxu0 %v1828
      %1948 = vmatmul.mubr.f32.gmra.mrb[0].mxu0 %v1768
      %v1949 = vpop.f32.mrb[0].mxu0
      %v1950 = vadd.f32 0.0, %v1949
      %v1951 = vpop.f32.mrb[0].mxu0
      %1952 = vmatprep.mubr.f32.mxu0 %v1831
      %1953 = vmatmul.mubr.f32.gmra.mrb[0].mxu0 %v1770
      %v1954 = vpop.f32.mrb[0].mxu0
      %v1955 = vadd.f32 0.0, %v1954
      %v1956 = vpop.f32.mrb[0].mxu0
      %1957 = vmatprep.mubr.f32.mxu0 %v1834
      %1958 = vmatmul.mubr.f32.gmra.mrb[0].mxu0 %v1772
      %v1959 = vpop.f32.mrb[0].mxu0
      %v1960 = vadd.f32 0.0, %v1959
      %v1961 = vpop.f32.mrb[0].mxu0
      %1962 = vmatprep.mubr.f32.mxu0 %v1837
      %1963 = vmatmul.mubr.f32.gmra.mrb[0].mxu0 %v1774
      %v1964 = vpop.f32.mrb[0].mxu0
      %v1965 = vadd.f32 0.0, %v1964
      %v1966 = vpop.f32.mrb[0].mxu0
      %1967 = vmatprep.mubr.f32.mxu0 %v1840
      %1968 = vmatmul.mubr.f32.gmra.mrb[0].mxu0 %v1776
      %v1969 = vpop.f32.mrb[0].mxu0
      %v1970 = vadd.f32 0.0, %v1969
      %v1971 = vpop.f32.mrb[0].mxu0
      %1972 = vmatprep.mubr.f32.mxu0 %v1843
      %1973 = vmatmul.mubr.f32.gmra.mrb[0].mxu0 %v1778
      %v1974 = vpop.f32.mrb[0].mxu0
      %v1975 = vadd.f32 0.0, %v1974
      %v1976 = vpop.f32.mrb[0].mxu0
      %1977 = vmatprep.mubr.f32.mxu0 %v1846
      %1978 = vmatmul.mubr.f32.gmra.mrb[0].mxu0 %v1780
      %v1979 = vpop.f32.mrb[0].mxu0
      %v1980 = vadd.f32 0.0, %v1979
      %v1981 = vpop.f32.mrb[0].mxu0
      %1982 = vmatprep.mubr.f32.mxu0 %v1849
      %1983 = vmatmul.mubr.f32.gmra.mrb[0].mxu0 %v1782
      %v1984 = vpop.f32.mrb[0].mxu0
      %v1985 = vadd.f32 0.0, %v1984
      %v1986 = vpop.f32.mrb[0].mxu0
      %1987 = vmatprep.mubr.f32.mxu0 %v1852
      %1988 = vmatmul.mubr.f32.gmra.mrb[0].mxu0 %v1784
      %v1989 = vpop.f32.mrb[0].mxu0
      %v1990 = vadd.f32 0.0, %v1989
      %v1991 = vpop.f32.mrb[0].mxu0
      %1992 = vmatprep.mubr.f32.mxu0 %v1855
      %1993 = vmatmul.mubr.f32.gmra.mrb[0].mxu0 %v1786
      %v1994 = vpop.f32.mrb[0].mxu0
      %v1995 = vadd.f32 0.0, %v1994
      %v1996 = vpop.f32.mrb[0].mxu0
      %1997 = vmatprep.mubr.f32.mxu0 %v1858
      %1998 = vmatmul.mubr.f32.gmra.mrb[0].mxu0 %v1788
      %v1999 = vpop.f32.mrb[0].mxu0
      %v2000 = vadd.f32 0.0, %v1999
      %v2001 = vpop.f32.mrb[0].mxu0
      %2002 = vmatprep.mubr.f32.mxu0 %v1861
      %2003 = vmatmul.mubr.f32.gmra.mrb[0].mxu0 %v1790
      %v2004 = vpop.f32.mrb[0].mxu0
      %v2005 = vadd.f32 0.0, %v2004
      %v2006 = vpop.f32.mrb[0].mxu0
      %2007 = vdwg.mxu0
      %v2008 = vadd.f32 %v953, %v1930
      %v2009 = vadd.f32 %v958, %v1935
      %v2010 = vadd.f32 %v963, %v1940
      %v2011 = vadd.f32 %v968, %v1945
      %v2012 = vadd.f32 %v973, %v1950
      %v2013 = vadd.f32 %v978, %v1955
      %v2014 = vadd.f32 %v983, %v1960
      %v2015 = vadd.f32 %v988, %v1965
      %v2016 = vadd.f32 %v993, %v1970
      %v2017 = vadd.f32 %v998, %v1975
      %v2018 = vadd.f32 %v1003, %v1980
      %v2019 = vadd.f32 %v1008, %v1985
      %v2020 = vadd.f32 %v1013, %v1990
      %v2021 = vadd.f32 %v1018, %v1995
      %v2022 = vadd.f32 %v1023, %v2000
      %v2023 = vadd.f32 %v1028, %v2005
      %v2024 = vld [vmem:[%s8] sm:$0x1]
      %v2026 = vlaneseq
      %v2027 = vshrl.u32 %v2026, 7
      %v2028 = vsub.s32 0, %v2027
      %v2029 = vrot.slane %v2024, %v2028
      %v2031 = vadd.f32 %v2008, %v2029
      %v2032 = vadd.f32 %v2009, %v2029
      %v2033 = vadd.f32 %v2010, %v2029
      %v2034 = vadd.f32 %v2011, %v2029
      %v2035 = vadd.f32 %v2012, %v2029
      %v2036 = vadd.f32 %v2013, %v2029
      %v2037 = vadd.f32 %v2014, %v2029
      %v2038 = vadd.f32 %v2015, %v2029
      %v2039 = vadd.f32 %v2016, %v2029
      %v2040 = vadd.f32 %v2017, %v2029
      %v2041 = vadd.f32 %v2018, %v2029
      %v2042 = vadd.f32 %v2019, %v2029
      %v2043 = vadd.f32 %v2020, %v2029
      %v2044 = vadd.f32 %v2021, %v2029
      %v2045 = vadd.f32 %v2022, %v2029
      %v2046 = vadd.f32 %v2023, %v2029
      %2047 = vmatprep.subr.mxu0 %v1761
      %2048 = vmatpush1.msra.mxu0 %v1760
      %2049 = vmatprep.subr.mxu0 %v1763
      %2050 = vmatpush1.msra.mxu0 %v1762
      %2051 = vmatprep.subr.mxu0 %v1765
      %2052 = vmatpush1.msra.mxu0 %v1764
      %2053 = vmatprep.subr.mxu0 %v1767
      %2054 = vmatpush1.msra.mxu0 %v1766
      %2055 = vmatprep.subr.mxu0 %v1769
      %2056 = vmatpush1.msra.mxu0 %v1768
      %2057 = vmatprep.subr.mxu0 %v1771
      %2058 = vmatpush1.msra.mxu0 %v1770
      %2059 = vmatprep.subr.mxu0 %v1773
      %2060 = vmatpush1.msra.mxu0 %v1772
      %2061 = vmatprep.subr.mxu0 %v1775
      %2062 = vmatpush1.msra.mxu0 %v1774
      %2063 = vmatprep.subr.mxu0 %v1777
      %2064 = vmatpush1.msra.mxu0 %v1776
      %2065 = vmatprep.subr.mxu0 %v1779
      %2066 = vmatpush1.msra.mxu0 %v1778
      %2067 = vmatprep.subr.mxu0 %v1781
      %2068 = vmatpush1.msra.mxu0 %v1780
      %2069 = vmatprep.subr.mxu0 %v1783
      %2070 = vmatpush1.msra.mxu0 %v1782
      %2071 = vmatprep.subr.mxu0 %v1785
      %2072 = vmatpush1.msra.mxu0 %v1784
      %2073 = vmatprep.subr.mxu0 %v1787
      %2074 = vmatpush1.msra.mxu0 %v1786
      %2075 = vmatprep.subr.mxu0 %v1789
      %2076 = vmatpush1.msra.mxu0 %v1788
      %2077 = vmatprep.subr.mxu0 %v1791
      %2078 = vmatpush1.msra.mxu0 %v1790
      %2079 = vmatprep.subr.mxu0 0.0
      %2080 = vmatpush1.msra.mxu0 0.0
      %2081 = vmatprep.subr.mxu0 0.0
      %2082 = vmatpush1.msra.mxu0 0.0
      %2083 = vmatprep.subr.mxu0 0.0
      %2084 = vmatpush1.msra.mxu0 0.0
      %2085 = vmatprep.subr.mxu0 0.0
      %2086 = vmatpush1.msra.mxu0 0.0
      %2087 = vmatprep.subr.mxu0 0.0
      %2088 = vmatpush1.msra.mxu0 0.0
      %2089 = vmatprep.subr.mxu0 0.0
      %2090 = vmatpush1.msra.mxu0 0.0
      %2091 = vmatprep.subr.mxu0 0.0
      %2092 = vmatpush1.msra.mxu0 0.0
      %2093 = vmatprep.subr.mxu0 0.0
      %2094 = vmatpush1.msra.mxu0 0.0
      %2095 = vmatprep.subr.mxu0 0.0
      %2096 = vmatpush1.msra.mxu0 0.0
      %2097 = vmatprep.subr.mxu0 0.0
      %2098 = vmatpush1.msra.mxu0 0.0
      %2099 = vmatprep.subr.mxu0 0.0
      %2100 = vmatpush1.msra.mxu0 0.0
      %2101 = vmatprep.subr.mxu0 0.0
      %2102 = vmatpush1.msra.mxu0 0.0
      %2103 = vmatprep.subr.mxu0 0.0
      %2104 = vmatpush1.msra.mxu0 0.0
      %2105 = vmatprep.subr.mxu0 0.0
      %2106 = vmatpush1.msra.mxu0 0.0
      %2107 = vmatprep.subr.mxu0 0.0
      %2108 = vmatpush1.msra.mxu0 0.0
      %2109 = vmatprep.subr.mxu0 0.0
      %2110 = vmatpush1.msra.mxu0 0.0
      %2111 = vmatprep.mubr.f32.mxu0 0.0
      %2112 = vmatmul.mubr.f32.gmra.mrb[0].mxu0 %v1031
      %v2113 = vpop.f32.mrb[0].mxu0
      %v2114 = vadd.f32 0.0, %v2113
      %v2115 = vpop.f32.mrb[0].mxu0
      %v2116 = vadd.f32 0.0, %v2115
      %2117 = vmatprep.mubr.f32.mxu0 0.0
      %2118 = vmatmul.mubr.f32.gmra.mrb[0].mxu0 %v1032
      %v2119 = vpop.f32.mrb[0].mxu0
      %v2120 = vadd.f32 0.0, %v2119
      %v2121 = vpop.f32.mrb[0].mxu0
      %v2122 = vadd.f32 0.0, %v2121
      %2123 = vmatprep.mubr.f32.mxu0 0.0
      %2124 = vmatmul.mubr.f32.gmra.mrb[0].mxu0 %v1033
      %v2125 = vpop.f32.mrb[0].mxu0
      %v2126 = vadd.f32 0.0, %v2125
      %v2127 = vpop.f32.mrb[0].mxu0
      %v2128 = vadd.f32 0.0, %v2127
      %2129 = vmatprep.mubr.f32.mxu0 0.0
      %2130 = vmatmul.mubr.f32.gmra.mrb[0].mxu0 %v1034
      %v2131 = vpop.f32.mrb[0].mxu0
      %v2132 = vadd.f32 0.0, %v2131
      %v2133 = vpop.f32.mrb[0].mxu0
      %v2134 = vadd.f32 0.0, %v2133
      %2135 = vmatprep.mubr.f32.mxu0 0.0
      %2136 = vmatmul.mubr.f32.gmra.mrb[0].mxu0 %v1035
      %v2137 = vpop.f32.mrb[0].mxu0
      %v2138 = vadd.f32 0.0, %v2137
      %v2139 = vpop.f32.mrb[0].mxu0
      %v2140 = vadd.f32 0.0, %v2139
      %2141 = vmatprep.mubr.f32.mxu0 0.0
      %2142 = vmatmul.mubr.f32.gmra.mrb[0].mxu0 %v1036
      %v2143 = vpop.f32.mrb[0].mxu0
      %v2144 = vadd.f32 0.0, %v2143
      %v2145 = vpop.f32.mrb[0].mxu0
      %v2146 = vadd.f32 0.0, %v2145
      %2147 = vmatprep.mubr.f32.mxu0 0.0
      %2148 = vmatmul.mubr.f32.gmra.mrb[0].mxu0 %v1037
      %v2149 = vpop.f32.mrb[0].mxu0
      %v2150 = vadd.f32 0.0, %v2149
      %v2151 = vpop.f32.mrb[0].mxu0
      %v2152 = vadd.f32 0.0, %v2151
      %2153 = vmatprep.mubr.f32.mxu0 0.0
      %2154 = vmatmul.mubr.f32.gmra.mrb[0].mxu0 %v1038
      %v2155 = vpop.f32.mrb[0].mxu0
      %v2156 = vadd.f32 0.0, %v2155
      %v2157 = vpop.f32.mrb[0].mxu0
      %v2158 = vadd.f32 0.0, %v2157
      %2159 = vmatprep.mubr.f32.mxu0 0.0
      %2160 = vmatmul.mubr.f32.gmra.mrb[0].mxu0 %v1039
      %v2161 = vpop.f32.mrb[0].mxu0
      %v2162 = vadd.f32 0.0, %v2161
      %v2163 = vpop.f32.mrb[0].mxu0
      %v2164 = vadd.f32 0.0, %v2163
      %2165 = vmatprep.mubr.f32.mxu0 0.0
      %2166 = vmatmul.mubr.f32.gmra.mrb[0].mxu0 %v1040
      %v2167 = vpop.f32.mrb[0].mxu0
      %v2168 = vadd.f32 0.0, %v2167
      %v2169 = vpop.f32.mrb[0].mxu0
      %v2170 = vadd.f32 0.0, %v2169
      %2171 = vmatprep.mubr.f32.mxu0 0.0
      %2172 = vmatmul.mubr.f32.gmra.mrb[0].mxu0 %v1041
      %v2173 = vpop.f32.mrb[0].mxu0
      %v2174 = vadd.f32 0.0, %v2173
      %v2175 = vpop.f32.mrb[0].mxu0
      %v2176 = vadd.f32 0.0, %v2175
      %2177 = vmatprep.mubr.f32.mxu0 0.0
      %2178 = vmatmul.mubr.f32.gmra.mrb[0].mxu0 %v1042
      %v2179 = vpop.f32.mrb[0].mxu0
      %v2180 = vadd.f32 0.0, %v2179
      %v2181 = vpop.f32.mrb[0].mxu0
      %v2182 = vadd.f32 0.0, %v2181
      %2183 = vmatprep.mubr.f32.mxu0 0.0
      %2184 = vmatmul.mubr.f32.gmra.mrb[0].mxu0 %v1043
      %v2185 = vpop.f32.mrb[0].mxu0
      %v2186 = vadd.f32 0.0, %v2185
      %v2187 = vpop.f32.mrb[0].mxu0
      %v2188 = vadd.f32 0.0, %v2187
      %2189 = vmatprep.mubr.f32.mxu0 0.0
      %2190 = vmatmul.mubr.f32.gmra.mrb[0].mxu0 %v1044
      %v2191 = vpop.f32.mrb[0].mxu0
      %v2192 = vadd.f32 0.0, %v2191
      %v2193 = vpop.f32.mrb[0].mxu0
      %v2194 = vadd.f32 0.0, %v2193
      %2195 = vmatprep.mubr.f32.mxu0 0.0
      %2196 = vmatmul.mubr.f32.gmra.mrb[0].mxu0 %v1045
      %v2197 = vpop.f32.mrb[0].mxu0
      %v2198 = vadd.f32 0.0, %v2197
      %v2199 = vpop.f32.mrb[0].mxu0
      %v2200 = vadd.f32 0.0, %v2199
      %2201 = vmatprep.mubr.f32.mxu0 0.0
      %2202 = vmatmul.mubr.f32.gmra.mrb[0].mxu0 %v1046
      %v2203 = vpop.f32.mrb[0].mxu0
      %v2204 = vadd.f32 0.0, %v2203
      %v2205 = vpop.f32.mrb[0].mxu0
      %v2206 = vadd.f32 0.0, %v2205
      %2207 = vdwg.mxu0
      %v2208 = vld [vmem:[%s10] sm:$0xff]
      %v2209 = vld [vmem:[%s10 + $0x8] sm:$0xff]
      %v2210 = vld [vmem:[%s10 + $0x10] sm:$0xff]
      %v2211 = vld [vmem:[%s10 + $0x18] sm:$0xff]
      %v2212 = vld [vmem:[%s10 + $0x20] sm:$0xff]
      %v2213 = vld [vmem:[%s10 + $0x28] sm:$0xff]
      %v2214 = vld [vmem:[%s10 + $0x30] sm:$0xff]
      %v2215 = vld [vmem:[%s10 + $0x38] sm:$0xff]
      %v2216 = vld [vmem:[%s10 + $0x40] sm:$0xff]
      %v2217 = vld [vmem:[%s10 + $0x48] sm:$0xff]
      %v2218 = vld [vmem:[%s10 + $0x50] sm:$0xff]
      %v2219 = vld [vmem:[%s10 + $0x58] sm:$0xff]
      %v2220 = vld [vmem:[%s10 + $0x60] sm:$0xff]
      %v2221 = vld [vmem:[%s10 + $0x68] sm:$0xff]
      %v2222 = vld [vmem:[%s10 + $0x70] sm:$0xff]
      %v2223 = vld [vmem:[%s10 + $0x78] sm:$0xff]
      %v2224 = vld [vmem:[%s10 + $0x80] sm:$0xff]
      %v2225 = vld [vmem:[%s10 + $0x88] sm:$0xff]
      %v2226 = vld [vmem:[%s10 + $0x90] sm:$0xff]
      %v2227 = vld [vmem:[%s10 + $0x98] sm:$0xff]
      %v2228 = vld [vmem:[%s10 + $0xa0] sm:$0xff]
      %v2229 = vld [vmem:[%s10 + $0xa8] sm:$0xff]
      %v2230 = vld [vmem:[%s10 + $0xb0] sm:$0xff]
      %v2231 = vld [vmem:[%s10 + $0xb8] sm:$0xff]
      %v2232 = vld [vmem:[%s10 + $0xc0] sm:$0xff]
      %v2233 = vld [vmem:[%s10 + $0xc8] sm:$0xff]
      %v2234 = vld [vmem:[%s10 + $0xd0] sm:$0xff]
      %v2235 = vld [vmem:[%s10 + $0xd8] sm:$0xff]
      %v2236 = vld [vmem:[%s10 + $0xe0] sm:$0xff]
      %v2237 = vld [vmem:[%s10 + $0xe8] sm:$0xff]
      %v2238 = vld [vmem:[%s10 + $0xf0] sm:$0xff]
      %v2239 = vld [vmem:[%s10 + $0xf8] sm:$0xff]
      %v2240 = vld [vmem:[%s10 + $0x100] sm:$0xff]
      %v2241 = vld [vmem:[%s10 + $0x108] sm:$0xff]
      %v2242 = vld [vmem:[%s10 + $0x110] sm:$0xff]
      %v2243 = vld [vmem:[%s10 + $0x118] sm:$0xff]
      %v2244 = vld [vmem:[%s10 + $0x120] sm:$0xff]
      %v2245 = vld [vmem:[%s10 + $0x128] sm:$0xff]
      %v2246 = vld [vmem:[%s10 + $0x130] sm:$0xff]
      %v2247 = vld [vmem:[%s10 + $0x138] sm:$0xff]
      %v2248 = vld [vmem:[%s10 + $0x140] sm:$0xff]
      %v2249 = vld [vmem:[%s10 + $0x148] sm:$0xff]
      %v2250 = vld [vmem:[%s10 + $0x150] sm:$0xff]
      %v2251 = vld [vmem:[%s10 + $0x158] sm:$0xff]
      %v2252 = vld [vmem:[%s11] sm:$0x3]
      %v2254 = vlaneseq
      %v2255 = vshrl.u32 %v2254, 7
      %v2256 = vsub.s32 0, %v2255
      %v2257 = vrot.slane %v2252, %v2256
      %v2258 = vlaneseq
      %v2259 = vshrl.u32 %v2258, 7
      %v2260 = vsub.s32 1, %v2259
      %v2261 = vrot.slane %v2252, %v2260
      %v2265 = vsel %vm1814, %v2116, 0
      %v2268 = vsel %vm1814, %v2122, 0
      %v2271 = vsel %vm1814, %v2128, 0
      %v2274 = vsel %vm1814, %v2134, 0
      %v2277 = vsel %vm1814, %v2140, 0
      %v2280 = vsel %vm1814, %v2146, 0
      %v2283 = vsel %vm1814, %v2152, 0
      %v2286 = vsel %vm1814, %v2158, 0
      %v2289 = vsel %vm1814, %v2164, 0
      %v2292 = vsel %vm1814, %v2170, 0
      %v2295 = vsel %vm1814, %v2176, 0
      %v2298 = vsel %vm1814, %v2182, 0
      %v2301 = vsel %vm1814, %v2188, 0
      %v2304 = vsel %vm1814, %v2194, 0
      %v2307 = vsel %vm1814, %v2200, 0
      %v2310 = vsel %vm1814, %v2206, 0
      %2312 = vmatprep.subr.mxu0 %v2209
      %2313 = vmatpush1.msra.mxu0 %v2208
      %2314 = vmatprep.subr.mxu0 %v2211
      %2315 = vmatpush1.msra.mxu0 %v2210
      %2316 = vmatprep.subr.mxu0 %v2213
      %2317 = vmatpush1.msra.mxu0 %v2212
      %2318 = vmatprep.subr.mxu0 %v2215
      %2319 = vmatpush1.msra.mxu0 %v2214
      %2320 = vmatprep.subr.mxu0 %v2217
      %2321 = vmatpush1.msra.mxu0 %v2216
      %2322 = vmatprep.subr.mxu0 %v2219
      %2323 = vmatpush1.msra.mxu0 %v2218
      %2324 = vmatprep.subr.mxu0 %v2221
      %2325 = vmatpush1.msra.mxu0 %v2220
      %2326 = vmatprep.subr.mxu0 %v2223
      %2327 = vmatpush1.msra.mxu0 %v2222
      %2328 = vmatprep.subr.mxu0 %v2225
      %2329 = vmatpush1.msra.mxu0 %v2224
      %2330 = vmatprep.subr.mxu0 %v2227
      %2331 = vmatpush1.msra.mxu0 %v2226
      %2332 = vmatprep.subr.mxu0 %v2229
      %2333 = vmatpush1.msra.mxu0 %v2228
      %2334 = vmatprep.subr.mxu0 %v2231
      %2335 = vmatpush1.msra.mxu0 %v2230
      %2336 = vmatprep.subr.mxu0 %v2233
      %2337 = vmatpush1.msra.mxu0 %v2232
      %2338 = vmatprep.subr.mxu0 %v2235
      %2339 = vmatpush1.msra.mxu0 %v2234
      %2340 = vmatprep.subr.mxu0 %v2237
      %2341 = vmatpush1.msra.mxu0 %v2236
      %2342 = vmatprep.subr.mxu0 %v2239
      %2343 = vmatpush1.msra.mxu0 %v2238
      %2344 = vmatprep.subr.mxu0 %v2241
      %2345 = vmatpush1.msra.mxu0 %v2240
      %2346 = vmatprep.subr.mxu0 %v2243
      %2347 = vmatpush1.msra.mxu0 %v2242
      %2348 = vmatprep.subr.mxu0 %v2245
      %2349 = vmatpush1.msra.mxu0 %v2244
      %2350 = vmatprep.subr.mxu0 %v2247
      %2351 = vmatpush1.msra.mxu0 %v2246
      %2352 = vmatprep.subr.mxu0 %v2249
      %2353 = vmatpush1.msra.mxu0 %v2248
      %2354 = vmatprep.subr.mxu0 %v2251
      %2355 = vmatpush1.msra.mxu0 %v2250
      %2356 = vmatprep.subr.mxu0 0.0
      %2357 = vmatpush1.msra.mxu0 0.0
      %2358 = vmatprep.subr.mxu0 0.0
      %2359 = vmatpush1.msra.mxu0 0.0
      %2360 = vmatprep.subr.mxu0 0.0
      %2361 = vmatpush1.msra.mxu0 0.0
      %2362 = vmatprep.subr.mxu0 0.0
      %2363 = vmatpush1.msra.mxu0 0.0
      %2364 = vmatprep.subr.mxu0 0.0
      %2365 = vmatpush1.msra.mxu0 0.0
      %2366 = vmatprep.subr.mxu0 0.0
      %2367 = vmatpush1.msra.mxu0 0.0
      %2368 = vmatprep.subr.mxu0 0.0
      %2369 = vmatpush1.msra.mxu0 0.0
      %2370 = vmatprep.subr.mxu0 0.0
      %2371 = vmatpush1.msra.mxu0 0.0
      %2372 = vmatprep.subr.mxu0 0.0
      %2373 = vmatpush1.msra.mxu0 0.0
      %2374 = vmatprep.subr.mxu0 0.0
      %2375 = vmatpush1.msra.mxu0 0.0
      %2376 = vmatprep.mubr.f32.mxu0 %v2265
      %2377 = vmatmul.mubr.f32.gmra.mrb[0].mxu0 %v2114
      %v2378 = vpop.f32.mrb[0].mxu0
      %v2379 = vadd.f32 %v2257, %v2378
      %v2380 = vpop.f32.mrb[0].mxu0
      %v2381 = vadd.f32 %v2261, %v2380
      %2382 = vmatprep.mubr.f32.mxu0 %v2268
      %2383 = vmatmul.mubr.f32.gmra.mrb[0].mxu0 %v2120
      %v2384 = vpop.f32.mrb[0].mxu0
      %v2385 = vadd.f32 %v2257, %v2384
      %v2386 = vpop.f32.mrb[0].mxu0
      %v2387 = vadd.f32 %v2261, %v2386
      %2388 = vmatprep.mubr.f32.mxu0 %v2271
      %2389 = vmatmul.mubr.f32.gmra.mrb[0].mxu0 %v2126
      %v2390 = vpop.f32.mrb[0].mxu0
      %v2391 = vadd.f32 %v2257, %v2390
      %v2392 = vpop.f32.mrb[0].mxu0
      %v2393 = vadd.f32 %v2261, %v2392
      %2394 = vmatprep.mubr.f32.mxu0 %v2274
      %2395 = vmatmul.mubr.f32.gmra.mrb[0].mxu0 %v2132
      %v2396 = vpop.f32.mrb[0].mxu0
      %v2397 = vadd.f32 %v2257, %v2396
      %v2398 = vpop.f32.mrb[0].mxu0
      %v2399 = vadd.f32 %v2261, %v2398
      %2400 = vmatprep.mubr.f32.mxu0 %v2277
      %2401 = vmatmul.mubr.f32.gmra.mrb[0].mxu0 %v2138
      %v2402 = vpop.f32.mrb[0].mxu0
      %v2403 = vadd.f32 %v2257, %v2402
      %v2404 = vpop.f32.mrb[0].mxu0
      %v2405 = vadd.f32 %v2261, %v2404
      %2406 = vmatprep.mubr.f32.mxu0 %v2280
      %2407 = vmatmul.mubr.f32.gmra.mrb[0].mxu0 %v2144
      %v2408 = vpop.f32.mrb[0].mxu0
      %v2409 = vadd.f32 %v2257, %v2408
      %v2410 = vpop.f32.mrb[0].mxu0
      %v2411 = vadd.f32 %v2261, %v2410
      %2412 = vmatprep.mubr.f32.mxu0 %v2283
      %2413 = vmatmul.mubr.f32.gmra.mrb[0].mxu0 %v2150
      %v2414 = vpop.f32.mrb[0].mxu0
      %v2415 = vadd.f32 %v2257, %v2414
      %v2416 = vpop.f32.mrb[0].mxu0
      %v2417 = vadd.f32 %v2261, %v2416
      %2418 = vmatprep.mubr.f32.mxu0 %v2286
      %2419 = vmatmul.mubr.f32.gmra.mrb[0].mxu0 %v2156
      %v2420 = vpop.f32.mrb[0].mxu0
      %v2421 = vadd.f32 %v2257, %v2420
      %v2422 = vpop.f32.mrb[0].mxu0
      %v2423 = vadd.f32 %v2261, %v2422
      %2424 = vmatprep.mubr.f32.mxu0 %v2289
      %2425 = vmatmul.mubr.f32.gmra.mrb[0].mxu0 %v2162
      %v2426 = vpop.f32.mrb[0].mxu0
      %v2427 = vadd.f32 %v2257, %v2426
      %v2428 = vpop.f32.mrb[0].mxu0
      %v2429 = vadd.f32 %v2261, %v2428
      %2430 = vmatprep.mubr.f32.mxu0 %v2292
      %2431 = vmatmul.mubr.f32.gmra.mrb[0].mxu0 %v2168
      %v2432 = vpop.f32.mrb[0].mxu0
      %v2433 = vadd.f32 %v2257, %v2432
      %v2434 = vpop.f32.mrb[0].mxu0
      %v2435 = vadd.f32 %v2261, %v2434
      %2436 = vmatprep.mubr.f32.mxu0 %v2295
      %2437 = vmatmul.mubr.f32.gmra.mrb[0].mxu0 %v2174
      %v2438 = vpop.f32.mrb[0].mxu0
      %v2439 = vadd.f32 %v2257, %v2438
      %v2440 = vpop.f32.mrb[0].mxu0
      %v2441 = vadd.f32 %v2261, %v2440
      %2442 = vmatprep.mubr.f32.mxu0 %v2298
      %2443 = vmatmul.mubr.f32.gmra.mrb[0].mxu0 %v2180
      %v2444 = vpop.f32.mrb[0].mxu0
      %v2445 = vadd.f32 %v2257, %v2444
      %v2446 = vpop.f32.mrb[0].mxu0
      %v2447 = vadd.f32 %v2261, %v2446
      %2448 = vmatprep.mubr.f32.mxu0 %v2301
      %2449 = vmatmul.mubr.f32.gmra.mrb[0].mxu0 %v2186
      %v2450 = vpop.f32.mrb[0].mxu0
      %v2451 = vadd.f32 %v2257, %v2450
      %v2452 = vpop.f32.mrb[0].mxu0
      %v2453 = vadd.f32 %v2261, %v2452
      %2454 = vmatprep.mubr.f32.mxu0 %v2304
      %2455 = vmatmul.mubr.f32.gmra.mrb[0].mxu0 %v2192
      %v2456 = vpop.f32.mrb[0].mxu0
      %v2457 = vadd.f32 %v2257, %v2456
      %v2458 = vpop.f32.mrb[0].mxu0
      %v2459 = vadd.f32 %v2261, %v2458
      %2460 = vmatprep.mubr.f32.mxu0 %v2307
      %2461 = vmatmul.mubr.f32.gmra.mrb[0].mxu0 %v2198
      %v2462 = vpop.f32.mrb[0].mxu0
      %v2463 = vadd.f32 %v2257, %v2462
      %v2464 = vpop.f32.mrb[0].mxu0
      %v2465 = vadd.f32 %v2261, %v2464
      %2466 = vmatprep.mubr.f32.mxu0 %v2310
      %2467 = vmatmul.mubr.f32.gmra.mrb[0].mxu0 %v2204
      %v2468 = vpop.f32.mrb[0].mxu0
      %v2469 = vadd.f32 %v2257, %v2468
      %v2470 = vpop.f32.mrb[0].mxu0
      %v2471 = vadd.f32 %v2261, %v2470
      %2472 = vdwg.mxu0
      %2505 = vrot.lane.b32.xlu0 %v783, 48
      %v2506 = vpop.permute.xlu0 %2505
      %2507 = vrot.lane.b32.xlu0 %v785, 48
      %v2508 = vpop.permute.xlu0 %2507
      %2509 = vrot.lane.b32.xlu0 %v789, 48
      %v2510 = vpop.permute.xlu0 %2509
      %2511 = vrot.lane.b32.xlu0 %v791, 48
      %v2512 = vpop.permute.xlu0 %2511
      %2513 = vrot.lane.b32.xlu0 %v795, 48
      %v2514 = vpop.permute.xlu0 %2513
      %2515 = vrot.lane.b32.xlu0 %v797, 48
      %v2516 = vpop.permute.xlu0 %2515
      %2517 = vrot.lane.b32.xlu0 %v801, 48
      %v2518 = vpop.permute.xlu0 %2517
      %2519 = vrot.lane.b32.xlu0 %v803, 48
      %v2520 = vpop.permute.xlu0 %2519
      %2521 = vrot.lane.b32.xlu0 %v807, 48
      %v2522 = vpop.permute.xlu0 %2521
      %2523 = vrot.lane.b32.xlu0 %v809, 48
      %v2524 = vpop.permute.xlu0 %2523
      %2525 = vrot.lane.b32.xlu0 %v813, 48
      %v2526 = vpop.permute.xlu0 %2525
      %2527 = vrot.lane.b32.xlu0 %v815, 48
      %v2528 = vpop.permute.xlu0 %2527
      %2529 = vrot.lane.b32.xlu0 %v819, 48
      %v2530 = vpop.permute.xlu0 %2529
      %2531 = vrot.lane.b32.xlu0 %v821, 48
      %v2532 = vpop.permute.xlu0 %2531
      %2533 = vrot.lane.b32.xlu0 %v825, 48
      %v2534 = vpop.permute.xlu0 %2533
      %2535 = vrot.lane.b32.xlu0 %v827, 48
      %v2536 = vpop.permute.xlu0 %2535
      %2537 = vrot.lane.b32.xlu0 %v831, 48
      %v2538 = vpop.permute.xlu0 %2537
      %2539 = vrot.lane.b32.xlu0 %v833, 48
      %v2540 = vpop.permute.xlu0 %2539
      %2541 = vrot.lane.b32.xlu0 %v837, 48
      %v2542 = vpop.permute.xlu0 %2541
      %2543 = vrot.lane.b32.xlu0 %v839, 48
      %v2544 = vpop.permute.xlu0 %2543
      %2545 = vrot.lane.b32.xlu0 %v843, 48
      %v2546 = vpop.permute.xlu0 %2545
      %2547 = vrot.lane.b32.xlu0 %v845, 48
      %v2548 = vpop.permute.xlu0 %2547
      %2549 = vrot.lane.b32.xlu0 %v849, 48
      %v2550 = vpop.permute.xlu0 %2549
      %2551 = vrot.lane.b32.xlu0 %v851, 48
      %v2552 = vpop.permute.xlu0 %2551
      %2553 = vrot.lane.b32.xlu0 %v855, 48
      %v2554 = vpop.permute.xlu0 %2553
      %2555 = vrot.lane.b32.xlu0 %v857, 48
      %v2556 = vpop.permute.xlu0 %2555
      %2557 = vrot.lane.b32.xlu0 %v861, 48
      %v2558 = vpop.permute.xlu0 %2557
      %2559 = vrot.lane.b32.xlu0 %v863, 48
      %v2560 = vpop.permute.xlu0 %2559
      %2561 = vrot.lane.b32.xlu0 %v867, 48
      %v2562 = vpop.permute.xlu0 %2561
      %2563 = vrot.lane.b32.xlu0 %v869, 48
      %v2564 = vpop.permute.xlu0 %2563
      %2565 = vrot.lane.b32.xlu0 %v873, 48
      %v2566 = vpop.permute.xlu0 %2565
      %2567 = vrot.lane.b32.xlu0 %v875, 48
      %v2568 = vpop.permute.xlu0 %2567
      %v2569 = vsel %vm1814, %v2506, %v2508
      %v2570 = vsel %vm1814, %v2510, %v2512
      %v2571 = vsel %vm1814, %v2514, %v2516
      %v2572 = vsel %vm1814, %v2518, %v2520
      %v2573 = vsel %vm1814, %v2522, %v2524
      %v2574 = vsel %vm1814, %v2526, %v2528
      %v2575 = vsel %vm1814, %v2530, %v2532
      %v2576 = vsel %vm1814, %v2534, %v2536
      %v2577 = vsel %vm1814, %v2538, %v2540
      %v2578 = vsel %vm1814, %v2542, %v2544
      %v2579 = vsel %vm1814, %v2546, %v2548
      %v2580 = vsel %vm1814, %v2550, %v2552
      %v2581 = vsel %vm1814, %v2554, %v2556
      %v2582 = vsel %vm1814, %v2558, %v2560
      %v2583 = vsel %vm1814, %v2562, %v2564
      %v2584 = vsel %vm1814, %v2566, %v2568
      %v2617 = vadd.f32 %v2379, %v2569
      %v2618 = vadd.f32 %v2381, %v2508
      %v2619 = vadd.f32 %v2385, %v2570
      %v2620 = vadd.f32 %v2387, %v2512
      %v2621 = vadd.f32 %v2391, %v2571
      %v2622 = vadd.f32 %v2393, %v2516
      %v2623 = vadd.f32 %v2397, %v2572
      %v2624 = vadd.f32 %v2399, %v2520
      %v2625 = vadd.f32 %v2403, %v2573
      %v2626 = vadd.f32 %v2405, %v2524
      %v2627 = vadd.f32 %v2409, %v2574
      %v2628 = vadd.f32 %v2411, %v2528
      %v2629 = vadd.f32 %v2415, %v2575
      %v2630 = vadd.f32 %v2417, %v2532
      %v2631 = vadd.f32 %v2421, %v2576
      %v2632 = vadd.f32 %v2423, %v2536
      %v2633 = vadd.f32 %v2427, %v2577
      %v2634 = vadd.f32 %v2429, %v2540
      %v2635 = vadd.f32 %v2433, %v2578
      %v2636 = vadd.f32 %v2435, %v2544
      %v2637 = vadd.f32 %v2439, %v2579
      %v2638 = vadd.f32 %v2441, %v2548
      %v2639 = vadd.f32 %v2445, %v2580
      %v2640 = vadd.f32 %v2447, %v2552
      %v2641 = vadd.f32 %v2451, %v2581
      %v2642 = vadd.f32 %v2453, %v2556
      %v2643 = vadd.f32 %v2457, %v2582
      %v2644 = vadd.f32 %v2459, %v2560
      %v2645 = vadd.f32 %v2463, %v2583
      %v2646 = vadd.f32 %v2465, %v2564
      %v2647 = vadd.f32 %v2469, %v2584
      %v2648 = vadd.f32 %v2471, %v2568
      %v2649 = vsel %vm1814, %v2618, 0.0
      %v2650 = vadd.f32 %v2617, %v2649
      %2651 = vadd.xlane.f32.xlu0 %v2650
      %v2652 = vpop.xlane.xlu0 %2651
      %v2653 = vsel %vm1814, %v2620, 0.0
      %v2654 = vadd.f32 %v2619, %v2653
      %2655 = vadd.xlane.f32.xlu0 %v2654
      %v2656 = vpop.xlane.xlu0 %2655
      %v2657 = vsel %vm1814, %v2622, 0.0
      %v2658 = vadd.f32 %v2621, %v2657
      %2659 = vadd.xlane.f32.xlu0 %v2658
      %v2660 = vpop.xlane.xlu0 %2659
      %v2661 = vsel %vm1814, %v2624, 0.0
      %v2662 = vadd.f32 %v2623, %v2661
      %2663 = vadd.xlane.f32.xlu0 %v2662
      %v2664 = vpop.xlane.xlu0 %2663
      %v2665 = vsel %vm1814, %v2626, 0.0
      %v2666 = vadd.f32 %v2625, %v2665
      %2667 = vadd.xlane.f32.xlu0 %v2666
      %v2668 = vpop.xlane.xlu0 %2667
      %v2669 = vsel %vm1814, %v2628, 0.0
      %v2670 = vadd.f32 %v2627, %v2669
      %2671 = vadd.xlane.f32.xlu0 %v2670
      %v2672 = vpop.xlane.xlu0 %2671
      %v2673 = vsel %vm1814, %v2630, 0.0
      %v2674 = vadd.f32 %v2629, %v2673
      %2675 = vadd.xlane.f32.xlu0 %v2674
      %v2676 = vpop.xlane.xlu0 %2675
      %v2677 = vsel %vm1814, %v2632, 0.0
      %v2678 = vadd.f32 %v2631, %v2677
      %2679 = vadd.xlane.f32.xlu0 %v2678
      %v2680 = vpop.xlane.xlu0 %2679
      %v2681 = vsel %vm1814, %v2634, 0.0
      %v2682 = vadd.f32 %v2633, %v2681
      %2683 = vadd.xlane.f32.xlu0 %v2682
      %v2684 = vpop.xlane.xlu0 %2683
      %v2685 = vsel %vm1814, %v2636, 0.0
      %v2686 = vadd.f32 %v2635, %v2685
      %2687 = vadd.xlane.f32.xlu0 %v2686
      %v2688 = vpop.xlane.xlu0 %2687
      %v2689 = vsel %vm1814, %v2638, 0.0
      %v2690 = vadd.f32 %v2637, %v2689
      %2691 = vadd.xlane.f32.xlu0 %v2690
      %v2692 = vpop.xlane.xlu0 %2691
      %v2693 = vsel %vm1814, %v2640, 0.0
      %v2694 = vadd.f32 %v2639, %v2693
      %2695 = vadd.xlane.f32.xlu0 %v2694
      %v2696 = vpop.xlane.xlu0 %2695
      %v2697 = vsel %vm1814, %v2642, 0.0
      %v2698 = vadd.f32 %v2641, %v2697
      %2699 = vadd.xlane.f32.xlu0 %v2698
      %v2700 = vpop.xlane.xlu0 %2699
      %v2701 = vsel %vm1814, %v2644, 0.0
      %v2702 = vadd.f32 %v2643, %v2701
      %2703 = vadd.xlane.f32.xlu0 %v2702
      %v2704 = vpop.xlane.xlu0 %2703
      %v2705 = vsel %vm1814, %v2646, 0.0
      %v2706 = vadd.f32 %v2645, %v2705
      %2707 = vadd.xlane.f32.xlu0 %v2706
      %v2708 = vpop.xlane.xlu0 %2707
      %v2709 = vsel %vm1814, %v2648, 0.0
      %v2710 = vadd.f32 %v2647, %v2709
      %2711 = vadd.xlane.f32.xlu0 %v2710
      %v2712 = vpop.xlane.xlu0 %2711
      %v2713 = vmul.f32 %v2617, %v2617
      %v2714 = vmul.f32 %v2618, %v2618
      %v2715 = vmul.f32 %v2619, %v2619
      %v2716 = vmul.f32 %v2620, %v2620
      %v2717 = vmul.f32 %v2621, %v2621
      %v2718 = vmul.f32 %v2622, %v2622
      %v2719 = vmul.f32 %v2623, %v2623
      %v2720 = vmul.f32 %v2624, %v2624
      %v2721 = vmul.f32 %v2625, %v2625
      %v2722 = vmul.f32 %v2626, %v2626
      %v2723 = vmul.f32 %v2627, %v2627
      %v2724 = vmul.f32 %v2628, %v2628
      %v2725 = vmul.f32 %v2629, %v2629
      %v2726 = vmul.f32 %v2630, %v2630
      %v2727 = vmul.f32 %v2631, %v2631
      %v2728 = vmul.f32 %v2632, %v2632
      %v2729 = vmul.f32 %v2633, %v2633
      %v2730 = vmul.f32 %v2634, %v2634
      %v2731 = vmul.f32 %v2635, %v2635
      %v2732 = vmul.f32 %v2636, %v2636
      %v2733 = vmul.f32 %v2637, %v2637
      %v2734 = vmul.f32 %v2638, %v2638
      %v2735 = vmul.f32 %v2639, %v2639
      %v2736 = vmul.f32 %v2640, %v2640
      %v2737 = vmul.f32 %v2641, %v2641
      %v2738 = vmul.f32 %v2642, %v2642
      %v2739 = vmul.f32 %v2643, %v2643
      %v2740 = vmul.f32 %v2644, %v2644
      %v2741 = vmul.f32 %v2645, %v2645
      %v2742 = vmul.f32 %v2646, %v2646
      %v2743 = vmul.f32 %v2647, %v2647
      %v2744 = vmul.f32 %v2648, %v2648
      %v2745 = vsel %vm1814, %v2714, 0.0
      %v2746 = vadd.f32 %v2713, %v2745
      %2747 = vadd.xlane.f32.xlu0 %v2746
      %v2748 = vpop.xlane.xlu0 %2747
      %v2749 = vsel %vm1814, %v2716, 0.0
      %v2750 = vadd.f32 %v2715, %v2749
      %2751 = vadd.xlane.f32.xlu0 %v2750
      %v2752 = vpop.xlane.xlu0 %2751
      %v2753 = vsel %vm1814, %v2718, 0.0
      %v2754 = vadd.f32 %v2717, %v2753
      %2755 = vadd.xlane.f32.xlu0 %v2754
      %v2756 = vpop.xlane.xlu0 %2755
      %v2757 = vsel %vm1814, %v2720, 0.0
      %v2758 = vadd.f32 %v2719, %v2757
      %2759 = vadd.xlane.f32.xlu0 %v2758
      %v2760 = vpop.xlane.xlu0 %2759
      %v2761 = vsel %vm1814, %v2722, 0.0
      %v2762 = vadd.f32 %v2721, %v2761
      %2763 = vadd.xlane.f32.xlu0 %v2762
      %v2764 = vpop.xlane.xlu0 %2763
      %v2765 = vsel %vm1814, %v2724, 0.0
      %v2766 = vadd.f32 %v2723, %v2765
      %2767 = vadd.xlane.f32.xlu0 %v2766
      %v2768 = vpop.xlane.xlu0 %2767
      %v2769 = vsel %vm1814, %v2726, 0.0
      %v2770 = vadd.f32 %v2725, %v2769
      %2771 = vadd.xlane.f32.xlu0 %v2770
      %v2772 = vpop.xlane.xlu0 %2771
      %v2773 = vsel %vm1814, %v2728, 0.0
      %v2774 = vadd.f32 %v2727, %v2773
      %2775 = vadd.xlane.f32.xlu0 %v2774
      %v2776 = vpop.xlane.xlu0 %2775
      %v2777 = vsel %vm1814, %v2730, 0.0
      %v2778 = vadd.f32 %v2729, %v2777
      %2779 = vadd.xlane.f32.xlu0 %v2778
      %v2780 = vpop.xlane.xlu0 %2779
      %v2781 = vsel %vm1814, %v2732, 0.0
      %v2782 = vadd.f32 %v2731, %v2781
      %2783 = vadd.xlane.f32.xlu0 %v2782
      %v2784 = vpop.xlane.xlu0 %2783
      %v2785 = vsel %vm1814, %v2734, 0.0
      %v2786 = vadd.f32 %v2733, %v2785
      %2787 = vadd.xlane.f32.xlu0 %v2786
      %v2788 = vpop.xlane.xlu0 %2787
      %v2789 = vsel %vm1814, %v2736, 0.0
      %v2790 = vadd.f32 %v2735, %v2789
      %2791 = vadd.xlane.f32.xlu0 %v2790
      %v2792 = vpop.xlane.xlu0 %2791
      %v2793 = vsel %vm1814, %v2738, 0.0
      %v2794 = vadd.f32 %v2737, %v2793
      %2795 = vadd.xlane.f32.xlu0 %v2794
      %v2796 = vpop.xlane.xlu0 %2795
      %v2797 = vsel %vm1814, %v2740, 0.0
      %v2798 = vadd.f32 %v2739, %v2797
      %2799 = vadd.xlane.f32.xlu0 %v2798
      %v2800 = vpop.xlane.xlu0 %2799
      %v2801 = vsel %vm1814, %v2742, 0.0
      %v2802 = vadd.f32 %v2741, %v2801
      %2803 = vadd.xlane.f32.xlu0 %v2802
      %v2804 = vpop.xlane.xlu0 %2803
      %v2805 = vsel %vm1814, %v2744, 0.0
      %v2806 = vadd.f32 %v2743, %v2805
      %2807 = vadd.xlane.f32.xlu0 %v2806
      %v2808 = vpop.xlane.xlu0 %2807
      %vm2809 = vcmask 7168
      %v2810 = vsel %vm2809, %v2652, %v2748
      %v2811 = vsel %vm2809, %v2656, %v2752
      %v2812 = vsel %vm2809, %v2660, %v2756
      %v2813 = vsel %vm2809, %v2664, %v2760
      %v2814 = vsel %vm2809, %v2668, %v2764
      %v2815 = vsel %vm2809, %v2672, %v2768
      %v2816 = vsel %vm2809, %v2676, %v2772
      %v2817 = vsel %vm2809, %v2680, %v2776
      %v2818 = vsel %vm2809, %v2684, %v2780
      %v2819 = vsel %vm2809, %v2688, %v2784
      %v2820 = vsel %vm2809, %v2692, %v2788
      %v2821 = vsel %vm2809, %v2696, %v2792
      %v2822 = vsel %vm2809, %v2700, %v2796
      %v2823 = vsel %vm2809, %v2704, %v2800
      %v2824 = vsel %vm2809, %v2708, %v2804
      %v2825 = vsel %vm2809, %v2712, %v2808
      %2826 = vmatprep.subr.mxu0 0.0
      %2827 = vmatpush1.msra.mxu0 %v2810
      %2828 = vmatprep.subr.mxu0 0.0
      %2829 = vmatpush1.msra.mxu0 %v2811
      %2830 = vmatprep.subr.mxu0 0.0
      %2831 = vmatpush1.msra.mxu0 %v2812
      %2832 = vmatprep.subr.mxu0 0.0
      %2833 = vmatpush1.msra.mxu0 %v2813
      %2834 = vmatprep.subr.mxu0 0.0
      %2835 = vmatpush1.msra.mxu0 %v2814
      %2836 = vmatprep.subr.mxu0 0.0
      %2837 = vmatpush1.msra.mxu0 %v2815
      %2838 = vmatprep.subr.mxu0 0.0
      %2839 = vmatpush1.msra.mxu0 %v2816
      %2840 = vmatprep.subr.mxu0 0.0
      %2841 = vmatpush1.msra.mxu0 %v2817
      %2842 = vmatprep.subr.mxu0 0.0
      %2843 = vmatpush1.msra.mxu0 %v2818
      %2844 = vmatprep.subr.mxu0 0.0
      %2845 = vmatpush1.msra.mxu0 %v2819
      %2846 = vmatprep.subr.mxu0 0.0
      %2847 = vmatpush1.msra.mxu0 %v2820
      %2848 = vmatprep.subr.mxu0 0.0
      %2849 = vmatpush1.msra.mxu0 %v2821
      %2850 = vmatprep.subr.mxu0 0.0
      %2851 = vmatpush1.msra.mxu0 %v2822
      %2852 = vmatprep.subr.mxu0 0.0
      %2853 = vmatpush1.msra.mxu0 %v2823
      %2854 = vmatprep.subr.mxu0 0.0
      %2855 = vmatpush1.msra.mxu0 %v2824
      %2856 = vmatprep.subr.mxu0 0.0
      %2857 = vmatpush1.msra.mxu0 %v2825
      %2858 = vmatprep.subr.mxu0 0.0
      %2859 = vmatpush1.msra.mxu0 0.0
      %2860 = vmatprep.subr.mxu0 0.0
      %2861 = vmatpush1.msra.mxu0 0.0
      %2862 = vmatprep.subr.mxu0 0.0
      %2863 = vmatpush1.msra.mxu0 0.0
      %2864 = vmatprep.subr.mxu0 0.0
      %2865 = vmatpush1.msra.mxu0 0.0
      %2866 = vmatprep.subr.mxu0 0.0
      %2867 = vmatpush1.msra.mxu0 0.0
      %2868 = vmatprep.subr.mxu0 0.0
      %2869 = vmatpush1.msra.mxu0 0.0
      %2870 = vmatprep.subr.mxu0 0.0
      %2871 = vmatpush1.msra.mxu0 0.0
      %2872 = vmatprep.subr.mxu0 0.0
      %2873 = vmatpush1.msra.mxu0 0.0
      %2874 = vmatprep.subr.mxu0 0.0
      %2875 = vmatpush1.msra.mxu0 0.0
      %2876 = vmatprep.subr.mxu0 0.0
      %2877 = vmatpush1.msra.mxu0 0.0
      %2878 = vmatprep.subr.mxu0 0.0
      %2879 = vmatpush1.msra.mxu0 0.0
      %2880 = vmatprep.subr.mxu0 0.0
      %2881 = vmatpush1.msra.mxu0 0.0
      %2882 = vmatprep.subr.mxu0 0.0
      %2883 = vmatpush1.msra.mxu0 0.0
      %2884 = vmatprep.subr.mxu0 0.0
      %2885 = vmatpush1.msra.mxu0 0.0
      %2886 = vmatprep.subr.mxu0 0.0
      %2887 = vmatpush1.msra.mxu0 0.0
      %2888 = vmatprep.subr.mxu0 0.0
      %2889 = vmatpush1.msra.mxu0 0.0
      %2890 = vmatprep.mubr.f32.mxu0 0.0
      %2891 = vmatmul.mubr.f32.gmra.mrb[0].mxu0 %v1048
      %v2892 = vpop.f32.mrb[0].mxu0
      %v2893 = vadd.f32 0.0, %v2892
      %v2894 = vpop.f32.mrb[0].mxu0
      %2895 = vmatprep.mubr.f32.mxu0 0.0
      %2896 = vmatmul.mubr.f32.gmra.mrb[0].mxu0 %v1049
      %v2897 = vpop.f32.mrb[0].mxu0
      %v2898 = vadd.f32 0.0, %v2897
      %v2899 = vpop.f32.mrb[0].mxu0
      %2900 = vmatprep.mubr.f32.mxu0 0.0
      %2901 = vmatmul.mubr.f32.gmra.mrb[0].mxu0 %v1050
      %v2902 = vpop.f32.mrb[0].mxu0
      %v2903 = vadd.f32 0.0, %v2902
      %v2904 = vpop.f32.mrb[0].mxu0
      %2905 = vmatprep.mubr.f32.mxu0 0.0
      %2906 = vmatmul.mubr.f32.gmra.mrb[0].mxu0 %v1051
      %v2907 = vpop.f32.mrb[0].mxu0
      %v2908 = vadd.f32 0.0, %v2907
      %v2909 = vpop.f32.mrb[0].mxu0
      %2910 = vmatprep.mubr.f32.mxu0 0.0
      %2911 = vmatmul.mubr.f32.gmra.mrb[0].mxu0 %v1052
      %v2912 = vpop.f32.mrb[0].mxu0
      %v2913 = vadd.f32 0.0, %v2912
      %v2914 = vpop.f32.mrb[0].mxu0
      %2915 = vmatprep.mubr.f32.mxu0 0.0
      %2916 = vmatmul.mubr.f32.gmra.mrb[0].mxu0 %v1053
      %v2917 = vpop.f32.mrb[0].mxu0
      %v2918 = vadd.f32 0.0, %v2917
      %v2919 = vpop.f32.mrb[0].mxu0
      %2920 = vmatprep.mubr.f32.mxu0 0.0
      %2921 = vmatmul.mubr.f32.gmra.mrb[0].mxu0 %v1054
      %v2922 = vpop.f32.mrb[0].mxu0
      %v2923 = vadd.f32 0.0, %v2922
      %v2924 = vpop.f32.mrb[0].mxu0
      %2925 = vmatprep.mubr.f32.mxu0 0.0
      %2926 = vmatmul.mubr.f32.gmra.mrb[0].mxu0 %v1055
      %v2927 = vpop.f32.mrb[0].mxu0
      %v2928 = vadd.f32 0.0, %v2927
      %v2929 = vpop.f32.mrb[0].mxu0
      %2930 = vmatprep.mubr.f32.mxu0 0.0
      %2931 = vmatmul.mubr.f32.gmra.mrb[0].mxu0 %v1056
      %v2932 = vpop.f32.mrb[0].mxu0
      %v2933 = vadd.f32 0.0, %v2932
      %v2934 = vpop.f32.mrb[0].mxu0
      %2935 = vmatprep.mubr.f32.mxu0 0.0
      %2936 = vmatmul.mubr.f32.gmra.mrb[0].mxu0 %v1057
      %v2937 = vpop.f32.mrb[0].mxu0
      %v2938 = vadd.f32 0.0, %v2937
      %v2939 = vpop.f32.mrb[0].mxu0
      %2940 = vmatprep.mubr.f32.mxu0 0.0
      %2941 = vmatmul.mubr.f32.gmra.mrb[0].mxu0 %v1058
      %v2942 = vpop.f32.mrb[0].mxu0
      %v2943 = vadd.f32 0.0, %v2942
      %v2944 = vpop.f32.mrb[0].mxu0
      %2945 = vmatprep.mubr.f32.mxu0 0.0
      %2946 = vmatmul.mubr.f32.gmra.mrb[0].mxu0 %v1059
      %v2947 = vpop.f32.mrb[0].mxu0
      %v2948 = vadd.f32 0.0, %v2947
      %v2949 = vpop.f32.mrb[0].mxu0
      %2950 = vmatprep.mubr.f32.mxu0 0.0
      %2951 = vmatmul.mubr.f32.gmra.mrb[0].mxu0 %v1060
      %v2952 = vpop.f32.mrb[0].mxu0
      %v2953 = vadd.f32 0.0, %v2952
      %v2954 = vpop.f32.mrb[0].mxu0
      %2955 = vmatprep.mubr.f32.mxu0 0.0
      %2956 = vmatmul.mubr.f32.gmra.mrb[0].mxu0 %v1061
      %v2957 = vpop.f32.mrb[0].mxu0
      %v2958 = vadd.f32 0.0, %v2957
      %v2959 = vpop.f32.mrb[0].mxu0
      %2960 = vmatprep.mubr.f32.mxu0 0.0
      %2961 = vmatmul.mubr.f32.gmra.mrb[0].mxu0 %v1062
      %v2962 = vpop.f32.mrb[0].mxu0
      %v2963 = vadd.f32 0.0, %v2962
      %v2964 = vpop.f32.mrb[0].mxu0
      %2965 = vmatprep.mubr.f32.mxu0 0.0
      %2966 = vmatmul.mubr.f32.gmra.mrb[0].mxu0 %v1063
      %v2967 = vpop.f32.mrb[0].mxu0
      %v2968 = vadd.f32 0.0, %v2967
      %v2969 = vpop.f32.mrb[0].mxu0
      %2970 = vdwg.mxu0
      %v2971 = vmul.f32 %v2893, 0.0007102273
      %v2972 = vmul.f32 %v2898, 0.0007102273
      %v2973 = vmul.f32 %v2903, 0.0007102273
      %v2974 = vmul.f32 %v2908, 0.0007102273
      %v2975 = vmul.f32 %v2913, 0.0007102273
      %v2976 = vmul.f32 %v2918, 0.0007102273
      %v2977 = vmul.f32 %v2923, 0.0007102273
      %v2978 = vmul.f32 %v2928, 0.0007102273
      %v2979 = vmul.f32 %v2933, 0.0007102273
      %v2980 = vmul.f32 %v2938, 0.0007102273
      %v2981 = vmul.f32 %v2943, 0.0007102273
      %v2982 = vmul.f32 %v2948, 0.0007102273
      %v2983 = vmul.f32 %v2953, 0.0007102273
      %v2984 = vmul.f32 %v2958, 0.0007102273
      %v2985 = vmul.f32 %v2963, 0.0007102273
      %v2986 = vmul.f32 %v2968, 0.0007102273
      %v2987 = vmul.f32 %v2971, %v2971
      %v2988 = vmul.f32 %v2972, %v2972
      %v2989 = vmul.f32 %v2973, %v2973
      %v2990 = vmul.f32 %v2974, %v2974
      %v2991 = vmul.f32 %v2975, %v2975
      %v2992 = vmul.f32 %v2976, %v2976
      %v2993 = vmul.f32 %v2977, %v2977
      %v2994 = vmul.f32 %v2978, %v2978
      %v2995 = vmul.f32 %v2979, %v2979
      %v2996 = vmul.f32 %v2980, %v2980
      %v2997 = vmul.f32 %v2981, %v2981
      %v2998 = vmul.f32 %v2982, %v2982
      %v2999 = vmul.f32 %v2983, %v2983
      %v3000 = vmul.f32 %v2984, %v2984
      %v3001 = vmul.f32 %v2985, %v2985
      %v3002 = vmul.f32 %v2986, %v2986
      %3019 = vrot.lane.b32.xlu0 %v2987, 1
      %v3020 = vpop.permute.xlu0 %3019
      %3021 = vrot.lane.b32.xlu0 %v2988, 1
      %v3022 = vpop.permute.xlu0 %3021
      %3023 = vrot.lane.b32.xlu0 %v2989, 1
      %v3024 = vpop.permute.xlu0 %3023
      %3025 = vrot.lane.b32.xlu0 %v2990, 1
      %v3026 = vpop.permute.xlu0 %3025
      %3027 = vrot.lane.b32.xlu0 %v2991, 1
      %v3028 = vpop.permute.xlu0 %3027
      %3029 = vrot.lane.b32.xlu0 %v2992, 1
      %v3030 = vpop.permute.xlu0 %3029
      %3031 = vrot.lane.b32.xlu0 %v2993, 1
      %v3032 = vpop.permute.xlu0 %3031
      %3033 = vrot.lane.b32.xlu0 %v2994, 1
      %v3034 = vpop.permute.xlu0 %3033
      %3035 = vrot.lane.b32.xlu0 %v2995, 1
      %v3036 = vpop.permute.xlu0 %3035
      %3037 = vrot.lane.b32.xlu0 %v2996, 1
      %v3038 = vpop.permute.xlu0 %3037
      %3039 = vrot.lane.b32.xlu0 %v2997, 1
      %v3040 = vpop.permute.xlu0 %3039
      %3041 = vrot.lane.b32.xlu0 %v2998, 1
      %v3042 = vpop.permute.xlu0 %3041
      %3043 = vrot.lane.b32.xlu0 %v2999, 1
      %v3044 = vpop.permute.xlu0 %3043
      %3045 = vrot.lane.b32.xlu0 %v3000, 1
      %v3046 = vpop.permute.xlu0 %3045
      %3047 = vrot.lane.b32.xlu0 %v3001, 1
      %v3048 = vpop.permute.xlu0 %3047
      %3049 = vrot.lane.b32.xlu0 %v3002, 1
      %v3050 = vpop.permute.xlu0 %3049
      %v3067 = vsub.f32 %v2971, %v3020
      %v3068 = vsub.f32 %v2972, %v3022
      %v3069 = vsub.f32 %v2973, %v3024
      %v3070 = vsub.f32 %v2974, %v3026
      %v3071 = vsub.f32 %v2975, %v3028
      %v3072 = vsub.f32 %v2976, %v3030
      %v3073 = vsub.f32 %v2977, %v3032
      %v3074 = vsub.f32 %v2978, %v3034
      %v3075 = vsub.f32 %v2979, %v3036
      %v3076 = vsub.f32 %v2980, %v3038
      %v3077 = vsub.f32 %v2981, %v3040
      %v3078 = vsub.f32 %v2982, %v3042
      %v3079 = vsub.f32 %v2983, %v3044
      %v3080 = vsub.f32 %v2984, %v3046
      %v3081 = vsub.f32 %v2985, %v3048
      %v3082 = vsub.f32 %v2986, %v3050
      %v3083 = vmax.f32 %v3067, 0.0
      %v3084 = vmax.f32 %v3068, 0.0
      %v3085 = vmax.f32 %v3069, 0.0
      %v3086 = vmax.f32 %v3070, 0.0
      %v3087 = vmax.f32 %v3071, 0.0
      %v3088 = vmax.f32 %v3072, 0.0
      %v3089 = vmax.f32 %v3073, 0.0
      %v3090 = vmax.f32 %v3074, 0.0
      %v3091 = vmax.f32 %v3075, 0.0
      %v3092 = vmax.f32 %v3076, 0.0
      %v3093 = vmax.f32 %v3077, 0.0
      %v3094 = vmax.f32 %v3078, 0.0
      %v3095 = vmax.f32 %v3079, 0.0
      %v3096 = vmax.f32 %v3080, 0.0
      %v3097 = vmax.f32 %v3081, 0.0
      %v3098 = vmax.f32 %v3082, 0.0
      %3100 = vset.pattern.permute.xlu0 0
      %3101 = vperm.xlu0 %3100, %v2971
      %v3102 = vpop.permute.xlu0 %3101
      %3105 = vset.pattern.permute.xlu0 0
      %3106 = vperm.xlu0 %3105, %v2972
      %v3107 = vpop.permute.xlu0 %3106
      %3110 = vset.pattern.permute.xlu0 0
      %3111 = vperm.xlu0 %3110, %v2973
      %v3112 = vpop.permute.xlu0 %3111
      %3115 = vset.pattern.permute.xlu0 0
      %3116 = vperm.xlu0 %3115, %v2974
      %v3117 = vpop.permute.xlu0 %3116
      %3120 = vset.pattern.permute.xlu0 0
      %3121 = vperm.xlu0 %3120, %v2975
      %v3122 = vpop.permute.xlu0 %3121
      %3125 = vset.pattern.permute.xlu0 0
      %3126 = vperm.xlu0 %3125, %v2976
      %v3127 = vpop.permute.xlu0 %3126
      %3130 = vset.pattern.permute.xlu0 0
      %3131 = vperm.xlu0 %3130, %v2977
      %v3132 = vpop.permute.xlu0 %3131
      %3135 = vset.pattern.permute.xlu0 0
      %3136 = vperm.xlu0 %3135, %v2978
      %v3137 = vpop.permute.xlu0 %3136
      %3140 = vset.pattern.permute.xlu0 0
      %3141 = vperm.xlu0 %3140, %v2979
      %v3142 = vpop.permute.xlu0 %3141
      %3145 = vset.pattern.permute.xlu0 0
      %3146 = vperm.xlu0 %3145, %v2980
      %v3147 = vpop.permute.xlu0 %3146
      %3150 = vset.pattern.permute.xlu0 0
      %3151 = vperm.xlu0 %3150, %v2981
      %v3152 = vpop.permute.xlu0 %3151
      %3155 = vset.pattern.permute.xlu0 0
      %3156 = vperm.xlu0 %3155, %v2982
      %v3157 = vpop.permute.xlu0 %3156
      %3160 = vset.pattern.permute.xlu0 0
      %3161 = vperm.xlu0 %3160, %v2983
      %v3162 = vpop.permute.xlu0 %3161
      %3165 = vset.pattern.permute.xlu0 0
      %3166 = vperm.xlu0 %3165, %v2984
      %v3167 = vpop.permute.xlu0 %3166
      %3170 = vset.pattern.permute.xlu0 0
      %3171 = vperm.xlu0 %3170, %v2985
      %v3172 = vpop.permute.xlu0 %3171
      %3175 = vset.pattern.permute.xlu0 0
      %3176 = vperm.xlu0 %3175, %v2986
      %v3177 = vpop.permute.xlu0 %3176
      %v3179 = vsub.f32 %v2617, %v3102
      %v3180 = vsub.f32 %v2618, %v3102
      %v3181 = vsub.f32 %v2619, %v3107
      %v3182 = vsub.f32 %v2620, %v3107
      %v3183 = vsub.f32 %v2621, %v3112
      %v3184 = vsub.f32 %v2622, %v3112
      %v3185 = vsub.f32 %v2623, %v3117
      %v3186 = vsub.f32 %v2624, %v3117
      %v3187 = vsub.f32 %v2625, %v3122
      %v3188 = vsub.f32 %v2626, %v3122
      %v3189 = vsub.f32 %v2627, %v3127
      %v3190 = vsub.f32 %v2628, %v3127
      %v3191 = vsub.f32 %v2629, %v3132
      %v3192 = vsub.f32 %v2630, %v3132
      %v3193 = vsub.f32 %v2631, %v3137
      %v3194 = vsub.f32 %v2632, %v3137
      %v3195 = vsub.f32 %v2633, %v3142
      %v3196 = vsub.f32 %v2634, %v3142
      %v3197 = vsub.f32 %v2635, %v3147
      %v3198 = vsub.f32 %v2636, %v3147
      %v3199 = vsub.f32 %v2637, %v3152
      %v3200 = vsub.f32 %v2638, %v3152
      %v3201 = vsub.f32 %v2639, %v3157
      %v3202 = vsub.f32 %v2640, %v3157
      %v3203 = vsub.f32 %v2641, %v3162
      %v3204 = vsub.f32 %v2642, %v3162
      %v3205 = vsub.f32 %v2643, %v3167
      %v3206 = vsub.f32 %v2644, %v3167
      %v3207 = vsub.f32 %v2645, %v3172
      %v3208 = vsub.f32 %v2646, %v3172
      %v3209 = vsub.f32 %v2647, %v3177
      %v3210 = vsub.f32 %v2648, %v3177
      %v3211 = vadd.f32 %v3083, 1e-05
      %v3212 = vadd.f32 %v3084, 1e-05
      %v3213 = vadd.f32 %v3085, 1e-05
      %v3214 = vadd.f32 %v3086, 1e-05
      %v3215 = vadd.f32 %v3087, 1e-05
      %v3216 = vadd.f32 %v3088, 1e-05
      %v3217 = vadd.f32 %v3089, 1e-05
      %v3218 = vadd.f32 %v3090, 1e-05
      %v3219 = vadd.f32 %v3091, 1e-05
      %v3220 = vadd.f32 %v3092, 1e-05
      %v3221 = vadd.f32 %v3093, 1e-05
      %v3222 = vadd.f32 %v3094, 1e-05
      %v3223 = vadd.f32 %v3095, 1e-05
      %v3224 = vadd.f32 %v3096, 1e-05
      %v3225 = vadd.f32 %v3097, 1e-05
      %v3226 = vadd.f32 %v3098, 1e-05
      %v3227 = vrsqrt.pop %v3211
      %v3228 = vrsqrt.pop %v3212
      %v3229 = vrsqrt.pop %v3213
      %v3230 = vrsqrt.pop %v3214
      %v3231 = vrsqrt.pop %v3215
      %v3232 = vrsqrt.pop %v3216
      %v3233 = vrsqrt.pop %v3217
      %v3234 = vrsqrt.pop %v3218
      %v3235 = vrsqrt.pop %v3219
      %v3236 = vrsqrt.pop %v3220
      %v3237 = vrsqrt.pop %v3221
      %v3238 = vrsqrt.pop %v3222
      %v3239 = vrsqrt.pop %v3223
      %v3240 = vrsqrt.pop %v3224
      %v3241 = vrsqrt.pop %v3225
      %v3242 = vrsqrt.pop %v3226
      %3244 = vset.pattern.permute.xlu0 1
      %3245 = vperm.xlu0 %3244, %v3227
      %v3246 = vpop.permute.xlu0 %3245
      %3249 = vset.pattern.permute.xlu0 1
      %3250 = vperm.xlu0 %3249, %v3228
      %v3251 = vpop.permute.xlu0 %3250
      %3254 = vset.pattern.permute.xlu0 1
      %3255 = vperm.xlu0 %3254, %v3229
      %v3256 = vpop.permute.xlu0 %3255
      %3259 = vset.pattern.permute.xlu0 1
      %3260 = vperm.xlu0 %3259, %v3230
      %v3261 = vpop.permute.xlu0 %3260
      %3264 = vset.pattern.permute.xlu0 1
      %3265 = vperm.xlu0 %3264, %v3231
      %v3266 = vpop.permute.xlu0 %3265
      %3269 = vset.pattern.permute.xlu0 1
      %3270 = vperm.xlu0 %3269, %v3232
      %v3271 = vpop.permute.xlu0 %3270
      %3274 = vset.pattern.permute.xlu0 1
      %3275 = vperm.xlu0 %3274, %v3233
      %v3276 = vpop.permute.xlu0 %3275
      %3279 = vset.pattern.permute.xlu0 1
      %3280 = vperm.xlu0 %3279, %v3234
      %v3281 = vpop.permute.xlu0 %3280
      %3284 = vset.pattern.permute.xlu0 1
      %3285 = vperm.xlu0 %3284, %v3235
      %v3286 = vpop.permute.xlu0 %3285
      %3289 = vset.pattern.permute.xlu0 1
      %3290 = vperm.xlu0 %3289, %v3236
      %v3291 = vpop.permute.xlu0 %3290
      %3294 = vset.pattern.permute.xlu0 1
      %3295 = vperm.xlu0 %3294, %v3237
      %v3296 = vpop.permute.xlu0 %3295
      %3299 = vset.pattern.permute.xlu0 1
      %3300 = vperm.xlu0 %3299, %v3238
      %v3301 = vpop.permute.xlu0 %3300
      %3304 = vset.pattern.permute.xlu0 1
      %3305 = vperm.xlu0 %3304, %v3239
      %v3306 = vpop.permute.xlu0 %3305
      %3309 = vset.pattern.permute.xlu0 1
      %3310 = vperm.xlu0 %3309, %v3240
      %v3311 = vpop.permute.xlu0 %3310
      %3314 = vset.pattern.permute.xlu0 1
      %3315 = vperm.xlu0 %3314, %v3241
      %v3316 = vpop.permute.xlu0 %3315
      %3319 = vset.pattern.permute.xlu0 1
      %3320 = vperm.xlu0 %3319, %v3242
      %v3321 = vpop.permute.xlu0 %3320
      %v3323 = vmul.f32 %v3179, %v3246
      %v3324 = vmul.f32 %v3180, %v3246
      %v3325 = vmul.f32 %v3181, %v3251
      %v3326 = vmul.f32 %v3182, %v3251
      %v3327 = vmul.f32 %v3183, %v3256
      %v3328 = vmul.f32 %v3184, %v3256
      %v3329 = vmul.f32 %v3185, %v3261
      %v3330 = vmul.f32 %v3186, %v3261
      %v3331 = vmul.f32 %v3187, %v3266
      %v3332 = vmul.f32 %v3188, %v3266
      %v3333 = vmul.f32 %v3189, %v3271
      %v3334 = vmul.f32 %v3190, %v3271
      %v3335 = vmul.f32 %v3191, %v3276
      %v3336 = vmul.f32 %v3192, %v3276
      %v3337 = vmul.f32 %v3193, %v3281
      %v3338 = vmul.f32 %v3194, %v3281
      %v3339 = vmul.f32 %v3195, %v3286
      %v3340 = vmul.f32 %v3196, %v3286
      %v3341 = vmul.f32 %v3197, %v3291
      %v3342 = vmul.f32 %v3198, %v3291
      %v3343 = vmul.f32 %v3199, %v3296
      %v3344 = vmul.f32 %v3200, %v3296
      %v3345 = vmul.f32 %v3201, %v3301
      %v3346 = vmul.f32 %v3202, %v3301
      %v3347 = vmul.f32 %v3203, %v3306
      %v3348 = vmul.f32 %v3204, %v3306
      %v3349 = vmul.f32 %v3205, %v3311
      %v3350 = vmul.f32 %v3206, %v3311
      %v3351 = vmul.f32 %v3207, %v3316
      %v3352 = vmul.f32 %v3208, %v3316
      %v3353 = vmul.f32 %v3209, %v3321
      %v3354 = vmul.f32 %v3210, %v3321
      %v3355 = vld [vmem:[%s12] sm:$0xff]
      %v3356 = vld [vmem:[%s12 + $0x8] sm:$0xff]
      %v3357 = vld [vmem:[%s12 + $0x10] sm:$0xff]
      %v3358 = vld [vmem:[%s12 + $0x18] sm:$0xff]
      %v3359 = vld [vmem:[%s12 + $0x20] sm:$0xff]
      %v3360 = vld [vmem:[%s12 + $0x28] sm:$0xff]
      %v3361 = vld [vmem:[%s12 + $0x30] sm:$0xff]
      %v3362 = vld [vmem:[%s12 + $0x38] sm:$0xff]
      %v3363 = vld [vmem:[%s12 + $0x40] sm:$0xff]
      %v3364 = vld [vmem:[%s12 + $0x48] sm:$0xff]
      %v3365 = vld [vmem:[%s12 + $0x50] sm:$0xff]
      %v3366 = vld [vmem:[%s12 + $0x58] sm:$0xff]
      %v3367 = vld [vmem:[%s12 + $0x60] sm:$0xff]
      %v3368 = vld [vmem:[%s12 + $0x68] sm:$0xff]
      %v3369 = vld [vmem:[%s12 + $0x70] sm:$0xff]
      %v3370 = vld [vmem:[%s12 + $0x78] sm:$0xff]
      %v3371 = vld [vmem:[%s12 + $0x80] sm:$0xff]
      %v3372 = vld [vmem:[%s12 + $0x88] sm:$0xff]
      %v3373 = vld [vmem:[%s12 + $0x90] sm:$0xff]
      %v3374 = vld [vmem:[%s12 + $0x98] sm:$0xff]
      %v3375 = vld [vmem:[%s12 + $0xa0] sm:$0xff]
      %v3376 = vld [vmem:[%s12 + $0xa8] sm:$0xff]
      %v3377 = vld [vmem:[%s12 + $0xb0] sm:$0xff]
      %v3378 = vld [vmem:[%s12 + $0xb8] sm:$0xff]
      %v3379 = vld [vmem:[%s12 + $0xc0] sm:$0xff]
      %v3380 = vld [vmem:[%s12 + $0xc8] sm:$0xff]
      %v3381 = vld [vmem:[%s12 + $0xd0] sm:$0xff]
      %v3382 = vld [vmem:[%s12 + $0xd8] sm:$0xff]
      %v3383 = vld [vmem:[%s12 + $0xe0] sm:$0xff]
      %v3384 = vld [vmem:[%s12 + $0xe8] sm:$0xff]
      %v3385 = vld [vmem:[%s12 + $0xf0] sm:$0xff]
      %v3386 = vld [vmem:[%s12 + $0xf8] sm:$0xff]
      %v3387 = vmul.f32 %v3323, %v3355
      %v3388 = vmul.f32 %v3324, %v3356
      %v3389 = vmul.f32 %v3325, %v3357
      %v3390 = vmul.f32 %v3326, %v3358
      %v3391 = vmul.f32 %v3327, %v3359
      %v3392 = vmul.f32 %v3328, %v3360
      %v3393 = vmul.f32 %v3329, %v3361
      %v3394 = vmul.f32 %v3330, %v3362
      %v3395 = vmul.f32 %v3331, %v3363
      %v3396 = vmul.f32 %v3332, %v3364
      %v3397 = vmul.f32 %v3333, %v3365
      %v3398 = vmul.f32 %v3334, %v3366
      %v3399 = vmul.f32 %v3335, %v3367
      %v3400 = vmul.f32 %v3336, %v3368
      %v3401 = vmul.f32 %v3337, %v3369
      %v3402 = vmul.f32 %v3338, %v3370
      %v3403 = vmul.f32 %v3339, %v3371
      %v3404 = vmul.f32 %v3340, %v3372
      %v3405 = vmul.f32 %v3341, %v3373
      %v3406 = vmul.f32 %v3342, %v3374
      %v3407 = vmul.f32 %v3343, %v3375
      %v3408 = vmul.f32 %v3344, %v3376
      %v3409 = vmul.f32 %v3345, %v3377
      %v3410 = vmul.f32 %v3346, %v3378
      %v3411 = vmul.f32 %v3347, %v3379
      %v3412 = vmul.f32 %v3348, %v3380
      %v3413 = vmul.f32 %v3349, %v3381
      %v3414 = vmul.f32 %v3350, %v3382
      %v3415 = vmul.f32 %v3351, %v3383
      %v3416 = vmul.f32 %v3352, %v3384
      %v3417 = vmul.f32 %v3353, %v3385
      %v3418 = vmul.f32 %v3354, %v3386
      %v3419 = vld [vmem:[%s13] sm:$0xff]
      %v3420 = vld [vmem:[%s13 + $0x8] sm:$0xff]
      %v3421 = vld [vmem:[%s13 + $0x10] sm:$0xff]
      %v3422 = vld [vmem:[%s13 + $0x18] sm:$0xff]
      %v3423 = vld [vmem:[%s13 + $0x20] sm:$0xff]
      %v3424 = vld [vmem:[%s13 + $0x28] sm:$0xff]
      %v3425 = vld [vmem:[%s13 + $0x30] sm:$0xff]
      %v3426 = vld [vmem:[%s13 + $0x38] sm:$0xff]
      %v3427 = vld [vmem:[%s13 + $0x40] sm:$0xff]
      %v3428 = vld [vmem:[%s13 + $0x48] sm:$0xff]
      %v3429 = vld [vmem:[%s13 + $0x50] sm:$0xff]
      %v3430 = vld [vmem:[%s13 + $0x58] sm:$0xff]
      %v3431 = vld [vmem:[%s13 + $0x60] sm:$0xff]
      %v3432 = vld [vmem:[%s13 + $0x68] sm:$0xff]
      %v3433 = vld [vmem:[%s13 + $0x70] sm:$0xff]
      %v3434 = vld [vmem:[%s13 + $0x78] sm:$0xff]
      %v3435 = vld [vmem:[%s13 + $0x80] sm:$0xff]
      %v3436 = vld [vmem:[%s13 + $0x88] sm:$0xff]
      %v3437 = vld [vmem:[%s13 + $0x90] sm:$0xff]
      %v3438 = vld [vmem:[%s13 + $0x98] sm:$0xff]
      %v3439 = vld [vmem:[%s13 + $0xa0] sm:$0xff]
      %v3440 = vld [vmem:[%s13 + $0xa8] sm:$0xff]
      %v3441 = vld [vmem:[%s13 + $0xb0] sm:$0xff]
      %v3442 = vld [vmem:[%s13 + $0xb8] sm:$0xff]
      %v3443 = vld [vmem:[%s13 + $0xc0] sm:$0xff]
      %v3444 = vld [vmem:[%s13 + $0xc8] sm:$0xff]
      %v3445 = vld [vmem:[%s13 + $0xd0] sm:$0xff]
      %v3446 = vld [vmem:[%s13 + $0xd8] sm:$0xff]
      %v3447 = vld [vmem:[%s13 + $0xe0] sm:$0xff]
      %v3448 = vld [vmem:[%s13 + $0xe8] sm:$0xff]
      %v3449 = vld [vmem:[%s13 + $0xf0] sm:$0xff]
      %v3450 = vld [vmem:[%s13 + $0xf8] sm:$0xff]
      %v3451 = vadd.f32 %v3387, %v3419
      %v3452 = vadd.f32 %v3388, %v3420
      %v3453 = vadd.f32 %v3389, %v3421
      %v3454 = vadd.f32 %v3390, %v3422
      %v3455 = vadd.f32 %v3391, %v3423
      %v3456 = vadd.f32 %v3392, %v3424
      %v3457 = vadd.f32 %v3393, %v3425
      %v3458 = vadd.f32 %v3394, %v3426
      %v3459 = vadd.f32 %v3395, %v3427
      %v3460 = vadd.f32 %v3396, %v3428
      %v3461 = vadd.f32 %v3397, %v3429
      %v3462 = vadd.f32 %v3398, %v3430
      %v3463 = vadd.f32 %v3399, %v3431
      %v3464 = vadd.f32 %v3400, %v3432
      %v3465 = vadd.f32 %v3401, %v3433
      %v3466 = vadd.f32 %v3402, %v3434
      %v3467 = vadd.f32 %v3403, %v3435
      %v3468 = vadd.f32 %v3404, %v3436
      %v3469 = vadd.f32 %v3405, %v3437
      %v3470 = vadd.f32 %v3406, %v3438
      %v3471 = vadd.f32 %v3407, %v3439
      %v3472 = vadd.f32 %v3408, %v3440
      %v3473 = vadd.f32 %v3409, %v3441
      %v3474 = vadd.f32 %v3410, %v3442
      %v3475 = vadd.f32 %v3411, %v3443
      %v3476 = vadd.f32 %v3412, %v3444
      %v3477 = vadd.f32 %v3413, %v3445
      %v3478 = vadd.f32 %v3414, %v3446
      %v3479 = vadd.f32 %v3415, %v3447
      %v3480 = vadd.f32 %v3416, %v3448
      %v3481 = vadd.f32 %v3417, %v3449
      %v3482 = vadd.f32 %v3418, %v3450
      %s3483 = scalar_lea.vmem %s5, 1024
      %v3484 = vld [vmem:[%s3483] sm:$0xff]
      %v3485 = vld [vmem:[%s3483 + $0x8] sm:$0xff]
      %v3486 = vld [vmem:[%s3483 + $0x10] sm:$0xff]
      %v3487 = vld [vmem:[%s3483 + $0x18] sm:$0xff]
      %v3488 = vld [vmem:[%s3483 + $0x20] sm:$0xff]
      %v3489 = vld [vmem:[%s3483 + $0x28] sm:$0xff]
      %v3490 = vld [vmem:[%s3483 + $0x30] sm:$0xff]
      %v3491 = vld [vmem:[%s3483 + $0x38] sm:$0xff]
      %v3492 = vld [vmem:[%s3483 + $0x40] sm:$0xff]
      %v3493 = vld [vmem:[%s3483 + $0x48] sm:$0xff]
      %v3494 = vld [vmem:[%s3483 + $0x50] sm:$0xff]
      %v3495 = vld [vmem:[%s3483 + $0x58] sm:$0xff]
      %v3496 = vld [vmem:[%s3483 + $0x60] sm:$0xff]
      %v3497 = vld [vmem:[%s3483 + $0x68] sm:$0xff]
      %v3498 = vld [vmem:[%s3483 + $0x70] sm:$0xff]
      %v3499 = vld [vmem:[%s3483 + $0x78] sm:$0xff]
      %v3500 = vld [vmem:[%s3483 + $0x80] sm:$0xff]
      %v3501 = vld [vmem:[%s3483 + $0x88] sm:$0xff]
      %v3502 = vld [vmem:[%s3483 + $0x90] sm:$0xff]
      %v3503 = vld [vmem:[%s3483 + $0x98] sm:$0xff]
      %v3504 = vld [vmem:[%s3483 + $0xa0] sm:$0xff]
      %v3505 = vld [vmem:[%s3483 + $0xa8] sm:$0xff]
      %v3506 = vld [vmem:[%s3483 + $0xb0] sm:$0xff]
      %v3507 = vld [vmem:[%s3483 + $0xb8] sm:$0xff]
      %v3508 = vld [vmem:[%s3483 + $0xc0] sm:$0xff]
      %v3509 = vld [vmem:[%s3483 + $0xc8] sm:$0xff]
      %v3510 = vld [vmem:[%s3483 + $0xd0] sm:$0xff]
      %v3511 = vld [vmem:[%s3483 + $0xd8] sm:$0xff]
      %v3512 = vld [vmem:[%s3483 + $0xe0] sm:$0xff]
      %v3513 = vld [vmem:[%s3483 + $0xe8] sm:$0xff]
      %v3514 = vld [vmem:[%s3483 + $0xf0] sm:$0xff]
      %v3515 = vld [vmem:[%s3483 + $0xf8] sm:$0xff]
      %v3516 = vld [vmem:[%s3483 + $0x100] sm:$0xff]
      %v3517 = vld [vmem:[%s3483 + $0x108] sm:$0xff]
      %v3518 = vld [vmem:[%s3483 + $0x110] sm:$0xff]
      %v3519 = vld [vmem:[%s3483 + $0x118] sm:$0xff]
      %v3520 = vld [vmem:[%s3483 + $0x120] sm:$0xff]
      %v3521 = vld [vmem:[%s3483 + $0x128] sm:$0xff]
      %v3522 = vld [vmem:[%s3483 + $0x130] sm:$0xff]
      %v3523 = vld [vmem:[%s3483 + $0x138] sm:$0xff]
      %v3524 = vld [vmem:[%s3483 + $0x140] sm:$0xff]
      %v3525 = vld [vmem:[%s3483 + $0x148] sm:$0xff]
      %v3526 = vld [vmem:[%s3483 + $0x150] sm:$0xff]
      %v3527 = vld [vmem:[%s3483 + $0x158] sm:$0xff]
      %v3528 = vld [vmem:[%s3483 + $0x160] sm:$0xff]
      %v3529 = vld [vmem:[%s3483 + $0x168] sm:$0xff]
      %v3530 = vld [vmem:[%s3483 + $0x170] sm:$0xff]
      %v3531 = vld [vmem:[%s3483 + $0x178] sm:$0xff]
      %v3532 = vld [vmem:[%s3483 + $0x180] sm:$0xff]
      %v3533 = vld [vmem:[%s3483 + $0x188] sm:$0xff]
      %v3534 = vld [vmem:[%s3483 + $0x190] sm:$0xff]
      %v3535 = vld [vmem:[%s3483 + $0x198] sm:$0xff]
      %v3536 = vld [vmem:[%s3483 + $0x1a0] sm:$0xff]
      %v3537 = vld [vmem:[%s3483 + $0x1a8] sm:$0xff]
      %v3538 = vld [vmem:[%s3483 + $0x1b0] sm:$0xff]
      %v3539 = vld [vmem:[%s3483 + $0x1b8] sm:$0xff]
      %v3540 = vld [vmem:[%s3483 + $0x1c0] sm:$0xff]
      %v3541 = vld [vmem:[%s3483 + $0x1c8] sm:$0xff]
      %v3542 = vld [vmem:[%s3483 + $0x1d0] sm:$0xff]
      %v3543 = vld [vmem:[%s3483 + $0x1d8] sm:$0xff]
      %v3544 = vld [vmem:[%s3483 + $0x1e0] sm:$0xff]
      %v3545 = vld [vmem:[%s3483 + $0x1e8] sm:$0xff]
      %v3546 = vld [vmem:[%s3483 + $0x1f0] sm:$0xff]
      %v3547 = vld [vmem:[%s3483 + $0x1f8] sm:$0xff]
      %v3548 = vld [vmem:[%s3483 + $0x200] sm:$0xff]
      %v3549 = vld [vmem:[%s3483 + $0x208] sm:$0xff]
      %v3550 = vld [vmem:[%s3483 + $0x210] sm:$0xff]
      %v3551 = vld [vmem:[%s3483 + $0x218] sm:$0xff]
      %v3552 = vld [vmem:[%s3483 + $0x220] sm:$0xff]
      %v3553 = vld [vmem:[%s3483 + $0x228] sm:$0xff]
      %v3554 = vld [vmem:[%s3483 + $0x230] sm:$0xff]
      %v3555 = vld [vmem:[%s3483 + $0x238] sm:$0xff]
      %v3556 = vld [vmem:[%s3483 + $0x240] sm:$0xff]
      %v3557 = vld [vmem:[%s3483 + $0x248] sm:$0xff]
      %v3558 = vld [vmem:[%s3483 + $0x250] sm:$0xff]
      %v3559 = vld [vmem:[%s3483 + $0x258] sm:$0xff]
      %v3560 = vld [vmem:[%s3483 + $0x260] sm:$0xff]
      %v3561 = vld [vmem:[%s3483 + $0x268] sm:$0xff]
      %v3562 = vld [vmem:[%s3483 + $0x270] sm:$0xff]
      %v3563 = vld [vmem:[%s3483 + $0x278] sm:$0xff]
      %v3564 = vld [vmem:[%s3483 + $0x280] sm:$0xff]
      %v3565 = vld [vmem:[%s3483 + $0x288] sm:$0xff]
      %v3566 = vld [vmem:[%s3483 + $0x290] sm:$0xff]
      %v3567 = vld [vmem:[%s3483 + $0x298] sm:$0xff]
      %v3568 = vld [vmem:[%s3483 + $0x2a0] sm:$0xff]
      %v3569 = vld [vmem:[%s3483 + $0x2a8] sm:$0xff]
      %v3570 = vld [vmem:[%s3483 + $0x2b0] sm:$0xff]
      %v3571 = vld [vmem:[%s3483 + $0x2b8] sm:$0xff]
      %s3572 = scalar_lea.vmem %s6, 4
      %v3573 = vld [vmem:[%s3572] sm:$0xf]
      %v3575 = vlaneseq
      %v3576 = vshrl.u32 %v3575, 7
      %v3577 = vsub.s32 0, %v3576
      %v3578 = vrot.slane %v3573, %v3577
      %v3579 = vlaneseq
      %v3580 = vshrl.u32 %v3579, 7
      %v3581 = vsub.s32 2, %v3580
      %v3582 = vrot.slane %v3573, %v3581
      %v3586 = vsel %vm1814, %v3452, 0
      %v3589 = vsel %vm1814, %v3454, 0
      %v3592 = vsel %vm1814, %v3456, 0
      %v3595 = vsel %vm1814, %v3458, 0
      %v3598 = vsel %vm1814, %v3460, 0
      %v3601 = vsel %vm1814, %v3462, 0
      %v3604 = vsel %vm1814, %v3464, 0
      %v3607 = vsel %vm1814, %v3466, 0
      %v3610 = vsel %vm1814, %v3468, 0
      %v3613 = vsel %vm1814, %v3470, 0
      %v3616 = vsel %vm1814, %v3472, 0
      %v3619 = vsel %vm1814, %v3474, 0
      %v3622 = vsel %vm1814, %v3476, 0
      %v3625 = vsel %vm1814, %v3478, 0
      %v3628 = vsel %vm1814, %v3480, 0
      %v3631 = vsel %vm1814, %v3482, 0
      %3633 = vmatprep.subr.mxu0 %v3485
      %3634 = vmatpush1.msra.mxu0 %v3484
      %3635 = vmatprep.subr.mxu0 %v3489
      %3636 = vmatpush1.msra.mxu0 %v3488
      %3637 = vmatprep.subr.mxu0 %v3493
      %3638 = vmatpush1.msra.mxu0 %v3492
      %3639 = vmatprep.subr.mxu0 %v3497
      %3640 = vmatpush1.msra.mxu0 %v3496
      %3641 = vmatprep.subr.mxu0 %v3501
      %3642 = vmatpush1.msra.mxu0 %v3500
      %3643 = vmatprep.subr.mxu0 %v3505
      %3644 = vmatpush1.msra.mxu0 %v3504
      %3645 = vmatprep.subr.mxu0 %v3509
      %3646 = vmatpush1.msra.mxu0 %v3508
      %3647 = vmatprep.subr.mxu0 %v3513
      %3648 = vmatpush1.msra.mxu0 %v3512
      %3649 = vmatprep.subr.mxu0 %v3517
      %3650 = vmatpush1.msra.mxu0 %v3516
      %3651 = vmatprep.subr.mxu0 %v3521
      %3652 = vmatpush1.msra.mxu0 %v3520
      %3653 = vmatprep.subr.mxu0 %v3525
      %3654 = vmatpush1.msra.mxu0 %v3524
      %3655 = vmatprep.subr.mxu0 %v3529
      %3656 = vmatpush1.msra.mxu0 %v3528
      %3657 = vmatprep.subr.mxu0 %v3533
      %3658 = vmatpush1.msra.mxu0 %v3532
      %3659 = vmatprep.subr.mxu0 %v3537
      %3660 = vmatpush1.msra.mxu0 %v3536
      %3661 = vmatprep.subr.mxu0 %v3541
      %3662 = vmatpush1.msra.mxu0 %v3540
      %3663 = vmatprep.subr.mxu0 %v3545
      %3664 = vmatpush1.msra.mxu0 %v3544
      %3665 = vmatprep.subr.mxu0 %v3549
      %3666 = vmatpush1.msra.mxu0 %v3548
      %3667 = vmatprep.subr.mxu0 %v3553
      %3668 = vmatpush1.msra.mxu0 %v3552
      %3669 = vmatprep.subr.mxu0 %v3557
      %3670 = vmatpush1.msra.mxu0 %v3556
      %3671 = vmatprep.subr.mxu0 %v3561
      %3672 = vmatpush1.msra.mxu0 %v3560
      %3673 = vmatprep.subr.mxu0 %v3565
      %3674 = vmatpush1.msra.mxu0 %v3564
      %3675 = vmatprep.subr.mxu0 %v3569
      %3676 = vmatpush1.msra.mxu0 %v3568
      %3677 = vmatprep.subr.mxu0 0.0
      %3678 = vmatpush1.msra.mxu0 0.0
      %3679 = vmatprep.subr.mxu0 0.0
      %3680 = vmatpush1.msra.mxu0 0.0
      %3681 = vmatprep.subr.mxu0 0.0
      %3682 = vmatpush1.msra.mxu0 0.0
      %3683 = vmatprep.subr.mxu0 0.0
      %3684 = vmatpush1.msra.mxu0 0.0
      %3685 = vmatprep.subr.mxu0 0.0
      %3686 = vmatpush1.msra.mxu0 0.0
      %3687 = vmatprep.subr.mxu0 0.0
      %3688 = vmatpush1.msra.mxu0 0.0
      %3689 = vmatprep.subr.mxu0 0.0
      %3690 = vmatpush1.msra.mxu0 0.0
      %3691 = vmatprep.subr.mxu0 0.0
      %3692 = vmatpush1.msra.mxu0 0.0
      %3693 = vmatprep.subr.mxu0 0.0
      %3694 = vmatpush1.msra.mxu0 0.0
      %3695 = vmatprep.subr.mxu0 0.0
      %3696 = vmatpush1.msra.mxu0 0.0
      %3697 = vmatprep.mubr.f32.mxu0 %v3586
      %3698 = vmatmul.mubr.f32.gmra.mrb[0].mxu0 %v3451
      %v3699 = vpop.f32.mrb[0].mxu0
      %v3700 = vadd.f32 %v3578, %v3699
      %v3701 = vpop.f32.mrb[0].mxu0
      %3702 = vmatprep.mubr.f32.mxu0 %v3589
      %3703 = vmatmul.mubr.f32.gmra.mrb[0].mxu0 %v3453
      %v3704 = vpop.f32.mrb[0].mxu0
      %v3705 = vadd.f32 %v3578, %v3704
      %v3706 = vpop.f32.mrb[0].mxu0
      %3707 = vmatprep.mubr.f32.mxu0 %v3592
      %3708 = vmatmul.mubr.f32.gmra.mrb[0].mxu0 %v3455
      %v3709 = vpop.f32.mrb[0].mxu0
      %v3710 = vadd.f32 %v3578, %v3709
      %v3711 = vpop.f32.mrb[0].mxu0
      %3712 = vmatprep.mubr.f32.mxu0 %v3595
      %3713 = vmatmul.mubr.f32.gmra.mrb[0].mxu0 %v3457
      %v3714 = vpop.f32.mrb[0].mxu0
      %v3715 = vadd.f32 %v3578, %v3714
      %v3716 = vpop.f32.mrb[0].mxu0
      %3717 = vmatprep.mubr.f32.mxu0 %v3598
      %3718 = vmatmul.mubr.f32.gmra.mrb[0].mxu0 %v3459
      %v3719 = vpop.f32.mrb[0].mxu0
      %v3720 = vadd.f32 %v3578, %v3719
      %v3721 = vpop.f32.mrb[0].mxu0
      %3722 = vmatprep.mubr.f32.mxu0 %v3601
      %3723 = vmatmul.mubr.f32.gmra.mrb[0].mxu0 %v3461
      %v3724 = vpop.f32.mrb[0].mxu0
      %v3725 = vadd.f32 %v3578, %v3724
      %v3726 = vpop.f32.mrb[0].mxu0
      %3727 = vmatprep.mubr.f32.mxu0 %v3604
      %3728 = vmatmul.mubr.f32.gmra.mrb[0].mxu0 %v3463
      %v3729 = vpop.f32.mrb[0].mxu0
      %v3730 = vadd.f32 %v3578, %v3729
      %v3731 = vpop.f32.mrb[0].mxu0
      %3732 = vmatprep.mubr.f32.mxu0 %v3607
      %3733 = vmatmul.mubr.f32.gmra.mrb[0].mxu0 %v3465
      %v3734 = vpop.f32.mrb[0].mxu0
      %v3735 = vadd.f32 %v3578, %v3734
      %v3736 = vpop.f32.mrb[0].mxu0
      %3737 = vmatprep.mubr.f32.mxu0 %v3610
      %3738 = vmatmul.mubr.f32.gmra.mrb[0].mxu0 %v3467
      %v3739 = vpop.f32.mrb[0].mxu0
      %v3740 = vadd.f32 %v3578, %v3739
      %v3741 = vpop.f32.mrb[0].mxu0
      %3742 = vmatprep.mubr.f32.mxu0 %v3613
      %3743 = vmatmul.mubr.f32.gmra.mrb[0].mxu0 %v3469
      %v3744 = vpop.f32.mrb[0].mxu0
      %v3745 = vadd.f32 %v3578, %v3744
      %v3746 = vpop.f32.mrb[0].mxu0
      %3747 = vmatprep.mubr.f32.mxu0 %v3616
      %3748 = vmatmul.mubr.f32.gmra.mrb[0].mxu0 %v3471
      %v3749 = vpop.f32.mrb[0].mxu0
      %v3750 = vadd.f32 %v3578, %v3749
      %v3751 = vpop.f32.mrb[0].mxu0
      %3752 = vmatprep.mubr.f32.mxu0 %v3619
      %3753 = vmatmul.mubr.f32.gmra.mrb[0].mxu0 %v3473
      %v3754 = vpop.f32.mrb[0].mxu0
      %v3755 = vadd.f32 %v3578, %v3754
      %v3756 = vpop.f32.mrb[0].mxu0
      %3757 = vmatprep.mubr.f32.mxu0 %v3622
      %3758 = vmatmul.mubr.f32.gmra.mrb[0].mxu0 %v3475
      %v3759 = vpop.f32.mrb[0].mxu0
      %v3760 = vadd.f32 %v3578, %v3759
      %v3761 = vpop.f32.mrb[0].mxu0
      %3762 = vmatprep.mubr.f32.mxu0 %v3625
      %3763 = vmatmul.mubr.f32.gmra.mrb[0].mxu0 %v3477
      %v3764 = vpop.f32.mrb[0].mxu0
      %v3765 = vadd.f32 %v3578, %v3764
      %v3766 = vpop.f32.mrb[0].mxu0
      %3767 = vmatprep.mubr.f32.mxu0 %v3628
      %3768 = vmatmul.mubr.f32.gmra.mrb[0].mxu0 %v3479
      %v3769 = vpop.f32.mrb[0].mxu0
      %v3770 = vadd.f32 %v3578, %v3769
      %v3771 = vpop.f32.mrb[0].mxu0
      %3772 = vmatprep.mubr.f32.mxu0 %v3631
      %3773 = vmatmul.mubr.f32.gmra.mrb[0].mxu0 %v3481
      %v3774 = vpop.f32.mrb[0].mxu0
      %v3775 = vadd.f32 %v3578, %v3774
      %v3776 = vpop.f32.mrb[0].mxu0
      %3777 = vdwg.mxu0
      %3778 = vmatprep.subr.mxu0 %v3487
      %3779 = vmatpush1.msra.mxu0 %v3486
      %3780 = vmatprep.subr.mxu0 %v3491
      %3781 = vmatpush1.msra.mxu0 %v3490
      %3782 = vmatprep.subr.mxu0 %v3495
      %3783 = vmatpush1.msra.mxu0 %v3494
      %3784 = vmatprep.subr.mxu0 %v3499
      %3785 = vmatpush1.msra.mxu0 %v3498
      %3786 = vmatprep.subr.mxu0 %v3503
      %3787 = vmatpush1.msra.mxu0 %v3502
      %3788 = vmatprep.subr.mxu0 %v3507
      %3789 = vmatpush1.msra.mxu0 %v3506
      %3790 = vmatprep.subr.mxu0 %v3511
      %3791 = vmatpush1.msra.mxu0 %v3510
      %3792 = vmatprep.subr.mxu0 %v3515
      %3793 = vmatpush1.msra.mxu0 %v3514
      %3794 = vmatprep.subr.mxu0 %v3519
      %3795 = vmatpush1.msra.mxu0 %v3518
      %3796 = vmatprep.subr.mxu0 %v3523
      %3797 = vmatpush1.msra.mxu0 %v3522
      %3798 = vmatprep.subr.mxu0 %v3527
      %3799 = vmatpush1.msra.mxu0 %v3526
      %3800 = vmatprep.subr.mxu0 %v3531
      %3801 = vmatpush1.msra.mxu0 %v3530
      %3802 = vmatprep.subr.mxu0 %v3535
      %3803 = vmatpush1.msra.mxu0 %v3534
      %3804 = vmatprep.subr.mxu0 %v3539
      %3805 = vmatpush1.msra.mxu0 %v3538
      %3806 = vmatprep.subr.mxu0 %v3543
      %3807 = vmatpush1.msra.mxu0 %v3542
      %3808 = vmatprep.subr.mxu0 %v3547
      %3809 = vmatpush1.msra.mxu0 %v3546
      %3810 = vmatprep.subr.mxu0 %v3551
      %3811 = vmatpush1.msra.mxu0 %v3550
      %3812 = vmatprep.subr.mxu0 %v3555
      %3813 = vmatpush1.msra.mxu0 %v3554
      %3814 = vmatprep.subr.mxu0 %v3559
      %3815 = vmatpush1.msra.mxu0 %v3558
      %3816 = vmatprep.subr.mxu0 %v3563
      %3817 = vmatpush1.msra.mxu0 %v3562
      %3818 = vmatprep.subr.mxu0 %v3567
      %3819 = vmatpush1.msra.mxu0 %v3566
      %3820 = vmatprep.subr.mxu0 %v3571
      %3821 = vmatpush1.msra.mxu0 %v3570
      %3822 = vmatprep.subr.mxu0 0.0
      %3823 = vmatpush1.msra.mxu0 0.0
      %3824 = vmatprep.subr.mxu0 0.0
      %3825 = vmatpush1.msra.mxu0 0.0
      %3826 = vmatprep.subr.mxu0 0.0
      %3827 = vmatpush1.msra.mxu0 0.0
      %3828 = vmatprep.subr.mxu0 0.0
      %3829 = vmatpush1.msra.mxu0 0.0
      %3830 = vmatprep.subr.mxu0 0.0
      %3831 = vmatpush1.msra.mxu0 0.0
      %3832 = vmatprep.subr.mxu0 0.0
      %3833 = vmatpush1.msra.mxu0 0.0
      %3834 = vmatprep.subr.mxu0 0.0
      %3835 = vmatpush1.msra.mxu0 0.0
      %3836 = vmatprep.subr.mxu0 0.0
      %3837 = vmatpush1.msra.mxu0 0.0
      %3838 = vmatprep.subr.mxu0 0.0
      %3839 = vmatpush1.msra.mxu0 0.0
      %3840 = vmatprep.subr.mxu0 0.0
      %3841 = vmatpush1.msra.mxu0 0.0
      %3842 = vmatprep.mubr.f32.mxu0 %v3586
      %3843 = vmatmul.mubr.f32.gmra.mrb[0].mxu0 %v3451
      %v3844 = vpop.f32.mrb[0].mxu0
      %v3845 = vadd.f32 %v3582, %v3844
      %v3846 = vpop.f32.mrb[0].mxu0
      %3847 = vmatprep.mubr.f32.mxu0 %v3589
      %3848 = vmatmul.mubr.f32.gmra.mrb[0].mxu0 %v3453
      %v3849 = vpop.f32.mrb[0].mxu0
      %v3850 = vadd.f32 %v3582, %v3849
      %v3851 = vpop.f32.mrb[0].mxu0
      %3852 = vmatprep.mubr.f32.mxu0 %v3592
      %3853 = vmatmul.mubr.f32.gmra.mrb[0].mxu0 %v3455
      %v3854 = vpop.f32.mrb[0].mxu0
      %v3855 = vadd.f32 %v3582, %v3854
      %v3856 = vpop.f32.mrb[0].mxu0
      %3857 = vmatprep.mubr.f32.mxu0 %v3595
      %3858 = vmatmul.mubr.f32.gmra.mrb[0].mxu0 %v3457
      %v3859 = vpop.f32.mrb[0].mxu0
      %v3860 = vadd.f32 %v3582, %v3859
      %v3861 = vpop.f32.mrb[0].mxu0
      %3862 = vmatprep.mubr.f32.mxu0 %v3598
      %3863 = vmatmul.mubr.f32.gmra.mrb[0].mxu0 %v3459
      %v3864 = vpop.f32.mrb[0].mxu0
      %v3865 = vadd.f32 %v3582, %v3864
      %v3866 = vpop.f32.mrb[0].mxu0
      %3867 = vmatprep.mubr.f32.mxu0 %v3601
      %3868 = vmatmul.mubr.f32.gmra.mrb[0].mxu0 %v3461
      %v3869 = vpop.f32.mrb[0].mxu0
      %v3870 = vadd.f32 %v3582, %v3869
      %v3871 = vpop.f32.mrb[0].mxu0
      %3872 = vmatprep.mubr.f32.mxu0 %v3604
      %3873 = vmatmul.mubr.f32.gmra.mrb[0].mxu0 %v3463
      %v3874 = vpop.f32.mrb[0].mxu0
      %v3875 = vadd.f32 %v3582, %v3874
      %v3876 = vpop.f32.mrb[0].mxu0
      %3877 = vmatprep.mubr.f32.mxu0 %v3607
      %3878 = vmatmul.mubr.f32.gmra.mrb[0].mxu0 %v3465
      %v3879 = vpop.f32.mrb[0].mxu0
      %v3880 = vadd.f32 %v3582, %v3879
      %v3881 = vpop.f32.mrb[0].mxu0
      %3882 = vmatprep.mubr.f32.mxu0 %v3610
      %3883 = vmatmul.mubr.f32.gmra.mrb[0].mxu0 %v3467
      %v3884 = vpop.f32.mrb[0].mxu0
      %v3885 = vadd.f32 %v3582, %v3884
      %v3886 = vpop.f32.mrb[0].mxu0
      %3887 = vmatprep.mubr.f32.mxu0 %v3613
      %3888 = vmatmul.mubr.f32.gmra.mrb[0].mxu0 %v3469
      %v3889 = vpop.f32.mrb[0].mxu0
      %v3890 = vadd.f32 %v3582, %v3889
      %v3891 = vpop.f32.mrb[0].mxu0
      %3892 = vmatprep.mubr.f32.mxu0 %v3616
      %3893 = vmatmul.mubr.f32.gmra.mrb[0].mxu0 %v3471
      %v3894 = vpop.f32.mrb[0].mxu0
      %v3895 = vadd.f32 %v3582, %v3894
      %v3896 = vpop.f32.mrb[0].mxu0
      %3897 = vmatprep.mubr.f32.mxu0 %v3619
      %3898 = vmatmul.mubr.f32.gmra.mrb[0].mxu0 %v3473
      %v3899 = vpop.f32.mrb[0].mxu0
      %v3900 = vadd.f32 %v3582, %v3899
      %v3901 = vpop.f32.mrb[0].mxu0
      %3902 = vmatprep.mubr.f32.mxu0 %v3622
      %3903 = vmatmul.mubr.f32.gmra.mrb[0].mxu0 %v3475
      %v3904 = vpop.f32.mrb[0].mxu0
      %v3905 = vadd.f32 %v3582, %v3904
      %v3906 = vpop.f32.mrb[0].mxu0
      %3907 = vmatprep.mubr.f32.mxu0 %v3625
      %3908 = vmatmul.mubr.f32.gmra.mrb[0].mxu0 %v3477
      %v3909 = vpop.f32.mrb[0].mxu0
      %v3910 = vadd.f32 %v3582, %v3909
      %v3911 = vpop.f32.mrb[0].mxu0
      %3912 = vmatprep.mubr.f32.mxu0 %v3628
      %3913 = vmatmul.mubr.f32.gmra.mrb[0].mxu0 %v3479
      %v3914 = vpop.f32.mrb[0].mxu0
      %v3915 = vadd.f32 %v3582, %v3914
      %v3916 = vpop.f32.mrb[0].mxu0
      %3917 = vmatprep.mubr.f32.mxu0 %v3631
      %3918 = vmatmul.mubr.f32.gmra.mrb[0].mxu0 %v3481
      %v3919 = vpop.f32.mrb[0].mxu0
      %v3920 = vadd.f32 %v3582, %v3919
      %v3921 = vpop.f32.mrb[0].mxu0
      %3922 = vdwg.mxu0
      %v3923 = vtanh.pop %v3700
      %v3924 = vtanh.pop %v3705
      %v3925 = vtanh.pop %v3710
      %v3926 = vtanh.pop %v3715
      %v3927 = vtanh.pop %v3720
      %v3928 = vtanh.pop %v3725
      %v3929 = vtanh.pop %v3730
      %v3930 = vtanh.pop %v3735
      %v3931 = vtanh.pop %v3740
      %v3932 = vtanh.pop %v3745
      %v3933 = vtanh.pop %v3750
      %v3934 = vtanh.pop %v3755
      %v3935 = vtanh.pop %v3760
      %v3936 = vtanh.pop %v3765
      %v3937 = vtanh.pop %v3770
      %v3938 = vtanh.pop %v3775
      %v3939 = vxor.u32 %v3845, 2147483648
      %v3940 = vxor.u32 %v3850, 2147483648
      %v3941 = vxor.u32 %v3855, 2147483648
      %v3942 = vxor.u32 %v3860, 2147483648
      %v3943 = vxor.u32 %v3865, 2147483648
      %v3944 = vxor.u32 %v3870, 2147483648
      %v3945 = vxor.u32 %v3875, 2147483648
      %v3946 = vxor.u32 %v3880, 2147483648
      %v3947 = vxor.u32 %v3885, 2147483648
      %v3948 = vxor.u32 %v3890, 2147483648
      %v3949 = vxor.u32 %v3895, 2147483648
      %v3950 = vxor.u32 %v3900, 2147483648
      %v3951 = vxor.u32 %v3905, 2147483648
      %v3952 = vxor.u32 %v3910, 2147483648
      %v3953 = vxor.u32 %v3915, 2147483648
      %v3954 = vxor.u32 %v3920, 2147483648
      %v3955 = vmul.f32 %v3939, 1.442695
      %v3956 = vpow.pop %v3955
      %v3957 = vmul.f32 %v3940, 1.442695
      %v3958 = vpow.pop %v3957
      %v3959 = vmul.f32 %v3941, 1.442695
      %v3960 = vpow.pop %v3959
      %v3961 = vmul.f32 %v3942, 1.442695
      %v3962 = vpow.pop %v3961
      %v3963 = vmul.f32 %v3943, 1.442695
      %v3964 = vpow.pop %v3963
      %v3965 = vmul.f32 %v3944, 1.442695
      %v3966 = vpow.pop %v3965
      %v3967 = vmul.f32 %v3945, 1.442695
      %v3968 = vpow.pop %v3967
      %v3969 = vmul.f32 %v3946, 1.442695
      %v3970 = vpow.pop %v3969
      %v3971 = vmul.f32 %v3947, 1.442695
      %v3972 = vpow.pop %v3971
      %v3973 = vmul.f32 %v3948, 1.442695
      %v3974 = vpow.pop %v3973
      %v3975 = vmul.f32 %v3949, 1.442695
      %v3976 = vpow.pop %v3975
      %v3977 = vmul.f32 %v3950, 1.442695
      %v3978 = vpow.pop %v3977
      %v3979 = vmul.f32 %v3951, 1.442695
      %v3980 = vpow.pop %v3979
      %v3981 = vmul.f32 %v3952, 1.442695
      %v3982 = vpow.pop %v3981
      %v3983 = vmul.f32 %v3953, 1.442695
      %v3984 = vpow.pop %v3983
      %v3985 = vmul.f32 %v3954, 1.442695
      %v3986 = vpow.pop %v3985
      %v3987 = vadd.f32 %v3956, 1.0
      %v3988 = vadd.f32 %v3958, 1.0
      %v3989 = vadd.f32 %v3960, 1.0
      %v3990 = vadd.f32 %v3962, 1.0
      %v3991 = vadd.f32 %v3964, 1.0
      %v3992 = vadd.f32 %v3966, 1.0
      %v3993 = vadd.f32 %v3968, 1.0
      %v3994 = vadd.f32 %v3970, 1.0
      %v3995 = vadd.f32 %v3972, 1.0
      %v3996 = vadd.f32 %v3974, 1.0
      %v3997 = vadd.f32 %v3976, 1.0
      %v3998 = vadd.f32 %v3978, 1.0
      %v3999 = vadd.f32 %v3980, 1.0
      %v4000 = vadd.f32 %v3982, 1.0
      %v4001 = vadd.f32 %v3984, 1.0
      %v4002 = vadd.f32 %v3986, 1.0
      %v4003 = vrcp.pop %v3987
      %v4004 = vmul.f32 1.0, %v4003
      %v4005 = vrcp.pop %v3988
      %v4006 = vmul.f32 1.0, %v4005
      %v4007 = vrcp.pop %v3989
      %v4008 = vmul.f32 1.0, %v4007
      %v4009 = vrcp.pop %v3990
      %v4010 = vmul.f32 1.0, %v4009
      %v4011 = vrcp.pop %v3991
      %v4012 = vmul.f32 1.0, %v4011
      %v4013 = vrcp.pop %v3992
      %v4014 = vmul.f32 1.0, %v4013
      %v4015 = vrcp.pop %v3993
      %v4016 = vmul.f32 1.0, %v4015
      %v4017 = vrcp.pop %v3994
      %v4018 = vmul.f32 1.0, %v4017
      %v4019 = vrcp.pop %v3995
      %v4020 = vmul.f32 1.0, %v4019
      %v4021 = vrcp.pop %v3996
      %v4022 = vmul.f32 1.0, %v4021
      %v4023 = vrcp.pop %v3997
      %v4024 = vmul.f32 1.0, %v4023
      %v4025 = vrcp.pop %v3998
      %v4026 = vmul.f32 1.0, %v4025
      %v4027 = vrcp.pop %v3999
      %v4028 = vmul.f32 1.0, %v4027
      %v4029 = vrcp.pop %v4000
      %v4030 = vmul.f32 1.0, %v4029
      %v4031 = vrcp.pop %v4001
      %v4032 = vmul.f32 1.0, %v4031
      %v4033 = vrcp.pop %v4002
      %v4034 = vmul.f32 1.0, %v4033
      %v4035 = vmul.f32 %v3923, %v4004
      %v4036 = vmul.f32 %v3924, %v4006
      %v4037 = vmul.f32 %v3925, %v4008
      %v4038 = vmul.f32 %v3926, %v4010
      %v4039 = vmul.f32 %v3927, %v4012
      %v4040 = vmul.f32 %v3928, %v4014
      %v4041 = vmul.f32 %v3929, %v4016
      %v4042 = vmul.f32 %v3930, %v4018
      %v4043 = vmul.f32 %v3931, %v4020
      %v4044 = vmul.f32 %v3932, %v4022
      %v4045 = vmul.f32 %v3933, %v4024
      %v4046 = vmul.f32 %v3934, %v4026
      %v4047 = vmul.f32 %v3935, %v4028
      %v4048 = vmul.f32 %v3936, %v4030
      %v4049 = vmul.f32 %v3937, %v4032
      %v4050 = vmul.f32 %v3938, %v4034
      %s4051 = scalar_lea.vmem %s7, 176
      %v4052 = vld [vmem:[%s4051] sm:$0xff]
      %v4053 = vld [vmem:[%s4051 + $0x8] sm:$0xff]
      %v4054 = vld [vmem:[%s4051 + $0x10] sm:$0xff]
      %v4055 = vld [vmem:[%s4051 + $0x18] sm:$0xff]
      %v4056 = vld [vmem:[%s4051 + $0x20] sm:$0xff]
      %v4057 = vld [vmem:[%s4051 + $0x28] sm:$0xff]
      %v4058 = vld [vmem:[%s4051 + $0x30] sm:$0xff]
      %v4059 = vld [vmem:[%s4051 + $0x38] sm:$0xff]
      %v4060 = vld [vmem:[%s4051 + $0x40] sm:$0xff]
      %v4061 = vld [vmem:[%s4051 + $0x48] sm:$0xff]
      %v4062 = vld [vmem:[%s4051 + $0x50] sm:$0xff]
      %v4063 = vld [vmem:[%s4051 + $0x58] sm:$0xff]
      %vm4064 = vcmask 785408
      %v4066 = vsel %vm4064, %v4035, 0
      %v4069 = vsel %vm4064, %v4036, 0
      %v4072 = vsel %vm4064, %v4037, 0
      %v4075 = vsel %vm4064, %v4038, 0
      %v4078 = vsel %vm4064, %v4039, 0
      %v4081 = vsel %vm4064, %v4040, 0
      %v4084 = vsel %vm4064, %v4041, 0
      %v4087 = vsel %vm4064, %v4042, 0
      %v4090 = vsel %vm4064, %v4043, 0
      %v4093 = vsel %vm4064, %v4044, 0
      %v4096 = vsel %vm4064, %v4045, 0
      %v4099 = vsel %vm4064, %v4046, 0
      %v4102 = vsel %vm4064, %v4047, 0
      %v4105 = vsel %vm4064, %v4048, 0
      %v4108 = vsel %vm4064, %v4049, 0
      %v4111 = vsel %vm4064, %v4050, 0
      %4113 = vmatprep.subr.mxu0 0.0
      %4114 = vmatpush1.msra.mxu0 %v4052
      %4115 = vmatprep.subr.mxu0 0.0
      %4116 = vmatpush1.msra.mxu0 %v4053
      %4117 = vmatprep.subr.mxu0 0.0
      %4118 = vmatpush1.msra.mxu0 %v4054
      %4119 = vmatprep.subr.mxu0 0.0
      %4120 = vmatpush1.msra.mxu0 %v4055
      %4121 = vmatprep.subr.mxu0 0.0
      %4122 = vmatpush1.msra.mxu0 %v4056
      %4123 = vmatprep.subr.mxu0 0.0
      %4124 = vmatpush1.msra.mxu0 %v4057
      %4125 = vmatprep.subr.mxu0 0.0
      %4126 = vmatpush1.msra.mxu0 %v4058
      %4127 = vmatprep.subr.mxu0 0.0
      %4128 = vmatpush1.msra.mxu0 %v4059
      %4129 = vmatprep.subr.mxu0 0.0
      %4130 = vmatpush1.msra.mxu0 %v4060
      %4131 = vmatprep.subr.mxu0 0.0
      %4132 = vmatpush1.msra.mxu0 %v4061
      %4133 = vmatprep.subr.mxu0 0.0
      %4134 = vmatpush1.msra.mxu0 %v4062
      %4135 = vmatprep.subr.mxu0 0.0
      %4136 = vmatpush1.msra.mxu0 %v4063
      %4137 = vmatprep.subr.mxu0 0.0
      %4138 = vmatpush1.msra.mxu0 0.0
      %4139 = vmatprep.subr.mxu0 0.0
      %4140 = vmatpush1.msra.mxu0 0.0
      %4141 = vmatprep.subr.mxu0 0.0
      %4142 = vmatpush1.msra.mxu0 0.0
      %4143 = vmatprep.subr.mxu0 0.0
      %4144 = vmatpush1.msra.mxu0 0.0
      %4145 = vmatprep.subr.mxu0 0.0
      %4146 = vmatpush1.msra.mxu0 0.0
      %4147 = vmatprep.subr.mxu0 0.0
      %4148 = vmatpush1.msra.mxu0 0.0
      %4149 = vmatprep.subr.mxu0 0.0
      %4150 = vmatpush1.msra.mxu0 0.0
      %4151 = vmatprep.subr.mxu0 0.0
      %4152 = vmatpush1.msra.mxu0 0.0
      %4153 = vmatprep.subr.mxu0 0.0
      %4154 = vmatpush1.msra.mxu0 0.0
      %4155 = vmatprep.subr.mxu0 0.0
      %4156 = vmatpush1.msra.mxu0 0.0
      %4157 = vmatprep.subr.mxu0 0.0
      %4158 = vmatpush1.msra.mxu0 0.0
      %4159 = vmatprep.subr.mxu0 0.0
      %4160 = vmatpush1.msra.mxu0 0.0
      %4161 = vmatprep.subr.mxu0 0.0
      %4162 = vmatpush1.msra.mxu0 0.0
      %4163 = vmatprep.subr.mxu0 0.0
      %4164 = vmatpush1.msra.mxu0 0.0
      %4165 = vmatprep.subr.mxu0 0.0
      %4166 = vmatpush1.msra.mxu0 0.0
      %4167 = vmatprep.subr.mxu0 0.0
      %4168 = vmatpush1.msra.mxu0 0.0
      %4169 = vmatprep.subr.mxu0 0.0
      %4170 = vmatpush1.msra.mxu0 0.0
      %4171 = vmatprep.subr.mxu0 0.0
      %4172 = vmatpush1.msra.mxu0 0.0
      %4173 = vmatprep.subr.mxu0 0.0
      %4174 = vmatpush1.msra.mxu0 0.0
      %4175 = vmatprep.subr.mxu0 0.0
      %4176 = vmatpush1.msra.mxu0 0.0
      %4177 = vmatprep.mubr.f32.mxu0 0.0
      %4178 = vmatmul.mubr.f32.gmra.mrb[0].mxu0 %v4066
      %v4179 = vpop.f32.mrb[0].mxu0
      %v4180 = vadd.f32 0.0, %v4179
      %v4181 = vpop.f32.mrb[0].mxu0
      %4182 = vmatprep.mubr.f32.mxu0 0.0
      %4183 = vmatmul.mubr.f32.gmra.mrb[0].mxu0 %v4069
      %v4184 = vpop.f32.mrb[0].mxu0
      %v4185 = vadd.f32 0.0, %v4184
      %v4186 = vpop.f32.mrb[0].mxu0
      %4187 = vmatprep.mubr.f32.mxu0 0.0
      %4188 = vmatmul.mubr.f32.gmra.mrb[0].mxu0 %v4072
      %v4189 = vpop.f32.mrb[0].mxu0
      %v4190 = vadd.f32 0.0, %v4189
      %v4191 = vpop.f32.mrb[0].mxu0
      %4192 = vmatprep.mubr.f32.mxu0 0.0
      %4193 = vmatmul.mubr.f32.gmra.mrb[0].mxu0 %v4075
      %v4194 = vpop.f32.mrb[0].mxu0
      %v4195 = vadd.f32 0.0, %v4194
      %v4196 = vpop.f32.mrb[0].mxu0
      %4197 = vmatprep.mubr.f32.mxu0 0.0
      %4198 = vmatmul.mubr.f32.gmra.mrb[0].mxu0 %v4078
      %v4199 = vpop.f32.mrb[0].mxu0
      %v4200 = vadd.f32 0.0, %v4199
      %v4201 = vpop.f32.mrb[0].mxu0
      %4202 = vmatprep.mubr.f32.mxu0 0.0
      %4203 = vmatmul.mubr.f32.gmra.mrb[0].mxu0 %v4081
      %v4204 = vpop.f32.mrb[0].mxu0
      %v4205 = vadd.f32 0.0, %v4204
      %v4206 = vpop.f32.mrb[0].mxu0
      %4207 = vmatprep.mubr.f32.mxu0 0.0
      %4208 = vmatmul.mubr.f32.gmra.mrb[0].mxu0 %v4084
      %v4209 = vpop.f32.mrb[0].mxu0
      %v4210 = vadd.f32 0.0, %v4209
      %v4211 = vpop.f32.mrb[0].mxu0
      %4212 = vmatprep.mubr.f32.mxu0 0.0
      %4213 = vmatmul.mubr.f32.gmra.mrb[0].mxu0 %v4087
      %v4214 = vpop.f32.mrb[0].mxu0
      %v4215 = vadd.f32 0.0, %v4214
      %v4216 = vpop.f32.mrb[0].mxu0
      %4217 = vmatprep.mubr.f32.mxu0 0.0
      %4218 = vmatmul.mubr.f32.gmra.mrb[0].mxu0 %v4090
      %v4219 = vpop.f32.mrb[0].mxu0
      %v4220 = vadd.f32 0.0, %v4219
      %v4221 = vpop.f32.mrb[0].mxu0
      %4222 = vmatprep.mubr.f32.mxu0 0.0
      %4223 = vmatmul.mubr.f32.gmra.mrb[0].mxu0 %v4093
      %v4224 = vpop.f32.mrb[0].mxu0
      %v4225 = vadd.f32 0.0, %v4224
      %v4226 = vpop.f32.mrb[0].mxu0
      %4227 = vmatprep.mubr.f32.mxu0 0.0
      %4228 = vmatmul.mubr.f32.gmra.mrb[0].mxu0 %v4096
      %v4229 = vpop.f32.mrb[0].mxu0
      %v4230 = vadd.f32 0.0, %v4229
      %v4231 = vpop.f32.mrb[0].mxu0
      %4232 = vmatprep.mubr.f32.mxu0 0.0
      %4233 = vmatmul.mubr.f32.gmra.mrb[0].mxu0 %v4099
      %v4234 = vpop.f32.mrb[0].mxu0
      %v4235 = vadd.f32 0.0, %v4234
      %v4236 = vpop.f32.mrb[0].mxu0
      %4237 = vmatprep.mubr.f32.mxu0 0.0
      %4238 = vmatmul.mubr.f32.gmra.mrb[0].mxu0 %v4102
      %v4239 = vpop.f32.mrb[0].mxu0
      %v4240 = vadd.f32 0.0, %v4239
      %v4241 = vpop.f32.mrb[0].mxu0
      %4242 = vmatprep.mubr.f32.mxu0 0.0
      %4243 = vmatmul.mubr.f32.gmra.mrb[0].mxu0 %v4105
      %v4244 = vpop.f32.mrb[0].mxu0
      %v4245 = vadd.f32 0.0, %v4244
      %v4246 = vpop.f32.mrb[0].mxu0
      %4247 = vmatprep.mubr.f32.mxu0 0.0
      %4248 = vmatmul.mubr.f32.gmra.mrb[0].mxu0 %v4108
      %v4249 = vpop.f32.mrb[0].mxu0
      %v4250 = vadd.f32 0.0, %v4249
      %v4251 = vpop.f32.mrb[0].mxu0
      %4252 = vmatprep.mubr.f32.mxu0 0.0
      %4253 = vmatmul.mubr.f32.gmra.mrb[0].mxu0 %v4111
      %v4254 = vpop.f32.mrb[0].mxu0
      %v4255 = vadd.f32 0.0, %v4254
      %v4256 = vpop.f32.mrb[0].mxu0
      %4257 = vdwg.mxu0
      %v4258 = vadd.f32 %v2031, %v4180
      %v4259 = vadd.f32 %v2032, %v4185
      %v4260 = vadd.f32 %v2033, %v4190
      %v4261 = vadd.f32 %v2034, %v4195
      %v4262 = vadd.f32 %v2035, %v4200
      %v4263 = vadd.f32 %v2036, %v4205
      %v4264 = vadd.f32 %v2037, %v4210
      %v4265 = vadd.f32 %v2038, %v4215
      %v4266 = vadd.f32 %v2039, %v4220
      %v4267 = vadd.f32 %v2040, %v4225
      %v4268 = vadd.f32 %v2041, %v4230
      %v4269 = vadd.f32 %v2042, %v4235
      %v4270 = vadd.f32 %v2043, %v4240
      %v4271 = vadd.f32 %v2044, %v4245
      %v4272 = vadd.f32 %v2045, %v4250
      %v4273 = vadd.f32 %v2046, %v4255
      %s4274 = scalar_lea.vmem %s8, 1
      %v4275 = vld [vmem:[%s4274] sm:$0x1]
      %v4277 = vlaneseq
      %v4278 = vshrl.u32 %v4277, 7
      %v4279 = vsub.s32 0, %v4278
      %v4280 = vrot.slane %v4275, %v4279
      %v4282 = vadd.f32 %v4258, %v4280
      %v4283 = vadd.f32 %v4259, %v4280
      %v4284 = vadd.f32 %v4260, %v4280
      %v4285 = vadd.f32 %v4261, %v4280
      %v4286 = vadd.f32 %v4262, %v4280
      %v4287 = vadd.f32 %v4263, %v4280
      %v4288 = vadd.f32 %v4264, %v4280
      %v4289 = vadd.f32 %v4265, %v4280
      %v4290 = vadd.f32 %v4266, %v4280
      %v4291 = vadd.f32 %v4267, %v4280
      %v4292 = vadd.f32 %v4268, %v4280
      %v4293 = vadd.f32 %v4269, %v4280
      %v4294 = vadd.f32 %v4270, %v4280
      %v4295 = vadd.f32 %v4271, %v4280
      %v4296 = vadd.f32 %v4272, %v4280
      %v4297 = vadd.f32 %v4273, %v4280
      %4298 = vmatprep.subr.mxu0 0.0
      %4299 = vmatpush1.msra.mxu0 %v4035
      %4300 = vmatprep.subr.mxu0 0.0
      %4301 = vmatpush1.msra.mxu0 %v4036
      %4302 = vmatprep.subr.mxu0 0.0
      %4303 = vmatpush1.msra.mxu0 %v4037
      %4304 = vmatprep.subr.mxu0 0.0
      %4305 = vmatpush1.msra.mxu0 %v4038
      %4306 = vmatprep.subr.mxu0 0.0
      %4307 = vmatpush1.msra.mxu0 %v4039
      %4308 = vmatprep.subr.mxu0 0.0
      %4309 = vmatpush1.msra.mxu0 %v4040
      %4310 = vmatprep.subr.mxu0 0.0
      %4311 = vmatpush1.msra.mxu0 %v4041
      %4312 = vmatprep.subr.mxu0 0.0
      %4313 = vmatpush1.msra.mxu0 %v4042
      %4314 = vmatprep.subr.mxu0 0.0
      %4315 = vmatpush1.msra.mxu0 %v4043
      %4316 = vmatprep.subr.mxu0 0.0
      %4317 = vmatpush1.msra.mxu0 %v4044
      %4318 = vmatprep.subr.mxu0 0.0
      %4319 = vmatpush1.msra.mxu0 %v4045
      %4320 = vmatprep.subr.mxu0 0.0
      %4321 = vmatpush1.msra.mxu0 %v4046
      %4322 = vmatprep.subr.mxu0 0.0
      %4323 = vmatpush1.msra.mxu0 %v4047
      %4324 = vmatprep.subr.mxu0 0.0
      %4325 = vmatpush1.msra.mxu0 %v4048
      %4326 = vmatprep.subr.mxu0 0.0
      %4327 = vmatpush1.msra.mxu0 %v4049
      %4328 = vmatprep.subr.mxu0 0.0
      %4329 = vmatpush1.msra.mxu0 %v4050
      %4330 = vmatprep.subr.mxu0 0.0
      %4331 = vmatpush1.msra.mxu0 0.0
      %4332 = vmatprep.subr.mxu0 0.0
      %4333 = vmatpush1.msra.mxu0 0.0
      %4334 = vmatprep.subr.mxu0 0.0
      %4335 = vmatpush1.msra.mxu0 0.0
      %4336 = vmatprep.subr.mxu0 0.0
      %4337 = vmatpush1.msra.mxu0 0.0
      %4338 = vmatprep.subr.mxu0 0.0
      %4339 = vmatpush1.msra.mxu0 0.0
      %4340 = vmatprep.subr.mxu0 0.0
      %4341 = vmatpush1.msra.mxu0 0.0
      %4342 = vmatprep.subr.mxu0 0.0
      %4343 = vmatpush1.msra.mxu0 0.0
      %4344 = vmatprep.subr.mxu0 0.0
      %4345 = vmatpush1.msra.mxu0 0.0
      %4346 = vmatprep.subr.mxu0 0.0
      %4347 = vmatpush1.msra.mxu0 0.0
      %4348 = vmatprep.subr.mxu0 0.0
      %4349 = vmatpush1.msra.mxu0 0.0
      %4350 = vmatprep.subr.mxu0 0.0
      %4351 = vmatpush1.msra.mxu0 0.0
      %4352 = vmatprep.subr.mxu0 0.0
      %4353 = vmatpush1.msra.mxu0 0.0
      %4354 = vmatprep.subr.mxu0 0.0
      %4355 = vmatpush1.msra.mxu0 0.0
      %4356 = vmatprep.subr.mxu0 0.0
      %4357 = vmatpush1.msra.mxu0 0.0
      %4358 = vmatprep.subr.mxu0 0.0
      %4359 = vmatpush1.msra.mxu0 0.0
      %4360 = vmatprep.subr.mxu0 0.0
      %4361 = vmatpush1.msra.mxu0 0.0
      %4362 = vmatprep.mubr.f32.mxu0 0.0
      %4363 = vmatmul.mubr.f32.gmra.mrb[0].mxu0 %v1031
      %v4364 = vpop.f32.mrb[0].mxu0
      %v4365 = vadd.f32 0.0, %v4364
      %v4366 = vpop.f32.mrb[0].mxu0
      %4367 = vmatprep.mubr.f32.mxu0 0.0
      %4368 = vmatmul.mubr.f32.gmra.mrb[0].mxu0 %v1032
      %v4369 = vpop.f32.mrb[0].mxu0
      %v4370 = vadd.f32 0.0, %v4369
      %v4371 = vpop.f32.mrb[0].mxu0
      %4372 = vmatprep.mubr.f32.mxu0 0.0
      %4373 = vmatmul.mubr.f32.gmra.mrb[0].mxu0 %v1033
      %v4374 = vpop.f32.mrb[0].mxu0
      %v4375 = vadd.f32 0.0, %v4374
      %v4376 = vpop.f32.mrb[0].mxu0
      %4377 = vmatprep.mubr.f32.mxu0 0.0
      %4378 = vmatmul.mubr.f32.gmra.mrb[0].mxu0 %v1034
      %v4379 = vpop.f32.mrb[0].mxu0
      %v4380 = vadd.f32 0.0, %v4379
      %v4381 = vpop.f32.mrb[0].mxu0
      %4382 = vmatprep.mubr.f32.mxu0 0.0
      %4383 = vmatmul.mubr.f32.gmra.mrb[0].mxu0 %v1035
      %v4384 = vpop.f32.mrb[0].mxu0
      %v4385 = vadd.f32 0.0, %v4384
      %v4386 = vpop.f32.mrb[0].mxu0
      %4387 = vmatprep.mubr.f32.mxu0 0.0
      %4388 = vmatmul.mubr.f32.gmra.mrb[0].mxu0 %v1036
      %v4389 = vpop.f32.mrb[0].mxu0
      %v4390 = vadd.f32 0.0, %v4389
      %v4391 = vpop.f32.mrb[0].mxu0
      %4392 = vmatprep.mubr.f32.mxu0 0.0
      %4393 = vmatmul.mubr.f32.gmra.mrb[0].mxu0 %v1037
      %v4394 = vpop.f32.mrb[0].mxu0
      %v4395 = vadd.f32 0.0, %v4394
      %v4396 = vpop.f32.mrb[0].mxu0
      %4397 = vmatprep.mubr.f32.mxu0 0.0
      %4398 = vmatmul.mubr.f32.gmra.mrb[0].mxu0 %v1038
      %v4399 = vpop.f32.mrb[0].mxu0
      %v4400 = vadd.f32 0.0, %v4399
      %v4401 = vpop.f32.mrb[0].mxu0
      %4402 = vmatprep.mubr.f32.mxu0 0.0
      %4403 = vmatmul.mubr.f32.gmra.mrb[0].mxu0 %v1039
      %v4404 = vpop.f32.mrb[0].mxu0
      %v4405 = vadd.f32 0.0, %v4404
      %v4406 = vpop.f32.mrb[0].mxu0
      %4407 = vmatprep.mubr.f32.mxu0 0.0
      %4408 = vmatmul.mubr.f32.gmra.mrb[0].mxu0 %v1040
      %v4409 = vpop.f32.mrb[0].mxu0
      %v4410 = vadd.f32 0.0, %v4409
      %v4411 = vpop.f32.mrb[0].mxu0
      %4412 = vmatprep.mubr.f32.mxu0 0.0
      %4413 = vmatmul.mubr.f32.gmra.mrb[0].mxu0 %v1041
      %v4414 = vpop.f32.mrb[0].mxu0
      %v4415 = vadd.f32 0.0, %v4414
      %v4416 = vpop.f32.mrb[0].mxu0
      %4417 = vmatprep.mubr.f32.mxu0 0.0
      %4418 = vmatmul.mubr.f32.gmra.mrb[0].mxu0 %v1042
      %v4419 = vpop.f32.mrb[0].mxu0
      %v4420 = vadd.f32 0.0, %v4419
      %v4421 = vpop.f32.mrb[0].mxu0
      %4422 = vmatprep.mubr.f32.mxu0 0.0
      %4423 = vmatmul.mubr.f32.gmra.mrb[0].mxu0 %v1043
      %v4424 = vpop.f32.mrb[0].mxu0
      %v4425 = vadd.f32 0.0, %v4424
      %v4426 = vpop.f32.mrb[0].mxu0
      %4427 = vmatprep.mubr.f32.mxu0 0.0
      %4428 = vmatmul.mubr.f32.gmra.mrb[0].mxu0 %v1044
      %v4429 = vpop.f32.mrb[0].mxu0
      %v4430 = vadd.f32 0.0, %v4429
      %v4431 = vpop.f32.mrb[0].mxu0
      %4432 = vmatprep.mubr.f32.mxu0 0.0
      %4433 = vmatmul.mubr.f32.gmra.mrb[0].mxu0 %v1045
      %v4434 = vpop.f32.mrb[0].mxu0
      %v4435 = vadd.f32 0.0, %v4434
      %v4436 = vpop.f32.mrb[0].mxu0
      %4437 = vmatprep.mubr.f32.mxu0 0.0
      %4438 = vmatmul.mubr.f32.gmra.mrb[0].mxu0 %v1046
      %v4439 = vpop.f32.mrb[0].mxu0
      %v4440 = vadd.f32 0.0, %v4439
      %v4441 = vpop.f32.mrb[0].mxu0
      %4442 = vdwg.mxu0
      %s4443 = scalar_lea.vmem %s10, 352
      %v4444 = vld [vmem:[%s4443] sm:$0xff]
      %v4445 = vld [vmem:[%s4443 + $0x10] sm:$0xff]
      %v4446 = vld [vmem:[%s4443 + $0x20] sm:$0xff]
      %v4447 = vld [vmem:[%s4443 + $0x30] sm:$0xff]
      %v4448 = vld [vmem:[%s4443 + $0x40] sm:$0xff]
      %v4449 = vld [vmem:[%s4443 + $0x50] sm:$0xff]
      %v4450 = vld [vmem:[%s4443 + $0x60] sm:$0xff]
      %v4451 = vld [vmem:[%s4443 + $0x70] sm:$0xff]
      %v4452 = vld [vmem:[%s4443 + $0x80] sm:$0xff]
      %v4453 = vld [vmem:[%s4443 + $0x90] sm:$0xff]
      %v4454 = vld [vmem:[%s4443 + $0xa0] sm:$0xff]
      %v4455 = vld [vmem:[%s4443 + $0xb0] sm:$0xff]
      %s4456 = scalar_lea.vmem %s11, 2
      %v4457 = vld [vmem:[%s4456] sm:$0x1]
      %v4459 = vlaneseq
      %v4460 = vshrl.u32 %v4459, 7
      %v4461 = vsub.s32 0, %v4460
      %v4462 = vrot.slane %v4457, %v4461
      %v4465 = vsel %vm4064, %v4365, 0
      %v4468 = vsel %vm4064, %v4370, 0
      %v4471 = vsel %vm4064, %v4375, 0
      %v4474 = vsel %vm4064, %v4380, 0
      %v4477 = vsel %vm4064, %v4385, 0
      %v4480 = vsel %vm4064, %v4390, 0
      %v4483 = vsel %vm4064, %v4395, 0
      %v4486 = vsel %vm4064, %v4400, 0
      %v4489 = vsel %vm4064, %v4405, 0
      %v4492 = vsel %vm4064, %v4410, 0
      %v4495 = vsel %vm4064, %v4415, 0
      %v4498 = vsel %vm4064, %v4420, 0
      %v4501 = vsel %vm4064, %v4425, 0
      %v4504 = vsel %vm4064, %v4430, 0
      %v4507 = vsel %vm4064, %v4435, 0
      %v4510 = vsel %vm4064, %v4440, 0
      %4512 = vmatprep.subr.mxu0 0.0
      %4513 = vmatpush1.msra.mxu0 %v4444
      %4514 = vmatprep.subr.mxu0 0.0
      %4515 = vmatpush1.msra.mxu0 %v4445
      %4516 = vmatprep.subr.mxu0 0.0
      %4517 = vmatpush1.msra.mxu0 %v4446
      %4518 = vmatprep.subr.mxu0 0.0
      %4519 = vmatpush1.msra.mxu0 %v4447
      %4520 = vmatprep.subr.mxu0 0.0
      %4521 = vmatpush1.msra.mxu0 %v4448
      %4522 = vmatprep.subr.mxu0 0.0
      %4523 = vmatpush1.msra.mxu0 %v4449
      %4524 = vmatprep.subr.mxu0 0.0
      %4525 = vmatpush1.msra.mxu0 %v4450
      %4526 = vmatprep.subr.mxu0 0.0
      %4527 = vmatpush1.msra.mxu0 %v4451
      %4528 = vmatprep.subr.mxu0 0.0
      %4529 = vmatpush1.msra.mxu0 %v4452
      %4530 = vmatprep.subr.mxu0 0.0
      %4531 = vmatpush1.msra.mxu0 %v4453
      %4532 = vmatprep.subr.mxu0 0.0
      %4533 = vmatpush1.msra.mxu0 %v4454
      %4534 = vmatprep.subr.mxu0 0.0
      %4535 = vmatpush1.msra.mxu0 %v4455
      %4536 = vmatprep.subr.mxu0 0.0
      %4537 = vmatpush1.msra.mxu0 0.0
      %4538 = vmatprep.subr.mxu0 0.0
      %4539 = vmatpush1.msra.mxu0 0.0
      %4540 = vmatprep.subr.mxu0 0.0
      %4541 = vmatpush1.msra.mxu0 0.0
      %4542 = vmatprep.subr.mxu0 0.0
      %4543 = vmatpush1.msra.mxu0 0.0
      %4544 = vmatprep.subr.mxu0 0.0
      %4545 = vmatpush1.msra.mxu0 0.0
      %4546 = vmatprep.subr.mxu0 0.0
      %4547 = vmatpush1.msra.mxu0 0.0
      %4548 = vmatprep.subr.mxu0 0.0
      %4549 = vmatpush1.msra.mxu0 0.0
      %4550 = vmatprep.subr.mxu0 0.0
      %4551 = vmatpush1.msra.mxu0 0.0
      %4552 = vmatprep.subr.mxu0 0.0
      %4553 = vmatpush1.msra.mxu0 0.0
      %4554 = vmatprep.subr.mxu0 0.0
      %4555 = vmatpush1.msra.mxu0 0.0
      %4556 = vmatprep.subr.mxu0 0.0
      %4557 = vmatpush1.msra.mxu0 0.0
      %4558 = vmatprep.subr.mxu0 0.0
      %4559 = vmatpush1.msra.mxu0 0.0
      %4560 = vmatprep.subr.mxu0 0.0
      %4561 = vmatpush1.msra.mxu0 0.0
      %4562 = vmatprep.subr.mxu0 0.0
      %4563 = vmatpush1.msra.mxu0 0.0
      %4564 = vmatprep.subr.mxu0 0.0
      %4565 = vmatpush1.msra.mxu0 0.0
      %4566 = vmatprep.subr.mxu0 0.0
      %4567 = vmatpush1.msra.mxu0 0.0
      %4568 = vmatprep.subr.mxu0 0.0
      %4569 = vmatpush1.msra.mxu0 0.0
      %4570 = vmatprep.subr.mxu0 0.0
      %4571 = vmatpush1.msra.mxu0 0.0
      %4572 = vmatprep.subr.mxu0 0.0
      %4573 = vmatpush1.msra.mxu0 0.0
      %4574 = vmatprep.subr.mxu0 0.0
      %4575 = vmatpush1.msra.mxu0 0.0
      %4576 = vmatprep.mubr.f32.mxu0 0.0
      %4577 = vmatmul.mubr.f32.gmra.mrb[0].mxu0 %v4465
      %v4578 = vpop.f32.mrb[0].mxu0
      %v4579 = vadd.f32 %v4462, %v4578
      %v4580 = vpop.f32.mrb[0].mxu0
      %4581 = vmatprep.mubr.f32.mxu0 0.0
      %4582 = vmatmul.mubr.f32.gmra.mrb[0].mxu0 %v4468
      %v4583 = vpop.f32.mrb[0].mxu0
      %v4584 = vadd.f32 %v4462, %v4583
      %v4585 = vpop.f32.mrb[0].mxu0
      %4586 = vmatprep.mubr.f32.mxu0 0.0
      %4587 = vmatmul.mubr.f32.gmra.mrb[0].mxu0 %v4471
      %v4588 = vpop.f32.mrb[0].mxu0
      %v4589 = vadd.f32 %v4462, %v4588
      %v4590 = vpop.f32.mrb[0].mxu0
      %4591 = vmatprep.mubr.f32.mxu0 0.0
      %4592 = vmatmul.mubr.f32.gmra.mrb[0].mxu0 %v4474
      %v4593 = vpop.f32.mrb[0].mxu0
      %v4594 = vadd.f32 %v4462, %v4593
      %v4595 = vpop.f32.mrb[0].mxu0
      %4596 = vmatprep.mubr.f32.mxu0 0.0
      %4597 = vmatmul.mubr.f32.gmra.mrb[0].mxu0 %v4477
      %v4598 = vpop.f32.mrb[0].mxu0
      %v4599 = vadd.f32 %v4462, %v4598
      %v4600 = vpop.f32.mrb[0].mxu0
      %4601 = vmatprep.mubr.f32.mxu0 0.0
      %4602 = vmatmul.mubr.f32.gmra.mrb[0].mxu0 %v4480
      %v4603 = vpop.f32.mrb[0].mxu0
      %v4604 = vadd.f32 %v4462, %v4603
      %v4605 = vpop.f32.mrb[0].mxu0
      %4606 = vmatprep.mubr.f32.mxu0 0.0
      %4607 = vmatmul.mubr.f32.gmra.mrb[0].mxu0 %v4483
      %v4608 = vpop.f32.mrb[0].mxu0
      %v4609 = vadd.f32 %v4462, %v4608
      %v4610 = vpop.f32.mrb[0].mxu0
      %4611 = vmatprep.mubr.f32.mxu0 0.0
      %4612 = vmatmul.mubr.f32.gmra.mrb[0].mxu0 %v4486
      %v4613 = vpop.f32.mrb[0].mxu0
      %v4614 = vadd.f32 %v4462, %v4613
      %v4615 = vpop.f32.mrb[0].mxu0
      %4616 = vmatprep.mubr.f32.mxu0 0.0
      %4617 = vmatmul.mubr.f32.gmra.mrb[0].mxu0 %v4489
      %v4618 = vpop.f32.mrb[0].mxu0
      %v4619 = vadd.f32 %v4462, %v4618
      %v4620 = vpop.f32.mrb[0].mxu0
      %4621 = vmatprep.mubr.f32.mxu0 0.0
      %4622 = vmatmul.mubr.f32.gmra.mrb[0].mxu0 %v4492
      %v4623 = vpop.f32.mrb[0].mxu0
      %v4624 = vadd.f32 %v4462, %v4623
      %v4625 = vpop.f32.mrb[0].mxu0
      %4626 = vmatprep.mubr.f32.mxu0 0.0
      %4627 = vmatmul.mubr.f32.gmra.mrb[0].mxu0 %v4495
      %v4628 = vpop.f32.mrb[0].mxu0
      %v4629 = vadd.f32 %v4462, %v4628
      %v4630 = vpop.f32.mrb[0].mxu0
      %4631 = vmatprep.mubr.f32.mxu0 0.0
      %4632 = vmatmul.mubr.f32.gmra.mrb[0].mxu0 %v4498
      %v4633 = vpop.f32.mrb[0].mxu0
      %v4634 = vadd.f32 %v4462, %v4633
      %v4635 = vpop.f32.mrb[0].mxu0
      %4636 = vmatprep.mubr.f32.mxu0 0.0
      %4637 = vmatmul.mubr.f32.gmra.mrb[0].mxu0 %v4501
      %v4638 = vpop.f32.mrb[0].mxu0
      %v4639 = vadd.f32 %v4462, %v4638
      %v4640 = vpop.f32.mrb[0].mxu0
      %4641 = vmatprep.mubr.f32.mxu0 0.0
      %4642 = vmatmul.mubr.f32.gmra.mrb[0].mxu0 %v4504
      %v4643 = vpop.f32.mrb[0].mxu0
      %v4644 = vadd.f32 %v4462, %v4643
      %v4645 = vpop.f32.mrb[0].mxu0
      %4646 = vmatprep.mubr.f32.mxu0 0.0
      %4647 = vmatmul.mubr.f32.gmra.mrb[0].mxu0 %v4507
      %v4648 = vpop.f32.mrb[0].mxu0
      %v4649 = vadd.f32 %v4462, %v4648
      %v4650 = vpop.f32.mrb[0].mxu0
      %4651 = vmatprep.mubr.f32.mxu0 0.0
      %4652 = vmatmul.mubr.f32.gmra.mrb[0].mxu0 %v4510
      %v4653 = vpop.f32.mrb[0].mxu0
      %v4654 = vadd.f32 %v4462, %v4653
      %v4655 = vpop.f32.mrb[0].mxu0
      %4656 = vdwg.mxu0
      %4673 = vrot.lane.b32.xlu0 %v3451, 48
      %v4674 = vpop.permute.xlu0 %4673
      %4675 = vrot.lane.b32.xlu0 %v3452, 48
      %v4676 = vpop.permute.xlu0 %4675
      %4677 = vrot.lane.b32.xlu0 %v3453, 48
      %v4678 = vpop.permute.xlu0 %4677
      %4679 = vrot.lane.b32.xlu0 %v3454, 48
      %v4680 = vpop.permute.xlu0 %4679
      %4681 = vrot.lane.b32.xlu0 %v3455, 48
      %v4682 = vpop.permute.xlu0 %4681
      %4683 = vrot.lane.b32.xlu0 %v3456, 48
      %v4684 = vpop.permute.xlu0 %4683
      %4685 = vrot.lane.b32.xlu0 %v3457, 48
      %v4686 = vpop.permute.xlu0 %4685
      %4687 = vrot.lane.b32.xlu0 %v3458, 48
      %v4688 = vpop.permute.xlu0 %4687
      %4689 = vrot.lane.b32.xlu0 %v3459, 48
      %v4690 = vpop.permute.xlu0 %4689
      %4691 = vrot.lane.b32.xlu0 %v3460, 48
      %v4692 = vpop.permute.xlu0 %4691
      %4693 = vrot.lane.b32.xlu0 %v3461, 48
      %v4694 = vpop.permute.xlu0 %4693
      %4695 = vrot.lane.b32.xlu0 %v3462, 48
      %v4696 = vpop.permute.xlu0 %4695
      %4697 = vrot.lane.b32.xlu0 %v3463, 48
      %v4698 = vpop.permute.xlu0 %4697
      %4699 = vrot.lane.b32.xlu0 %v3464, 48
      %v4700 = vpop.permute.xlu0 %4699
      %4701 = vrot.lane.b32.xlu0 %v3465, 48
      %v4702 = vpop.permute.xlu0 %4701
      %4703 = vrot.lane.b32.xlu0 %v3466, 48
      %v4704 = vpop.permute.xlu0 %4703
      %4705 = vrot.lane.b32.xlu0 %v3467, 48
      %v4706 = vpop.permute.xlu0 %4705
      %4707 = vrot.lane.b32.xlu0 %v3468, 48
      %v4708 = vpop.permute.xlu0 %4707
      %4709 = vrot.lane.b32.xlu0 %v3469, 48
      %v4710 = vpop.permute.xlu0 %4709
      %4711 = vrot.lane.b32.xlu0 %v3470, 48
      %v4712 = vpop.permute.xlu0 %4711
      %4713 = vrot.lane.b32.xlu0 %v3471, 48
      %v4714 = vpop.permute.xlu0 %4713
      %4715 = vrot.lane.b32.xlu0 %v3472, 48
      %v4716 = vpop.permute.xlu0 %4715
      %4717 = vrot.lane.b32.xlu0 %v3473, 48
      %v4718 = vpop.permute.xlu0 %4717
      %4719 = vrot.lane.b32.xlu0 %v3474, 48
      %v4720 = vpop.permute.xlu0 %4719
      %4721 = vrot.lane.b32.xlu0 %v3475, 48
      %v4722 = vpop.permute.xlu0 %4721
      %4723 = vrot.lane.b32.xlu0 %v3476, 48
      %v4724 = vpop.permute.xlu0 %4723
      %4725 = vrot.lane.b32.xlu0 %v3477, 48
      %v4726 = vpop.permute.xlu0 %4725
      %4727 = vrot.lane.b32.xlu0 %v3478, 48
      %v4728 = vpop.permute.xlu0 %4727
      %4729 = vrot.lane.b32.xlu0 %v3479, 48
      %v4730 = vpop.permute.xlu0 %4729
      %4731 = vrot.lane.b32.xlu0 %v3480, 48
      %v4732 = vpop.permute.xlu0 %4731
      %4733 = vrot.lane.b32.xlu0 %v3481, 48
      %v4734 = vpop.permute.xlu0 %4733
      %4735 = vrot.lane.b32.xlu0 %v3482, 48
      %v4736 = vpop.permute.xlu0 %4735
      %v4737 = vsel %vm1814, %v4674, %v4676
      %v4738 = vsel %vm1814, %v4678, %v4680
      %v4739 = vsel %vm1814, %v4682, %v4684
      %v4740 = vsel %vm1814, %v4686, %v4688
      %v4741 = vsel %vm1814, %v4690, %v4692
      %v4742 = vsel %vm1814, %v4694, %v4696
      %v4743 = vsel %vm1814, %v4698, %v4700
      %v4744 = vsel %vm1814, %v4702, %v4704
      %v4745 = vsel %vm1814, %v4706, %v4708
      %v4746 = vsel %vm1814, %v4710, %v4712
      %v4747 = vsel %vm1814, %v4714, %v4716
      %v4748 = vsel %vm1814, %v4718, %v4720
      %v4749 = vsel %vm1814, %v4722, %v4724
      %v4750 = vsel %vm1814, %v4726, %v4728
      %v4751 = vsel %vm1814, %v4730, %v4732
      %v4752 = vsel %vm1814, %v4734, %v4736
      %v4769 = vadd.f32 %v4579, %v4737
      %v4770 = vadd.f32 %v4584, %v4738
      %v4771 = vadd.f32 %v4589, %v4739
      %v4772 = vadd.f32 %v4594, %v4740
      %v4773 = vadd.f32 %v4599, %v4741
      %v4774 = vadd.f32 %v4604, %v4742
      %v4775 = vadd.f32 %v4609, %v4743
      %v4776 = vadd.f32 %v4614, %v4744
      %v4777 = vadd.f32 %v4619, %v4745
      %v4778 = vadd.f32 %v4624, %v4746
      %v4779 = vadd.f32 %v4629, %v4747
      %v4780 = vadd.f32 %v4634, %v4748
      %v4781 = vadd.f32 %v4639, %v4749
      %v4782 = vadd.f32 %v4644, %v4750
      %v4783 = vadd.f32 %v4649, %v4751
      %v4784 = vadd.f32 %v4654, %v4752
      %v4785 = vsel %vm4064, %v4769, 0.0
      %4786 = vadd.xlane.f32.xlu0 %v4785
      %v4787 = vpop.xlane.xlu0 %4786
      %v4788 = vsel %vm4064, %v4770, 0.0
      %4789 = vadd.xlane.f32.xlu0 %v4788
      %v4790 = vpop.xlane.xlu0 %4789
      %v4791 = vsel %vm4064, %v4771, 0.0
      %4792 = vadd.xlane.f32.xlu0 %v4791
      %v4793 = vpop.xlane.xlu0 %4792
      %v4794 = vsel %vm4064, %v4772, 0.0
      %4795 = vadd.xlane.f32.xlu0 %v4794
      %v4796 = vpop.xlane.xlu0 %4795
      %v4797 = vsel %vm4064, %v4773, 0.0
      %4798 = vadd.xlane.f32.xlu0 %v4797
      %v4799 = vpop.xlane.xlu0 %4798
      %v4800 = vsel %vm4064, %v4774, 0.0
      %4801 = vadd.xlane.f32.xlu0 %v4800
      %v4802 = vpop.xlane.xlu0 %4801
      %v4803 = vsel %vm4064, %v4775, 0.0
      %4804 = vadd.xlane.f32.xlu0 %v4803
      %v4805 = vpop.xlane.xlu0 %4804
      %v4806 = vsel %vm4064, %v4776, 0.0
      %4807 = vadd.xlane.f32.xlu0 %v4806
      %v4808 = vpop.xlane.xlu0 %4807
      %v4809 = vsel %vm4064, %v4777, 0.0
      %4810 = vadd.xlane.f32.xlu0 %v4809
      %v4811 = vpop.xlane.xlu0 %4810
      %v4812 = vsel %vm4064, %v4778, 0.0
      %4813 = vadd.xlane.f32.xlu0 %v4812
      %v4814 = vpop.xlane.xlu0 %4813
      %v4815 = vsel %vm4064, %v4779, 0.0
      %4816 = vadd.xlane.f32.xlu0 %v4815
      %v4817 = vpop.xlane.xlu0 %4816
      %v4818 = vsel %vm4064, %v4780, 0.0
      %4819 = vadd.xlane.f32.xlu0 %v4818
      %v4820 = vpop.xlane.xlu0 %4819
      %v4821 = vsel %vm4064, %v4781, 0.0
      %4822 = vadd.xlane.f32.xlu0 %v4821
      %v4823 = vpop.xlane.xlu0 %4822
      %v4824 = vsel %vm4064, %v4782, 0.0
      %4825 = vadd.xlane.f32.xlu0 %v4824
      %v4826 = vpop.xlane.xlu0 %4825
      %v4827 = vsel %vm4064, %v4783, 0.0
      %4828 = vadd.xlane.f32.xlu0 %v4827
      %v4829 = vpop.xlane.xlu0 %4828
      %v4830 = vsel %vm4064, %v4784, 0.0
      %4831 = vadd.xlane.f32.xlu0 %v4830
      %v4832 = vpop.xlane.xlu0 %4831
      %v4833 = vmul.f32 %v4769, %v4769
      %v4834 = vmul.f32 %v4770, %v4770
      %v4835 = vmul.f32 %v4771, %v4771
      %v4836 = vmul.f32 %v4772, %v4772
      %v4837 = vmul.f32 %v4773, %v4773
      %v4838 = vmul.f32 %v4774, %v4774
      %v4839 = vmul.f32 %v4775, %v4775
      %v4840 = vmul.f32 %v4776, %v4776
      %v4841 = vmul.f32 %v4777, %v4777
      %v4842 = vmul.f32 %v4778, %v4778
      %v4843 = vmul.f32 %v4779, %v4779
      %v4844 = vmul.f32 %v4780, %v4780
      %v4845 = vmul.f32 %v4781, %v4781
      %v4846 = vmul.f32 %v4782, %v4782
      %v4847 = vmul.f32 %v4783, %v4783
      %v4848 = vmul.f32 %v4784, %v4784
      %v4849 = vsel %vm4064, %v4833, 0.0
      %4850 = vadd.xlane.f32.xlu0 %v4849
      %v4851 = vpop.xlane.xlu0 %4850
      %v4852 = vsel %vm4064, %v4834, 0.0
      %4853 = vadd.xlane.f32.xlu0 %v4852
      %v4854 = vpop.xlane.xlu0 %4853
      %v4855 = vsel %vm4064, %v4835, 0.0
      %4856 = vadd.xlane.f32.xlu0 %v4855
      %v4857 = vpop.xlane.xlu0 %4856
      %v4858 = vsel %vm4064, %v4836, 0.0
      %4859 = vadd.xlane.f32.xlu0 %v4858
      %v4860 = vpop.xlane.xlu0 %4859
      %v4861 = vsel %vm4064, %v4837, 0.0
      %4862 = vadd.xlane.f32.xlu0 %v4861
      %v4863 = vpop.xlane.xlu0 %4862
      %v4864 = vsel %vm4064, %v4838, 0.0
      %4865 = vadd.xlane.f32.xlu0 %v4864
      %v4866 = vpop.xlane.xlu0 %4865
      %v4867 = vsel %vm4064, %v4839, 0.0
      %4868 = vadd.xlane.f32.xlu0 %v4867
      %v4869 = vpop.xlane.xlu0 %4868
      %v4870 = vsel %vm4064, %v4840, 0.0
      %4871 = vadd.xlane.f32.xlu0 %v4870
      %v4872 = vpop.xlane.xlu0 %4871
      %v4873 = vsel %vm4064, %v4841, 0.0
      %4874 = vadd.xlane.f32.xlu0 %v4873
      %v4875 = vpop.xlane.xlu0 %4874
      %v4876 = vsel %vm4064, %v4842, 0.0
      %4877 = vadd.xlane.f32.xlu0 %v4876
      %v4878 = vpop.xlane.xlu0 %4877
      %v4879 = vsel %vm4064, %v4843, 0.0
      %4880 = vadd.xlane.f32.xlu0 %v4879
      %v4881 = vpop.xlane.xlu0 %4880
      %v4882 = vsel %vm4064, %v4844, 0.0
      %4883 = vadd.xlane.f32.xlu0 %v4882
      %v4884 = vpop.xlane.xlu0 %4883
      %v4885 = vsel %vm4064, %v4845, 0.0
      %4886 = vadd.xlane.f32.xlu0 %v4885
      %v4887 = vpop.xlane.xlu0 %4886
      %v4888 = vsel %vm4064, %v4846, 0.0
      %4889 = vadd.xlane.f32.xlu0 %v4888
      %v4890 = vpop.xlane.xlu0 %4889
      %v4891 = vsel %vm4064, %v4847, 0.0
      %4892 = vadd.xlane.f32.xlu0 %v4891
      %v4893 = vpop.xlane.xlu0 %4892
      %v4894 = vsel %vm4064, %v4848, 0.0
      %4895 = vadd.xlane.f32.xlu0 %v4894
      %v4896 = vpop.xlane.xlu0 %4895
      %v4897 = vsel %vm2809, %v4787, %v4851
      %v4898 = vsel %vm2809, %v4790, %v4854
      %v4899 = vsel %vm2809, %v4793, %v4857
      %v4900 = vsel %vm2809, %v4796, %v4860
      %v4901 = vsel %vm2809, %v4799, %v4863
      %v4902 = vsel %vm2809, %v4802, %v4866
      %v4903 = vsel %vm2809, %v4805, %v4869
      %v4904 = vsel %vm2809, %v4808, %v4872
      %v4905 = vsel %vm2809, %v4811, %v4875
      %v4906 = vsel %vm2809, %v4814, %v4878
      %v4907 = vsel %vm2809, %v4817, %v4881
      %v4908 = vsel %vm2809, %v4820, %v4884
      %v4909 = vsel %vm2809, %v4823, %v4887
      %v4910 = vsel %vm2809, %v4826, %v4890
      %v4911 = vsel %vm2809, %v4829, %v4893
      %v4912 = vsel %vm2809, %v4832, %v4896
      %4913 = vmatprep.subr.mxu0 0.0
      %4914 = vmatpush1.msra.mxu0 %v4897
      %4915 = vmatprep.subr.mxu0 0.0
      %4916 = vmatpush1.msra.mxu0 %v4898
      %4917 = vmatprep.subr.mxu0 0.0
      %4918 = vmatpush1.msra.mxu0 %v4899
      %4919 = vmatprep.subr.mxu0 0.0
      %4920 = vmatpush1.msra.mxu0 %v4900
      %4921 = vmatprep.subr.mxu0 0.0
      %4922 = vmatpush1.msra.mxu0 %v4901
      %4923 = vmatprep.subr.mxu0 0.0
      %4924 = vmatpush1.msra.mxu0 %v4902
      %4925 = vmatprep.subr.mxu0 0.0
      %4926 = vmatpush1.msra.mxu0 %v4903
      %4927 = vmatprep.subr.mxu0 0.0
      %4928 = vmatpush1.msra.mxu0 %v4904
      %4929 = vmatprep.subr.mxu0 0.0
      %4930 = vmatpush1.msra.mxu0 %v4905
      %4931 = vmatprep.subr.mxu0 0.0
      %4932 = vmatpush1.msra.mxu0 %v4906
      %4933 = vmatprep.subr.mxu0 0.0
      %4934 = vmatpush1.msra.mxu0 %v4907
      %4935 = vmatprep.subr.mxu0 0.0
      %4936 = vmatpush1.msra.mxu0 %v4908
      %4937 = vmatprep.subr.mxu0 0.0
      %4938 = vmatpush1.msra.mxu0 %v4909
      %4939 = vmatprep.subr.mxu0 0.0
      %4940 = vmatpush1.msra.mxu0 %v4910
      %4941 = vmatprep.subr.mxu0 0.0
      %4942 = vmatpush1.msra.mxu0 %v4911
      %4943 = vmatprep.subr.mxu0 0.0
      %4944 = vmatpush1.msra.mxu0 %v4912
      %4945 = vmatprep.subr.mxu0 0.0
      %4946 = vmatpush1.msra.mxu0 0.0
      %4947 = vmatprep.subr.mxu0 0.0
      %4948 = vmatpush1.msra.mxu0 0.0
      %4949 = vmatprep.subr.mxu0 0.0
      %4950 = vmatpush1.msra.mxu0 0.0
      %4951 = vmatprep.subr.mxu0 0.0
      %4952 = vmatpush1.msra.mxu0 0.0
      %4953 = vmatprep.subr.mxu0 0.0
      %4954 = vmatpush1.msra.mxu0 0.0
      %4955 = vmatprep.subr.mxu0 0.0
      %4956 = vmatpush1.msra.mxu0 0.0
      %4957 = vmatprep.subr.mxu0 0.0
      %4958 = vmatpush1.msra.mxu0 0.0
      %4959 = vmatprep.subr.mxu0 0.0
      %4960 = vmatpush1.msra.mxu0 0.0
      %4961 = vmatprep.subr.mxu0 0.0
      %4962 = vmatpush1.msra.mxu0 0.0
      %4963 = vmatprep.subr.mxu0 0.0
      %4964 = vmatpush1.msra.mxu0 0.0
      %4965 = vmatprep.subr.mxu0 0.0
      %4966 = vmatpush1.msra.mxu0 0.0
      %4967 = vmatprep.subr.mxu0 0.0
      %4968 = vmatpush1.msra.mxu0 0.0
      %4969 = vmatprep.subr.mxu0 0.0
      %4970 = vmatpush1.msra.mxu0 0.0
      %4971 = vmatprep.subr.mxu0 0.0
      %4972 = vmatpush1.msra.mxu0 0.0
      %4973 = vmatprep.subr.mxu0 0.0
      %4974 = vmatpush1.msra.mxu0 0.0
      %4975 = vmatprep.subr.mxu0 0.0
      %4976 = vmatpush1.msra.mxu0 0.0
      %4977 = vmatprep.mubr.f32.mxu0 0.0
      %4978 = vmatmul.mubr.f32.gmra.mrb[0].mxu0 %v1048
      %v4979 = vpop.f32.mrb[0].mxu0
      %v4980 = vadd.f32 0.0, %v4979
      %v4981 = vpop.f32.mrb[0].mxu0
      %4982 = vmatprep.mubr.f32.mxu0 0.0
      %4983 = vmatmul.mubr.f32.gmra.mrb[0].mxu0 %v1049
      %v4984 = vpop.f32.mrb[0].mxu0
      %v4985 = vadd.f32 0.0, %v4984
      %v4986 = vpop.f32.mrb[0].mxu0
      %4987 = vmatprep.mubr.f32.mxu0 0.0
      %4988 = vmatmul.mubr.f32.gmra.mrb[0].mxu0 %v1050
      %v4989 = vpop.f32.mrb[0].mxu0
      %v4990 = vadd.f32 0.0, %v4989
      %v4991 = vpop.f32.mrb[0].mxu0
      %4992 = vmatprep.mubr.f32.mxu0 0.0
      %4993 = vmatmul.mubr.f32.gmra.mrb[0].mxu0 %v1051
      %v4994 = vpop.f32.mrb[0].mxu0
      %v4995 = vadd.f32 0.0, %v4994
      %v4996 = vpop.f32.mrb[0].mxu0
      %4997 = vmatprep.mubr.f32.mxu0 0.0
      %4998 = vmatmul.mubr.f32.gmra.mrb[0].mxu0 %v1052
      %v4999 = vpop.f32.mrb[0].mxu0
      %v5000 = vadd.f32 0.0, %v4999
      %v5001 = vpop.f32.mrb[0].mxu0
      %5002 = vmatprep.mubr.f32.mxu0 0.0
      %5003 = vmatmul.mubr.f32.gmra.mrb[0].mxu0 %v1053
      %v5004 = vpop.f32.mrb[0].mxu0
      %v5005 = vadd.f32 0.0, %v5004
      %v5006 = vpop.f32.mrb[0].mxu0
      %5007 = vmatprep.mubr.f32.mxu0 0.0
      %5008 = vmatmul.mubr.f32.gmra.mrb[0].mxu0 %v1054
      %v5009 = vpop.f32.mrb[0].mxu0
      %v5010 = vadd.f32 0.0, %v5009
      %v5011 = vpop.f32.mrb[0].mxu0
      %5012 = vmatprep.mubr.f32.mxu0 0.0
      %5013 = vmatmul.mubr.f32.gmra.mrb[0].mxu0 %v1055
      %v5014 = vpop.f32.mrb[0].mxu0
      %v5015 = vadd.f32 0.0, %v5014
      %v5016 = vpop.f32.mrb[0].mxu0
      %5017 = vmatprep.mubr.f32.mxu0 0.0
      %5018 = vmatmul.mubr.f32.gmra.mrb[0].mxu0 %v1056
      %v5019 = vpop.f32.mrb[0].mxu0
      %v5020 = vadd.f32 0.0, %v5019
      %v5021 = vpop.f32.mrb[0].mxu0
      %5022 = vmatprep.mubr.f32.mxu0 0.0
      %5023 = vmatmul.mubr.f32.gmra.mrb[0].mxu0 %v1057
      %v5024 = vpop.f32.mrb[0].mxu0
      %v5025 = vadd.f32 0.0, %v5024
      %v5026 = vpop.f32.mrb[0].mxu0
      %5027 = vmatprep.mubr.f32.mxu0 0.0
      %5028 = vmatmul.mubr.f32.gmra.mrb[0].mxu0 %v1058
      %v5029 = vpop.f32.mrb[0].mxu0
      %v5030 = vadd.f32 0.0, %v5029
      %v5031 = vpop.f32.mrb[0].mxu0
      %5032 = vmatprep.mubr.f32.mxu0 0.0
      %5033 = vmatmul.mubr.f32.gmra.mrb[0].mxu0 %v1059
      %v5034 = vpop.f32.mrb[0].mxu0
      %v5035 = vadd.f32 0.0, %v5034
      %v5036 = vpop.f32.mrb[0].mxu0
      %5037 = vmatprep.mubr.f32.mxu0 0.0
      %5038 = vmatmul.mubr.f32.gmra.mrb[0].mxu0 %v1060
      %v5039 = vpop.f32.mrb[0].mxu0
      %v5040 = vadd.f32 0.0, %v5039
      %v5041 = vpop.f32.mrb[0].mxu0
      %5042 = vmatprep.mubr.f32.mxu0 0.0
      %5043 = vmatmul.mubr.f32.gmra.mrb[0].mxu0 %v1061
      %v5044 = vpop.f32.mrb[0].mxu0
      %v5045 = vadd.f32 0.0, %v5044
      %v5046 = vpop.f32.mrb[0].mxu0
      %5047 = vmatprep.mubr.f32.mxu0 0.0
      %5048 = vmatmul.mubr.f32.gmra.mrb[0].mxu0 %v1062
      %v5049 = vpop.f32.mrb[0].mxu0
      %v5050 = vadd.f32 0.0, %v5049
      %v5051 = vpop.f32.mrb[0].mxu0
      %5052 = vmatprep.mubr.f32.mxu0 0.0
      %5053 = vmatmul.mubr.f32.gmra.mrb[0].mxu0 %v1063
      %v5054 = vpop.f32.mrb[0].mxu0
      %v5055 = vadd.f32 0.0, %v5054
      %v5056 = vpop.f32.mrb[0].mxu0
      %5057 = vdwg.mxu0
      %v5058 = vmul.f32 %v4980, 0.0013020834
      %v5059 = vmul.f32 %v4985, 0.0013020834
      %v5060 = vmul.f32 %v4990, 0.0013020834
      %v5061 = vmul.f32 %v4995, 0.0013020834
      %v5062 = vmul.f32 %v5000, 0.0013020834
      %v5063 = vmul.f32 %v5005, 0.0013020834
      %v5064 = vmul.f32 %v5010, 0.0013020834
      %v5065 = vmul.f32 %v5015, 0.0013020834
      %v5066 = vmul.f32 %v5020, 0.0013020834
      %v5067 = vmul.f32 %v5025, 0.0013020834
      %v5068 = vmul.f32 %v5030, 0.0013020834
      %v5069 = vmul.f32 %v5035, 0.0013020834
      %v5070 = vmul.f32 %v5040, 0.0013020834
      %v5071 = vmul.f32 %v5045, 0.0013020834
      %v5072 = vmul.f32 %v5050, 0.0013020834
      %v5073 = vmul.f32 %v5055, 0.0013020834
      %v5074 = vmul.f32 %v5058, %v5058
      %v5075 = vmul.f32 %v5059, %v5059
      %v5076 = vmul.f32 %v5060, %v5060
      %v5077 = vmul.f32 %v5061, %v5061
      %v5078 = vmul.f32 %v5062, %v5062
      %v5079 = vmul.f32 %v5063, %v5063
      %v5080 = vmul.f32 %v5064, %v5064
      %v5081 = vmul.f32 %v5065, %v5065
      %v5082 = vmul.f32 %v5066, %v5066
      %v5083 = vmul.f32 %v5067, %v5067
      %v5084 = vmul.f32 %v5068, %v5068
      %v5085 = vmul.f32 %v5069, %v5069
      %v5086 = vmul.f32 %v5070, %v5070
      %v5087 = vmul.f32 %v5071, %v5071
      %v5088 = vmul.f32 %v5072, %v5072
      %v5089 = vmul.f32 %v5073, %v5073
      %5106 = vrot.lane.b32.xlu0 %v5074, 1
      %v5107 = vpop.permute.xlu0 %5106
      %5108 = vrot.lane.b32.xlu0 %v5075, 1
      %v5109 = vpop.permute.xlu0 %5108
      %5110 = vrot.lane.b32.xlu0 %v5076, 1
      %v5111 = vpop.permute.xlu0 %5110
      %5112 = vrot.lane.b32.xlu0 %v5077, 1
      %v5113 = vpop.permute.xlu0 %5112
      %5114 = vrot.lane.b32.xlu0 %v5078, 1
      %v5115 = vpop.permute.xlu0 %5114
      %5116 = vrot.lane.b32.xlu0 %v5079, 1
      %v5117 = vpop.permute.xlu0 %5116
      %5118 = vrot.lane.b32.xlu0 %v5080, 1
      %v5119 = vpop.permute.xlu0 %5118
      %5120 = vrot.lane.b32.xlu0 %v5081, 1
      %v5121 = vpop.permute.xlu0 %5120
      %5122 = vrot.lane.b32.xlu0 %v5082, 1
      %v5123 = vpop.permute.xlu0 %5122
      %5124 = vrot.lane.b32.xlu0 %v5083, 1
      %v5125 = vpop.permute.xlu0 %5124
      %5126 = vrot.lane.b32.xlu0 %v5084, 1
      %v5127 = vpop.permute.xlu0 %5126
      %5128 = vrot.lane.b32.xlu0 %v5085, 1
      %v5129 = vpop.permute.xlu0 %5128
      %5130 = vrot.lane.b32.xlu0 %v5086, 1
      %v5131 = vpop.permute.xlu0 %5130
      %5132 = vrot.lane.b32.xlu0 %v5087, 1
      %v5133 = vpop.permute.xlu0 %5132
      %5134 = vrot.lane.b32.xlu0 %v5088, 1
      %v5135 = vpop.permute.xlu0 %5134
      %5136 = vrot.lane.b32.xlu0 %v5089, 1
      %v5137 = vpop.permute.xlu0 %5136
      %v5154 = vsub.f32 %v5058, %v5107
      %v5155 = vsub.f32 %v5059, %v5109
      %v5156 = vsub.f32 %v5060, %v5111
      %v5157 = vsub.f32 %v5061, %v5113
      %v5158 = vsub.f32 %v5062, %v5115
      %v5159 = vsub.f32 %v5063, %v5117
      %v5160 = vsub.f32 %v5064, %v5119
      %v5161 = vsub.f32 %v5065, %v5121
      %v5162 = vsub.f32 %v5066, %v5123
      %v5163 = vsub.f32 %v5067, %v5125
      %v5164 = vsub.f32 %v5068, %v5127
      %v5165 = vsub.f32 %v5069, %v5129
      %v5166 = vsub.f32 %v5070, %v5131
      %v5167 = vsub.f32 %v5071, %v5133
      %v5168 = vsub.f32 %v5072, %v5135
      %v5169 = vsub.f32 %v5073, %v5137
      %v5170 = vmax.f32 %v5154, 0.0
      %v5171 = vmax.f32 %v5155, 0.0
      %v5172 = vmax.f32 %v5156, 0.0
      %v5173 = vmax.f32 %v5157, 0.0
      %v5174 = vmax.f32 %v5158, 0.0
      %v5175 = vmax.f32 %v5159, 0.0
      %v5176 = vmax.f32 %v5160, 0.0
      %v5177 = vmax.f32 %v5161, 0.0
      %v5178 = vmax.f32 %v5162, 0.0
      %v5179 = vmax.f32 %v5163, 0.0
      %v5180 = vmax.f32 %v5164, 0.0
      %v5181 = vmax.f32 %v5165, 0.0
      %v5182 = vmax.f32 %v5166, 0.0
      %v5183 = vmax.f32 %v5167, 0.0
      %v5184 = vmax.f32 %v5168, 0.0
      %v5185 = vmax.f32 %v5169, 0.0
      %5187 = vset.pattern.permute.xlu0 0
      %5188 = vperm.xlu0 %5187, %v5058
      %v5189 = vpop.permute.xlu0 %5188
      %5192 = vset.pattern.permute.xlu0 0
      %5193 = vperm.xlu0 %5192, %v5059
      %v5194 = vpop.permute.xlu0 %5193
      %5197 = vset.pattern.permute.xlu0 0
      %5198 = vperm.xlu0 %5197, %v5060
      %v5199 = vpop.permute.xlu0 %5198
      %5202 = vset.pattern.permute.xlu0 0
      %5203 = vperm.xlu0 %5202, %v5061
      %v5204 = vpop.permute.xlu0 %5203
      %5207 = vset.pattern.permute.xlu0 0
      %5208 = vperm.xlu0 %5207, %v5062
      %v5209 = vpop.permute.xlu0 %5208
      %5212 = vset.pattern.permute.xlu0 0
      %5213 = vperm.xlu0 %5212, %v5063
      %v5214 = vpop.permute.xlu0 %5213
      %5217 = vset.pattern.permute.xlu0 0
      %5218 = vperm.xlu0 %5217, %v5064
      %v5219 = vpop.permute.xlu0 %5218
      %5222 = vset.pattern.permute.xlu0 0
      %5223 = vperm.xlu0 %5222, %v5065
      %v5224 = vpop.permute.xlu0 %5223
      %5227 = vset.pattern.permute.xlu0 0
      %5228 = vperm.xlu0 %5227, %v5066
      %v5229 = vpop.permute.xlu0 %5228
      %5232 = vset.pattern.permute.xlu0 0
      %5233 = vperm.xlu0 %5232, %v5067
      %v5234 = vpop.permute.xlu0 %5233
      %5237 = vset.pattern.permute.xlu0 0
      %5238 = vperm.xlu0 %5237, %v5068
      %v5239 = vpop.permute.xlu0 %5238
      %5242 = vset.pattern.permute.xlu0 0
      %5243 = vperm.xlu0 %5242, %v5069
      %v5244 = vpop.permute.xlu0 %5243
      %5247 = vset.pattern.permute.xlu0 0
      %5248 = vperm.xlu0 %5247, %v5070
      %v5249 = vpop.permute.xlu0 %5248
      %5252 = vset.pattern.permute.xlu0 0
      %5253 = vperm.xlu0 %5252, %v5071
      %v5254 = vpop.permute.xlu0 %5253
      %5257 = vset.pattern.permute.xlu0 0
      %5258 = vperm.xlu0 %5257, %v5072
      %v5259 = vpop.permute.xlu0 %5258
      %5262 = vset.pattern.permute.xlu0 0
      %5263 = vperm.xlu0 %5262, %v5073
      %v5264 = vpop.permute.xlu0 %5263
      %v5266 = vsub.f32 %v4769, %v5189
      %v5267 = vsub.f32 %v4770, %v5194
      %v5268 = vsub.f32 %v4771, %v5199
      %v5269 = vsub.f32 %v4772, %v5204
      %v5270 = vsub.f32 %v4773, %v5209
      %v5271 = vsub.f32 %v4774, %v5214
      %v5272 = vsub.f32 %v4775, %v5219
      %v5273 = vsub.f32 %v4776, %v5224
      %v5274 = vsub.f32 %v4777, %v5229
      %v5275 = vsub.f32 %v4778, %v5234
      %v5276 = vsub.f32 %v4779, %v5239
      %v5277 = vsub.f32 %v4780, %v5244
      %v5278 = vsub.f32 %v4781, %v5249
      %v5279 = vsub.f32 %v4782, %v5254
      %v5280 = vsub.f32 %v4783, %v5259
      %v5281 = vsub.f32 %v4784, %v5264
      %v5282 = vadd.f32 %v5170, 1e-05
      %v5283 = vadd.f32 %v5171, 1e-05
      %v5284 = vadd.f32 %v5172, 1e-05
      %v5285 = vadd.f32 %v5173, 1e-05
      %v5286 = vadd.f32 %v5174, 1e-05
      %v5287 = vadd.f32 %v5175, 1e-05
      %v5288 = vadd.f32 %v5176, 1e-05
      %v5289 = vadd.f32 %v5177, 1e-05
      %v5290 = vadd.f32 %v5178, 1e-05
      %v5291 = vadd.f32 %v5179, 1e-05
      %v5292 = vadd.f32 %v5180, 1e-05
      %v5293 = vadd.f32 %v5181, 1e-05
      %v5294 = vadd.f32 %v5182, 1e-05
      %v5295 = vadd.f32 %v5183, 1e-05
      %v5296 = vadd.f32 %v5184, 1e-05
      %v5297 = vadd.f32 %v5185, 1e-05
      %v5298 = vrsqrt.pop %v5282
      %v5299 = vrsqrt.pop %v5283
      %v5300 = vrsqrt.pop %v5284
      %v5301 = vrsqrt.pop %v5285
      %v5302 = vrsqrt.pop %v5286
      %v5303 = vrsqrt.pop %v5287
      %v5304 = vrsqrt.pop %v5288
      %v5305 = vrsqrt.pop %v5289
      %v5306 = vrsqrt.pop %v5290
      %v5307 = vrsqrt.pop %v5291
      %v5308 = vrsqrt.pop %v5292
      %v5309 = vrsqrt.pop %v5293
      %v5310 = vrsqrt.pop %v5294
      %v5311 = vrsqrt.pop %v5295
      %v5312 = vrsqrt.pop %v5296
      %v5313 = vrsqrt.pop %v5297
      %5315 = vset.pattern.permute.xlu0 1
      %5316 = vperm.xlu0 %5315, %v5298
      %v5317 = vpop.permute.xlu0 %5316
      %5320 = vset.pattern.permute.xlu0 1
      %5321 = vperm.xlu0 %5320, %v5299
      %v5322 = vpop.permute.xlu0 %5321
      %5325 = vset.pattern.permute.xlu0 1
      %5326 = vperm.xlu0 %5325, %v5300
      %v5327 = vpop.permute.xlu0 %5326
      %5330 = vset.pattern.permute.xlu0 1
      %5331 = vperm.xlu0 %5330, %v5301
      %v5332 = vpop.permute.xlu0 %5331
      %5335 = vset.pattern.permute.xlu0 1
      %5336 = vperm.xlu0 %5335, %v5302
      %v5337 = vpop.permute.xlu0 %5336
      %5340 = vset.pattern.permute.xlu0 1
      %5341 = vperm.xlu0 %5340, %v5303
      %v5342 = vpop.permute.xlu0 %5341
      %5345 = vset.pattern.permute.xlu0 1
      %5346 = vperm.xlu0 %5345, %v5304
      %v5347 = vpop.permute.xlu0 %5346
      %5350 = vset.pattern.permute.xlu0 1
      %5351 = vperm.xlu0 %5350, %v5305
      %v5352 = vpop.permute.xlu0 %5351
      %5355 = vset.pattern.permute.xlu0 1
      %5356 = vperm.xlu0 %5355, %v5306
      %v5357 = vpop.permute.xlu0 %5356
      %5360 = vset.pattern.permute.xlu0 1
      %5361 = vperm.xlu0 %5360, %v5307
      %v5362 = vpop.permute.xlu0 %5361
      %5365 = vset.pattern.permute.xlu0 1
      %5366 = vperm.xlu0 %5365, %v5308
      %v5367 = vpop.permute.xlu0 %5366
      %5370 = vset.pattern.permute.xlu0 1
      %5371 = vperm.xlu0 %5370, %v5309
      %v5372 = vpop.permute.xlu0 %5371
      %5375 = vset.pattern.permute.xlu0 1
      %5376 = vperm.xlu0 %5375, %v5310
      %v5377 = vpop.permute.xlu0 %5376
      %5380 = vset.pattern.permute.xlu0 1
      %5381 = vperm.xlu0 %5380, %v5311
      %v5382 = vpop.permute.xlu0 %5381
      %5385 = vset.pattern.permute.xlu0 1
      %5386 = vperm.xlu0 %5385, %v5312
      %v5387 = vpop.permute.xlu0 %5386
      %5390 = vset.pattern.permute.xlu0 1
      %5391 = vperm.xlu0 %5390, %v5313
      %v5392 = vpop.permute.xlu0 %5391
      %v5394 = vmul.f32 %v5266, %v5317
      %v5395 = vmul.f32 %v5267, %v5322
      %v5396 = vmul.f32 %v5268, %v5327
      %v5397 = vmul.f32 %v5269, %v5332
      %v5398 = vmul.f32 %v5270, %v5337
      %v5399 = vmul.f32 %v5271, %v5342
      %v5400 = vmul.f32 %v5272, %v5347
      %v5401 = vmul.f32 %v5273, %v5352
      %v5402 = vmul.f32 %v5274, %v5357
      %v5403 = vmul.f32 %v5275, %v5362
      %v5404 = vmul.f32 %v5276, %v5367
      %v5405 = vmul.f32 %v5277, %v5372
      %v5406 = vmul.f32 %v5278, %v5377
      %v5407 = vmul.f32 %v5279, %v5382
      %v5408 = vmul.f32 %v5280, %v5387
      %v5409 = vmul.f32 %v5281, %v5392
      %s5410 = scalar_lea.vmem %s12, 256
      %v5411 = vld [vmem:[%s5410] sm:$0xff]
      %v5412 = vld [vmem:[%s5410 + $0x10] sm:$0xff]
      %v5413 = vld [vmem:[%s5410 + $0x20] sm:$0xff]
      %v5414 = vld [vmem:[%s5410 + $0x30] sm:$0xff]
      %v5415 = vld [vmem:[%s5410 + $0x40] sm:$0xff]
      %v5416 = vld [vmem:[%s5410 + $0x50] sm:$0xff]
      %v5417 = vld [vmem:[%s5410 + $0x60] sm:$0xff]
      %v5418 = vld [vmem:[%s5410 + $0x70] sm:$0xff]
      %v5419 = vld [vmem:[%s5410 + $0x80] sm:$0xff]
      %v5420 = vld [vmem:[%s5410 + $0x90] sm:$0xff]
      %v5421 = vld [vmem:[%s5410 + $0xa0] sm:$0xff]
      %v5422 = vld [vmem:[%s5410 + $0xb0] sm:$0xff]
      %v5423 = vld [vmem:[%s5410 + $0xc0] sm:$0xff]
      %v5424 = vld [vmem:[%s5410 + $0xd0] sm:$0xff]
      %v5425 = vld [vmem:[%s5410 + $0xe0] sm:$0xff]
      %v5426 = vld [vmem:[%s5410 + $0xf0] sm:$0xff]
      %v5427 = vmul.f32 %v5394, %v5411
      %v5428 = vmul.f32 %v5395, %v5412
      %v5429 = vmul.f32 %v5396, %v5413
      %v5430 = vmul.f32 %v5397, %v5414
      %v5431 = vmul.f32 %v5398, %v5415
      %v5432 = vmul.f32 %v5399, %v5416
      %v5433 = vmul.f32 %v5400, %v5417
      %v5434 = vmul.f32 %v5401, %v5418
      %v5435 = vmul.f32 %v5402, %v5419
      %v5436 = vmul.f32 %v5403, %v5420
      %v5437 = vmul.f32 %v5404, %v5421
      %v5438 = vmul.f32 %v5405, %v5422
      %v5439 = vmul.f32 %v5406, %v5423
      %v5440 = vmul.f32 %v5407, %v5424
      %v5441 = vmul.f32 %v5408, %v5425
      %v5442 = vmul.f32 %v5409, %v5426
      %s5443 = scalar_lea.vmem %s13, 256
      %v5444 = vld [vmem:[%s5443] sm:$0xff]
      %v5445 = vld [vmem:[%s5443 + $0x10] sm:$0xff]
      %v5446 = vld [vmem:[%s5443 + $0x20] sm:$0xff]
      %v5447 = vld [vmem:[%s5443 + $0x30] sm:$0xff]
      %v5448 = vld [vmem:[%s5443 + $0x40] sm:$0xff]
      %v5449 = vld [vmem:[%s5443 + $0x50] sm:$0xff]
      %v5450 = vld [vmem:[%s5443 + $0x60] sm:$0xff]
      %v5451 = vld [vmem:[%s5443 + $0x70] sm:$0xff]
      %v5452 = vld [vmem:[%s5443 + $0x80] sm:$0xff]
      %v5453 = vld [vmem:[%s5443 + $0x90] sm:$0xff]
      %v5454 = vld [vmem:[%s5443 + $0xa0] sm:$0xff]
      %v5455 = vld [vmem:[%s5443 + $0xb0] sm:$0xff]
      %v5456 = vld [vmem:[%s5443 + $0xc0] sm:$0xff]
      %v5457 = vld [vmem:[%s5443 + $0xd0] sm:$0xff]
      %v5458 = vld [vmem:[%s5443 + $0xe0] sm:$0xff]
      %v5459 = vld [vmem:[%s5443 + $0xf0] sm:$0xff]
      %v5460 = vadd.f32 %v5427, %v5444
      %v5461 = vadd.f32 %v5428, %v5445
      %v5462 = vadd.f32 %v5429, %v5446
      %v5463 = vadd.f32 %v5430, %v5447
      %v5464 = vadd.f32 %v5431, %v5448
      %v5465 = vadd.f32 %v5432, %v5449
      %v5466 = vadd.f32 %v5433, %v5450
      %v5467 = vadd.f32 %v5434, %v5451
      %v5468 = vadd.f32 %v5435, %v5452
      %v5469 = vadd.f32 %v5436, %v5453
      %v5470 = vadd.f32 %v5437, %v5454
      %v5471 = vadd.f32 %v5438, %v5455
      %v5472 = vadd.f32 %v5439, %v5456
      %v5473 = vadd.f32 %v5440, %v5457
      %v5474 = vadd.f32 %v5441, %v5458
      %v5475 = vadd.f32 %v5442, %v5459
      %s5476 = scalar_lea.vmem %s5, 2048
      %v5477 = vld [vmem:[%s5476] sm:$0xff]
      %v5478 = vld [vmem:[%s5476 + $0x8] sm:$0xff]
      %v5479 = vld [vmem:[%s5476 + $0x10] sm:$0xff]
      %v5480 = vld [vmem:[%s5476 + $0x18] sm:$0xff]
      %v5481 = vld [vmem:[%s5476 + $0x20] sm:$0xff]
      %v5482 = vld [vmem:[%s5476 + $0x28] sm:$0xff]
      %v5483 = vld [vmem:[%s5476 + $0x30] sm:$0xff]
      %v5484 = vld [vmem:[%s5476 + $0x38] sm:$0xff]
      %v5485 = vld [vmem:[%s5476 + $0x40] sm:$0xff]
      %v5486 = vld [vmem:[%s5476 + $0x48] sm:$0xff]
      %v5487 = vld [vmem:[%s5476 + $0x50] sm:$0xff]
      %v5488 = vld [vmem:[%s5476 + $0x58] sm:$0xff]
      %v5489 = vld [vmem:[%s5476 + $0x60] sm:$0xff]
      %v5490 = vld [vmem:[%s5476 + $0x68] sm:$0xff]
      %v5491 = vld [vmem:[%s5476 + $0x70] sm:$0xff]
      %v5492 = vld [vmem:[%s5476 + $0x78] sm:$0xff]
      %v5493 = vld [vmem:[%s5476 + $0x80] sm:$0xff]
      %v5494 = vld [vmem:[%s5476 + $0x88] sm:$0xff]
      %v5495 = vld [vmem:[%s5476 + $0x90] sm:$0xff]
      %v5496 = vld [vmem:[%s5476 + $0x98] sm:$0xff]
      %v5497 = vld [vmem:[%s5476 + $0xa0] sm:$0xff]
      %v5498 = vld [vmem:[%s5476 + $0xa8] sm:$0xff]
      %v5499 = vld [vmem:[%s5476 + $0xb0] sm:$0xff]
      %v5500 = vld [vmem:[%s5476 + $0xb8] sm:$0xff]
      %v5501 = vld [vmem:[%s5476 + $0xc0] sm:$0xff]
      %v5502 = vld [vmem:[%s5476 + $0xc8] sm:$0xff]
      %v5503 = vld [vmem:[%s5476 + $0xd0] sm:$0xff]
      %v5504 = vld [vmem:[%s5476 + $0xd8] sm:$0xff]
      %v5505 = vld [vmem:[%s5476 + $0xe0] sm:$0xff]
      %v5506 = vld [vmem:[%s5476 + $0xe8] sm:$0xff]
      %v5507 = vld [vmem:[%s5476 + $0xf0] sm:$0xff]
      %v5508 = vld [vmem:[%s5476 + $0xf8] sm:$0xff]
      %v5509 = vld [vmem:[%s5476 + $0x100] sm:$0xff]
      %v5510 = vld [vmem:[%s5476 + $0x108] sm:$0xff]
      %v5511 = vld [vmem:[%s5476 + $0x110] sm:$0xff]
      %v5512 = vld [vmem:[%s5476 + $0x118] sm:$0xff]
      %v5513 = vld [vmem:[%s5476 + $0x120] sm:$0xff]
      %v5514 = vld [vmem:[%s5476 + $0x128] sm:$0xff]
      %v5515 = vld [vmem:[%s5476 + $0x130] sm:$0xff]
      %v5516 = vld [vmem:[%s5476 + $0x138] sm:$0xff]
      %v5517 = vld [vmem:[%s5476 + $0x140] sm:$0xff]
      %v5518 = vld [vmem:[%s5476 + $0x148] sm:$0xff]
      %v5519 = vld [vmem:[%s5476 + $0x150] sm:$0xff]
      %v5520 = vld [vmem:[%s5476 + $0x158] sm:$0xff]
      %v5521 = vld [vmem:[%s5476 + $0x160] sm:$0xff]
      %v5522 = vld [vmem:[%s5476 + $0x168] sm:$0xff]
      %v5523 = vld [vmem:[%s5476 + $0x170] sm:$0xff]
      %v5524 = vld [vmem:[%s5476 + $0x178] sm:$0xff]
      %s5525 = scalar_lea.vmem %s6, 8
      %v5526 = vld [vmem:[%s5525] sm:$0xf]
      %v5528 = vlaneseq
      %v5529 = vshrl.u32 %v5528, 7
      %v5530 = vsub.s32 0, %v5529
      %v5531 = vrot.slane %v5526, %v5530
      %v5532 = vlaneseq
      %v5533 = vshrl.u32 %v5532, 7
      %v5534 = vsub.s32 2, %v5533
      %v5535 = vrot.slane %v5526, %v5534
      %v5539 = vsel %vm4064, %v5460, 0
      %v5542 = vsel %vm4064, %v5461, 0
      %v5545 = vsel %vm4064, %v5462, 0
      %v5548 = vsel %vm4064, %v5463, 0
      %v5551 = vsel %vm4064, %v5464, 0
      %v5554 = vsel %vm4064, %v5465, 0
      %v5557 = vsel %vm4064, %v5466, 0
      %v5560 = vsel %vm4064, %v5467, 0
      %v5563 = vsel %vm4064, %v5468, 0
      %v5566 = vsel %vm4064, %v5469, 0
      %v5569 = vsel %vm4064, %v5470, 0
      %v5572 = vsel %vm4064, %v5471, 0
      %v5575 = vsel %vm4064, %v5472, 0
      %v5578 = vsel %vm4064, %v5473, 0
      %v5581 = vsel %vm4064, %v5474, 0
      %v5584 = vsel %vm4064, %v5475, 0
      %5586 = vmatprep.subr.mxu0 %v5478
      %5587 = vmatpush1.msra.mxu0 %v5477
      %5588 = vmatprep.subr.mxu0 %v5482
      %5589 = vmatpush1.msra.mxu0 %v5481
      %5590 = vmatprep.subr.mxu0 %v5486
      %5591 = vmatpush1.msra.mxu0 %v5485
      %5592 = vmatprep.subr.mxu0 %v5490
      %5593 = vmatpush1.msra.mxu0 %v5489
      %5594 = vmatprep.subr.mxu0 %v5494
      %5595 = vmatpush1.msra.mxu0 %v5493
      %5596 = vmatprep.subr.mxu0 %v5498
      %5597 = vmatpush1.msra.mxu0 %v5497
      %5598 = vmatprep.subr.mxu0 %v5502
      %5599 = vmatpush1.msra.mxu0 %v5501
      %5600 = vmatprep.subr.mxu0 %v5506
      %5601 = vmatpush1.msra.mxu0 %v5505
      %5602 = vmatprep.subr.mxu0 %v5510
      %5603 = vmatpush1.msra.mxu0 %v5509
      %5604 = vmatprep.subr.mxu0 %v5514
      %5605 = vmatpush1.msra.mxu0 %v5513
      %5606 = vmatprep.subr.mxu0 %v5518
      %5607 = vmatpush1.msra.mxu0 %v5517
      %5608 = vmatprep.subr.mxu0 %v5522
      %5609 = vmatpush1.msra.mxu0 %v5521
      %5610 = vmatprep.subr.mxu0 0.0
      %5611 = vmatpush1.msra.mxu0 0.0
      %5612 = vmatprep.subr.mxu0 0.0
      %5613 = vmatpush1.msra.mxu0 0.0
      %5614 = vmatprep.subr.mxu0 0.0
      %5615 = vmatpush1.msra.mxu0 0.0
      %5616 = vmatprep.subr.mxu0 0.0
      %5617 = vmatpush1.msra.mxu0 0.0
      %5618 = vmatprep.subr.mxu0 0.0
      %5619 = vmatpush1.msra.mxu0 0.0
      %5620 = vmatprep.subr.mxu0 0.0
      %5621 = vmatpush1.msra.mxu0 0.0
      %5622 = vmatprep.subr.mxu0 0.0
      %5623 = vmatpush1.msra.mxu0 0.0
      %5624 = vmatprep.subr.mxu0 0.0
      %5625 = vmatpush1.msra.mxu0 0.0
      %5626 = vmatprep.subr.mxu0 0.0
      %5627 = vmatpush1.msra.mxu0 0.0
      %5628 = vmatprep.subr.mxu0 0.0
      %5629 = vmatpush1.msra.mxu0 0.0
      %5630 = vmatprep.subr.mxu0 0.0
      %5631 = vmatpush1.msra.mxu0 0.0
      %5632 = vmatprep.subr.mxu0 0.0
      %5633 = vmatpush1.msra.mxu0 0.0
      %5634 = vmatprep.subr.mxu0 0.0
      %5635 = vmatpush1.msra.mxu0 0.0
      %5636 = vmatprep.subr.mxu0 0.0
      %5637 = vmatpush1.msra.mxu0 0.0
      %5638 = vmatprep.subr.mxu0 0.0
      %5639 = vmatpush1.msra.mxu0 0.0
      %5640 = vmatprep.subr.mxu0 0.0
      %5641 = vmatpush1.msra.mxu0 0.0
      %5642 = vmatprep.subr.mxu0 0.0
      %5643 = vmatpush1.msra.mxu0 0.0
      %5644 = vmatprep.subr.mxu0 0.0
      %5645 = vmatpush1.msra.mxu0 0.0
      %5646 = vmatprep.subr.mxu0 0.0
      %5647 = vmatpush1.msra.mxu0 0.0
      %5648 = vmatprep.subr.mxu0 0.0
      %5649 = vmatpush1.msra.mxu0 0.0
      %5650 = vmatprep.mubr.f32.mxu0 0.0
      %5651 = vmatmul.mubr.f32.gmra.mrb[0].mxu0 %v5539
      %v5652 = vpop.f32.mrb[0].mxu0
      %v5653 = vadd.f32 %v5531, %v5652
      %v5654 = vpop.f32.mrb[0].mxu0
      %5655 = vmatprep.mubr.f32.mxu0 0.0
      %5656 = vmatmul.mubr.f32.gmra.mrb[0].mxu0 %v5542
      %v5657 = vpop.f32.mrb[0].mxu0
      %v5658 = vadd.f32 %v5531, %v5657
      %v5659 = vpop.f32.mrb[0].mxu0
      %5660 = vmatprep.mubr.f32.mxu0 0.0
      %5661 = vmatmul.mubr.f32.gmra.mrb[0].mxu0 %v5545
      %v5662 = vpop.f32.mrb[0].mxu0
      %v5663 = vadd.f32 %v5531, %v5662
      %v5664 = vpop.f32.mrb[0].mxu0
      %5665 = vmatprep.mubr.f32.mxu0 0.0
      %5666 = vmatmul.mubr.f32.gmra.mrb[0].mxu0 %v5548
      %v5667 = vpop.f32.mrb[0].mxu0
      %v5668 = vadd.f32 %v5531, %v5667
      %v5669 = vpop.f32.mrb[0].mxu0
      %5670 = vmatprep.mubr.f32.mxu0 0.0
      %5671 = vmatmul.mubr.f32.gmra.mrb[0].mxu0 %v5551
      %v5672 = vpop.f32.mrb[0].mxu0
      %v5673 = vadd.f32 %v5531, %v5672
      %v5674 = vpop.f32.mrb[0].mxu0
      %5675 = vmatprep.mubr.f32.mxu0 0.0
      %5676 = vmatmul.mubr.f32.gmra.mrb[0].mxu0 %v5554
      %v5677 = vpop.f32.mrb[0].mxu0
      %v5678 = vadd.f32 %v5531, %v5677
      %v5679 = vpop.f32.mrb[0].mxu0
      %5680 = vmatprep.mubr.f32.mxu0 0.0
      %5681 = vmatmul.mubr.f32.gmra.mrb[0].mxu0 %v5557
      %v5682 = vpop.f32.mrb[0].mxu0
      %v5683 = vadd.f32 %v5531, %v5682
      %v5684 = vpop.f32.mrb[0].mxu0
      %5685 = vmatprep.mubr.f32.mxu0 0.0
      %5686 = vmatmul.mubr.f32.gmra.mrb[0].mxu0 %v5560
      %v5687 = vpop.f32.mrb[0].mxu0
      %v5688 = vadd.f32 %v5531, %v5687
      %v5689 = vpop.f32.mrb[0].mxu0
      %5690 = vmatprep.mubr.f32.mxu0 0.0
      %5691 = vmatmul.mubr.f32.gmra.mrb[0].mxu0 %v5563
      %v5692 = vpop.f32.mrb[0].mxu0
      %v5693 = vadd.f32 %v5531, %v5692
      %v5694 = vpop.f32.mrb[0].mxu0
      %5695 = vmatprep.mubr.f32.mxu0 0.0
      %5696 = vmatmul.mubr.f32.gmra.mrb[0].mxu0 %v5566
      %v5697 = vpop.f32.mrb[0].mxu0
      %v5698 = vadd.f32 %v5531, %v5697
      %v5699 = vpop.f32.mrb[0].mxu0
      %5700 = vmatprep.mubr.f32.mxu0 0.0
      %5701 = vmatmul.mubr.f32.gmra.mrb[0].mxu0 %v5569
      %v5702 = vpop.f32.mrb[0].mxu0
      %v5703 = vadd.f32 %v5531, %v5702
      %v5704 = vpop.f32.mrb[0].mxu0
      %5705 = vmatprep.mubr.f32.mxu0 0.0
      %5706 = vmatmul.mubr.f32.gmra.mrb[0].mxu0 %v5572
      %v5707 = vpop.f32.mrb[0].mxu0
      %v5708 = vadd.f32 %v5531, %v5707
      %v5709 = vpop.f32.mrb[0].mxu0
      %5710 = vmatprep.mubr.f32.mxu0 0.0
      %5711 = vmatmul.mubr.f32.gmra.mrb[0].mxu0 %v5575
      %v5712 = vpop.f32.mrb[0].mxu0
      %v5713 = vadd.f32 %v5531, %v5712
      %v5714 = vpop.f32.mrb[0].mxu0
      %5715 = vmatprep.mubr.f32.mxu0 0.0
      %5716 = vmatmul.mubr.f32.gmra.mrb[0].mxu0 %v5578
      %v5717 = vpop.f32.mrb[0].mxu0
      %v5718 = vadd.f32 %v5531, %v5717
      %v5719 = vpop.f32.mrb[0].mxu0
      %5720 = vmatprep.mubr.f32.mxu0 0.0
      %5721 = vmatmul.mubr.f32.gmra.mrb[0].mxu0 %v5581
      %v5722 = vpop.f32.mrb[0].mxu0
      %v5723 = vadd.f32 %v5531, %v5722
      %v5724 = vpop.f32.mrb[0].mxu0
      %5725 = vmatprep.mubr.f32.mxu0 0.0
      %5726 = vmatmul.mubr.f32.gmra.mrb[0].mxu0 %v5584
      %v5727 = vpop.f32.mrb[0].mxu0
      %v5728 = vadd.f32 %v5531, %v5727
      %v5729 = vpop.f32.mrb[0].mxu0
      %5730 = vdwg.mxu0
      %5731 = vmatprep.subr.mxu0 %v5480
      %5732 = vmatpush1.msra.mxu0 %v5479
      %5733 = vmatprep.subr.mxu0 %v5484
      %5734 = vmatpush1.msra.mxu0 %v5483
      %5735 = vmatprep.subr.mxu0 %v5488
      %5736 = vmatpush1.msra.mxu0 %v5487
      %5737 = vmatprep.subr.mxu0 %v5492
      %5738 = vmatpush1.msra.mxu0 %v5491
      %5739 = vmatprep.subr.mxu0 %v5496
      %5740 = vmatpush1.msra.mxu0 %v5495
      %5741 = vmatprep.subr.mxu0 %v5500
      %5742 = vmatpush1.msra.mxu0 %v5499
      %5743 = vmatprep.subr.mxu0 %v5504
      %5744 = vmatpush1.msra.mxu0 %v5503
      %5745 = vmatprep.subr.mxu0 %v5508
      %5746 = vmatpush1.msra.mxu0 %v5507
      %5747 = vmatprep.subr.mxu0 %v5512
      %5748 = vmatpush1.msra.mxu0 %v5511
      %5749 = vmatprep.subr.mxu0 %v5516
      %5750 = vmatpush1.msra.mxu0 %v5515
      %5751 = vmatprep.subr.mxu0 %v5520
      %5752 = vmatpush1.msra.mxu0 %v5519
      %5753 = vmatprep.subr.mxu0 %v5524
      %5754 = vmatpush1.msra.mxu0 %v5523
      %5755 = vmatprep.subr.mxu0 0.0
      %5756 = vmatpush1.msra.mxu0 0.0
      %5757 = vmatprep.subr.mxu0 0.0
      %5758 = vmatpush1.msra.mxu0 0.0
      %5759 = vmatprep.subr.mxu0 0.0
      %5760 = vmatpush1.msra.mxu0 0.0
      %5761 = vmatprep.subr.mxu0 0.0
      %5762 = vmatpush1.msra.mxu0 0.0
      %5763 = vmatprep.subr.mxu0 0.0
      %5764 = vmatpush1.msra.mxu0 0.0
      %5765 = vmatprep.subr.mxu0 0.0
      %5766 = vmatpush1.msra.mxu0 0.0
      %5767 = vmatprep.subr.mxu0 0.0
      %5768 = vmatpush1.msra.mxu0 0.0
      %5769 = vmatprep.subr.mxu0 0.0
      %5770 = vmatpush1.msra.mxu0 0.0
      %5771 = vmatprep.subr.mxu0 0.0
      %5772 = vmatpush1.msra.mxu0 0.0
      %5773 = vmatprep.subr.mxu0 0.0
      %5774 = vmatpush1.msra.mxu0 0.0
      %5775 = vmatprep.subr.mxu0 0.0
      %5776 = vmatpush1.msra.mxu0 0.0
      %5777 = vmatprep.subr.mxu0 0.0
      %5778 = vmatpush1.msra.mxu0 0.0
      %5779 = vmatprep.subr.mxu0 0.0
      %5780 = vmatpush1.msra.mxu0 0.0
      %5781 = vmatprep.subr.mxu0 0.0
      %5782 = vmatpush1.msra.mxu0 0.0
      %5783 = vmatprep.subr.mxu0 0.0
      %5784 = vmatpush1.msra.mxu0 0.0
      %5785 = vmatprep.subr.mxu0 0.0
      %5786 = vmatpush1.msra.mxu0 0.0
      %5787 = vmatprep.subr.mxu0 0.0
      %5788 = vmatpush1.msra.mxu0 0.0
      %5789 = vmatprep.subr.mxu0 0.0
      %5790 = vmatpush1.msra.mxu0 0.0
      %5791 = vmatprep.subr.mxu0 0.0
      %5792 = vmatpush1.msra.mxu0 0.0
      %5793 = vmatprep.subr.mxu0 0.0
      %5794 = vmatpush1.msra.mxu0 0.0
      %5795 = vmatprep.mubr.f32.mxu0 0.0
      %5796 = vmatmul.mubr.f32.gmra.mrb[0].mxu0 %v5539
      %v5797 = vpop.f32.mrb[0].mxu0
      %v5798 = vadd.f32 %v5535, %v5797
      %v5799 = vpop.f32.mrb[0].mxu0
      %5800 = vmatprep.mubr.f32.mxu0 0.0
      %5801 = vmatmul.mubr.f32.gmra.mrb[0].mxu0 %v5542
      %v5802 = vpop.f32.mrb[0].mxu0
      %v5803 = vadd.f32 %v5535, %v5802
      %v5804 = vpop.f32.mrb[0].mxu0
      %5805 = vmatprep.mubr.f32.mxu0 0.0
      %5806 = vmatmul.mubr.f32.gmra.mrb[0].mxu0 %v5545
      %v5807 = vpop.f32.mrb[0].mxu0
      %v5808 = vadd.f32 %v5535, %v5807
      %v5809 = vpop.f32.mrb[0].mxu0
      %5810 = vmatprep.mubr.f32.mxu0 0.0
      %5811 = vmatmul.mubr.f32.gmra.mrb[0].mxu0 %v5548
      %v5812 = vpop.f32.mrb[0].mxu0
      %v5813 = vadd.f32 %v5535, %v5812
      %v5814 = vpop.f32.mrb[0].mxu0
      %5815 = vmatprep.mubr.f32.mxu0 0.0
      %5816 = vmatmul.mubr.f32.gmra.mrb[0].mxu0 %v5551
      %v5817 = vpop.f32.mrb[0].mxu0
      %v5818 = vadd.f32 %v5535, %v5817
      %v5819 = vpop.f32.mrb[0].mxu0
      %5820 = vmatprep.mubr.f32.mxu0 0.0
      %5821 = vmatmul.mubr.f32.gmra.mrb[0].mxu0 %v5554
      %v5822 = vpop.f32.mrb[0].mxu0
      %v5823 = vadd.f32 %v5535, %v5822
      %v5824 = vpop.f32.mrb[0].mxu0
      %5825 = vmatprep.mubr.f32.mxu0 0.0
      %5826 = vmatmul.mubr.f32.gmra.mrb[0].mxu0 %v5557
      %v5827 = vpop.f32.mrb[0].mxu0
      %v5828 = vadd.f32 %v5535, %v5827
      %v5829 = vpop.f32.mrb[0].mxu0
      %5830 = vmatprep.mubr.f32.mxu0 0.0
      %5831 = vmatmul.mubr.f32.gmra.mrb[0].mxu0 %v5560
      %v5832 = vpop.f32.mrb[0].mxu0
      %v5833 = vadd.f32 %v5535, %v5832
      %v5834 = vpop.f32.mrb[0].mxu0
      %5835 = vmatprep.mubr.f32.mxu0 0.0
      %5836 = vmatmul.mubr.f32.gmra.mrb[0].mxu0 %v5563
      %v5837 = vpop.f32.mrb[0].mxu0
      %v5838 = vadd.f32 %v5535, %v5837
      %v5839 = vpop.f32.mrb[0].mxu0
      %5840 = vmatprep.mubr.f32.mxu0 0.0
      %5841 = vmatmul.mubr.f32.gmra.mrb[0].mxu0 %v5566
      %v5842 = vpop.f32.mrb[0].mxu0
      %v5843 = vadd.f32 %v5535, %v5842
      %v5844 = vpop.f32.mrb[0].mxu0
      %5845 = vmatprep.mubr.f32.mxu0 0.0
      %5846 = vmatmul.mubr.f32.gmra.mrb[0].mxu0 %v5569
      %v5847 = vpop.f32.mrb[0].mxu0
      %v5848 = vadd.f32 %v5535, %v5847
      %v5849 = vpop.f32.mrb[0].mxu0
      %5850 = vmatprep.mubr.f32.mxu0 0.0
      %5851 = vmatmul.mubr.f32.gmra.mrb[0].mxu0 %v5572
      %v5852 = vpop.f32.mrb[0].mxu0
      %v5853 = vadd.f32 %v5535, %v5852
      %v5854 = vpop.f32.mrb[0].mxu0
      %5855 = vmatprep.mubr.f32.mxu0 0.0
      %5856 = vmatmul.mubr.f32.gmra.mrb[0].mxu0 %v5575
      %v5857 = vpop.f32.mrb[0].mxu0
      %v5858 = vadd.f32 %v5535, %v5857
      %v5859 = vpop.f32.mrb[0].mxu0
      %5860 = vmatprep.mubr.f32.mxu0 0.0
      %5861 = vmatmul.mubr.f32.gmra.mrb[0].mxu0 %v5578
      %v5862 = vpop.f32.mrb[0].mxu0
      %v5863 = vadd.f32 %v5535, %v5862
      %v5864 = vpop.f32.mrb[0].mxu0
      %5865 = vmatprep.mubr.f32.mxu0 0.0
      %5866 = vmatmul.mubr.f32.gmra.mrb[0].mxu0 %v5581
      %v5867 = vpop.f32.mrb[0].mxu0
      %v5868 = vadd.f32 %v5535, %v5867
      %v5869 = vpop.f32.mrb[0].mxu0
      %5870 = vmatprep.mubr.f32.mxu0 0.0
      %5871 = vmatmul.mubr.f32.gmra.mrb[0].mxu0 %v5584
      %v5872 = vpop.f32.mrb[0].mxu0
      %v5873 = vadd.f32 %v5535, %v5872
      %v5874 = vpop.f32.mrb[0].mxu0
      %5875 = vdwg.mxu0
      %v5876 = vtanh.pop %v5653
      %v5877 = vtanh.pop %v5658
      %v5878 = vtanh.pop %v5663
      %v5879 = vtanh.pop %v5668
      %v5880 = vtanh.pop %v5673
      %v5881 = vtanh.pop %v5678
      %v5882 = vtanh.pop %v5683
      %v5883 = vtanh.pop %v5688
      %v5884 = vtanh.pop %v5693
      %v5885 = vtanh.pop %v5698
      %v5886 = vtanh.pop %v5703
      %v5887 = vtanh.pop %v5708
      %v5888 = vtanh.pop %v5713
      %v5889 = vtanh.pop %v5718
      %v5890 = vtanh.pop %v5723
      %v5891 = vtanh.pop %v5728
      %v5892 = vxor.u32 %v5798, 2147483648
      %v5893 = vxor.u32 %v5803, 2147483648
      %v5894 = vxor.u32 %v5808, 2147483648
      %v5895 = vxor.u32 %v5813, 2147483648
      %v5896 = vxor.u32 %v5818, 2147483648
      %v5897 = vxor.u32 %v5823, 2147483648
      %v5898 = vxor.u32 %v5828, 2147483648
      %v5899 = vxor.u32 %v5833, 2147483648
      %v5900 = vxor.u32 %v5838, 2147483648
      %v5901 = vxor.u32 %v5843, 2147483648
      %v5902 = vxor.u32 %v5848, 2147483648
      %v5903 = vxor.u32 %v5853, 2147483648
      %v5904 = vxor.u32 %v5858, 2147483648
      %v5905 = vxor.u32 %v5863, 2147483648
      %v5906 = vxor.u32 %v5868, 2147483648
      %v5907 = vxor.u32 %v5873, 2147483648
      %v5908 = vmul.f32 %v5892, 1.442695
      %v5909 = vpow.pop %v5908
      %v5910 = vmul.f32 %v5893, 1.442695
      %v5911 = vpow.pop %v5910
      %v5912 = vmul.f32 %v5894, 1.442695
      %v5913 = vpow.pop %v5912
      %v5914 = vmul.f32 %v5895, 1.442695
      %v5915 = vpow.pop %v5914
      %v5916 = vmul.f32 %v5896, 1.442695
      %v5917 = vpow.pop %v5916
      %v5918 = vmul.f32 %v5897, 1.442695
      %v5919 = vpow.pop %v5918
      %v5920 = vmul.f32 %v5898, 1.442695
      %v5921 = vpow.pop %v5920
      %v5922 = vmul.f32 %v5899, 1.442695
      %v5923 = vpow.pop %v5922
      %v5924 = vmul.f32 %v5900, 1.442695
      %v5925 = vpow.pop %v5924
      %v5926 = vmul.f32 %v5901, 1.442695
      %v5927 = vpow.pop %v5926
      %v5928 = vmul.f32 %v5902, 1.442695
      %v5929 = vpow.pop %v5928
      %v5930 = vmul.f32 %v5903, 1.442695
      %v5931 = vpow.pop %v5930
      %v5932 = vmul.f32 %v5904, 1.442695
      %v5933 = vpow.pop %v5932
      %v5934 = vmul.f32 %v5905, 1.442695
      %v5935 = vpow.pop %v5934
      %v5936 = vmul.f32 %v5906, 1.442695
      %v5937 = vpow.pop %v5936
      %v5938 = vmul.f32 %v5907, 1.442695
      %v5939 = vpow.pop %v5938
      %v5940 = vadd.f32 %v5909, 1.0
      %v5941 = vadd.f32 %v5911, 1.0
      %v5942 = vadd.f32 %v5913, 1.0
      %v5943 = vadd.f32 %v5915, 1.0
      %v5944 = vadd.f32 %v5917, 1.0
      %v5945 = vadd.f32 %v5919, 1.0
      %v5946 = vadd.f32 %v5921, 1.0
      %v5947 = vadd.f32 %v5923, 1.0
      %v5948 = vadd.f32 %v5925, 1.0
      %v5949 = vadd.f32 %v5927, 1.0
      %v5950 = vadd.f32 %v5929, 1.0
      %v5951 = vadd.f32 %v5931, 1.0
      %v5952 = vadd.f32 %v5933, 1.0
      %v5953 = vadd.f32 %v5935, 1.0
      %v5954 = vadd.f32 %v5937, 1.0
      %v5955 = vadd.f32 %v5939, 1.0
      %v5956 = vrcp.pop %v5940
      %v5957 = vmul.f32 1.0, %v5956
      %v5958 = vrcp.pop %v5941
      %v5959 = vmul.f32 1.0, %v5958
      %v5960 = vrcp.pop %v5942
      %v5961 = vmul.f32 1.0, %v5960
      %v5962 = vrcp.pop %v5943
      %v5963 = vmul.f32 1.0, %v5962
      %v5964 = vrcp.pop %v5944
      %v5965 = vmul.f32 1.0, %v5964
      %v5966 = vrcp.pop %v5945
      %v5967 = vmul.f32 1.0, %v5966
      %v5968 = vrcp.pop %v5946
      %v5969 = vmul.f32 1.0, %v5968
      %v5970 = vrcp.pop %v5947
      %v5971 = vmul.f32 1.0, %v5970
      %v5972 = vrcp.pop %v5948
      %v5973 = vmul.f32 1.0, %v5972
      %v5974 = vrcp.pop %v5949
      %v5975 = vmul.f32 1.0, %v5974
      %v5976 = vrcp.pop %v5950
      %v5977 = vmul.f32 1.0, %v5976
      %v5978 = vrcp.pop %v5951
      %v5979 = vmul.f32 1.0, %v5978
      %v5980 = vrcp.pop %v5952
      %v5981 = vmul.f32 1.0, %v5980
      %v5982 = vrcp.pop %v5953
      %v5983 = vmul.f32 1.0, %v5982
      %v5984 = vrcp.pop %v5954
      %v5985 = vmul.f32 1.0, %v5984
      %v5986 = vrcp.pop %v5955
      %v5987 = vmul.f32 1.0, %v5986
      %v5988 = vmul.f32 %v5876, %v5957
      %v5989 = vmul.f32 %v5877, %v5959
      %v5990 = vmul.f32 %v5878, %v5961
      %v5991 = vmul.f32 %v5879, %v5963
      %v5992 = vmul.f32 %v5880, %v5965
      %v5993 = vmul.f32 %v5881, %v5967
      %v5994 = vmul.f32 %v5882, %v5969
      %v5995 = vmul.f32 %v5883, %v5971
      %v5996 = vmul.f32 %v5884, %v5973
      %v5997 = vmul.f32 %v5885, %v5975
      %v5998 = vmul.f32 %v5886, %v5977
      %v5999 = vmul.f32 %v5887, %v5979
      %v6000 = vmul.f32 %v5888, %v5981
      %v6001 = vmul.f32 %v5889, %v5983
      %v6002 = vmul.f32 %v5890, %v5985
      %v6003 = vmul.f32 %v5891, %v5987
      %s6004 = scalar_lea.vmem %s7, 352
      %v6005 = vld [vmem:[%s6004] sm:$0xff]
      %v6006 = vld [vmem:[%s6004 + $0x8] sm:$0xff]
      %v6008 = vsel %vm667, %v5988, 0
      %v6011 = vsel %vm667, %v5989, 0
      %v6014 = vsel %vm667, %v5990, 0
      %v6017 = vsel %vm667, %v5991, 0
      %v6020 = vsel %vm667, %v5992, 0
      %v6023 = vsel %vm667, %v5993, 0
      %v6026 = vsel %vm667, %v5994, 0
      %v6029 = vsel %vm667, %v5995, 0
      %v6032 = vsel %vm667, %v5996, 0
      %v6035 = vsel %vm667, %v5997, 0
      %v6038 = vsel %vm667, %v5998, 0
      %v6041 = vsel %vm667, %v5999, 0
      %v6044 = vsel %vm667, %v6000, 0
      %v6047 = vsel %vm667, %v6001, 0
      %v6050 = vsel %vm667, %v6002, 0
      %v6053 = vsel %vm667, %v6003, 0
      %6055 = vmatprep.subr.mxu0 0.0
      %6056 = vmatpush1.msra.mxu0 %v6005
      %6057 = vmatprep.subr.mxu0 0.0
      %6058 = vmatpush1.msra.mxu0 %v6006
      %6059 = vmatprep.subr.mxu0 0.0
      %6060 = vmatpush1.msra.mxu0 0.0
      %6061 = vmatprep.subr.mxu0 0.0
      %6062 = vmatpush1.msra.mxu0 0.0
      %6063 = vmatprep.subr.mxu0 0.0
      %6064 = vmatpush1.msra.mxu0 0.0
      %6065 = vmatprep.subr.mxu0 0.0
      %6066 = vmatpush1.msra.mxu0 0.0
      %6067 = vmatprep.subr.mxu0 0.0
      %6068 = vmatpush1.msra.mxu0 0.0
      %6069 = vmatprep.subr.mxu0 0.0
      %6070 = vmatpush1.msra.mxu0 0.0
      %6071 = vmatprep.subr.mxu0 0.0
      %6072 = vmatpush1.msra.mxu0 0.0
      %6073 = vmatprep.subr.mxu0 0.0
      %6074 = vmatpush1.msra.mxu0 0.0
      %6075 = vmatprep.subr.mxu0 0.0
      %6076 = vmatpush1.msra.mxu0 0.0
      %6077 = vmatprep.subr.mxu0 0.0
      %6078 = vmatpush1.msra.mxu0 0.0
      %6079 = vmatprep.subr.mxu0 0.0
      %6080 = vmatpush1.msra.mxu0 0.0
      %6081 = vmatprep.subr.mxu0 0.0
      %6082 = vmatpush1.msra.mxu0 0.0
      %6083 = vmatprep.subr.mxu0 0.0
      %6084 = vmatpush1.msra.mxu0 0.0
      %6085 = vmatprep.subr.mxu0 0.0
      %6086 = vmatpush1.msra.mxu0 0.0
      %6087 = vmatprep.subr.mxu0 0.0
      %6088 = vmatpush1.msra.mxu0 0.0
      %6089 = vmatprep.subr.mxu0 0.0
      %6090 = vmatpush1.msra.mxu0 0.0
      %6091 = vmatprep.subr.mxu0 0.0
      %6092 = vmatpush1.msra.mxu0 0.0
      %6093 = vmatprep.subr.mxu0 0.0
      %6094 = vmatpush1.msra.mxu0 0.0
      %6095 = vmatprep.subr.mxu0 0.0
      %6096 = vmatpush1.msra.mxu0 0.0
      %6097 = vmatprep.subr.mxu0 0.0
      %6098 = vmatpush1.msra.mxu0 0.0
      %6099 = vmatprep.subr.mxu0 0.0
      %6100 = vmatpush1.msra.mxu0 0.0
      %6101 = vmatprep.subr.mxu0 0.0
      %6102 = vmatpush1.msra.mxu0 0.0
      %6103 = vmatprep.subr.mxu0 0.0
      %6104 = vmatpush1.msra.mxu0 0.0
      %6105 = vmatprep.subr.mxu0 0.0
      %6106 = vmatpush1.msra.mxu0 0.0
      %6107 = vmatprep.subr.mxu0 0.0
      %6108 = vmatpush1.msra.mxu0 0.0
      %6109 = vmatprep.subr.mxu0 0.0
      %6110 = vmatpush1.msra.mxu0 0.0
      %6111 = vmatprep.subr.mxu0 0.0
      %6112 = vmatpush1.msra.mxu0 0.0
      %6113 = vmatprep.subr.mxu0 0.0
      %6114 = vmatpush1.msra.mxu0 0.0
      %6115 = vmatprep.subr.mxu0 0.0
      %6116 = vmatpush1.msra.mxu0 0.0
      %6117 = vmatprep.subr.mxu0 0.0
      %6118 = vmatpush1.msra.mxu0 0.0
      %6119 = vmatprep.mubr.f32.mxu0 0.0
      %6120 = vmatmul.mubr.f32.gmra.mrb[0].mxu0 %v6008
      %v6121 = vpop.f32.mrb[0].mxu0
      %v6122 = vadd.f32 0.0, %v6121
      %v6123 = vpop.f32.mrb[0].mxu0
      %6124 = vmatprep.mubr.f32.mxu0 0.0
      %6125 = vmatmul.mubr.f32.gmra.mrb[0].mxu0 %v6011
      %v6126 = vpop.f32.mrb[0].mxu0
      %v6127 = vadd.f32 0.0, %v6126
      %v6128 = vpop.f32.mrb[0].mxu0
      %6129 = vmatprep.mubr.f32.mxu0 0.0
      %6130 = vmatmul.mubr.f32.gmra.mrb[0].mxu0 %v6014
      %v6131 = vpop.f32.mrb[0].mxu0
      %v6132 = vadd.f32 0.0, %v6131
      %v6133 = vpop.f32.mrb[0].mxu0
      %6134 = vmatprep.mubr.f32.mxu0 0.0
      %6135 = vmatmul.mubr.f32.gmra.mrb[0].mxu0 %v6017
      %v6136 = vpop.f32.mrb[0].mxu0
      %v6137 = vadd.f32 0.0, %v6136
      %v6138 = vpop.f32.mrb[0].mxu0
      %6139 = vmatprep.mubr.f32.mxu0 0.0
      %6140 = vmatmul.mubr.f32.gmra.mrb[0].mxu0 %v6020
      %v6141 = vpop.f32.mrb[0].mxu0
      %v6142 = vadd.f32 0.0, %v6141
      %v6143 = vpop.f32.mrb[0].mxu0
      %6144 = vmatprep.mubr.f32.mxu0 0.0
      %6145 = vmatmul.mubr.f32.gmra.mrb[0].mxu0 %v6023
      %v6146 = vpop.f32.mrb[0].mxu0
      %v6147 = vadd.f32 0.0, %v6146
      %v6148 = vpop.f32.mrb[0].mxu0
      %6149 = vmatprep.mubr.f32.mxu0 0.0
      %6150 = vmatmul.mubr.f32.gmra.mrb[0].mxu0 %v6026
      %v6151 = vpop.f32.mrb[0].mxu0
      %v6152 = vadd.f32 0.0, %v6151
      %v6153 = vpop.f32.mrb[0].mxu0
      %6154 = vmatprep.mubr.f32.mxu0 0.0
      %6155 = vmatmul.mubr.f32.gmra.mrb[0].mxu0 %v6029
      %v6156 = vpop.f32.mrb[0].mxu0
      %v6157 = vadd.f32 0.0, %v6156
      %v6158 = vpop.f32.mrb[0].mxu0
      %6159 = vmatprep.mubr.f32.mxu0 0.0
      %6160 = vmatmul.mubr.f32.gmra.mrb[0].mxu0 %v6032
      %v6161 = vpop.f32.mrb[0].mxu0
      %v6162 = vadd.f32 0.0, %v6161
      %v6163 = vpop.f32.mrb[0].mxu0
      %6164 = vmatprep.mubr.f32.mxu0 0.0
      %6165 = vmatmul.mubr.f32.gmra.mrb[0].mxu0 %v6035
      %v6166 = vpop.f32.mrb[0].mxu0
      %v6167 = vadd.f32 0.0, %v6166
      %v6168 = vpop.f32.mrb[0].mxu0
      %6169 = vmatprep.mubr.f32.mxu0 0.0
      %6170 = vmatmul.mubr.f32.gmra.mrb[0].mxu0 %v6038
      %v6171 = vpop.f32.mrb[0].mxu0
      %v6172 = vadd.f32 0.0, %v6171
      %v6173 = vpop.f32.mrb[0].mxu0
      %6174 = vmatprep.mubr.f32.mxu0 0.0
      %6175 = vmatmul.mubr.f32.gmra.mrb[0].mxu0 %v6041
      %v6176 = vpop.f32.mrb[0].mxu0
      %v6177 = vadd.f32 0.0, %v6176
      %v6178 = vpop.f32.mrb[0].mxu0
      %6179 = vmatprep.mubr.f32.mxu0 0.0
      %6180 = vmatmul.mubr.f32.gmra.mrb[0].mxu0 %v6044
      %v6181 = vpop.f32.mrb[0].mxu0
      %v6182 = vadd.f32 0.0, %v6181
      %v6183 = vpop.f32.mrb[0].mxu0
      %6184 = vmatprep.mubr.f32.mxu0 0.0
      %6185 = vmatmul.mubr.f32.gmra.mrb[0].mxu0 %v6047
      %v6186 = vpop.f32.mrb[0].mxu0
      %v6187 = vadd.f32 0.0, %v6186
      %v6188 = vpop.f32.mrb[0].mxu0
      %6189 = vmatprep.mubr.f32.mxu0 0.0
      %6190 = vmatmul.mubr.f32.gmra.mrb[0].mxu0 %v6050
      %v6191 = vpop.f32.mrb[0].mxu0
      %v6192 = vadd.f32 0.0, %v6191
      %v6193 = vpop.f32.mrb[0].mxu0
      %6194 = vmatprep.mubr.f32.mxu0 0.0
      %6195 = vmatmul.mubr.f32.gmra.mrb[0].mxu0 %v6053
      %v6196 = vpop.f32.mrb[0].mxu0
      %v6197 = vadd.f32 0.0, %v6196
      %v6198 = vpop.f32.mrb[0].mxu0
      %6199 = vdwg.mxu0
      %v6200 = vadd.f32 %v4282, %v6122
      %v6201 = vadd.f32 %v4283, %v6127
      %v6202 = vadd.f32 %v4284, %v6132
      %v6203 = vadd.f32 %v4285, %v6137
      %v6204 = vadd.f32 %v4286, %v6142
      %v6205 = vadd.f32 %v4287, %v6147
      %v6206 = vadd.f32 %v4288, %v6152
      %v6207 = vadd.f32 %v4289, %v6157
      %v6208 = vadd.f32 %v4290, %v6162
      %v6209 = vadd.f32 %v4291, %v6167
      %v6210 = vadd.f32 %v4292, %v6172
      %v6211 = vadd.f32 %v4293, %v6177
      %v6212 = vadd.f32 %v4294, %v6182
      %v6213 = vadd.f32 %v4295, %v6187
      %v6214 = vadd.f32 %v4296, %v6192
      %v6215 = vadd.f32 %v4297, %v6197
      %s6216 = scalar_lea.vmem %s8, 2
      %v6217 = vld [vmem:[%s6216] sm:$0x1]
      %v6219 = vlaneseq
      %v6220 = vshrl.u32 %v6219, 7
      %v6221 = vsub.s32 0, %v6220
      %v6222 = vrot.slane %v6217, %v6221
      %v6224 = vadd.f32 %v6200, %v6222
      %v6225 = vadd.f32 %v6201, %v6222
      %v6226 = vadd.f32 %v6202, %v6222
      %v6227 = vadd.f32 %v6203, %v6222
      %v6228 = vadd.f32 %v6204, %v6222
      %v6229 = vadd.f32 %v6205, %v6222
      %v6230 = vadd.f32 %v6206, %v6222
      %v6231 = vadd.f32 %v6207, %v6222
      %v6232 = vadd.f32 %v6208, %v6222
      %v6233 = vadd.f32 %v6209, %v6222
      %v6234 = vadd.f32 %v6210, %v6222
      %v6235 = vadd.f32 %v6211, %v6222
      %v6236 = vadd.f32 %v6212, %v6222
      %v6237 = vadd.f32 %v6213, %v6222
      %v6238 = vadd.f32 %v6214, %v6222
      %v6239 = vadd.f32 %v6215, %v6222
      %6240 = vmatprep.subr.mxu0 0.0
      %6241 = vmatpush1.msra.mxu0 %v5988
      %6242 = vmatprep.subr.mxu0 0.0
      %6243 = vmatpush1.msra.mxu0 %v5989
      %6244 = vmatprep.subr.mxu0 0.0
      %6245 = vmatpush1.msra.mxu0 %v5990
      %6246 = vmatprep.subr.mxu0 0.0
      %6247 = vmatpush1.msra.mxu0 %v5991
      %6248 = vmatprep.subr.mxu0 0.0
      %6249 = vmatpush1.msra.mxu0 %v5992
      %6250 = vmatprep.subr.mxu0 0.0
      %6251 = vmatpush1.msra.mxu0 %v5993
      %6252 = vmatprep.subr.mxu0 0.0
      %6253 = vmatpush1.msra.mxu0 %v5994
      %6254 = vmatprep.subr.mxu0 0.0
      %6255 = vmatpush1.msra.mxu0 %v5995
      %6256 = vmatprep.subr.mxu0 0.0
      %6257 = vmatpush1.msra.mxu0 %v5996
      %6258 = vmatprep.subr.mxu0 0.0
      %6259 = vmatpush1.msra.mxu0 %v5997
      %6260 = vmatprep.subr.mxu0 0.0
      %6261 = vmatpush1.msra.mxu0 %v5998
      %6262 = vmatprep.subr.mxu0 0.0
      %6263 = vmatpush1.msra.mxu0 %v5999
      %6264 = vmatprep.subr.mxu0 0.0
      %6265 = vmatpush1.msra.mxu0 %v6000
      %6266 = vmatprep.subr.mxu0 0.0
      %6267 = vmatpush1.msra.mxu0 %v6001
      %6268 = vmatprep.subr.mxu0 0.0
      %6269 = vmatpush1.msra.mxu0 %v6002
      %6270 = vmatprep.subr.mxu0 0.0
      %6271 = vmatpush1.msra.mxu0 %v6003
      %6272 = vmatprep.subr.mxu0 0.0
      %6273 = vmatpush1.msra.mxu0 0.0
      %6274 = vmatprep.subr.mxu0 0.0
      %6275 = vmatpush1.msra.mxu0 0.0
      %6276 = vmatprep.subr.mxu0 0.0
      %6277 = vmatpush1.msra.mxu0 0.0
      %6278 = vmatprep.subr.mxu0 0.0
      %6279 = vmatpush1.msra.mxu0 0.0
      %6280 = vmatprep.subr.mxu0 0.0
      %6281 = vmatpush1.msra.mxu0 0.0
      %6282 = vmatprep.subr.mxu0 0.0
      %6283 = vmatpush1.msra.mxu0 0.0
      %6284 = vmatprep.subr.mxu0 0.0
      %6285 = vmatpush1.msra.mxu0 0.0
      %6286 = vmatprep.subr.mxu0 0.0
      %6287 = vmatpush1.msra.mxu0 0.0
      %6288 = vmatprep.subr.mxu0 0.0
      %6289 = vmatpush1.msra.mxu0 0.0
      %6290 = vmatprep.subr.mxu0 0.0
      %6291 = vmatpush1.msra.mxu0 0.0
      %6292 = vmatprep.subr.mxu0 0.0
      %6293 = vmatpush1.msra.mxu0 0.0
      %6294 = vmatprep.subr.mxu0 0.0
      %6295 = vmatpush1.msra.mxu0 0.0
      %6296 = vmatprep.subr.mxu0 0.0
      %6297 = vmatpush1.msra.mxu0 0.0
      %6298 = vmatprep.subr.mxu0 0.0
      %6299 = vmatpush1.msra.mxu0 0.0
      %6300 = vmatprep.subr.mxu0 0.0
      %6301 = vmatpush1.msra.mxu0 0.0
      %6302 = vmatprep.subr.mxu0 0.0
      %6303 = vmatpush1.msra.mxu0 0.0
      %6304 = vmatprep.mubr.f32.mxu0 0.0
      %6305 = vmatmul.mubr.f32.gmra.mrb[0].mxu0 %v1031
      %v6306 = vpop.f32.mrb[0].mxu0
      %v6307 = vadd.f32 0.0, %v6306
      %v6308 = vpop.f32.mrb[0].mxu0
      %6309 = vmatprep.mubr.f32.mxu0 0.0
      %6310 = vmatmul.mubr.f32.gmra.mrb[0].mxu0 %v1032
      %v6311 = vpop.f32.mrb[0].mxu0
      %v6312 = vadd.f32 0.0, %v6311
      %v6313 = vpop.f32.mrb[0].mxu0
      %6314 = vmatprep.mubr.f32.mxu0 0.0
      %6315 = vmatmul.mubr.f32.gmra.mrb[0].mxu0 %v1033
      %v6316 = vpop.f32.mrb[0].mxu0
      %v6317 = vadd.f32 0.0, %v6316
      %v6318 = vpop.f32.mrb[0].mxu0
      %6319 = vmatprep.mubr.f32.mxu0 0.0
      %6320 = vmatmul.mubr.f32.gmra.mrb[0].mxu0 %v1034
      %v6321 = vpop.f32.mrb[0].mxu0
      %v6322 = vadd.f32 0.0, %v6321
      %v6323 = vpop.f32.mrb[0].mxu0
      %6324 = vmatprep.mubr.f32.mxu0 0.0
      %6325 = vmatmul.mubr.f32.gmra.mrb[0].mxu0 %v1035
      %v6326 = vpop.f32.mrb[0].mxu0
      %v6327 = vadd.f32 0.0, %v6326
      %v6328 = vpop.f32.mrb[0].mxu0
      %6329 = vmatprep.mubr.f32.mxu0 0.0
      %6330 = vmatmul.mubr.f32.gmra.mrb[0].mxu0 %v1036
      %v6331 = vpop.f32.mrb[0].mxu0
      %v6332 = vadd.f32 0.0, %v6331
      %v6333 = vpop.f32.mrb[0].mxu0
      %6334 = vmatprep.mubr.f32.mxu0 0.0
      %6335 = vmatmul.mubr.f32.gmra.mrb[0].mxu0 %v1037
      %v6336 = vpop.f32.mrb[0].mxu0
      %v6337 = vadd.f32 0.0, %v6336
      %v6338 = vpop.f32.mrb[0].mxu0
      %6339 = vmatprep.mubr.f32.mxu0 0.0
      %6340 = vmatmul.mubr.f32.gmra.mrb[0].mxu0 %v1038
      %v6341 = vpop.f32.mrb[0].mxu0
      %v6342 = vadd.f32 0.0, %v6341
      %v6343 = vpop.f32.mrb[0].mxu0
      %6344 = vmatprep.mubr.f32.mxu0 0.0
      %6345 = vmatmul.mubr.f32.gmra.mrb[0].mxu0 %v1039
      %v6346 = vpop.f32.mrb[0].mxu0
      %v6347 = vadd.f32 0.0, %v6346
      %v6348 = vpop.f32.mrb[0].mxu0
      %6349 = vmatprep.mubr.f32.mxu0 0.0
      %6350 = vmatmul.mubr.f32.gmra.mrb[0].mxu0 %v1040
      %v6351 = vpop.f32.mrb[0].mxu0
      %v6352 = vadd.f32 0.0, %v6351
      %v6353 = vpop.f32.mrb[0].mxu0
      %6354 = vmatprep.mubr.f32.mxu0 0.0
      %6355 = vmatmul.mubr.f32.gmra.mrb[0].mxu0 %v1041
      %v6356 = vpop.f32.mrb[0].mxu0
      %v6357 = vadd.f32 0.0, %v6356
      %v6358 = vpop.f32.mrb[0].mxu0
      %6359 = vmatprep.mubr.f32.mxu0 0.0
      %6360 = vmatmul.mubr.f32.gmra.mrb[0].mxu0 %v1042
      %v6361 = vpop.f32.mrb[0].mxu0
      %v6362 = vadd.f32 0.0, %v6361
      %v6363 = vpop.f32.mrb[0].mxu0
      %6364 = vmatprep.mubr.f32.mxu0 0.0
      %6365 = vmatmul.mubr.f32.gmra.mrb[0].mxu0 %v1043
      %v6366 = vpop.f32.mrb[0].mxu0
      %v6367 = vadd.f32 0.0, %v6366
      %v6368 = vpop.f32.mrb[0].mxu0
      %6369 = vmatprep.mubr.f32.mxu0 0.0
      %6370 = vmatmul.mubr.f32.gmra.mrb[0].mxu0 %v1044
      %v6371 = vpop.f32.mrb[0].mxu0
      %v6372 = vadd.f32 0.0, %v6371
      %v6373 = vpop.f32.mrb[0].mxu0
      %6374 = vmatprep.mubr.f32.mxu0 0.0
      %6375 = vmatmul.mubr.f32.gmra.mrb[0].mxu0 %v1045
      %v6376 = vpop.f32.mrb[0].mxu0
      %v6377 = vadd.f32 0.0, %v6376
      %v6378 = vpop.f32.mrb[0].mxu0
      %6379 = vmatprep.mubr.f32.mxu0 0.0
      %6380 = vmatmul.mubr.f32.gmra.mrb[0].mxu0 %v1046
      %v6381 = vpop.f32.mrb[0].mxu0
      %v6382 = vadd.f32 0.0, %v6381
      %v6383 = vpop.f32.mrb[0].mxu0
      %6384 = vdwg.mxu0
      %s6385 = scalar_lea.vmem %s10, 704
      %v6386 = vld [vmem:[%s6385] sm:$0xff]
      %v6387 = vld [vmem:[%s6385 + $0x10] sm:$0xff]
      %s6388 = scalar_lea.vmem %s11, 4
      %v6389 = vld [vmem:[%s6388] sm:$0x1]
      %v6391 = vlaneseq
      %v6392 = vshrl.u32 %v6391, 7
      %v6393 = vsub.s32 0, %v6392
      %v6394 = vrot.slane %v6389, %v6393
      %v6397 = vsel %vm667, %v6307, 0
      %v6400 = vsel %vm667, %v6312, 0
      %v6403 = vsel %vm667, %v6317, 0
      %v6406 = vsel %vm667, %v6322, 0
      %v6409 = vsel %vm667, %v6327, 0
      %v6412 = vsel %vm667, %v6332, 0
      %v6415 = vsel %vm667, %v6337, 0
      %v6418 = vsel %vm667, %v6342, 0
      %v6421 = vsel %vm667, %v6347, 0
      %v6424 = vsel %vm667, %v6352, 0
      %v6427 = vsel %vm667, %v6357, 0
      %v6430 = vsel %vm667, %v6362, 0
      %v6433 = vsel %vm667, %v6367, 0
      %v6436 = vsel %vm667, %v6372, 0
      %v6439 = vsel %vm667, %v6377, 0
      %v6442 = vsel %vm667, %v6382, 0
      %6444 = vmatprep.subr.mxu0 0.0
      %6445 = vmatpush1.msra.mxu0 %v6386
      %6446 = vmatprep.subr.mxu0 0.0
      %6447 = vmatpush1.msra.mxu0 %v6387
      %6448 = vmatprep.subr.mxu0 0.0
      %6449 = vmatpush1.msra.mxu0 0.0
      %6450 = vmatprep.subr.mxu0 0.0
      %6451 = vmatpush1.msra.mxu0 0.0
      %6452 = vmatprep.subr.mxu0 0.0
      %6453 = vmatpush1.msra.mxu0 0.0
      %6454 = vmatprep.subr.mxu0 0.0
      %6455 = vmatpush1.msra.mxu0 0.0
      %6456 = vmatprep.subr.mxu0 0.0
      %6457 = vmatpush1.msra.mxu0 0.0
      %6458 = vmatprep.subr.mxu0 0.0
      %6459 = vmatpush1.msra.mxu0 0.0
      %6460 = vmatprep.subr.mxu0 0.0
      %6461 = vmatpush1.msra.mxu0 0.0
      %6462 = vmatprep.subr.mxu0 0.0
      %6463 = vmatpush1.msra.mxu0 0.0
      %6464 = vmatprep.subr.mxu0 0.0
      %6465 = vmatpush1.msra.mxu0 0.0
      %6466 = vmatprep.subr.mxu0 0.0
      %6467 = vmatpush1.msra.mxu0 0.0
      %6468 = vmatprep.subr.mxu0 0.0
      %6469 = vmatpush1.msra.mxu0 0.0
      %6470 = vmatprep.subr.mxu0 0.0
      %6471 = vmatpush1.msra.mxu0 0.0
      %6472 = vmatprep.subr.mxu0 0.0
      %6473 = vmatpush1.msra.mxu0 0.0
      %6474 = vmatprep.subr.mxu0 0.0
      %6475 = vmatpush1.msra.mxu0 0.0
      %6476 = vmatprep.subr.mxu0 0.0
      %6477 = vmatpush1.msra.mxu0 0.0
      %6478 = vmatprep.subr.mxu0 0.0
      %6479 = vmatpush1.msra.mxu0 0.0
      %6480 = vmatprep.subr.mxu0 0.0
      %6481 = vmatpush1.msra.mxu0 0.0
      %6482 = vmatprep.subr.mxu0 0.0
      %6483 = vmatpush1.msra.mxu0 0.0
      %6484 = vmatprep.subr.mxu0 0.0
      %6485 = vmatpush1.msra.mxu0 0.0
      %6486 = vmatprep.subr.mxu0 0.0
      %6487 = vmatpush1.msra.mxu0 0.0
      %6488 = vmatprep.subr.mxu0 0.0
      %6489 = vmatpush1.msra.mxu0 0.0
      %6490 = vmatprep.subr.mxu0 0.0
      %6491 = vmatpush1.msra.mxu0 0.0
      %6492 = vmatprep.subr.mxu0 0.0
      %6493 = vmatpush1.msra.mxu0 0.0
      %6494 = vmatprep.subr.mxu0 0.0
      %6495 = vmatpush1.msra.mxu0 0.0
      %6496 = vmatprep.subr.mxu0 0.0
      %6497 = vmatpush1.msra.mxu0 0.0
      %6498 = vmatprep.subr.mxu0 0.0
      %6499 = vmatpush1.msra.mxu0 0.0
      %6500 = vmatprep.subr.mxu0 0.0
      %6501 = vmatpush1.msra.mxu0 0.0
      %6502 = vmatprep.subr.mxu0 0.0
      %6503 = vmatpush1.msra.mxu0 0.0
      %6504 = vmatprep.subr.mxu0 0.0
      %6505 = vmatpush1.msra.mxu0 0.0
      %6506 = vmatprep.subr.mxu0 0.0
      %6507 = vmatpush1.msra.mxu0 0.0
      %6508 = vmatprep.mubr.f32.mxu0 0.0
      %6509 = vmatmul.mubr.f32.gmra.mrb[0].mxu0 %v6397
      %v6510 = vpop.f32.mrb[0].mxu0
      %v6511 = vadd.f32 %v6394, %v6510
      %v6512 = vpop.f32.mrb[0].mxu0
      %6513 = vmatprep.mubr.f32.mxu0 0.0
      %6514 = vmatmul.mubr.f32.gmra.mrb[0].mxu0 %v6400
      %v6515 = vpop.f32.mrb[0].mxu0
      %v6516 = vadd.f32 %v6394, %v6515
      %v6517 = vpop.f32.mrb[0].mxu0
      %6518 = vmatprep.mubr.f32.mxu0 0.0
      %6519 = vmatmul.mubr.f32.gmra.mrb[0].mxu0 %v6403
      %v6520 = vpop.f32.mrb[0].mxu0
      %v6521 = vadd.f32 %v6394, %v6520
      %v6522 = vpop.f32.mrb[0].mxu0
      %6523 = vmatprep.mubr.f32.mxu0 0.0
      %6524 = vmatmul.mubr.f32.gmra.mrb[0].mxu0 %v6406
      %v6525 = vpop.f32.mrb[0].mxu0
      %v6526 = vadd.f32 %v6394, %v6525
      %v6527 = vpop.f32.mrb[0].mxu0
      %6528 = vmatprep.mubr.f32.mxu0 0.0
      %6529 = vmatmul.mubr.f32.gmra.mrb[0].mxu0 %v6409
      %v6530 = vpop.f32.mrb[0].mxu0
      %v6531 = vadd.f32 %v6394, %v6530
      %v6532 = vpop.f32.mrb[0].mxu0
      %6533 = vmatprep.mubr.f32.mxu0 0.0
      %6534 = vmatmul.mubr.f32.gmra.mrb[0].mxu0 %v6412
      %v6535 = vpop.f32.mrb[0].mxu0
      %v6536 = vadd.f32 %v6394, %v6535
      %v6537 = vpop.f32.mrb[0].mxu0
      %6538 = vmatprep.mubr.f32.mxu0 0.0
      %6539 = vmatmul.mubr.f32.gmra.mrb[0].mxu0 %v6415
      %v6540 = vpop.f32.mrb[0].mxu0
      %v6541 = vadd.f32 %v6394, %v6540
      %v6542 = vpop.f32.mrb[0].mxu0
      %6543 = vmatprep.mubr.f32.mxu0 0.0
      %6544 = vmatmul.mubr.f32.gmra.mrb[0].mxu0 %v6418
      %v6545 = vpop.f32.mrb[0].mxu0
      %v6546 = vadd.f32 %v6394, %v6545
      %v6547 = vpop.f32.mrb[0].mxu0
      %6548 = vmatprep.mubr.f32.mxu0 0.0
      %6549 = vmatmul.mubr.f32.gmra.mrb[0].mxu0 %v6421
      %v6550 = vpop.f32.mrb[0].mxu0
      %v6551 = vadd.f32 %v6394, %v6550
      %v6552 = vpop.f32.mrb[0].mxu0
      %6553 = vmatprep.mubr.f32.mxu0 0.0
      %6554 = vmatmul.mubr.f32.gmra.mrb[0].mxu0 %v6424
      %v6555 = vpop.f32.mrb[0].mxu0
      %v6556 = vadd.f32 %v6394, %v6555
      %v6557 = vpop.f32.mrb[0].mxu0
      %6558 = vmatprep.mubr.f32.mxu0 0.0
      %6559 = vmatmul.mubr.f32.gmra.mrb[0].mxu0 %v6427
      %v6560 = vpop.f32.mrb[0].mxu0
      %v6561 = vadd.f32 %v6394, %v6560
      %v6562 = vpop.f32.mrb[0].mxu0
      %6563 = vmatprep.mubr.f32.mxu0 0.0
      %6564 = vmatmul.mubr.f32.gmra.mrb[0].mxu0 %v6430
      %v6565 = vpop.f32.mrb[0].mxu0
      %v6566 = vadd.f32 %v6394, %v6565
      %v6567 = vpop.f32.mrb[0].mxu0
      %6568 = vmatprep.mubr.f32.mxu0 0.0
      %6569 = vmatmul.mubr.f32.gmra.mrb[0].mxu0 %v6433
      %v6570 = vpop.f32.mrb[0].mxu0
      %v6571 = vadd.f32 %v6394, %v6570
      %v6572 = vpop.f32.mrb[0].mxu0
      %6573 = vmatprep.mubr.f32.mxu0 0.0
      %6574 = vmatmul.mubr.f32.gmra.mrb[0].mxu0 %v6436
      %v6575 = vpop.f32.mrb[0].mxu0
      %v6576 = vadd.f32 %v6394, %v6575
      %v6577 = vpop.f32.mrb[0].mxu0
      %6578 = vmatprep.mubr.f32.mxu0 0.0
      %6579 = vmatmul.mubr.f32.gmra.mrb[0].mxu0 %v6439
      %v6580 = vpop.f32.mrb[0].mxu0
      %v6581 = vadd.f32 %v6394, %v6580
      %v6582 = vpop.f32.mrb[0].mxu0
      %6583 = vmatprep.mubr.f32.mxu0 0.0
      %6584 = vmatmul.mubr.f32.gmra.mrb[0].mxu0 %v6442
      %v6585 = vpop.f32.mrb[0].mxu0
      %v6586 = vadd.f32 %v6394, %v6585
      %v6587 = vpop.f32.mrb[0].mxu0
      %6588 = vdwg.mxu0
      %6589 = vrot.lane.b32.xlu0 %v5460, 48
      %v6590 = vpop.permute.xlu0 %6589
      %6591 = vrot.lane.b32.xlu0 %v5461, 48
      %v6592 = vpop.permute.xlu0 %6591
      %6593 = vrot.lane.b32.xlu0 %v5462, 48
      %v6594 = vpop.permute.xlu0 %6593
      %6595 = vrot.lane.b32.xlu0 %v5463, 48
      %v6596 = vpop.permute.xlu0 %6595
      %6597 = vrot.lane.b32.xlu0 %v5464, 48
      %v6598 = vpop.permute.xlu0 %6597
      %6599 = vrot.lane.b32.xlu0 %v5465, 48
      %v6600 = vpop.permute.xlu0 %6599
      %6601 = vrot.lane.b32.xlu0 %v5466, 48
      %v6602 = vpop.permute.xlu0 %6601
      %6603 = vrot.lane.b32.xlu0 %v5467, 48
      %v6604 = vpop.permute.xlu0 %6603
      %6605 = vrot.lane.b32.xlu0 %v5468, 48
      %v6606 = vpop.permute.xlu0 %6605
      %6607 = vrot.lane.b32.xlu0 %v5469, 48
      %v6608 = vpop.permute.xlu0 %6607
      %6609 = vrot.lane.b32.xlu0 %v5470, 48
      %v6610 = vpop.permute.xlu0 %6609
      %6611 = vrot.lane.b32.xlu0 %v5471, 48
      %v6612 = vpop.permute.xlu0 %6611
      %6613 = vrot.lane.b32.xlu0 %v5472, 48
      %v6614 = vpop.permute.xlu0 %6613
      %6615 = vrot.lane.b32.xlu0 %v5473, 48
      %v6616 = vpop.permute.xlu0 %6615
      %6617 = vrot.lane.b32.xlu0 %v5474, 48
      %v6618 = vpop.permute.xlu0 %6617
      %6619 = vrot.lane.b32.xlu0 %v5475, 48
      %v6620 = vpop.permute.xlu0 %6619
      %v6637 = vadd.f32 %v6511, %v6590
      %v6638 = vadd.f32 %v6516, %v6592
      %v6639 = vadd.f32 %v6521, %v6594
      %v6640 = vadd.f32 %v6526, %v6596
      %v6641 = vadd.f32 %v6531, %v6598
      %v6642 = vadd.f32 %v6536, %v6600
      %v6643 = vadd.f32 %v6541, %v6602
      %v6644 = vadd.f32 %v6546, %v6604
      %v6645 = vadd.f32 %v6551, %v6606
      %v6646 = vadd.f32 %v6556, %v6608
      %v6647 = vadd.f32 %v6561, %v6610
      %v6648 = vadd.f32 %v6566, %v6612
      %v6649 = vadd.f32 %v6571, %v6614
      %v6650 = vadd.f32 %v6576, %v6616
      %v6651 = vadd.f32 %v6581, %v6618
      %v6652 = vadd.f32 %v6586, %v6620
      %v6653 = vsel %vm667, %v6637, 0.0
      %6654 = vadd.xlane.f32.xlu0 %v6653
      %v6655 = vpop.xlane.xlu0 %6654
      %v6656 = vsel %vm667, %v6638, 0.0
      %6657 = vadd.xlane.f32.xlu0 %v6656
      %v6658 = vpop.xlane.xlu0 %6657
      %v6659 = vsel %vm667, %v6639, 0.0
      %6660 = vadd.xlane.f32.xlu0 %v6659
      %v6661 = vpop.xlane.xlu0 %6660
      %v6662 = vsel %vm667, %v6640, 0.0
      %6663 = vadd.xlane.f32.xlu0 %v6662
      %v6664 = vpop.xlane.xlu0 %6663
      %v6665 = vsel %vm667, %v6641, 0.0
      %6666 = vadd.xlane.f32.xlu0 %v6665
      %v6667 = vpop.xlane.xlu0 %6666
      %v6668 = vsel %vm667, %v6642, 0.0
      %6669 = vadd.xlane.f32.xlu0 %v6668
      %v6670 = vpop.xlane.xlu0 %6669
      %v6671 = vsel %vm667, %v6643, 0.0
      %6672 = vadd.xlane.f32.xlu0 %v6671
      %v6673 = vpop.xlane.xlu0 %6672
      %v6674 = vsel %vm667, %v6644, 0.0
      %6675 = vadd.xlane.f32.xlu0 %v6674
      %v6676 = vpop.xlane.xlu0 %6675
      %v6677 = vsel %vm667, %v6645, 0.0
      %6678 = vadd.xlane.f32.xlu0 %v6677
      %v6679 = vpop.xlane.xlu0 %6678
      %v6680 = vsel %vm667, %v6646, 0.0
      %6681 = vadd.xlane.f32.xlu0 %v6680
      %v6682 = vpop.xlane.xlu0 %6681
      %v6683 = vsel %vm667, %v6647, 0.0
      %6684 = vadd.xlane.f32.xlu0 %v6683
      %v6685 = vpop.xlane.xlu0 %6684
      %v6686 = vsel %vm667, %v6648, 0.0
      %6687 = vadd.xlane.f32.xlu0 %v6686
      %v6688 = vpop.xlane.xlu0 %6687
      %v6689 = vsel %vm667, %v6649, 0.0
      %6690 = vadd.xlane.f32.xlu0 %v6689
      %v6691 = vpop.xlane.xlu0 %6690
      %v6692 = vsel %vm667, %v6650, 0.0
      %6693 = vadd.xlane.f32.xlu0 %v6692
      %v6694 = vpop.xlane.xlu0 %6693
      %v6695 = vsel %vm667, %v6651, 0.0
      %6696 = vadd.xlane.f32.xlu0 %v6695
      %v6697 = vpop.xlane.xlu0 %6696
      %v6698 = vsel %vm667, %v6652, 0.0
      %6699 = vadd.xlane.f32.xlu0 %v6698
      %v6700 = vpop.xlane.xlu0 %6699
      %v6701 = vmul.f32 %v6637, %v6637
      %v6702 = vmul.f32 %v6638, %v6638
      %v6703 = vmul.f32 %v6639, %v6639
      %v6704 = vmul.f32 %v6640, %v6640
      %v6705 = vmul.f32 %v6641, %v6641
      %v6706 = vmul.f32 %v6642, %v6642
      %v6707 = vmul.f32 %v6643, %v6643
      %v6708 = vmul.f32 %v6644, %v6644
      %v6709 = vmul.f32 %v6645, %v6645
      %v6710 = vmul.f32 %v6646, %v6646
      %v6711 = vmul.f32 %v6647, %v6647
      %v6712 = vmul.f32 %v6648, %v6648
      %v6713 = vmul.f32 %v6649, %v6649
      %v6714 = vmul.f32 %v6650, %v6650
      %v6715 = vmul.f32 %v6651, %v6651
      %v6716 = vmul.f32 %v6652, %v6652
      %v6717 = vsel %vm667, %v6701, 0.0
      %6718 = vadd.xlane.f32.xlu0 %v6717
      %v6719 = vpop.xlane.xlu0 %6718
      %v6720 = vsel %vm667, %v6702, 0.0
      %6721 = vadd.xlane.f32.xlu0 %v6720
      %v6722 = vpop.xlane.xlu0 %6721
      %v6723 = vsel %vm667, %v6703, 0.0
      %6724 = vadd.xlane.f32.xlu0 %v6723
      %v6725 = vpop.xlane.xlu0 %6724
      %v6726 = vsel %vm667, %v6704, 0.0
      %6727 = vadd.xlane.f32.xlu0 %v6726
      %v6728 = vpop.xlane.xlu0 %6727
      %v6729 = vsel %vm667, %v6705, 0.0
      %6730 = vadd.xlane.f32.xlu0 %v6729
      %v6731 = vpop.xlane.xlu0 %6730
      %v6732 = vsel %vm667, %v6706, 0.0
      %6733 = vadd.xlane.f32.xlu0 %v6732
      %v6734 = vpop.xlane.xlu0 %6733
      %v6735 = vsel %vm667, %v6707, 0.0
      %6736 = vadd.xlane.f32.xlu0 %v6735
      %v6737 = vpop.xlane.xlu0 %6736
      %v6738 = vsel %vm667, %v6708, 0.0
      %6739 = vadd.xlane.f32.xlu0 %v6738
      %v6740 = vpop.xlane.xlu0 %6739
      %v6741 = vsel %vm667, %v6709, 0.0
      %6742 = vadd.xlane.f32.xlu0 %v6741
      %v6743 = vpop.xlane.xlu0 %6742
      %v6744 = vsel %vm667, %v6710, 0.0
      %6745 = vadd.xlane.f32.xlu0 %v6744
      %v6746 = vpop.xlane.xlu0 %6745
      %v6747 = vsel %vm667, %v6711, 0.0
      %6748 = vadd.xlane.f32.xlu0 %v6747
      %v6749 = vpop.xlane.xlu0 %6748
      %v6750 = vsel %vm667, %v6712, 0.0
      %6751 = vadd.xlane.f32.xlu0 %v6750
      %v6752 = vpop.xlane.xlu0 %6751
      %v6753 = vsel %vm667, %v6713, 0.0
      %6754 = vadd.xlane.f32.xlu0 %v6753
      %v6755 = vpop.xlane.xlu0 %6754
      %v6756 = vsel %vm667, %v6714, 0.0
      %6757 = vadd.xlane.f32.xlu0 %v6756
      %v6758 = vpop.xlane.xlu0 %6757
      %v6759 = vsel %vm667, %v6715, 0.0
      %6760 = vadd.xlane.f32.xlu0 %v6759
      %v6761 = vpop.xlane.xlu0 %6760
      %v6762 = vsel %vm667, %v6716, 0.0
      %6763 = vadd.xlane.f32.xlu0 %v6762
      %v6764 = vpop.xlane.xlu0 %6763
      %v6765 = vsel %vm2809, %v6655, %v6719
      %v6766 = vsel %vm2809, %v6658, %v6722
      %v6767 = vsel %vm2809, %v6661, %v6725
      %v6768 = vsel %vm2809, %v6664, %v6728
      %v6769 = vsel %vm2809, %v6667, %v6731
      %v6770 = vsel %vm2809, %v6670, %v6734
      %v6771 = vsel %vm2809, %v6673, %v6737
      %v6772 = vsel %vm2809, %v6676, %v6740
      %v6773 = vsel %vm2809, %v6679, %v6743
      %v6774 = vsel %vm2809, %v6682, %v6746
      %v6775 = vsel %vm2809, %v6685, %v6749
      %v6776 = vsel %vm2809, %v6688, %v6752
      %v6777 = vsel %vm2809, %v6691, %v6755
      %v6778 = vsel %vm2809, %v6694, %v6758
      %v6779 = vsel %vm2809, %v6697, %v6761
      %v6780 = vsel %vm2809, %v6700, %v6764
      %6781 = vmatprep.subr.mxu0 0.0
      %6782 = vmatpush1.msra.mxu0 %v6765
      %6783 = vmatprep.subr.mxu0 0.0
      %6784 = vmatpush1.msra.mxu0 %v6766
      %6785 = vmatprep.subr.mxu0 0.0
      %6786 = vmatpush1.msra.mxu0 %v6767
      %6787 = vmatprep.subr.mxu0 0.0
      %6788 = vmatpush1.msra.mxu0 %v6768
      %6789 = vmatprep.subr.mxu0 0.0
      %6790 = vmatpush1.msra.mxu0 %v6769
      %6791 = vmatprep.subr.mxu0 0.0
      %6792 = vmatpush1.msra.mxu0 %v6770
      %6793 = vmatprep.subr.mxu0 0.0
      %6794 = vmatpush1.msra.mxu0 %v6771
      %6795 = vmatprep.subr.mxu0 0.0
      %6796 = vmatpush1.msra.mxu0 %v6772
      %6797 = vmatprep.subr.mxu0 0.0
      %6798 = vmatpush1.msra.mxu0 %v6773
      %6799 = vmatprep.subr.mxu0 0.0
      %6800 = vmatpush1.msra.mxu0 %v6774
      %6801 = vmatprep.subr.mxu0 0.0
      %6802 = vmatpush1.msra.mxu0 %v6775
      %6803 = vmatprep.subr.mxu0 0.0
      %6804 = vmatpush1.msra.mxu0 %v6776
      %6805 = vmatprep.subr.mxu0 0.0
      %6806 = vmatpush1.msra.mxu0 %v6777
      %6807 = vmatprep.subr.mxu0 0.0
      %6808 = vmatpush1.msra.mxu0 %v6778
      %6809 = vmatprep.subr.mxu0 0.0
      %6810 = vmatpush1.msra.mxu0 %v6779
      %6811 = vmatprep.subr.mxu0 0.0
      %6812 = vmatpush1.msra.mxu0 %v6780
      %6813 = vmatprep.subr.mxu0 0.0
      %6814 = vmatpush1.msra.mxu0 0.0
      %6815 = vmatprep.subr.mxu0 0.0
      %6816 = vmatpush1.msra.mxu0 0.0
      %6817 = vmatprep.subr.mxu0 0.0
      %6818 = vmatpush1.msra.mxu0 0.0
      %6819 = vmatprep.subr.mxu0 0.0
      %6820 = vmatpush1.msra.mxu0 0.0
      %6821 = vmatprep.subr.mxu0 0.0
      %6822 = vmatpush1.msra.mxu0 0.0
      %6823 = vmatprep.subr.mxu0 0.0
      %6824 = vmatpush1.msra.mxu0 0.0
      %6825 = vmatprep.subr.mxu0 0.0
      %6826 = vmatpush1.msra.mxu0 0.0
      %6827 = vmatprep.subr.mxu0 0.0
      %6828 = vmatpush1.msra.mxu0 0.0
      %6829 = vmatprep.subr.mxu0 0.0
      %6830 = vmatpush1.msra.mxu0 0.0
      %6831 = vmatprep.subr.mxu0 0.0
      %6832 = vmatpush1.msra.mxu0 0.0
      %6833 = vmatprep.subr.mxu0 0.0
      %6834 = vmatpush1.msra.mxu0 0.0
      %6835 = vmatprep.subr.mxu0 0.0
      %6836 = vmatpush1.msra.mxu0 0.0
      %6837 = vmatprep.subr.mxu0 0.0
      %6838 = vmatpush1.msra.mxu0 0.0
      %6839 = vmatprep.subr.mxu0 0.0
      %6840 = vmatpush1.msra.mxu0 0.0
      %6841 = vmatprep.subr.mxu0 0.0
      %6842 = vmatpush1.msra.mxu0 0.0
      %6843 = vmatprep.subr.mxu0 0.0
      %6844 = vmatpush1.msra.mxu0 0.0
      %6845 = vmatprep.mubr.f32.mxu0 0.0
      %6846 = vmatmul.mubr.f32.gmra.mrb[0].mxu0 %v1048
      %v6847 = vpop.f32.mrb[0].mxu0
      %v6848 = vadd.f32 0.0, %v6847
      %v6849 = vpop.f32.mrb[0].mxu0
      %6850 = vmatprep.mubr.f32.mxu0 0.0
      %6851 = vmatmul.mubr.f32.gmra.mrb[0].mxu0 %v1049
      %v6852 = vpop.f32.mrb[0].mxu0
      %v6853 = vadd.f32 0.0, %v6852
      %v6854 = vpop.f32.mrb[0].mxu0
      %6855 = vmatprep.mubr.f32.mxu0 0.0
      %6856 = vmatmul.mubr.f32.gmra.mrb[0].mxu0 %v1050
      %v6857 = vpop.f32.mrb[0].mxu0
      %v6858 = vadd.f32 0.0, %v6857
      %v6859 = vpop.f32.mrb[0].mxu0
      %6860 = vmatprep.mubr.f32.mxu0 0.0
      %6861 = vmatmul.mubr.f32.gmra.mrb[0].mxu0 %v1051
      %v6862 = vpop.f32.mrb[0].mxu0
      %v6863 = vadd.f32 0.0, %v6862
      %v6864 = vpop.f32.mrb[0].mxu0
      %6865 = vmatprep.mubr.f32.mxu0 0.0
      %6866 = vmatmul.mubr.f32.gmra.mrb[0].mxu0 %v1052
      %v6867 = vpop.f32.mrb[0].mxu0
      %v6868 = vadd.f32 0.0, %v6867
      %v6869 = vpop.f32.mrb[0].mxu0
      %6870 = vmatprep.mubr.f32.mxu0 0.0
      %6871 = vmatmul.mubr.f32.gmra.mrb[0].mxu0 %v1053
      %v6872 = vpop.f32.mrb[0].mxu0
      %v6873 = vadd.f32 0.0, %v6872
      %v6874 = vpop.f32.mrb[0].mxu0
      %6875 = vmatprep.mubr.f32.mxu0 0.0
      %6876 = vmatmul.mubr.f32.gmra.mrb[0].mxu0 %v1054
      %v6877 = vpop.f32.mrb[0].mxu0
      %v6878 = vadd.f32 0.0, %v6877
      %v6879 = vpop.f32.mrb[0].mxu0
      %6880 = vmatprep.mubr.f32.mxu0 0.0
      %6881 = vmatmul.mubr.f32.gmra.mrb[0].mxu0 %v1055
      %v6882 = vpop.f32.mrb[0].mxu0
      %v6883 = vadd.f32 0.0, %v6882
      %v6884 = vpop.f32.mrb[0].mxu0
      %6885 = vmatprep.mubr.f32.mxu0 0.0
      %6886 = vmatmul.mubr.f32.gmra.mrb[0].mxu0 %v1056
      %v6887 = vpop.f32.mrb[0].mxu0
      %v6888 = vadd.f32 0.0, %v6887
      %v6889 = vpop.f32.mrb[0].mxu0
      %6890 = vmatprep.mubr.f32.mxu0 0.0
      %6891 = vmatmul.mubr.f32.gmra.mrb[0].mxu0 %v1057
      %v6892 = vpop.f32.mrb[0].mxu0
      %v6893 = vadd.f32 0.0, %v6892
      %v6894 = vpop.f32.mrb[0].mxu0
      %6895 = vmatprep.mubr.f32.mxu0 0.0
      %6896 = vmatmul.mubr.f32.gmra.mrb[0].mxu0 %v1058
      %v6897 = vpop.f32.mrb[0].mxu0
      %v6898 = vadd.f32 0.0, %v6897
      %v6899 = vpop.f32.mrb[0].mxu0
      %6900 = vmatprep.mubr.f32.mxu0 0.0
      %6901 = vmatmul.mubr.f32.gmra.mrb[0].mxu0 %v1059
      %v6902 = vpop.f32.mrb[0].mxu0
      %v6903 = vadd.f32 0.0, %v6902
      %v6904 = vpop.f32.mrb[0].mxu0
      %6905 = vmatprep.mubr.f32.mxu0 0.0
      %6906 = vmatmul.mubr.f32.gmra.mrb[0].mxu0 %v1060
      %v6907 = vpop.f32.mrb[0].mxu0
      %v6908 = vadd.f32 0.0, %v6907
      %v6909 = vpop.f32.mrb[0].mxu0
      %6910 = vmatprep.mubr.f32.mxu0 0.0
      %6911 = vmatmul.mubr.f32.gmra.mrb[0].mxu0 %v1061
      %v6912 = vpop.f32.mrb[0].mxu0
      %v6913 = vadd.f32 0.0, %v6912
      %v6914 = vpop.f32.mrb[0].mxu0
      %6915 = vmatprep.mubr.f32.mxu0 0.0
      %6916 = vmatmul.mubr.f32.gmra.mrb[0].mxu0 %v1062
      %v6917 = vpop.f32.mrb[0].mxu0
      %v6918 = vadd.f32 0.0, %v6917
      %v6919 = vpop.f32.mrb[0].mxu0
      %6920 = vmatprep.mubr.f32.mxu0 0.0
      %6921 = vmatmul.mubr.f32.gmra.mrb[0].mxu0 %v1063
      %v6922 = vpop.f32.mrb[0].mxu0
      %v6923 = vadd.f32 0.0, %v6922
      %v6924 = vpop.f32.mrb[0].mxu0
      %6925 = vdwg.mxu0
      %v6926 = vmul.f32 %v6848, 0.0078125
      %v6927 = vmul.f32 %v6853, 0.0078125
      %v6928 = vmul.f32 %v6858, 0.0078125
      %v6929 = vmul.f32 %v6863, 0.0078125
      %v6930 = vmul.f32 %v6868, 0.0078125
      %v6931 = vmul.f32 %v6873, 0.0078125
      %v6932 = vmul.f32 %v6878, 0.0078125
      %v6933 = vmul.f32 %v6883, 0.0078125
      %v6934 = vmul.f32 %v6888, 0.0078125
      %v6935 = vmul.f32 %v6893, 0.0078125
      %v6936 = vmul.f32 %v6898, 0.0078125
      %v6937 = vmul.f32 %v6903, 0.0078125
      %v6938 = vmul.f32 %v6908, 0.0078125
      %v6939 = vmul.f32 %v6913, 0.0078125
      %v6940 = vmul.f32 %v6918, 0.0078125
      %v6941 = vmul.f32 %v6923, 0.0078125
      %v6942 = vmul.f32 %v6926, %v6926
      %v6943 = vmul.f32 %v6927, %v6927
      %v6944 = vmul.f32 %v6928, %v6928
      %v6945 = vmul.f32 %v6929, %v6929
      %v6946 = vmul.f32 %v6930, %v6930
      %v6947 = vmul.f32 %v6931, %v6931
      %v6948 = vmul.f32 %v6932, %v6932
      %v6949 = vmul.f32 %v6933, %v6933
      %v6950 = vmul.f32 %v6934, %v6934
      %v6951 = vmul.f32 %v6935, %v6935
      %v6952 = vmul.f32 %v6936, %v6936
      %v6953 = vmul.f32 %v6937, %v6937
      %v6954 = vmul.f32 %v6938, %v6938
      %v6955 = vmul.f32 %v6939, %v6939
      %v6956 = vmul.f32 %v6940, %v6940
      %v6957 = vmul.f32 %v6941, %v6941
      %6974 = vrot.lane.b32.xlu0 %v6942, 1
      %v6975 = vpop.permute.xlu0 %6974
      %6976 = vrot.lane.b32.xlu0 %v6943, 1
      %v6977 = vpop.permute.xlu0 %6976
      %6978 = vrot.lane.b32.xlu0 %v6944, 1
      %v6979 = vpop.permute.xlu0 %6978
      %6980 = vrot.lane.b32.xlu0 %v6945, 1
      %v6981 = vpop.permute.xlu0 %6980
      %6982 = vrot.lane.b32.xlu0 %v6946, 1
      %v6983 = vpop.permute.xlu0 %6982
      %6984 = vrot.lane.b32.xlu0 %v6947, 1
      %v6985 = vpop.permute.xlu0 %6984
      %6986 = vrot.lane.b32.xlu0 %v6948, 1
      %v6987 = vpop.permute.xlu0 %6986
      %6988 = vrot.lane.b32.xlu0 %v6949, 1
      %v6989 = vpop.permute.xlu0 %6988
      %6990 = vrot.lane.b32.xlu0 %v6950, 1
      %v6991 = vpop.permute.xlu0 %6990
      %6992 = vrot.lane.b32.xlu0 %v6951, 1
      %v6993 = vpop.permute.xlu0 %6992
      %6994 = vrot.lane.b32.xlu0 %v6952, 1
      %v6995 = vpop.permute.xlu0 %6994
      %6996 = vrot.lane.b32.xlu0 %v6953, 1
      %v6997 = vpop.permute.xlu0 %6996
      %6998 = vrot.lane.b32.xlu0 %v6954, 1
      %v6999 = vpop.permute.xlu0 %6998
      %7000 = vrot.lane.b32.xlu0 %v6955, 1
      %v7001 = vpop.permute.xlu0 %7000
      %7002 = vrot.lane.b32.xlu0 %v6956, 1
      %v7003 = vpop.permute.xlu0 %7002
      %7004 = vrot.lane.b32.xlu0 %v6957, 1
      %v7005 = vpop.permute.xlu0 %7004
      %v7022 = vsub.f32 %v6926, %v6975
      %v7023 = vsub.f32 %v6927, %v6977
      %v7024 = vsub.f32 %v6928, %v6979
      %v7025 = vsub.f32 %v6929, %v6981
      %v7026 = vsub.f32 %v6930, %v6983
      %v7027 = vsub.f32 %v6931, %v6985
      %v7028 = vsub.f32 %v6932, %v6987
      %v7029 = vsub.f32 %v6933, %v6989
      %v7030 = vsub.f32 %v6934, %v6991
      %v7031 = vsub.f32 %v6935, %v6993
      %v7032 = vsub.f32 %v6936, %v6995
      %v7033 = vsub.f32 %v6937, %v6997
      %v7034 = vsub.f32 %v6938, %v6999
      %v7035 = vsub.f32 %v6939, %v7001
      %v7036 = vsub.f32 %v6940, %v7003
      %v7037 = vsub.f32 %v6941, %v7005
      %v7038 = vmax.f32 %v7022, 0.0
      %v7039 = vmax.f32 %v7023, 0.0
      %v7040 = vmax.f32 %v7024, 0.0
      %v7041 = vmax.f32 %v7025, 0.0
      %v7042 = vmax.f32 %v7026, 0.0
      %v7043 = vmax.f32 %v7027, 0.0
      %v7044 = vmax.f32 %v7028, 0.0
      %v7045 = vmax.f32 %v7029, 0.0
      %v7046 = vmax.f32 %v7030, 0.0
      %v7047 = vmax.f32 %v7031, 0.0
      %v7048 = vmax.f32 %v7032, 0.0
      %v7049 = vmax.f32 %v7033, 0.0
      %v7050 = vmax.f32 %v7034, 0.0
      %v7051 = vmax.f32 %v7035, 0.0
      %v7052 = vmax.f32 %v7036, 0.0
      %v7053 = vmax.f32 %v7037, 0.0
      %7055 = vset.pattern.permute.xlu0 0
      %7056 = vperm.xlu0 %7055, %v6926
      %v7057 = vpop.permute.xlu0 %7056
      %7060 = vset.pattern.permute.xlu0 0
      %7061 = vperm.xlu0 %7060, %v6927
      %v7062 = vpop.permute.xlu0 %7061
      %7065 = vset.pattern.permute.xlu0 0
      %7066 = vperm.xlu0 %7065, %v6928
      %v7067 = vpop.permute.xlu0 %7066
      %7070 = vset.pattern.permute.xlu0 0
      %7071 = vperm.xlu0 %7070, %v6929
      %v7072 = vpop.permute.xlu0 %7071
      %7075 = vset.pattern.permute.xlu0 0
      %7076 = vperm.xlu0 %7075, %v6930
      %v7077 = vpop.permute.xlu0 %7076
      %7080 = vset.pattern.permute.xlu0 0
      %7081 = vperm.xlu0 %7080, %v6931
      %v7082 = vpop.permute.xlu0 %7081
      %7085 = vset.pattern.permute.xlu0 0
      %7086 = vperm.xlu0 %7085, %v6932
      %v7087 = vpop.permute.xlu0 %7086
      %7090 = vset.pattern.permute.xlu0 0
      %7091 = vperm.xlu0 %7090, %v6933
      %v7092 = vpop.permute.xlu0 %7091
      %7095 = vset.pattern.permute.xlu0 0
      %7096 = vperm.xlu0 %7095, %v6934
      %v7097 = vpop.permute.xlu0 %7096
      %7100 = vset.pattern.permute.xlu0 0
      %7101 = vperm.xlu0 %7100, %v6935
      %v7102 = vpop.permute.xlu0 %7101
      %7105 = vset.pattern.permute.xlu0 0
      %7106 = vperm.xlu0 %7105, %v6936
      %v7107 = vpop.permute.xlu0 %7106
      %7110 = vset.pattern.permute.xlu0 0
      %7111 = vperm.xlu0 %7110, %v6937
      %v7112 = vpop.permute.xlu0 %7111
      %7115 = vset.pattern.permute.xlu0 0
      %7116 = vperm.xlu0 %7115, %v6938
      %v7117 = vpop.permute.xlu0 %7116
      %7120 = vset.pattern.permute.xlu0 0
      %7121 = vperm.xlu0 %7120, %v6939
      %v7122 = vpop.permute.xlu0 %7121
      %7125 = vset.pattern.permute.xlu0 0
      %7126 = vperm.xlu0 %7125, %v6940
      %v7127 = vpop.permute.xlu0 %7126
      %7130 = vset.pattern.permute.xlu0 0
      %7131 = vperm.xlu0 %7130, %v6941
      %v7132 = vpop.permute.xlu0 %7131
      %v7134 = vsub.f32 %v6637, %v7057
      %v7135 = vsub.f32 %v6638, %v7062
      %v7136 = vsub.f32 %v6639, %v7067
      %v7137 = vsub.f32 %v6640, %v7072
      %v7138 = vsub.f32 %v6641, %v7077
      %v7139 = vsub.f32 %v6642, %v7082
      %v7140 = vsub.f32 %v6643, %v7087
      %v7141 = vsub.f32 %v6644, %v7092
      %v7142 = vsub.f32 %v6645, %v7097
      %v7143 = vsub.f32 %v6646, %v7102
      %v7144 = vsub.f32 %v6647, %v7107
      %v7145 = vsub.f32 %v6648, %v7112
      %v7146 = vsub.f32 %v6649, %v7117
      %v7147 = vsub.f32 %v6650, %v7122
      %v7148 = vsub.f32 %v6651, %v7127
      %v7149 = vsub.f32 %v6652, %v7132
      %v7150 = vadd.f32 %v7038, 1e-05
      %v7151 = vadd.f32 %v7039, 1e-05
      %v7152 = vadd.f32 %v7040, 1e-05
      %v7153 = vadd.f32 %v7041, 1e-05
      %v7154 = vadd.f32 %v7042, 1e-05
      %v7155 = vadd.f32 %v7043, 1e-05
      %v7156 = vadd.f32 %v7044, 1e-05
      %v7157 = vadd.f32 %v7045, 1e-05
      %v7158 = vadd.f32 %v7046, 1e-05
      %v7159 = vadd.f32 %v7047, 1e-05
      %v7160 = vadd.f32 %v7048, 1e-05
      %v7161 = vadd.f32 %v7049, 1e-05
      %v7162 = vadd.f32 %v7050, 1e-05
      %v7163 = vadd.f32 %v7051, 1e-05
      %v7164 = vadd.f32 %v7052, 1e-05
      %v7165 = vadd.f32 %v7053, 1e-05
      %v7166 = vrsqrt.pop %v7150
      %v7167 = vrsqrt.pop %v7151
      %v7168 = vrsqrt.pop %v7152
      %v7169 = vrsqrt.pop %v7153
      %v7170 = vrsqrt.pop %v7154
      %v7171 = vrsqrt.pop %v7155
      %v7172 = vrsqrt.pop %v7156
      %v7173 = vrsqrt.pop %v7157
      %v7174 = vrsqrt.pop %v7158
      %v7175 = vrsqrt.pop %v7159
      %v7176 = vrsqrt.pop %v7160
      %v7177 = vrsqrt.pop %v7161
      %v7178 = vrsqrt.pop %v7162
      %v7179 = vrsqrt.pop %v7163
      %v7180 = vrsqrt.pop %v7164
      %v7181 = vrsqrt.pop %v7165
      %7183 = vset.pattern.permute.xlu0 1
      %7184 = vperm.xlu0 %7183, %v7166
      %v7185 = vpop.permute.xlu0 %7184
      %7188 = vset.pattern.permute.xlu0 1
      %7189 = vperm.xlu0 %7188, %v7167
      %v7190 = vpop.permute.xlu0 %7189
      %7193 = vset.pattern.permute.xlu0 1
      %7194 = vperm.xlu0 %7193, %v7168
      %v7195 = vpop.permute.xlu0 %7194
      %7198 = vset.pattern.permute.xlu0 1
      %7199 = vperm.xlu0 %7198, %v7169
      %v7200 = vpop.permute.xlu0 %7199
      %7203 = vset.pattern.permute.xlu0 1
      %7204 = vperm.xlu0 %7203, %v7170
      %v7205 = vpop.permute.xlu0 %7204
      %7208 = vset.pattern.permute.xlu0 1
      %7209 = vperm.xlu0 %7208, %v7171
      %v7210 = vpop.permute.xlu0 %7209
      %7213 = vset.pattern.permute.xlu0 1
      %7214 = vperm.xlu0 %7213, %v7172
      %v7215 = vpop.permute.xlu0 %7214
      %7218 = vset.pattern.permute.xlu0 1
      %7219 = vperm.xlu0 %7218, %v7173
      %v7220 = vpop.permute.xlu0 %7219
      %7223 = vset.pattern.permute.xlu0 1
      %7224 = vperm.xlu0 %7223, %v7174
      %v7225 = vpop.permute.xlu0 %7224
      %7228 = vset.pattern.permute.xlu0 1
      %7229 = vperm.xlu0 %7228, %v7175
      %v7230 = vpop.permute.xlu0 %7229
      %7233 = vset.pattern.permute.xlu0 1
      %7234 = vperm.xlu0 %7233, %v7176
      %v7235 = vpop.permute.xlu0 %7234
      %7238 = vset.pattern.permute.xlu0 1
      %7239 = vperm.xlu0 %7238, %v7177
      %v7240 = vpop.permute.xlu0 %7239
      %7243 = vset.pattern.permute.xlu0 1
      %7244 = vperm.xlu0 %7243, %v7178
      %v7245 = vpop.permute.xlu0 %7244
      %7248 = vset.pattern.permute.xlu0 1
      %7249 = vperm.xlu0 %7248, %v7179
      %v7250 = vpop.permute.xlu0 %7249
      %7253 = vset.pattern.permute.xlu0 1
      %7254 = vperm.xlu0 %7253, %v7180
      %v7255 = vpop.permute.xlu0 %7254
      %7258 = vset.pattern.permute.xlu0 1
      %7259 = vperm.xlu0 %7258, %v7181
      %v7260 = vpop.permute.xlu0 %7259
      %v7262 = vmul.f32 %v7134, %v7185
      %v7263 = vmul.f32 %v7135, %v7190
      %v7264 = vmul.f32 %v7136, %v7195
      %v7265 = vmul.f32 %v7137, %v7200
      %v7266 = vmul.f32 %v7138, %v7205
      %v7267 = vmul.f32 %v7139, %v7210
      %v7268 = vmul.f32 %v7140, %v7215
      %v7269 = vmul.f32 %v7141, %v7220
      %v7270 = vmul.f32 %v7142, %v7225
      %v7271 = vmul.f32 %v7143, %v7230
      %v7272 = vmul.f32 %v7144, %v7235
      %v7273 = vmul.f32 %v7145, %v7240
      %v7274 = vmul.f32 %v7146, %v7245
      %v7275 = vmul.f32 %v7147, %v7250
      %v7276 = vmul.f32 %v7148, %v7255
      %v7277 = vmul.f32 %v7149, %v7260
      %s7278 = scalar_lea.vmem %s12, 512
      %v7279 = vld [vmem:[%s7278] sm:$0xff]
      %v7280 = vld [vmem:[%s7278 + $0x10] sm:$0xff]
      %v7281 = vld [vmem:[%s7278 + $0x20] sm:$0xff]
      %v7282 = vld [vmem:[%s7278 + $0x30] sm:$0xff]
      %v7283 = vld [vmem:[%s7278 + $0x40] sm:$0xff]
      %v7284 = vld [vmem:[%s7278 + $0x50] sm:$0xff]
      %v7285 = vld [vmem:[%s7278 + $0x60] sm:$0xff]
      %v7286 = vld [vmem:[%s7278 + $0x70] sm:$0xff]
      %v7287 = vld [vmem:[%s7278 + $0x80] sm:$0xff]
      %v7288 = vld [vmem:[%s7278 + $0x90] sm:$0xff]
      %v7289 = vld [vmem:[%s7278 + $0xa0] sm:$0xff]
      %v7290 = vld [vmem:[%s7278 + $0xb0] sm:$0xff]
      %v7291 = vld [vmem:[%s7278 + $0xc0] sm:$0xff]
      %v7292 = vld [vmem:[%s7278 + $0xd0] sm:$0xff]
      %v7293 = vld [vmem:[%s7278 + $0xe0] sm:$0xff]
      %v7294 = vld [vmem:[%s7278 + $0xf0] sm:$0xff]
      %v7295 = vmul.f32 %v7262, %v7279
      %v7296 = vmul.f32 %v7263, %v7280
      %v7297 = vmul.f32 %v7264, %v7281
      %v7298 = vmul.f32 %v7265, %v7282
      %v7299 = vmul.f32 %v7266, %v7283
      %v7300 = vmul.f32 %v7267, %v7284
      %v7301 = vmul.f32 %v7268, %v7285
      %v7302 = vmul.f32 %v7269, %v7286
      %v7303 = vmul.f32 %v7270, %v7287
      %v7304 = vmul.f32 %v7271, %v7288
      %v7305 = vmul.f32 %v7272, %v7289
      %v7306 = vmul.f32 %v7273, %v7290
      %v7307 = vmul.f32 %v7274, %v7291
      %v7308 = vmul.f32 %v7275, %v7292
      %v7309 = vmul.f32 %v7276, %v7293
      %v7310 = vmul.f32 %v7277, %v7294
      %s7311 = scalar_lea.vmem %s13, 512
      %v7312 = vld [vmem:[%s7311] sm:$0xff]
      %v7313 = vld [vmem:[%s7311 + $0x10] sm:$0xff]
      %v7314 = vld [vmem:[%s7311 + $0x20] sm:$0xff]
      %v7315 = vld [vmem:[%s7311 + $0x30] sm:$0xff]
      %v7316 = vld [vmem:[%s7311 + $0x40] sm:$0xff]
      %v7317 = vld [vmem:[%s7311 + $0x50] sm:$0xff]
      %v7318 = vld [vmem:[%s7311 + $0x60] sm:$0xff]
      %v7319 = vld [vmem:[%s7311 + $0x70] sm:$0xff]
      %v7320 = vld [vmem:[%s7311 + $0x80] sm:$0xff]
      %v7321 = vld [vmem:[%s7311 + $0x90] sm:$0xff]
      %v7322 = vld [vmem:[%s7311 + $0xa0] sm:$0xff]
      %v7323 = vld [vmem:[%s7311 + $0xb0] sm:$0xff]
      %v7324 = vld [vmem:[%s7311 + $0xc0] sm:$0xff]
      %v7325 = vld [vmem:[%s7311 + $0xd0] sm:$0xff]
      %v7326 = vld [vmem:[%s7311 + $0xe0] sm:$0xff]
      %v7327 = vld [vmem:[%s7311 + $0xf0] sm:$0xff]
      %v7328 = vadd.f32 %v7295, %v7312
      %v7329 = vadd.f32 %v7296, %v7313
      %v7330 = vadd.f32 %v7297, %v7314
      %v7331 = vadd.f32 %v7298, %v7315
      %v7332 = vadd.f32 %v7299, %v7316
      %v7333 = vadd.f32 %v7300, %v7317
      %v7334 = vadd.f32 %v7301, %v7318
      %v7335 = vadd.f32 %v7302, %v7319
      %v7336 = vadd.f32 %v7303, %v7320
      %v7337 = vadd.f32 %v7304, %v7321
      %v7338 = vadd.f32 %v7305, %v7322
      %v7339 = vadd.f32 %v7306, %v7323
      %v7340 = vadd.f32 %v7307, %v7324
      %v7341 = vadd.f32 %v7308, %v7325
      %v7342 = vadd.f32 %v7309, %v7326
      %v7343 = vadd.f32 %v7310, %v7327
      %v7344 = vld [vmem:[%s14] sm:$0xff]
      %v7345 = vld [vmem:[%s14 + $0x8] sm:$0xff]
      %v7347 = vsel %vm667, %v7328, 0
      %v7350 = vsel %vm667, %v7329, 0
      %v7353 = vsel %vm667, %v7330, 0
      %v7356 = vsel %vm667, %v7331, 0
      %v7359 = vsel %vm667, %v7332, 0
      %v7362 = vsel %vm667, %v7333, 0
      %v7365 = vsel %vm667, %v7334, 0
      %v7368 = vsel %vm667, %v7335, 0
      %v7371 = vsel %vm667, %v7336, 0
      %v7374 = vsel %vm667, %v7337, 0
      %v7377 = vsel %vm667, %v7338, 0
      %v7380 = vsel %vm667, %v7339, 0
      %v7383 = vsel %vm667, %v7340, 0
      %v7386 = vsel %vm667, %v7341, 0
      %v7389 = vsel %vm667, %v7342, 0
      %v7392 = vsel %vm667, %v7343, 0
      %7394 = vmatprep.subr.mxu0 0.0
      %7395 = vmatpush1.msra.mxu0 %v7344
      %7396 = vmatprep.subr.mxu0 0.0
      %7397 = vmatpush1.msra.mxu0 %v7345
      %7398 = vmatprep.subr.mxu0 0.0
      %7399 = vmatpush1.msra.mxu0 0.0
      %7400 = vmatprep.subr.mxu0 0.0
      %7401 = vmatpush1.msra.mxu0 0.0
      %7402 = vmatprep.subr.mxu0 0.0
      %7403 = vmatpush1.msra.mxu0 0.0
      %7404 = vmatprep.subr.mxu0 0.0
      %7405 = vmatpush1.msra.mxu0 0.0
      %7406 = vmatprep.subr.mxu0 0.0
      %7407 = vmatpush1.msra.mxu0 0.0
      %7408 = vmatprep.subr.mxu0 0.0
      %7409 = vmatpush1.msra.mxu0 0.0
      %7410 = vmatprep.subr.mxu0 0.0
      %7411 = vmatpush1.msra.mxu0 0.0
      %7412 = vmatprep.subr.mxu0 0.0
      %7413 = vmatpush1.msra.mxu0 0.0
      %7414 = vmatprep.subr.mxu0 0.0
      %7415 = vmatpush1.msra.mxu0 0.0
      %7416 = vmatprep.subr.mxu0 0.0
      %7417 = vmatpush1.msra.mxu0 0.0
      %7418 = vmatprep.subr.mxu0 0.0
      %7419 = vmatpush1.msra.mxu0 0.0
      %7420 = vmatprep.subr.mxu0 0.0
      %7421 = vmatpush1.msra.mxu0 0.0
      %7422 = vmatprep.subr.mxu0 0.0
      %7423 = vmatpush1.msra.mxu0 0.0
      %7424 = vmatprep.subr.mxu0 0.0
      %7425 = vmatpush1.msra.mxu0 0.0
      %7426 = vmatprep.subr.mxu0 0.0
      %7427 = vmatpush1.msra.mxu0 0.0
      %7428 = vmatprep.subr.mxu0 0.0
      %7429 = vmatpush1.msra.mxu0 0.0
      %7430 = vmatprep.subr.mxu0 0.0
      %7431 = vmatpush1.msra.mxu0 0.0
      %7432 = vmatprep.subr.mxu0 0.0
      %7433 = vmatpush1.msra.mxu0 0.0
      %7434 = vmatprep.subr.mxu0 0.0
      %7435 = vmatpush1.msra.mxu0 0.0
      %7436 = vmatprep.subr.mxu0 0.0
      %7437 = vmatpush1.msra.mxu0 0.0
      %7438 = vmatprep.subr.mxu0 0.0
      %7439 = vmatpush1.msra.mxu0 0.0
      %7440 = vmatprep.subr.mxu0 0.0
      %7441 = vmatpush1.msra.mxu0 0.0
      %7442 = vmatprep.subr.mxu0 0.0
      %7443 = vmatpush1.msra.mxu0 0.0
      %7444 = vmatprep.subr.mxu0 0.0
      %7445 = vmatpush1.msra.mxu0 0.0
      %7446 = vmatprep.subr.mxu0 0.0
      %7447 = vmatpush1.msra.mxu0 0.0
      %7448 = vmatprep.subr.mxu0 0.0
      %7449 = vmatpush1.msra.mxu0 0.0
      %7450 = vmatprep.subr.mxu0 0.0
      %7451 = vmatpush1.msra.mxu0 0.0
      %7452 = vmatprep.subr.mxu0 0.0
      %7453 = vmatpush1.msra.mxu0 0.0
      %7454 = vmatprep.subr.mxu0 0.0
      %7455 = vmatpush1.msra.mxu0 0.0
      %7456 = vmatprep.subr.mxu0 0.0
      %7457 = vmatpush1.msra.mxu0 0.0
      %7458 = vmatprep.mubr.f32.mxu0 0.0
      %7459 = vmatmul.mubr.f32.gmra.mrb[0].mxu0 %v7347
      %v7460 = vpop.f32.mrb[0].mxu0
      %v7461 = vadd.f32 0.0, %v7460
      %v7462 = vpop.f32.mrb[0].mxu0
      %7463 = vmatprep.mubr.f32.mxu0 0.0
      %7464 = vmatmul.mubr.f32.gmra.mrb[0].mxu0 %v7350
      %v7465 = vpop.f32.mrb[0].mxu0
      %v7466 = vadd.f32 0.0, %v7465
      %v7467 = vpop.f32.mrb[0].mxu0
      %7468 = vmatprep.mubr.f32.mxu0 0.0
      %7469 = vmatmul.mubr.f32.gmra.mrb[0].mxu0 %v7353
      %v7470 = vpop.f32.mrb[0].mxu0
      %v7471 = vadd.f32 0.0, %v7470
      %v7472 = vpop.f32.mrb[0].mxu0
      %7473 = vmatprep.mubr.f32.mxu0 0.0
      %7474 = vmatmul.mubr.f32.gmra.mrb[0].mxu0 %v7356
      %v7475 = vpop.f32.mrb[0].mxu0
      %v7476 = vadd.f32 0.0, %v7475
      %v7477 = vpop.f32.mrb[0].mxu0
      %7478 = vmatprep.mubr.f32.mxu0 0.0
      %7479 = vmatmul.mubr.f32.gmra.mrb[0].mxu0 %v7359
      %v7480 = vpop.f32.mrb[0].mxu0
      %v7481 = vadd.f32 0.0, %v7480
      %v7482 = vpop.f32.mrb[0].mxu0
      %7483 = vmatprep.mubr.f32.mxu0 0.0
      %7484 = vmatmul.mubr.f32.gmra.mrb[0].mxu0 %v7362
      %v7485 = vpop.f32.mrb[0].mxu0
      %v7486 = vadd.f32 0.0, %v7485
      %v7487 = vpop.f32.mrb[0].mxu0
      %7488 = vmatprep.mubr.f32.mxu0 0.0
      %7489 = vmatmul.mubr.f32.gmra.mrb[0].mxu0 %v7365
      %v7490 = vpop.f32.mrb[0].mxu0
      %v7491 = vadd.f32 0.0, %v7490
      %v7492 = vpop.f32.mrb[0].mxu0
      %7493 = vmatprep.mubr.f32.mxu0 0.0
      %7494 = vmatmul.mubr.f32.gmra.mrb[0].mxu0 %v7368
      %v7495 = vpop.f32.mrb[0].mxu0
      %v7496 = vadd.f32 0.0, %v7495
      %v7497 = vpop.f32.mrb[0].mxu0
      %7498 = vmatprep.mubr.f32.mxu0 0.0
      %7499 = vmatmul.mubr.f32.gmra.mrb[0].mxu0 %v7371
      %v7500 = vpop.f32.mrb[0].mxu0
      %v7501 = vadd.f32 0.0, %v7500
      %v7502 = vpop.f32.mrb[0].mxu0
      %7503 = vmatprep.mubr.f32.mxu0 0.0
      %7504 = vmatmul.mubr.f32.gmra.mrb[0].mxu0 %v7374
      %v7505 = vpop.f32.mrb[0].mxu0
      %v7506 = vadd.f32 0.0, %v7505
      %v7507 = vpop.f32.mrb[0].mxu0
      %7508 = vmatprep.mubr.f32.mxu0 0.0
      %7509 = vmatmul.mubr.f32.gmra.mrb[0].mxu0 %v7377
      %v7510 = vpop.f32.mrb[0].mxu0
      %v7511 = vadd.f32 0.0, %v7510
      %v7512 = vpop.f32.mrb[0].mxu0
      %7513 = vmatprep.mubr.f32.mxu0 0.0
      %7514 = vmatmul.mubr.f32.gmra.mrb[0].mxu0 %v7380
      %v7515 = vpop.f32.mrb[0].mxu0
      %v7516 = vadd.f32 0.0, %v7515
      %v7517 = vpop.f32.mrb[0].mxu0
      %7518 = vmatprep.mubr.f32.mxu0 0.0
      %7519 = vmatmul.mubr.f32.gmra.mrb[0].mxu0 %v7383
      %v7520 = vpop.f32.mrb[0].mxu0
      %v7521 = vadd.f32 0.0, %v7520
      %v7522 = vpop.f32.mrb[0].mxu0
      %7523 = vmatprep.mubr.f32.mxu0 0.0
      %7524 = vmatmul.mubr.f32.gmra.mrb[0].mxu0 %v7386
      %v7525 = vpop.f32.mrb[0].mxu0
      %v7526 = vadd.f32 0.0, %v7525
      %v7527 = vpop.f32.mrb[0].mxu0
      %7528 = vmatprep.mubr.f32.mxu0 0.0
      %7529 = vmatmul.mubr.f32.gmra.mrb[0].mxu0 %v7389
      %v7530 = vpop.f32.mrb[0].mxu0
      %v7531 = vadd.f32 0.0, %v7530
      %v7532 = vpop.f32.mrb[0].mxu0
      %7533 = vmatprep.mubr.f32.mxu0 0.0
      %7534 = vmatmul.mubr.f32.gmra.mrb[0].mxu0 %v7392
      %v7535 = vpop.f32.mrb[0].mxu0
      %v7536 = vadd.f32 0.0, %v7535
      %v7537 = vpop.f32.mrb[0].mxu0
      %7538 = vdwg.mxu0
      %v7539 = vadd.f32 %v6224, %v7461
      %v7540 = vadd.f32 %v6225, %v7466
      %v7541 = vadd.f32 %v6226, %v7471
      %v7542 = vadd.f32 %v6227, %v7476
      %v7543 = vadd.f32 %v6228, %v7481
      %v7544 = vadd.f32 %v6229, %v7486
      %v7545 = vadd.f32 %v6230, %v7491
      %v7546 = vadd.f32 %v6231, %v7496
      %v7547 = vadd.f32 %v6232, %v7501
      %v7548 = vadd.f32 %v6233, %v7506
      %v7549 = vadd.f32 %v6234, %v7511
      %v7550 = vadd.f32 %v6235, %v7516
      %v7551 = vadd.f32 %v6236, %v7521
      %v7552 = vadd.f32 %v6237, %v7526
      %v7553 = vadd.f32 %v6238, %v7531
      %v7554 = vadd.f32 %v6239, %v7536
      %v7555 = vld [vmem:[%s15] sm:$0x1]
      %v7557 = vlaneseq
      %v7558 = vshrl.u32 %v7557, 7
      %v7559 = vsub.s32 0, %v7558
      %v7560 = vrot.slane %v7555, %v7559
      %v7562 = vadd.f32 %v7539, %v7560
      %v7563 = vadd.f32 %v7540, %v7560
      %v7564 = vadd.f32 %v7541, %v7560
      %v7565 = vadd.f32 %v7542, %v7560
      %v7566 = vadd.f32 %v7543, %v7560
      %v7567 = vadd.f32 %v7544, %v7560
      %v7568 = vadd.f32 %v7545, %v7560
      %v7569 = vadd.f32 %v7546, %v7560
      %v7570 = vadd.f32 %v7547, %v7560
      %v7571 = vadd.f32 %v7548, %v7560
      %v7572 = vadd.f32 %v7549, %v7560
      %v7573 = vadd.f32 %v7550, %v7560
      %v7574 = vadd.f32 %v7551, %v7560
      %v7575 = vadd.f32 %v7552, %v7560
      %v7576 = vadd.f32 %v7553, %v7560
      %v7577 = vadd.f32 %v7554, %v7560
      %v7578 = vmax.f32 %v7562, 0.0
      %v7579 = vmax.f32 %v7563, 0.0
      %v7580 = vmax.f32 %v7564, 0.0
      %v7581 = vmax.f32 %v7565, 0.0
      %v7582 = vmax.f32 %v7566, 0.0
      %v7583 = vmax.f32 %v7567, 0.0
      %v7584 = vmax.f32 %v7568, 0.0
      %v7585 = vmax.f32 %v7569, 0.0
      %v7586 = vmax.f32 %v7570, 0.0
      %v7587 = vmax.f32 %v7571, 0.0
      %v7588 = vmax.f32 %v7572, 0.0
      %v7589 = vmax.f32 %v7573, 0.0
      %v7590 = vmax.f32 %v7574, 0.0
      %v7591 = vmax.f32 %v7575, 0.0
      %v7592 = vmax.f32 %v7576, 0.0
      %v7593 = vmax.f32 %v7577, 0.0
      %v7594 = vld [vmem:[%s16] sm:$0xff]
      %v7595 = vld [vmem:[%s16 + $0x8] sm:$0xff]
      %v7596 = vld [vmem:[%s16 + $0x10] sm:$0xff]
      %v7597 = vld [vmem:[%s16 + $0x18] sm:$0xff]
      %v7598 = vld [vmem:[%s17] sm:$0x1]
      %v7600 = vlaneseq
      %v7601 = vshrl.u32 %v7600, 7
      %v7602 = vsub.s32 0, %v7601
      %v7603 = vrot.slane %v7598, %v7602
      %vm7605 = vcmask 261120
      %v7607 = vsel %vm7605, %v7578, 0
      %v7610 = vsel %vm7605, %v7579, 0
      %v7613 = vsel %vm7605, %v7580, 0
      %v7616 = vsel %vm7605, %v7581, 0
      %v7619 = vsel %vm7605, %v7582, 0
      %v7622 = vsel %vm7605, %v7583, 0
      %v7625 = vsel %vm7605, %v7584, 0
      %v7628 = vsel %vm7605, %v7585, 0
      %v7631 = vsel %vm7605, %v7586, 0
      %v7634 = vsel %vm7605, %v7587, 0
      %v7637 = vsel %vm7605, %v7588, 0
      %v7640 = vsel %vm7605, %v7589, 0
      %v7643 = vsel %vm7605, %v7590, 0
      %v7646 = vsel %vm7605, %v7591, 0
      %v7649 = vsel %vm7605, %v7592, 0
      %v7652 = vsel %vm7605, %v7593, 0
      %7654 = vmatprep.subr.mxu0 0.0
      %7655 = vmatpush1.msra.mxu0 %v7594
      %7656 = vmatprep.subr.mxu0 0.0
      %7657 = vmatpush1.msra.mxu0 %v7595
      %7658 = vmatprep.subr.mxu0 0.0
      %7659 = vmatpush1.msra.mxu0 %v7596
      %7660 = vmatprep.subr.mxu0 0.0
      %7661 = vmatpush1.msra.mxu0 %v7597
      %7662 = vmatprep.subr.mxu0 0.0
      %7663 = vmatpush1.msra.mxu0 0.0
      %7664 = vmatprep.subr.mxu0 0.0
      %7665 = vmatpush1.msra.mxu0 0.0
      %7666 = vmatprep.subr.mxu0 0.0
      %7667 = vmatpush1.msra.mxu0 0.0
      %7668 = vmatprep.subr.mxu0 0.0
      %7669 = vmatpush1.msra.mxu0 0.0
      %7670 = vmatprep.subr.mxu0 0.0
      %7671 = vmatpush1.msra.mxu0 0.0
      %7672 = vmatprep.subr.mxu0 0.0
      %7673 = vmatpush1.msra.mxu0 0.0
      %7674 = vmatprep.subr.mxu0 0.0
      %7675 = vmatpush1.msra.mxu0 0.0
      %7676 = vmatprep.subr.mxu0 0.0
      %7677 = vmatpush1.msra.mxu0 0.0
      %7678 = vmatprep.subr.mxu0 0.0
      %7679 = vmatpush1.msra.mxu0 0.0
      %7680 = vmatprep.subr.mxu0 0.0
      %7681 = vmatpush1.msra.mxu0 0.0
      %7682 = vmatprep.subr.mxu0 0.0
      %7683 = vmatpush1.msra.mxu0 0.0
      %7684 = vmatprep.subr.mxu0 0.0
      %7685 = vmatpush1.msra.mxu0 0.0
      %7686 = vmatprep.subr.mxu0 0.0
      %7687 = vmatpush1.msra.mxu0 0.0
      %7688 = vmatprep.subr.mxu0 0.0
      %7689 = vmatpush1.msra.mxu0 0.0
      %7690 = vmatprep.subr.mxu0 0.0
      %7691 = vmatpush1.msra.mxu0 0.0
      %7692 = vmatprep.subr.mxu0 0.0
      %7693 = vmatpush1.msra.mxu0 0.0
      %7694 = vmatprep.subr.mxu0 0.0
      %7695 = vmatpush1.msra.mxu0 0.0
      %7696 = vmatprep.subr.mxu0 0.0
      %7697 = vmatpush1.msra.mxu0 0.0
      %7698 = vmatprep.subr.mxu0 0.0
      %7699 = vmatpush1.msra.mxu0 0.0
      %7700 = vmatprep.subr.mxu0 0.0
      %7701 = vmatpush1.msra.mxu0 0.0
      %7702 = vmatprep.subr.mxu0 0.0
      %7703 = vmatpush1.msra.mxu0 0.0
      %7704 = vmatprep.subr.mxu0 0.0
      %7705 = vmatpush1.msra.mxu0 0.0
      %7706 = vmatprep.subr.mxu0 0.0
      %7707 = vmatpush1.msra.mxu0 0.0
      %7708 = vmatprep.subr.mxu0 0.0
      %7709 = vmatpush1.msra.mxu0 0.0
      %7710 = vmatprep.subr.mxu0 0.0
      %7711 = vmatpush1.msra.mxu0 0.0
      %7712 = vmatprep.subr.mxu0 0.0
      %7713 = vmatpush1.msra.mxu0 0.0
      %7714 = vmatprep.subr.mxu0 0.0
      %7715 = vmatpush1.msra.mxu0 0.0
      %7716 = vmatprep.subr.mxu0 0.0
      %7717 = vmatpush1.msra.mxu0 0.0
      %7718 = vmatprep.mubr.f32.mxu0 0.0
      %7719 = vmatmul.mubr.f32.gmra.mrb[0].mxu0 %v7607
      %v7720 = vpop.f32.mrb[0].mxu0
      %v7721 = vadd.f32 %v7603, %v7720
      %v7722 = vpop.f32.mrb[0].mxu0
      %7723 = vmatprep.mubr.f32.mxu0 0.0
      %7724 = vmatmul.mubr.f32.gmra.mrb[0].mxu0 %v7610
      %v7725 = vpop.f32.mrb[0].mxu0
      %v7726 = vadd.f32 %v7603, %v7725
      %v7727 = vpop.f32.mrb[0].mxu0
      %7728 = vmatprep.mubr.f32.mxu0 0.0
      %7729 = vmatmul.mubr.f32.gmra.mrb[0].mxu0 %v7613
      %v7730 = vpop.f32.mrb[0].mxu0
      %v7731 = vadd.f32 %v7603, %v7730
      %v7732 = vpop.f32.mrb[0].mxu0
      %7733 = vmatprep.mubr.f32.mxu0 0.0
      %7734 = vmatmul.mubr.f32.gmra.mrb[0].mxu0 %v7616
      %v7735 = vpop.f32.mrb[0].mxu0
      %v7736 = vadd.f32 %v7603, %v7735
      %v7737 = vpop.f32.mrb[0].mxu0
      %7738 = vmatprep.mubr.f32.mxu0 0.0
      %7739 = vmatmul.mubr.f32.gmra.mrb[0].mxu0 %v7619
      %v7740 = vpop.f32.mrb[0].mxu0
      %v7741 = vadd.f32 %v7603, %v7740
      %v7742 = vpop.f32.mrb[0].mxu0
      %7743 = vmatprep.mubr.f32.mxu0 0.0
      %7744 = vmatmul.mubr.f32.gmra.mrb[0].mxu0 %v7622
      %v7745 = vpop.f32.mrb[0].mxu0
      %v7746 = vadd.f32 %v7603, %v7745
      %v7747 = vpop.f32.mrb[0].mxu0
      %7748 = vmatprep.mubr.f32.mxu0 0.0
      %7749 = vmatmul.mubr.f32.gmra.mrb[0].mxu0 %v7625
      %v7750 = vpop.f32.mrb[0].mxu0
      %v7751 = vadd.f32 %v7603, %v7750
      %v7752 = vpop.f32.mrb[0].mxu0
      %7753 = vmatprep.mubr.f32.mxu0 0.0
      %7754 = vmatmul.mubr.f32.gmra.mrb[0].mxu0 %v7628
      %v7755 = vpop.f32.mrb[0].mxu0
      %v7756 = vadd.f32 %v7603, %v7755
      %v7757 = vpop.f32.mrb[0].mxu0
      %7758 = vmatprep.mubr.f32.mxu0 0.0
      %7759 = vmatmul.mubr.f32.gmra.mrb[0].mxu0 %v7631
      %v7760 = vpop.f32.mrb[0].mxu0
      %v7761 = vadd.f32 %v7603, %v7760
      %v7762 = vpop.f32.mrb[0].mxu0
      %7763 = vmatprep.mubr.f32.mxu0 0.0
      %7764 = vmatmul.mubr.f32.gmra.mrb[0].mxu0 %v7634
      %v7765 = vpop.f32.mrb[0].mxu0
      %v7766 = vadd.f32 %v7603, %v7765
      %v7767 = vpop.f32.mrb[0].mxu0
      %7768 = vmatprep.mubr.f32.mxu0 0.0
      %7769 = vmatmul.mubr.f32.gmra.mrb[0].mxu0 %v7637
      %v7770 = vpop.f32.mrb[0].mxu0
      %v7771 = vadd.f32 %v7603, %v7770
      %v7772 = vpop.f32.mrb[0].mxu0
      %7773 = vmatprep.mubr.f32.mxu0 0.0
      %7774 = vmatmul.mubr.f32.gmra.mrb[0].mxu0 %v7640
      %v7775 = vpop.f32.mrb[0].mxu0
      %v7776 = vadd.f32 %v7603, %v7775
      %v7777 = vpop.f32.mrb[0].mxu0
      %7778 = vmatprep.mubr.f32.mxu0 0.0
      %7779 = vmatmul.mubr.f32.gmra.mrb[0].mxu0 %v7643
      %v7780 = vpop.f32.mrb[0].mxu0
      %v7781 = vadd.f32 %v7603, %v7780
      %v7782 = vpop.f32.mrb[0].mxu0
      %7783 = vmatprep.mubr.f32.mxu0 0.0
      %7784 = vmatmul.mubr.f32.gmra.mrb[0].mxu0 %v7646
      %v7785 = vpop.f32.mrb[0].mxu0
      %v7786 = vadd.f32 %v7603, %v7785
      %v7787 = vpop.f32.mrb[0].mxu0
      %7788 = vmatprep.mubr.f32.mxu0 0.0
      %7789 = vmatmul.mubr.f32.gmra.mrb[0].mxu0 %v7649
      %v7790 = vpop.f32.mrb[0].mxu0
      %v7791 = vadd.f32 %v7603, %v7790
      %v7792 = vpop.f32.mrb[0].mxu0
      %7793 = vmatprep.mubr.f32.mxu0 0.0
      %7794 = vmatmul.mubr.f32.gmra.mrb[0].mxu0 %v7652
      %v7795 = vpop.f32.mrb[0].mxu0
      %v7796 = vadd.f32 %v7603, %v7795
      %v7797 = vpop.f32.mrb[0].mxu0
      %7798 = vdwg.mxu0
      %v7799 = vmax.f32 %v7721, 0.0
      %v7800 = vmax.f32 %v7726, 0.0
      %v7801 = vmax.f32 %v7731, 0.0
      %v7802 = vmax.f32 %v7736, 0.0
      %v7803 = vmax.f32 %v7741, 0.0
      %v7804 = vmax.f32 %v7746, 0.0
      %v7805 = vmax.f32 %v7751, 0.0
      %v7806 = vmax.f32 %v7756, 0.0
      %v7807 = vmax.f32 %v7761, 0.0
      %v7808 = vmax.f32 %v7766, 0.0
      %v7809 = vmax.f32 %v7771, 0.0
      %v7810 = vmax.f32 %v7776, 0.0
      %v7811 = vmax.f32 %v7781, 0.0
      %v7812 = vmax.f32 %v7786, 0.0
      %v7813 = vmax.f32 %v7791, 0.0
      %v7814 = vmax.f32 %v7796, 0.0
      %v7815 = vld [vmem:[%s18] sm:$0xff]
      %v7816 = vld [vmem:[%s18 + $0x8] sm:$0xff]
      %v7817 = vld [vmem:[%s18 + $0x10] sm:$0xff]
      %v7818 = vld [vmem:[%s18 + $0x18] sm:$0xff]
      %v7819 = vld [vmem:[%s18 + $0x20] sm:$0xff]
      %v7820 = vld [vmem:[%s18 + $0x28] sm:$0xff]
      %v7821 = vld [vmem:[%s18 + $0x30] sm:$0xff]
      %v7822 = vld [vmem:[%s18 + $0x38] sm:$0xff]
      %v7823 = vld [vmem:[#allocation2] sm:$0x1]
      %v7825 = vlaneseq
      %v7826 = vshrl.u32 %v7825, 7
      %v7827 = vsub.s32 0, %v7826
      %v7828 = vrot.slane %v7823, %v7827
      %vm7830 = vcmask 523264
      %v7832 = vsel %vm7830, %v7799, 0
      %v7835 = vsel %vm7830, %v7800, 0
      %v7838 = vsel %vm7830, %v7801, 0
      %v7841 = vsel %vm7830, %v7802, 0
      %v7844 = vsel %vm7830, %v7803, 0
      %v7847 = vsel %vm7830, %v7804, 0
      %v7850 = vsel %vm7830, %v7805, 0
      %v7853 = vsel %vm7830, %v7806, 0
      %v7856 = vsel %vm7830, %v7807, 0
      %v7859 = vsel %vm7830, %v7808, 0
      %v7862 = vsel %vm7830, %v7809, 0
      %v7865 = vsel %vm7830, %v7810, 0
      %v7868 = vsel %vm7830, %v7811, 0
      %v7871 = vsel %vm7830, %v7812, 0
      %v7874 = vsel %vm7830, %v7813, 0
      %v7877 = vsel %vm7830, %v7814, 0
      %7879 = vmatprep.subr.mxu0 0.0
      %7880 = vmatpush1.msra.mxu0 %v7815
      %7881 = vmatprep.subr.mxu0 0.0
      %7882 = vmatpush1.msra.mxu0 %v7816
      %7883 = vmatprep.subr.mxu0 0.0
      %7884 = vmatpush1.msra.mxu0 %v7817
      %7885 = vmatprep.subr.mxu0 0.0
      %7886 = vmatpush1.msra.mxu0 %v7818
      %7887 = vmatprep.subr.mxu0 0.0
      %7888 = vmatpush1.msra.mxu0 %v7819
      %7889 = vmatprep.subr.mxu0 0.0
      %7890 = vmatpush1.msra.mxu0 %v7820
      %7891 = vmatprep.subr.mxu0 0.0
      %7892 = vmatpush1.msra.mxu0 %v7821
      %7893 = vmatprep.subr.mxu0 0.0
      %7894 = vmatpush1.msra.mxu0 %v7822
      %7895 = vmatprep.subr.mxu0 0.0
      %7896 = vmatpush1.msra.mxu0 0.0
      %7897 = vmatprep.subr.mxu0 0.0
      %7898 = vmatpush1.msra.mxu0 0.0
      %7899 = vmatprep.subr.mxu0 0.0
      %7900 = vmatpush1.msra.mxu0 0.0
      %7901 = vmatprep.subr.mxu0 0.0
      %7902 = vmatpush1.msra.mxu0 0.0
      %7903 = vmatprep.subr.mxu0 0.0
      %7904 = vmatpush1.msra.mxu0 0.0
      %7905 = vmatprep.subr.mxu0 0.0
      %7906 = vmatpush1.msra.mxu0 0.0
      %7907 = vmatprep.subr.mxu0 0.0
      %7908 = vmatpush1.msra.mxu0 0.0
      %7909 = vmatprep.subr.mxu0 0.0
      %7910 = vmatpush1.msra.mxu0 0.0
      %7911 = vmatprep.subr.mxu0 0.0
      %7912 = vmatpush1.msra.mxu0 0.0
      %7913 = vmatprep.subr.mxu0 0.0
      %7914 = vmatpush1.msra.mxu0 0.0
      %7915 = vmatprep.subr.mxu0 0.0
      %7916 = vmatpush1.msra.mxu0 0.0
      %7917 = vmatprep.subr.mxu0 0.0
      %7918 = vmatpush1.msra.mxu0 0.0
      %7919 = vmatprep.subr.mxu0 0.0
      %7920 = vmatpush1.msra.mxu0 0.0
      %7921 = vmatprep.subr.mxu0 0.0
      %7922 = vmatpush1.msra.mxu0 0.0
      %7923 = vmatprep.subr.mxu0 0.0
      %7924 = vmatpush1.msra.mxu0 0.0
      %7925 = vmatprep.subr.mxu0 0.0
      %7926 = vmatpush1.msra.mxu0 0.0
      %7927 = vmatprep.subr.mxu0 0.0
      %7928 = vmatpush1.msra.mxu0 0.0
      %7929 = vmatprep.subr.mxu0 0.0
      %7930 = vmatpush1.msra.mxu0 0.0
      %7931 = vmatprep.subr.mxu0 0.0
      %7932 = vmatpush1.msra.mxu0 0.0
      %7933 = vmatprep.subr.mxu0 0.0
      %7934 = vmatpush1.msra.mxu0 0.0
      %7935 = vmatprep.subr.mxu0 0.0
      %7936 = vmatpush1.msra.mxu0 0.0
      %7937 = vmatprep.subr.mxu0 0.0
      %7938 = vmatpush1.msra.mxu0 0.0
      %7939 = vmatprep.subr.mxu0 0.0
      %7940 = vmatpush1.msra.mxu0 0.0
      %7941 = vmatprep.subr.mxu0 0.0
      %7942 = vmatpush1.msra.mxu0 0.0
      %7943 = vmatprep.mubr.f32.mxu0 0.0
      %7944 = vmatmul.mubr.f32.gmra.mrb[0].mxu0 %v7832
      %v7945 = vpop.f32.mrb[0].mxu0
      %v7946 = vadd.f32 %v7828, %v7945
      %v7947 = vpop.f32.mrb[0].mxu0
      %7948 = vmatprep.mubr.f32.mxu0 0.0
      %7949 = vmatmul.mubr.f32.gmra.mrb[0].mxu0 %v7835
      %v7950 = vpop.f32.mrb[0].mxu0
      %v7951 = vadd.f32 %v7828, %v7950
      %v7952 = vpop.f32.mrb[0].mxu0
      %7953 = vmatprep.mubr.f32.mxu0 0.0
      %7954 = vmatmul.mubr.f32.gmra.mrb[0].mxu0 %v7838
      %v7955 = vpop.f32.mrb[0].mxu0
      %v7956 = vadd.f32 %v7828, %v7955
      %v7957 = vpop.f32.mrb[0].mxu0
      %7958 = vmatprep.mubr.f32.mxu0 0.0
      %7959 = vmatmul.mubr.f32.gmra.mrb[0].mxu0 %v7841
      %v7960 = vpop.f32.mrb[0].mxu0
      %v7961 = vadd.f32 %v7828, %v7960
      %v7962 = vpop.f32.mrb[0].mxu0
      %7963 = vmatprep.mubr.f32.mxu0 0.0
      %7964 = vmatmul.mubr.f32.gmra.mrb[0].mxu0 %v7844
      %v7965 = vpop.f32.mrb[0].mxu0
      %v7966 = vadd.f32 %v7828, %v7965
      %v7967 = vpop.f32.mrb[0].mxu0
      %7968 = vmatprep.mubr.f32.mxu0 0.0
      %7969 = vmatmul.mubr.f32.gmra.mrb[0].mxu0 %v7847
      %v7970 = vpop.f32.mrb[0].mxu0
      %v7971 = vadd.f32 %v7828, %v7970
      %v7972 = vpop.f32.mrb[0].mxu0
      %7973 = vmatprep.mubr.f32.mxu0 0.0
      %7974 = vmatmul.mubr.f32.gmra.mrb[0].mxu0 %v7850
      %v7975 = vpop.f32.mrb[0].mxu0
      %v7976 = vadd.f32 %v7828, %v7975
      %v7977 = vpop.f32.mrb[0].mxu0
      %7978 = vmatprep.mubr.f32.mxu0 0.0
      %7979 = vmatmul.mubr.f32.gmra.mrb[0].mxu0 %v7853
      %v7980 = vpop.f32.mrb[0].mxu0
      %v7981 = vadd.f32 %v7828, %v7980
      %v7982 = vpop.f32.mrb[0].mxu0
      %7983 = vmatprep.mubr.f32.mxu0 0.0
      %7984 = vmatmul.mubr.f32.gmra.mrb[0].mxu0 %v7856
      %v7985 = vpop.f32.mrb[0].mxu0
      %v7986 = vadd.f32 %v7828, %v7985
      %v7987 = vpop.f32.mrb[0].mxu0
      %7988 = vmatprep.mubr.f32.mxu0 0.0
      %7989 = vmatmul.mubr.f32.gmra.mrb[0].mxu0 %v7859
      %v7990 = vpop.f32.mrb[0].mxu0
      %v7991 = vadd.f32 %v7828, %v7990
      %v7992 = vpop.f32.mrb[0].mxu0
      %7993 = vmatprep.mubr.f32.mxu0 0.0
      %7994 = vmatmul.mubr.f32.gmra.mrb[0].mxu0 %v7862
      %v7995 = vpop.f32.mrb[0].mxu0
      %v7996 = vadd.f32 %v7828, %v7995
      %v7997 = vpop.f32.mrb[0].mxu0
      %7998 = vmatprep.mubr.f32.mxu0 0.0
      %7999 = vmatmul.mubr.f32.gmra.mrb[0].mxu0 %v7865
      %v8000 = vpop.f32.mrb[0].mxu0
      %v8001 = vadd.f32 %v7828, %v8000
      %v8002 = vpop.f32.mrb[0].mxu0
      %8003 = vmatprep.mubr.f32.mxu0 0.0
      %8004 = vmatmul.mubr.f32.gmra.mrb[0].mxu0 %v7868
      %v8005 = vpop.f32.mrb[0].mxu0
      %v8006 = vadd.f32 %v7828, %v8005
      %v8007 = vpop.f32.mrb[0].mxu0
      %8008 = vmatprep.mubr.f32.mxu0 0.0
      %8009 = vmatmul.mubr.f32.gmra.mrb[0].mxu0 %v7871
      %v8010 = vpop.f32.mrb[0].mxu0
      %v8011 = vadd.f32 %v7828, %v8010
      %v8012 = vpop.f32.mrb[0].mxu0
      %8013 = vmatprep.mubr.f32.mxu0 0.0
      %8014 = vmatmul.mubr.f32.gmra.mrb[0].mxu0 %v7874
      %v8015 = vpop.f32.mrb[0].mxu0
      %v8016 = vadd.f32 %v7828, %v8015
      %v8017 = vpop.f32.mrb[0].mxu0
      %8018 = vmatprep.mubr.f32.mxu0 0.0
      %8019 = vmatmul.mubr.f32.gmra.mrb[0].mxu0 %v7877
      %v8020 = vpop.f32.mrb[0].mxu0
      %v8021 = vadd.f32 %v7828, %v8020
      %v8022 = vpop.f32.mrb[0].mxu0
      %8023 = vdwg.mxu0
      %8024 = vst.msk [vmem:[%s633] sm:$0xff] %vm2809, %v7946
      %8025 = vst.msk [vmem:[%s633 + $0x8] sm:$0xff] %vm2809, %v7951
      %8026 = vst.msk [vmem:[%s633 + $0x10] sm:$0xff] %vm2809, %v7956
      %8027 = vst.msk [vmem:[%s633 + $0x18] sm:$0xff] %vm2809, %v7961
      %8028 = vst.msk [vmem:[%s633 + $0x20] sm:$0xff] %vm2809, %v7966
      %8029 = vst.msk [vmem:[%s633 + $0x28] sm:$0xff] %vm2809, %v7971
      %8030 = vst.msk [vmem:[%s633 + $0x30] sm:$0xff] %vm2809, %v7976
      %8031 = vst.msk [vmem:[%s633 + $0x38] sm:$0xff] %vm2809, %v7981
      %8032 = vst.msk [vmem:[%s633 + $0x40] sm:$0xff] %vm2809, %v7986
      %8033 = vst.msk [vmem:[%s633 + $0x48] sm:$0xff] %vm2809, %v7991
      %8034 = vst.msk [vmem:[%s633 + $0x50] sm:$0xff] %vm2809, %v7996
      %8035 = vst.msk [vmem:[%s633 + $0x58] sm:$0xff] %vm2809, %v8001
      %8036 = vst.msk [vmem:[%s633 + $0x60] sm:$0xff] %vm2809, %v8006
      %8037 = vst.msk [vmem:[%s633 + $0x68] sm:$0xff] %vm2809, %v8011
      %8038 = vst.msk [vmem:[%s633 + $0x70] sm:$0xff] %vm2809, %v8016
      %8039 = vst.msk [vmem:[%s633 + $0x78] sm:$0xff] %vm2809, %v8021
      %s8040 = smul.u32 16, %s33
      %p8041 = scmp.lt.s32.totalorder %s8040, 31
      %s8042 = scalar_select %p8041, %s8040, 31
      %s8043 = smul.addr %s8042, 8
      %s8044 = scalar_lea.vmem %s20, %s8043
      // Predicated region
      $region101: #{tpu_custom_call.1} parent=99 // pred_check
        %p8045 = pneg %p476
      $region102: #{tpu_custom_call.1} parent=99 // pred_check_branch
        %8047 = sbr.rel (%p8045) target = $region104
      $region103: #{tpu_custom_call.1} parent=99 // pred_region
        %s8048 = smul.u32 16, %s33
      $region104: #{tpu_custom_call.1} parent=99 // pred_fallthru
        _
    $region100: #{tpu_custom_call.1} parent=5 // pred_fallthru
      _
    %p8049 = scmp.le.s32.totalorder 2, %s28
    // Predicated region
    $region105: #{tpu_custom_call.1} parent=5 // pred_check
      %p8050 = pneg %p8049
    $region106: #{tpu_custom_call.1} parent=5 // pred_check_branch
      %8052 = sbr.rel (%p8050) target = $region108
    $region107: #{tpu_custom_call.1} parent=5 // pred_region
      %s8053 = ssub.s32 %s28, 2
      // Predicated region
      $region109: #{tpu_custom_call.1} parent=107 // pred_check
        %p8054 = pneg %p482
      $region110: #{tpu_custom_call.1} parent=107 // pred_check_branch
        %8056 = sbr.rel (%p8054) target = $region112
      $region111: #{tpu_custom_call.1} parent=107 // pred_region
        %s8057 = smul.u32 16, %s34
        %p8058 = scmp.lt.s32.totalorder %s8057, 31
        %s8059 = scalar_select %p8058, %s8057, 31
        %s8060 = smul.addr %s8059, 8
        %s8061 = scalar_lea.vmem %s20, %s8060
      $region112: #{tpu_custom_call.1} parent=107 // pred_fallthru
        _
    $region108: #{tpu_custom_call.1} parent=5 // pred_fallthru
      _
  $region6: #{tpu_custom_call.1} parent=0 // loop_footer
    %s32 = sadd.s32 1, %s28
  $region7: #{tpu_custom_call.1} parent=0 // loop_footer_branch
    %27 = sbr.rel target = $region3
  $region8: #{tpu_custom_call.1} parent=0 // loop_exit
    _

</llo_original>
